<compile_context>
chip_gen: v7x
topology: tpu7x:2x2x1
jax: 0.10.0
libtpu: 0.0.40
codegen_flags: <defaults>
</compile_context>

<pallas_src>
import functools

import jax
import jax.numpy as jnp
from jax.experimental import pallas as pl
from jax.experimental.pallas import tpu as pltpu

BN_EPS = 1e-5
TILE_M = 1024                   # M-tile of the im2col matmul (rows)
TILE_K_MAX = 2048               # max K-tile (multiple of 128)
VMEM_LIMIT = 48 * 1024 * 1024   # explicit scoped-VMEM budget (<= v7x 64 MiB physical)


def _cdiv(a, b):
    return -(-a // b)


def _round_up(x, m):
    return _cdiv(x, m) * m


def _choose_k_tiling(K, tile_k_max=TILE_K_MAX):
    """Return (tk, nk, K_pad).  Prefer no padding: a single full-K tile, otherwise a
    128-multiple tile that divides the 128-rounded K exactly (128 always does)."""
    if K <= tile_k_max:
        return K, 1, K                       # single tile == full dim: no pad needed
    K128 = _round_up(K, 128)
    tk = tile_k_max - tile_k_max % 128
    while K128 % tk:
        tk -= 128
    return tk, K128 // tk, K128


def _cparams(*sem):
    return pltpu.CompilerParams(dimension_semantics=sem,
                                vmem_limit_bytes=VMEM_LIMIT)


# ---------------------------------------------------------------------------
# Pallas kernels
# ---------------------------------------------------------------------------
def _fused_conv_bn_kernel(*refs, m_real, relu, has_residual, masked_rows):
    """Single-M-tile path (grid=(Cout-tiles, K-tiles)): K-tiled matmul into an f32
    scratch accumulator, fused train-mode BN / residual / ReLU epilogue, bf16 store."""
    if has_residual:
        p_ref, w_ref, g_ref, b_ref, r_ref, o_ref, acc_ref = refs
    else:
        p_ref, w_ref, g_ref, b_ref, o_ref, acc_ref = refs
        r_ref = None
    k = pl.program_id(1)

    @pl.when(k == 0)
    def _():
        acc_ref[...] = jnp.zeros_like(acc_ref)

    acc_ref[...] += jnp.dot(p_ref[...], w_ref[...],
                            preferred_element_type=jnp.float32)

    @pl.when(k == pl.num_programs(1) - 1)
    def _():
        acc = acc_ref[...]
        inv_m = jnp.float32(1.0 / m_real)
        mean = jnp.sum(acc, axis=0, keepdims=True) * inv_m
        # centred (cancellation-safe) variance; mask zero-padded rows if any.
        centered = acc - mean
        if masked_rows:
            rows = jax.lax.broadcasted_iota(jnp.int32, acc.shape, 0)
            centered = jnp.where(rows < m_real, centered, 0.0)
        var = jnp.sum(centered * centered, axis=0, keepdims=True) * inv_m
        # per-channel scale/shift computed once -> per-element epilogue is one FMA
        scale = g_ref[...] * jax.lax.rsqrt(var + BN_EPS)
        shift = b_ref[...] - mean * scale
        y = acc * scale + shift
        if has_residual:
            y = y + r_ref[...].astype(jnp.float32)
        if relu:
            y = jnp.maximum(y, 0.0)
        o_ref[...] = y.astype(o_ref.dtype)


def _matmul_stats_kernel(p_ref, w_ref, y_ref, sum_ref, ssq_ref, acc_ref):
    """Large-M path (pass A): tiled matmul (bf16 store) + per-M-tile per-channel
    sum / sumsq (f32).  The BN affine is applied in plain jnp by the caller."""
    k = pl.program_id(1)

    @pl.when(k == 0)
    def _():
        acc_ref[...] = jnp.zeros_like(acc_ref)

    acc_ref[...] += jnp.dot(p_ref[...], w_ref[...],
                            preferred_element_type=jnp.float32)

    @pl.when(k == pl.num_programs(1) - 1)
    def _():
        acc = acc_ref[...]
        y_ref[...] = acc.astype(y_ref.dtype)
        sum_ref[0] = jnp.sum(acc, axis=0, keepdims=True)
        ssq_ref[0] = jnp.sum(acc * acc, axis=0, keepdims=True)


def _maxpool_kernel(p00_ref, p01_ref, p10_ref, p11_ref, o_ref):
    """3x3/s2 max pool: every window is a contiguous slice of one parity phase."""
    oh, ow = o_ref.shape[1], o_ref.shape[2]
    phases = {(0, 0): p00_ref, (0, 1): p01_ref, (1, 0): p10_ref, (1, 1): p11_ref}
    out = None
    for di in range(3):
        for dj in range(3):
            ref = phases[(di % 2, dj % 2)]
            win = ref[0, di // 2:di // 2 + oh, dj // 2:dj // 2 + ow, :]
            out = win if out is None else jnp.maximum(out, win)
    o_ref[0] = out


# ---------------------------------------------------------------------------
# Pallas wrappers
# ---------------------------------------------------------------------------
def conv_bn_matmul(patches, w2, gamma, beta, residual=None, relu=True,
                   tile_m=TILE_M):
    """(M,K)@(K,Cout) + train-mode BN over the full M (+residual, +ReLU).
    Returns (M, Cout) bf16."""
    M, K = patches.shape
    Cout = w2.shape[1]
    has_res = residual is not None

    # ---- M tiling (pad to sublane multiple; handles M < 8) -------------------
    if M <= tile_m:
        tm, nm = max(_round_up(M, 8), 8), 1
    else:
        tm, nm = tile_m, _cdiv(M, tile_m)
    M_pad = tm * nm

    # ---- K tiling (no padding for any ResNet-18 K) ---------------------------
    tk, nk, K_pad = _choose_k_tiling(K)

    p = patches.astype(jnp.bfloat16)
    w = w2.astype(jnp.bfloat16)
    if (M_pad, K_pad) != (M, K):
        p = jnp.pad(p, ((0, M_pad - M), (0, K_pad - K)))
    if K_pad != K:
        w = jnp.pad(w, ((0, K_pad - K), (0, 0)))
    g = gamma.reshape(1, Cout).astype(jnp.float32)
    b = beta.reshape(1, Cout).astype(jnp.float32)

    if nm == 1:
        # -------- fully fused single call ----------------------------------------
        # Split Cout>=512 into 256-wide tiles: a *parallel* grid axis for v7x's two
        # TensorCores while keeping 256-wide MXU N-fill; BN is per-channel -> exact.
        tc = 256 if (Cout >= 512 and Cout % 256 == 0) else Cout
        nc = Cout // tc
        r = None
        if has_res:
            r = residual.astype(jnp.bfloat16)
            if M_pad != M:
                r = jnp.pad(r, ((0, M_pad - M), (0, 0)))
        kern = functools.partial(_fused_conv_bn_kernel, m_real=M, relu=relu,
                                 has_residual=has_res, masked_rows=(tm > M))
        in_specs = [
            pl.BlockSpec((tm, tk), lambda c, k: (0, k)),
            pl.BlockSpec((tk, tc), lambda c, k: (k, c)),
            pl.BlockSpec((1, tc), lambda c, k: (0, c)),
            pl.BlockSpec((1, tc), lambda c, k: (0, c)),
        ]
        args = [p, w, g, b]
        if has_res:
            in_specs.append(pl.BlockSpec((tm, tc), lambda c, k: (0, c)))
            args.append(r)
        out = pl.pallas_call(
            kern,
            grid=(nc, nk),
            in_specs=in_specs,
            out_specs=pl.BlockSpec((tm, tc), lambda c, k: (0, c)),
            out_shape=jax.ShapeDtypeStruct((M_pad, Cout), jnp.bfloat16),
            scratch_shapes=[pltpu.VMEM((tm, tc), jnp.float32)],
            compiler_params=_cparams("parallel", "arbitrary"),
        )(*args)
        return out[:M]

    # -------- two-pass path: (A) tiled matmul + per-tile stats (one pallas_call) ----
    y, tsum, tssq = pl.pallas_call(
        _matmul_stats_kernel,
        grid=(nm, nk),
        in_specs=[
            pl.BlockSpec((tm, tk), lambda i, k: (i, k)),
            pl.BlockSpec((tk, Cout), lambda i, k: (k, 0)),
        ],
        out_specs=[
            pl.BlockSpec((tm, Cout), lambda i, k: (i, 0)),
            pl.BlockSpec((1, 1, Cout), lambda i, k: (i, 0, 0)),
            pl.BlockSpec((1, 1, Cout), lambda i, k: (i, 0, 0)),
        ],
        out_shape=[
            jax.ShapeDtypeStruct((M_pad, Cout), jnp.bfloat16),
            jax.ShapeDtypeStruct((nm, 1, Cout), jnp.float32),
            jax.ShapeDtypeStruct((nm, 1, Cout), jnp.float32),
        ],
        scratch_shapes=[pltpu.VMEM((tm, Cout), jnp.float32)],
        compiler_params=_cparams("parallel", "arbitrary"),
    )(p, w)

    # -------- (B) tiny jnp epilogue: fused by XLA with the next layer's im2col -------
    # (no separate pallas_call, no extra HBM round trip).
    inv_m = 1.0 / M
    mean = tsum.reshape(nm, Cout).sum(axis=0) * inv_m
    # TODO(synk): E[x^2]-E[x]^2 can cancel for extreme mean/std ratios; switch to a
    #             Welford-style per-tile (mean, M2) combine if that ever matters.
    var = jnp.maximum(tssq.reshape(nm, Cout).sum(axis=0) * inv_m - mean * mean, 0.0)
    scale = gamma.astype(jnp.float32) * jax.lax.rsqrt(var + BN_EPS)
    shift = beta.astype(jnp.float32) - mean * scale
    out = y[:M].astype(jnp.float32) * scale + shift
    if has_res:
        out = out + residual.astype(jnp.float32)
    if relu:
        out = jnp.maximum(out, 0.0)
    return out.astype(jnp.bfloat16)


def maxpool3x3s2(x):
    """MaxPool 3x3 / stride 2 / pad 1 (NHWC, bf16).  Input is post-ReLU so padding
    with 0 never changes the max; parity phases keep HBM traffic ~1x the input."""
    N, H, W, C = x.shape
    # TODO(synk): parity-phase trick assumes even spatial dims (true for ResNet-18).
    assert H % 2 == 0 and W % 2 == 0
    OH = (H + 2 - 3) // 2 + 1
    OW = (W + 2 - 3) // 2 + 1
    xp = jnp.pad(x.astype(jnp.bfloat16), ((0, 0), (1, 1), (1, 1), (0, 0)))
    phases = [xp[:, a::2, b::2, :] for a in (0, 1) for b in (0, 1)]
    PH, PW = OH + 1, OW + 1
    return pl.pallas_call(
        _maxpool_kernel,
        grid=(N,),
        in_specs=[pl.BlockSpec((1, PH, PW, C), lambda n: (n, 0, 0, 0))] * 4,
        out_specs=pl.BlockSpec((1, OH, OW, C), lambda n: (n, 0, 0, 0)),
        out_shape=jax.ShapeDtypeStruct((N, OH, OW, C), jnp.bfloat16),
        compiler_params=_cparams("parallel"),
    )(*phases)


# ---------------------------------------------------------------------------
# Plain-JAX glue: im2col, conv+bn, ResNet-18 structure
# ---------------------------------------------------------------------------
def im2col(x, kh, kw, stride, pad):
    """x: (N,H,W,C) -> bf16 patches (N*OH*OW, kh*kw*C).  Pure jnp glue: under jit the
    stack/reshape (and any pad) fuse into the pallas_call's input pipeline."""
    x = x.astype(jnp.bfloat16)
    N, H, W, C = x.shape
    OH = (H + 2 * pad - kh) // stride + 1
    OW = (W + 2 * pad - kw) // stride + 1
    if pad:
        x = jnp.pad(x, ((0, 0), (pad, pad), (pad, pad), (0, 0)))
    cols = [x[:, i:i + stride * (OH - 1) + 1:stride,
              j:j + stride * (OW - 1) + 1:stride, :]
            for i in range(kh) for j in range(kw)]
    patches = jnp.stack(cols, axis=3).reshape(N * OH * OW, kh * kw * C)
    return patches, OH, OW


def conv2d_bn(x, w, gamma, beta, stride, pad, relu=True, residual=None):
    """x: (N,H,W,Cin); w: (kh,kw,Cin,Cout). Returns (N,OH,OW,Cout) bf16."""
    kh, kw, cin, cout = w.shape
    N = x.shape[0]
    patches, OH, OW = im2col(x, kh, kw, stride, pad)
    res2 = residual.reshape(N * OH * OW, cout) if residual is not None else None
    y = conv_bn_matmul(patches, w.reshape(kh * kw * cin, cout), gamma, beta,
                       residual=res2, relu=relu)
    return y.reshape(N, OH, OW, cout)


def basic_block(x, p, stride):
    cout = p['conv1_w'].shape[-1]
    if 'down_w' in p:
        cin = x.shape[-1]
        # Fuse conv1 (3x3/s2) and the 1x1/s2 downsample into ONE matmul: embed the 1x1
        # weights as the centre tap of a zero 3x3 and concatenate along Cout.  Both
        # share the same im2col patches; BN is per-channel so results are identical,
        # MXU N-fill doubles and one pallas_call + one im2col disappear per block.
        w_ds = jnp.zeros((3, 3, cin, cout), p['down_w'].dtype
                         ).at[1, 1].set(p['down_w'][0, 0])
        w_cmb = jnp.concatenate([p['conv1_w'], w_ds], axis=3)
        g_cmb = jnp.concatenate([p['bn1_g'], p['down_g']])
        b_cmb = jnp.concatenate([p['bn1_b'], p['down_b']])
        y = conv2d_bn(x, w_cmb, g_cmb, b_cmb, stride=stride, pad=1, relu=False)
        out = jnp.maximum(y[..., :cout], 0)      # conv1 branch ReLU (XLA-fused)
        identity = y[..., cout:]                 # downsample branch (no ReLU)
    else:
        out = conv2d_bn(x, p['conv1_w'], p['bn1_g'], p['bn1_b'],
                        stride=stride, pad=1, relu=True)
        identity = x
    return conv2d_bn(out, p['conv2_w'], p['bn2_g'], p['bn2_b'],
                     stride=1, pad=1, relu=True, residual=identity)


def resnet18_forward(params, x_nchw):
    # NCHW (PyTorch) -> NHWC (channels on the lane axis); bf16 activations throughout.
    x = jnp.transpose(x_nchw, (0, 2, 3, 1)).astype(jnp.bfloat16)
    x = conv2d_bn(x, params['conv1_w'], params['bn1_g'], params['bn1_b'],
                  stride=2, pad=3, relu=True)
    x = maxpool3x3s2(x)
    for si, blocks in enumerate(params['layers']):
        for bi, blk in enumerate(blocks):
            stride = 2 if (si > 0 and bi == 0) else 1
            x = basic_block(x, blk, stride)
    # adaptive avg pool (1,1) + flatten; the final map is tiny, so plain jnp
    # (a dedicated pallas_call here would be a pure latency loss).
    return x.astype(jnp.float32).mean(axis=(1, 2))   # fc == Identity, feature_dim=512


_encode = jax.jit(resnet18_forward)                  # single XLA program (latency)


def regular_encoder_forward(params, inputs):
    """Mirrors RegularEncoder.forward: encode every 'image' key, update the dict."""
    output = {}
    for key, value in inputs.items():
        if 'image' in key:
            output['encoder_' + key] = _encode(params, value)
    result = dict(inputs)
    result.update(output)
    return result


# ---------------------------------------------------------------------------
# Deterministic parameter initialization (resnet18, zero_init_residual=True)
# ---------------------------------------------------------------------------
def init_resnet18(key):
    def conv_w(k, kh, kw, cin, cout):
        fan_in = kh * kw * cin
        return (jax.random.normal(k, (kh, kw, cin, cout), jnp.float32)
                * jnp.sqrt(2.0 / fan_in))

    keys = iter(jax.random.split(key, 64))
    params = {
        'conv1_w': conv_w(next(keys), 7, 7, 3, 64),
        'bn1_g': jnp.ones(64, jnp.float32),
        'bn1_b': jnp.zeros(64, jnp.float32),
    }
    stage_channels = [64, 128, 256, 512]
    in_ch = 64
    layers = []
    for si, cout in enumerate(stage_channels):
        blocks = []
        for bi in range(2):
            stride = 2 if (si > 0 and bi == 0) else 1
            blk = {
                'conv1_w': conv_w(next(keys), 3, 3, in_ch, cout),
                'bn1_g': jnp.ones(cout, jnp.float32),
                'bn1_b': jnp.zeros(cout, jnp.float32),
                'conv2_w': conv_w(next(keys), 3, 3, cout, cout),
                'bn2_g': jnp.zeros(cout, jnp.float32),   # zero_init_residual=True
                'bn2_b': jnp.zeros(cout, jnp.float32),
            }
            if stride != 1 or in_ch != cout:
                blk['down_w'] = conv_w(next(keys), 1, 1, in_ch, cout)
                blk['down_g'] = jnp.ones(cout, jnp.float32)
                blk['down_b'] = jnp.zeros(cout, jnp.float32)
            in_ch = cout
            blocks.append(blk)
        layers.append(blocks)
    params['layers'] = layers
    return params


# ---------------------------------------------------------------------------
if __name__ == "__main__":
    key = jax.random.PRNGKey(0)
    kp, kx, kc = jax.random.split(key, 3)

    # --- sanity: fused (single-M-tile, Cout-split, K-split) and tiled two-pass BN
    #     paths both match a plain-JAX reference (bf16 matmul, f32 batch-norm) ---
    M, K, C = 512, 2500, 512
    kk = jax.random.split(kc, 5)
    pm = jax.random.normal(kk[0], (M, K), jnp.float32)
    wm = jax.random.normal(kk[1], (K, C), jnp.float32) * 0.05
    gm = jax.random.normal(kk[2], (C,), jnp.float32)
    bm = jax.random.normal(kk[3], (C,), jnp.float32)
    rm = jax.random.normal(kk[4], (M, C), jnp.float32)

    def bn_ref(p_, w_, g_, b_, r_):
        y = jnp.dot(p_.astype(jnp.bfloat16).astype(jnp.float32),
                    w_.astype(jnp.bfloat16).astype(jnp.float32))
        mu = jnp.mean(y, axis=0, keepdims=True)
        var = jnp.mean((y - mu) ** 2, axis=0, keepdims=True)
        return jnp.maximum((y - mu) * jax.lax.rsqrt(var + BN_EPS) * g_ + b_ + r_, 0.0)

    ref = bn_ref(pm, wm, gm, bm, rm)
    fused = conv_bn_matmul(pm, wm, gm, bm, residual=rm, relu=True,
                           tile_m=512).astype(jnp.float32)
    tiled = conv_bn_matmul(pm, wm, gm, bm, residual=rm, relu=True,
                           tile_m=128).astype(jnp.float32)
    jax.block_until_ready((fused, tiled))
    assert bool(jnp.allclose(fused, ref, atol=3e-2, rtol=5e-2)), \
        float(jnp.max(jnp.abs(fused - ref)))
    assert bool(jnp.allclose(tiled, ref, atol=3e-2, rtol=5e-2)), \
        float(jnp.max(jnp.abs(tiled - ref)))

    # --- full encoder forward (PyTorch-convention NCHW input: batch=2, 3x32x32) ---
    params = init_resnet18(kp)
    x = jax.random.normal(kx, (2, 3, 32, 32), jnp.float32)
    inputs = {"image": x}

    out = regular_encoder_forward(params, inputs)
    z = out["encoder_image"]
    jax.block_until_ready(z)

    assert z.shape == (2, 512), z.shape
    assert bool(jnp.all(jnp.isfinite(z)))
    assert "image" in out  # original keys preserved, dict updated
    print("KERNEL_OK")
</pallas_src>

<mosaic_0001>
module attributes {stable_mosaic.version = 11 : i64} {
  func.func @_fused_conv_bn_kernel(%arg0: i32, %arg1: i32, %arg2: memref<512x1280xbf16, #tpu.memory_space<vmem>>, %arg3: memref<1280x256xbf16, #tpu.memory_space<vmem>>, %arg4: memref<1x256xf32, #tpu.memory_space<vmem>>, %arg5: memref<1x256xf32, #tpu.memory_space<vmem>>, %arg6: memref<512x256xbf16, #tpu.memory_space<vmem>>, %arg7: memref<512x256xbf16, #tpu.memory_space<vmem>>, %arg8: memref<512x256xf32, #tpu.memory_space<vmem>>) attributes {dimension_semantics = [#tpu.dimension_semantics<parallel>, #tpu.dimension_semantics<arbitrary>], iteration_bounds = array<i64: 2, 2>, scalar_prefetch = 0 : i64, scratch_operands = 1 : i64, tpu.core_type = #tpu.core_type<tc>, window_params = [{transform_indices = @transform_0, window_bounds = array<i64: 512, 1280>}, {transform_indices = @transform_1, window_bounds = array<i64: 1280, 256>}, {transform_indices = @transform_2, window_bounds = array<i64: 1, 256>}, {transform_indices = @transform_3, window_bounds = array<i64: 1, 256>}, {transform_indices = @transform_4, window_bounds = array<i64: 512, 256>}, {transform_indices = @transform_5, window_bounds = array<i64: 512, 256>}]} {
    %c0_i32 = arith.constant 0 : i32
    %0 = arith.cmpi eq, %arg1, %c0_i32 : i32
    %1 = arith.extui %0 : i1 to i32
    %c0_i32_0 = arith.constant 0 : i32
    %2 = arith.cmpi ne, %1, %c0_i32_0 : i32
    scf.if %2 {
      %cst_9 = arith.constant 0.000000e+00 : f32
      %12 = vector.broadcast %cst_9 : f32 to vector<512x256xf32>
      %c0_10 = arith.constant 0 : index
      %c0_11 = arith.constant 0 : index
      %13 = vector.load %arg8[%c0_10, %c0_11] : memref<512x256xf32, #tpu.memory_space<vmem>>, vector<512x256xf32>
      tpu.vector_store %arg8[%c0_10, %c0_11], %12 {strides = array<i32>} : memref<512x256xf32, #tpu.memory_space<vmem>>, vector<512x256xf32>,
    } else {
    }
    %c0 = arith.constant 0 : index
    %c0_1 = arith.constant 0 : index
    %3 = vector.load %arg8[%c0, %c0_1] : memref<512x256xf32, #tpu.memory_space<vmem>>, vector<512x256xf32>
    %c0_2 = arith.constant 0 : index
    %c0_3 = arith.constant 0 : index
    %4 = vector.load %arg2[%c0_2, %c0_3] : memref<512x1280xbf16, #tpu.memory_space<vmem>>, vector<512x1280xbf16>
    %c0_4 = arith.constant 0 : index
    %c0_5 = arith.constant 0 : index
    %5 = vector.load %arg3[%c0_4, %c0_5] : memref<1280x256xbf16, #tpu.memory_space<vmem>>, vector<1280x256xbf16>
    %cst = arith.constant dense<0.000000e+00> : vector<512x256xf32>
    %6 = tpu.matmul %4, %5, %cst {dimension_numbers = #tpu.dot_dimension_numbers<[1], [0], [0], [1], [0, 0, 1, 1], [], []>} : vector<512x1280xbf16>, vector<1280x256xbf16>, vector<512x256xf32> -> vector<512x256xf32>
    %7 = arith.addf %3, %6 : vector<512x256xf32>
    %c0_6 = arith.constant 0 : index
    %c0_7 = arith.constant 0 : index
    %8 = vector.load %arg8[%c0_6, %c0_7] : memref<512x256xf32, #tpu.memory_space<vmem>>, vector<512x256xf32>
    tpu.vector_store %arg8[%c0_6, %c0_7], %7 {strides = array<i32>} : memref<512x256xf32, #tpu.memory_space<vmem>>, vector<512x256xf32>,
    %c1_i32 = arith.constant 1 : i32
    %9 = arith.cmpi eq, %arg1, %c1_i32 : i32
    %10 = arith.extui %9 : i1 to i32
    %c0_i32_8 = arith.constant 0 : i32
    %11 = arith.cmpi ne, %10, %c0_i32_8 : i32
    scf.if %11 {
      %c0_9 = arith.constant 0 : index
      %c0_10 = arith.constant 0 : index
      %12 = vector.load %arg8[%c0_9, %c0_10] : memref<512x256xf32, #tpu.memory_space<vmem>>, vector<512x256xf32>
      %cst_11 = arith.constant dense<0.000000e+00> : vector<256xf32>
      %13 = vector.multi_reduction <add>, %12, %cst_11 [0] : vector<512x256xf32> to vector<256xf32>
      %14 = vector.shape_cast %13 : vector<256xf32> to vector<1x256xf32>
      %cst_12 = arith.constant 0.001953125 : f32
      %15 = vector.broadcast %cst_12 : f32 to vector<1x256xf32>
      %16 = arith.mulf %14, %15 : vector<1x256xf32>
      %17 = vector.broadcast %16 : vector<1x256xf32> to vector<512x256xf32>
      %18 = arith.subf %12, %17 : vector<512x256xf32>
      %19 = arith.mulf %18, %18 : vector<512x256xf32>
      %cst_13 = arith.constant dense<0.000000e+00> : vector<256xf32>
      %20 = vector.multi_reduction <add>, %19, %cst_13 [0] : vector<512x256xf32> to vector<256xf32>
      %21 = vector.shape_cast %20 : vector<256xf32> to vector<1x256xf32>
      %cst_14 = arith.constant 0.001953125 : f32
      %22 = vector.broadcast %cst_14 : f32 to vector<1x256xf32>
      %23 = arith.mulf %21, %22 : vector<1x256xf32>
      %c0_15 = arith.constant 0 : index
      %c0_16 = arith.constant 0 : index
      %24 = vector.load %arg4[%c0_15, %c0_16] : memref<1x256xf32, #tpu.memory_space<vmem>>, vector<1x256xf32>
      %cst_17 = arith.constant 9.99999974E-6 : f32
      %25 = vector.broadcast %cst_17 : f32 to vector<1x256xf32>
      %26 = arith.addf %23, %25 : vector<1x256xf32>
      %27 = math.rsqrt %26 : vector<1x256xf32>
      %28 = arith.mulf %24, %27 : vector<1x256xf32>
      %c0_18 = arith.constant 0 : index
      %c0_19 = arith.constant 0 : index
      %29 = vector.load %arg5[%c0_18, %c0_19] : memref<1x256xf32, #tpu.memory_space<vmem>>, vector<1x256xf32>
      %30 = arith.mulf %16, %28 : vector<1x256xf32>
      %31 = arith.subf %29, %30 : vector<1x256xf32>
      %32 = vector.broadcast %28 : vector<1x256xf32> to vector<512x256xf32>
      %33 = arith.mulf %12, %32 : vector<512x256xf32>
      %34 = vector.broadcast %31 : vector<1x256xf32> to vector<512x256xf32>
      %35 = arith.addf %33, %34 : vector<512x256xf32>
      %c0_20 = arith.constant 0 : index
      %c0_21 = arith.constant 0 : index
      %36 = vector.load %arg6[%c0_20, %c0_21] : memref<512x256xbf16, #tpu.memory_space<vmem>>, vector<512x256xbf16>
      %37 = arith.extf %36 : vector<512x256xbf16> to vector<512x256xf32>
      %38 = arith.addf %35, %37 : vector<512x256xf32>
      %cst_22 = arith.constant 0.000000e+00 : f32
      %39 = vector.broadcast %cst_22 : f32 to vector<512x256xf32>
      %40 = arith.maximumf %38, %39 : vector<512x256xf32>
      %41 = arith.truncf %40 : vector<512x256xf32> to vector<512x256xbf16>
      %c0_23 = arith.constant 0 : index
      %c0_24 = arith.constant 0 : index
      %42 = vector.load %arg7[%c0_23, %c0_24] : memref<512x256xbf16, #tpu.memory_space<vmem>>, vector<512x256xbf16>
      tpu.vector_store %arg7[%c0_23, %c0_24], %41 {strides = array<i32>} : memref<512x256xbf16, #tpu.memory_space<vmem>>, vector<512x256xbf16>,
    } else {
    }
    return
  }
  func.func @transform_0(%arg0: i32, %arg1: i32) -> (i32, i32) {
    %c0_i32 = arith.constant 0 : i32
    %c0_i32_0 = arith.constant 0 : i32
    return %c0_i32, %arg1 : i32, i32
  }
  func.func @transform_1(%arg0: i32, %arg1: i32) -> (i32, i32) {
    %c0_i32 = arith.constant 0 : i32
    return %arg1, %arg0 : i32, i32
  }
  func.func @transform_2(%arg0: i32, %arg1: i32) -> (i32, i32) {
    %c0_i32 = arith.constant 0 : i32
    %c0_i32_0 = arith.constant 0 : i32
    return %c0_i32, %arg0 : i32, i32
  }
  func.func @transform_3(%arg0: i32, %arg1: i32) -> (i32, i32) {
    %c0_i32 = arith.constant 0 : i32
    %c0_i32_0 = arith.constant 0 : i32
    return %c0_i32, %arg0 : i32, i32
  }
  func.func @transform_4(%arg0: i32, %arg1: i32) -> (i32, i32) {
    %c0_i32 = arith.constant 0 : i32
    %c0_i32_0 = arith.constant 0 : i32
    return %c0_i32, %arg0 : i32, i32
  }
  func.func @transform_5(%arg0: i32, %arg1: i32) -> (i32, i32) {
    %c0_i32 = arith.constant 0 : i32
    %c0_i32_0 = arith.constant 0 : i32
    return %c0_i32, %arg0 : i32, i32
  }
}

</mosaic_0001>

<llo_original>
// kernel: tpu_custom_call.1
$region0: #{tpu_custom_call.1}
  #allocation0 [shape = 'u32[]', space=smem, size = 0x4, offset = 0x4, fixed_abs, tag = 'smem constant byte address 0x4 - core index']
  #allocation1 [shape = 'u32[144,128]{1,0:T(1,128)}', space=vmem, size = 0x12000, scoped, tag = 'internal scratch']
  #allocation2 [shape = 'f32[512,256]{1,0:T(8,128)}', space=vmem, size = 0x80000, scoped, tag = 'scratch operand']
  %s0 = inlined_call_operand.hbm [shape: bf16[512,2560], index: 0, kind: input, shape index: {}]
  %s1 = inlined_call_operand.hbm [shape: bf16[2560,512], index: 1, kind: input, shape index: {}]
  %s2 = inlined_call_operand.hbm [shape: f32[1,512], index: 2, kind: input, shape index: {}]
  %s3 = inlined_call_operand.hbm [shape: f32[1,512], index: 3, kind: input, shape index: {}]
  %s4 = inlined_call_operand.hbm [shape: bf16[512,512], index: 4, kind: input, shape index: {}]
  %s5 = inlined_call_operand.hbm [shape: bf16[512,512], index: 5, kind: output, shape index: {}]
  %s6 = sld [smem:[#allocation0]]
  $region81: #{tpu_custom_call.1} parent=0
    _
  %s8 = ssub.s32 1, %s6
  %s9 = scalar_select 0, %s8, %s6
  $region1: #{tpu_custom_call.1} parent=0
    #allocation3 [shape = 'u8[2621440]{0}', space=vmem, size = 0x280000, scoped, tag = 'input window, operand 0']
    #allocation4 [shape = 's32[2]{0}', space=sflag, size = 0x8, scoped, tag = 'scoped memory for tpu_custom_call.1']
    #allocation5 [shape = 's32[2]{0}', space=sflag, size = 0x8, scoped, tag = 'scoped memory for tpu_custom_call.1']
    #allocation6 [shape = 'u8[1310720]{0}', space=vmem, size = 0x140000, scoped, tag = 'input window, operand 1']
    #allocation7 [shape = 's32[2]{0}', space=sflag, size = 0x8, scoped, tag = 'scoped memory for tpu_custom_call.1']
    #allocation8 [shape = 'u8[2048]{0}', space=vmem, size = 0x800, scoped, tag = 'input window, operand 2']
    #allocation9 [shape = 'u8[2048]{0}', space=vmem, size = 0x800, scoped, tag = 'input window, operand 3']
    #allocation10 [shape = 's32[2]{0}', space=sflag, size = 0x8, scoped, tag = 'scoped memory for tpu_custom_call.1']
    #allocation11 [shape = 'u8[524288]{0}', space=vmem, size = 0x80000, scoped, tag = 'input window, operand 4']
    #allocation12 [shape = 'u8[524288]{0}', space=vmem, size = 0x80000, scoped, tag = 'output window, operand 0']
    %10 = vsyncpa [#allocation4], 0
    %s11 = scalar_lea.sflag [#allocation4], 1
    %12 = vsyncpa %s11, 0
    %13 = vsyncpa [#allocation7], 0
    %s14 = scalar_lea.sflag [#allocation7], 1
    %15 = vsyncpa %s14, 0
    %16 = vsyncpa [#allocation10], 0
    %s17 = scalar_lea.sflag [#allocation10], 1
    %18 = vsyncpa %s17, 0
    %19 = vsyncpa [#allocation5], 0
    %s20 = scalar_lea.sflag [#allocation5], 1
    %21 = vsyncpa %s20, 0
    loop: start=0, step=1, limit=6
    $region2: #{tpu_custom_call.1} parent=1 // loop_pre_header
      _
    $region3: #{tpu_custom_call.1} parent=1 // loop_header
      %s23 = sphi 0, %s27
      %p24 = scmp.ge.s32.totalorder %s23, 6
      %s30 = sphi 0, %s42
      %s31 = sphi 0, %s38
      %s32 = sphi 0, %s30
      %s33 = sphi 0, %s31
      %s34 = sphi 0, %s32
      %s35 = sphi 0, %s33
      %s45 = sphi 0, %s47
      %s48 = sphi 0, %s45
      %s49 = sphi 0, %s48
      %s65 = sphi 0, %s49
      %s73 = sphi 0, %s75
      %s76 = sphi 0, %s73
      %s77 = sphi 0, %s76
      %s93 = sphi 0, %s77
      %s99 = sphi 0, %s101
      %s102 = sphi 0, %s99
      %s103 = sphi 0, %s102
      %s119 = sphi 0, %s103
      %s125 = sphi 0, %s127
      %s128 = sphi 0, %s125
      %s129 = sphi 0, %s128
      %s145 = sphi 0, %s129
      %s151 = sphi 0, %s153
      %s154 = sphi 0, %s151
      %s155 = sphi 0, %s154
      %s171 = sphi 0, %s155
      %s177 = sphi 0, %s179
      %s180 = sphi 0, %s177
      %s181 = sphi 0, %s180
      %s197 = sphi 0, %s181
    $region4: #{tpu_custom_call.1} parent=1 // loop_header_branch
      %26 = sbr.rel (%p24) target = $region8
    $region5: #{tpu_custom_call.1} parent=1 // loop_body
      %s28 = ssub.s32 %s23, 1
      %s29 = ssub.s32 %s23, 2
      %s36 = sadd.s32 1, %s31
      %p37 = scmp.ge.s32.totalorder %s36, 2
      %s38 = scalar_select %p37, 0, %s36
      %s39 = sadd.s32 1, %s30
      %s40 = scalar_select %p37, %s39, %s30
      %p41 = scmp.ge.s32.totalorder %s40, 2
      %s42 = scalar_select %p41, 0, %s40
      %s43 = ssub.s32 %s31, %s38
      %p44 = scmp.eq.s32.totalorder %s43, 0
      %s46 = sadd.s32 %s45, 1
      %s47 = scalar_select %p44, %s45, %s46
      %p50 = pneg %p44
      %p51 = scmp.eq.s32.totalorder %s23, 3
      %p52 = por %p50, %p51
      %p53 = scmp.ne.s32.totalorder %s45, %s48
      %p54 = scmp.eq.s32.totalorder %s23, 0
      %p55 = por %p53, %p54
      %p56 = scmp.ne.s32.totalorder %s45, %s48
      %p57 = scmp.eq.s32.totalorder %s28, 3
      %p58 = por %p56, %p57
      %p59 = scmp.ne.s32.totalorder %s48, %s49
      %p60 = scmp.eq.s32.totalorder %s28, 0
      %p61 = por %p59, %p60
      %p62 = scmp.ne.s32.totalorder %s48, %s49
      %p63 = scmp.eq.s32.totalorder %s29, 3
      %p64 = por %p62, %p63
      %p66 = scmp.ne.s32.totalorder %s49, %s65
      %p67 = scmp.eq.s32.totalorder %s29, 0
      %p68 = por %p66, %p67
      %s69 = ssub.s32 %s31, %s38
      %s70 = ssub.s32 %s30, %s42
      %s71 = sor.u32 %s69, %s70
      %p72 = scmp.eq.s32.totalorder %s71, 0
      %s74 = sadd.s32 %s73, 1
      %s75 = scalar_select %p72, %s73, %s74
      %p78 = pneg %p72
      %p79 = scmp.eq.s32.totalorder %s23, 3
      %p80 = por %p78, %p79
      %p81 = scmp.ne.s32.totalorder %s73, %s76
      %p82 = scmp.eq.s32.totalorder %s23, 0
      %p83 = por %p81, %p82
      %p84 = scmp.ne.s32.totalorder %s73, %s76
      %p85 = scmp.eq.s32.totalorder %s28, 3
      %p86 = por %p84, %p85
      %p87 = scmp.ne.s32.totalorder %s76, %s77
      %p88 = scmp.eq.s32.totalorder %s28, 0
      %p89 = por %p87, %p88
      %p90 = scmp.ne.s32.totalorder %s76, %s77
      %p91 = scmp.eq.s32.totalorder %s29, 3
      %p92 = por %p90, %p91
      %p94 = scmp.ne.s32.totalorder %s77, %s93
      %p95 = scmp.eq.s32.totalorder %s29, 0
      %p96 = por %p94, %p95
      %s97 = ssub.s32 %s30, %s42
      %p98 = scmp.eq.s32.totalorder %s97, 0
      %s100 = sadd.s32 %s99, 1
      %s101 = scalar_select %p98, %s99, %s100
      %p104 = pneg %p98
      %p105 = scmp.eq.s32.totalorder %s23, 3
      %p106 = por %p104, %p105
      %p107 = scmp.ne.s32.totalorder %s99, %s102
      %p108 = scmp.eq.s32.totalorder %s23, 0
      %p109 = por %p107, %p108
      %p110 = scmp.ne.s32.totalorder %s99, %s102
      %p111 = scmp.eq.s32.totalorder %s28, 3
      %p112 = por %p110, %p111
      %p113 = scmp.ne.s32.totalorder %s102, %s103
      %p114 = scmp.eq.s32.totalorder %s28, 0
      %p115 = por %p113, %p114
      %p116 = scmp.ne.s32.totalorder %s102, %s103
      %p117 = scmp.eq.s32.totalorder %s29, 3
      %p118 = por %p116, %p117
      %p120 = scmp.ne.s32.totalorder %s103, %s119
      %p121 = scmp.eq.s32.totalorder %s29, 0
      %p122 = por %p120, %p121
      %s123 = ssub.s32 %s30, %s42
      %p124 = scmp.eq.s32.totalorder %s123, 0
      %s126 = sadd.s32 %s125, 1
      %s127 = scalar_select %p124, %s125, %s126
      %p130 = pneg %p124
      %p131 = scmp.eq.s32.totalorder %s23, 3
      %p132 = por %p130, %p131
      %p133 = scmp.ne.s32.totalorder %s125, %s128
      %p134 = scmp.eq.s32.totalorder %s23, 0
      %p135 = por %p133, %p134
      %p136 = scmp.ne.s32.totalorder %s125, %s128
      %p137 = scmp.eq.s32.totalorder %s28, 3
      %p138 = por %p136, %p137
      %p139 = scmp.ne.s32.totalorder %s128, %s129
      %p140 = scmp.eq.s32.totalorder %s28, 0
      %p141 = por %p139, %p140
      %p142 = scmp.ne.s32.totalorder %s128, %s129
      %p143 = scmp.eq.s32.totalorder %s29, 3
      %p144 = por %p142, %p143
      %p146 = scmp.ne.s32.totalorder %s129, %s145
      %p147 = scmp.eq.s32.totalorder %s29, 0
      %p148 = por %p146, %p147
      %s149 = ssub.s32 %s30, %s42
      %p150 = scmp.eq.s32.totalorder %s149, 0
      %s152 = sadd.s32 %s151, 1
      %s153 = scalar_select %p150, %s151, %s152
      %p156 = pneg %p150
      %p157 = scmp.eq.s32.totalorder %s23, 3
      %p158 = por %p156, %p157
      %p159 = scmp.ne.s32.totalorder %s151, %s154
      %p160 = scmp.eq.s32.totalorder %s23, 0
      %p161 = por %p159, %p160
      %p162 = scmp.ne.s32.totalorder %s151, %s154
      %p163 = scmp.eq.s32.totalorder %s28, 3
      %p164 = por %p162, %p163
      %p165 = scmp.ne.s32.totalorder %s154, %s155
      %p166 = scmp.eq.s32.totalorder %s28, 0
      %p167 = por %p165, %p166
      %p168 = scmp.ne.s32.totalorder %s154, %s155
      %p169 = scmp.eq.s32.totalorder %s29, 3
      %p170 = por %p168, %p169
      %p172 = scmp.ne.s32.totalorder %s155, %s171
      %p173 = scmp.eq.s32.totalorder %s29, 0
      %p174 = por %p172, %p173
      %s175 = ssub.s32 %s30, %s42
      %p176 = scmp.eq.s32.totalorder %s175, 0
      %s178 = sadd.s32 %s177, 1
      %s179 = scalar_select %p176, %s177, %s178
      %p182 = pneg %p176
      %p183 = scmp.eq.s32.totalorder %s23, 3
      %p184 = por %p182, %p183
      %p185 = scmp.ne.s32.totalorder %s177, %s180
      %p186 = scmp.eq.s32.totalorder %s23, 0
      %p187 = por %p185, %p186
      %p188 = scmp.ne.s32.totalorder %s177, %s180
      %p189 = scmp.eq.s32.totalorder %s28, 3
      %p190 = por %p188, %p189
      %p191 = scmp.ne.s32.totalorder %s180, %s181
      %p192 = scmp.eq.s32.totalorder %s28, 0
      %p193 = por %p191, %p192
      %p194 = scmp.ne.s32.totalorder %s180, %s181
      %p195 = scmp.eq.s32.totalorder %s29, 3
      %p196 = por %p194, %p195
      %p198 = scmp.ne.s32.totalorder %s181, %s197
      %p199 = scmp.eq.s32.totalorder %s29, 0
      %p200 = por %p198, %p199
      %p201 = scmp.le.s32.totalorder 1, %s23
      %p202 = scmp.lt.s32.totalorder %s23, 5
      %p203 = pnand %p201, %p202
      %p204 = pneg %p203
      // Predicated region
      $region9: #{tpu_custom_call.1} parent=5 // pred_check
        _
      $region10: #{tpu_custom_call.1} parent=5 // pred_check_branch
        %206 = sbr.rel (%p203) target = $region12
      $region11: #{tpu_custom_call.1} parent=5 // pred_region
        %s207 = ssub.s32 %s23, 1
      $region12: #{tpu_custom_call.1} parent=5 // pred_fallthru
        _
      %p208 = scmp.lt.s32.totalorder %s23, 4
      // Predicated region
      $region13: #{tpu_custom_call.1} parent=5 // pred_check
        %p209 = pneg %p208
      $region14: #{tpu_custom_call.1} parent=5 // pred_check_branch
        %211 = sbr.rel (%p209) target = $region16
      $region15: #{tpu_custom_call.1} parent=5 // pred_region
        // Predicated region
        $region17: #{tpu_custom_call.1} parent=15 // pred_check
          %p212 = pneg %p55
        $region18: #{tpu_custom_call.1} parent=15 // pred_check_branch
          %214 = sbr.rel (%p212) target = $region20
        $region19: #{tpu_custom_call.1} parent=15 // pred_region
          %s215 = sand.u32 %s45, 1
          %s216 = scalar_lea.sflag [#allocation4], %s215
          %s217 = sand.u32 %s45, 1
          %s218 = smul.addr %s217, 2560
          %s219 = scalar_lea.vmem [#allocation3], %s218
          %s220 = smul.u32 10, %s31
          %s222 = ssub.s32 40960, 40960
          %223 = vsyncadd %s216, %s222
          %s224 = smul.addr %s220, 64
          %s225 = scalar_lea.hbm %s0, %s224
          %s226 = sshll.u32 %s219, 4
          %s227 = int_to_ptr.vmem [resolvable:$true] %s226
          %232 = dma.hbm_to_vmem [thread:$0]  %s225, 40960, %s227, %s216, 1280, 640, 40
        $region20: #{tpu_custom_call.1} parent=15 // pred_fallthru
          _
        // Predicated region
        $region21: #{tpu_custom_call.1} parent=15 // pred_check
          %p233 = pneg %p83
        $region22: #{tpu_custom_call.1} parent=15 // pred_check_branch
          %235 = sbr.rel (%p233) target = $region24
        $region23: #{tpu_custom_call.1} parent=15 // pred_region
          %s236 = sand.u32 %s23, 1
          %s237 = scalar_lea.sflag [#allocation7], %s236
          %s238 = sand.u32 %s73, 1
          %s239 = smul.addr %s238, 1280
          %s240 = scalar_lea.vmem [#allocation6], %s239
          %s241 = smul.u32 160, %s31
          %s242 = smul.u32 2, %s30
          %s244 = ssub.s32 20480, 20480
          %245 = vsyncadd %s237, %s244
          %s246 = smul.addr %s241, 4
          %s247 = sadd.s32 %s242, %s246
          %s248 = smul.addr %s247, 64
          %s249 = scalar_lea.hbm %s1, %s248
          %s250 = sshll.u32 %s240, 4
          %s251 = int_to_ptr.vmem [resolvable:$true] %s250
          %256 = dma.hbm_to_vmem [thread:$0]  %s249, 20480, %s251, %s237, 256, 128, 8
        $region24: #{tpu_custom_call.1} parent=15 // pred_fallthru
          _
        // Predicated region
        $region25: #{tpu_custom_call.1} parent=15 // pred_check
          %p257 = pneg %p109
        $region26: #{tpu_custom_call.1} parent=15 // pred_check_branch
          %259 = sbr.rel (%p257) target = $region28
        $region27: #{tpu_custom_call.1} parent=15 // pred_region
          %s260 = sand.u32 %s23, 1
          %s261 = scalar_lea.sflag [#allocation7], %s260
          %s262 = sand.u32 %s99, 1
          %s263 = smul.addr %s262, 2
          %s264 = scalar_lea.vmem [#allocation8], %s263
          %s265 = smul.u32 2, %s30
          %s267 = ssub.s32 32, 32
          %268 = vsyncadd %s261, %s267
          %s269 = smul.addr %s265, 16
          %s270 = scalar_lea.hbm %s2, %s269
          %s272 = sshll.u32 %s264, 4
          %s273 = int_to_ptr.vmem [resolvable:$true] %s272
          %275 = dma.hbm_to_vmem [thread:$0]  %s270, 32, %s273, %s261
        $region28: #{tpu_custom_call.1} parent=15 // pred_fallthru
          _
        // Predicated region
        $region29: #{tpu_custom_call.1} parent=15 // pred_check
          %p276 = pneg %p135
        $region30: #{tpu_custom_call.1} parent=15 // pred_check_branch
          %278 = sbr.rel (%p276) target = $region32
        $region31: #{tpu_custom_call.1} parent=15 // pred_region
          %s279 = sand.u32 %s23, 1
          %s280 = scalar_lea.sflag [#allocation10], %s279
          %s281 = sand.u32 %s125, 1
          %s282 = smul.addr %s281, 2
          %s283 = scalar_lea.vmem [#allocation9], %s282
          %s284 = smul.u32 2, %s30
          %s286 = ssub.s32 32, 32
          %287 = vsyncadd %s280, %s286
          %s288 = smul.addr %s284, 16
          %s289 = scalar_lea.hbm %s3, %s288
          %s291 = sshll.u32 %s283, 4
          %s292 = int_to_ptr.vmem [resolvable:$true] %s291
          %294 = dma.hbm_to_vmem [thread:$0]  %s289, 32, %s292, %s280
        $region32: #{tpu_custom_call.1} parent=15 // pred_fallthru
          _
        // Predicated region
        $region33: #{tpu_custom_call.1} parent=15 // pred_check
          %p295 = pneg %p161
        $region34: #{tpu_custom_call.1} parent=15 // pred_check_branch
          %297 = sbr.rel (%p295) target = $region36
        $region35: #{tpu_custom_call.1} parent=15 // pred_region
          %s298 = sand.u32 %s23, 1
          %s299 = scalar_lea.sflag [#allocation10], %s298
          %s300 = sand.u32 %s151, 1
          %s301 = smul.addr %s300, 512
          %s302 = scalar_lea.vmem [#allocation11], %s301
          %s303 = smul.u32 2, %s30
          %s305 = ssub.s32 8192, 8192
          %306 = vsyncadd %s299, %s305
          %s307 = smul.addr %s303, 64
          %s308 = scalar_lea.hbm %s4, %s307
          %s309 = sshll.u32 %s302, 4
          %s310 = int_to_ptr.vmem [resolvable:$true] %s309
          %315 = dma.hbm_to_vmem [thread:$0]  %s308, 8192, %s310, %s299, 256, 128, 8
        $region36: #{tpu_custom_call.1} parent=15 // pred_fallthru
          _
      $region16: #{tpu_custom_call.1} parent=5 // pred_fallthru
        _
      %p316 = scmp.le.s32.totalorder 1, %s23
      %p317 = scmp.lt.s32.totalorder %s23, 5
      %p318 = pnand %p316, %p317
      %p319 = pneg %p318
      // Predicated region
      $region37: #{tpu_custom_call.1} parent=5 // pred_check
        _
      $region38: #{tpu_custom_call.1} parent=5 // pred_check_branch
        %321 = sbr.rel (%p318) target = $region40
      $region39: #{tpu_custom_call.1} parent=5 // pred_region
        %s322 = ssub.s32 %s23, 1
        %s323 = sand.u32 %s48, 1
        %s324 = scalar_lea.sflag [#allocation4], %s323
        %s325 = sand.u32 %s48, 1
        %s326 = smul.addr %s325, 2560
        %s327 = scalar_lea.vmem [#allocation3], %s326
        // Predicated region
        $region41: #{tpu_custom_call.1} parent=39 // pred_check
          %p328 = pneg %p61
        $region42: #{tpu_custom_call.1} parent=39 // pred_check_branch
          %330 = sbr.rel (%p328) target = $region44
        $region43: #{tpu_custom_call.1} parent=39 // pred_region
          %331 = dma.done %s324, 40960
        $region44: #{tpu_custom_call.1} parent=39 // pred_fallthru
          _
        %s332 = sand.u32 %s28, 1
        %s333 = scalar_lea.sflag [#allocation7], %s332
        %s334 = sand.u32 %s76, 1
        %s335 = smul.addr %s334, 1280
        %s336 = scalar_lea.vmem [#allocation6], %s335
        // Predicated region
        $region45: #{tpu_custom_call.1} parent=39 // pred_check
          %p337 = pneg %p89
        $region46: #{tpu_custom_call.1} parent=39 // pred_check_branch
          %339 = sbr.rel (%p337) target = $region48
        $region47: #{tpu_custom_call.1} parent=39 // pred_region
          %340 = dma.done %s333, 20480
        $region48: #{tpu_custom_call.1} parent=39 // pred_fallthru
          _
        %s341 = sand.u32 %s28, 1
        %s342 = scalar_lea.sflag [#allocation7], %s341
        %s343 = sand.u32 %s102, 1
        %s344 = smul.addr %s343, 2
        %s345 = scalar_lea.vmem [#allocation8], %s344
        // Predicated region
        $region49: #{tpu_custom_call.1} parent=39 // pred_check
          %p346 = pneg %p115
        $region50: #{tpu_custom_call.1} parent=39 // pred_check_branch
          %348 = sbr.rel (%p346) target = $region52
        $region51: #{tpu_custom_call.1} parent=39 // pred_region
          %349 = dma.done %s342, 32
        $region52: #{tpu_custom_call.1} parent=39 // pred_fallthru
          _
        %s350 = sand.u32 %s28, 1
        %s351 = scalar_lea.sflag [#allocation10], %s350
        %s352 = sand.u32 %s128, 1
        %s353 = smul.addr %s352, 2
        %s354 = scalar_lea.vmem [#allocation9], %s353
        // Predicated region
        $region53: #{tpu_custom_call.1} parent=39 // pred_check
          %p355 = pneg %p141
        $region54: #{tpu_custom_call.1} parent=39 // pred_check_branch
          %357 = sbr.rel (%p355) target = $region56
        $region55: #{tpu_custom_call.1} parent=39 // pred_region
          %358 = dma.done %s351, 32
        $region56: #{tpu_custom_call.1} parent=39 // pred_fallthru
          _
        %s359 = sand.u32 %s28, 1
        %s360 = scalar_lea.sflag [#allocation10], %s359
        %s361 = sand.u32 %s154, 1
        %s362 = smul.addr %s361, 512
        %s363 = scalar_lea.vmem [#allocation11], %s362
        // Predicated region
        $region57: #{tpu_custom_call.1} parent=39 // pred_check
          %p364 = pneg %p167
        $region58: #{tpu_custom_call.1} parent=39 // pred_check_branch
          %366 = sbr.rel (%p364) target = $region60
        $region59: #{tpu_custom_call.1} parent=39 // pred_region
          %367 = dma.done %s360, 8192
        $region60: #{tpu_custom_call.1} parent=39 // pred_fallthru
          _
        %s368 = sand.u32 %s48, 1
        %s369 = scalar_lea.sflag [#allocation4], %s368
        %s370 = sand.u32 %s48, 1
        %s371 = smul.addr %s370, 2560
        %s372 = scalar_lea.vmem [#allocation3], %s371
        %p373 = pneg %p61
        %p374 = pneg %p58
        %s375 = sand.u32 %s28, 1
        %s376 = scalar_lea.sflag [#allocation7], %s375
        %s377 = sand.u32 %s76, 1
        %s378 = smul.addr %s377, 1280
        %s379 = scalar_lea.vmem [#allocation6], %s378
        %p380 = pneg %p89
        %p381 = pneg %p86
        %s382 = sand.u32 %s28, 1
        %s383 = scalar_lea.sflag [#allocation7], %s382
        %s384 = sand.u32 %s102, 1
        %s385 = smul.addr %s384, 2
        %s386 = scalar_lea.vmem [#allocation8], %s385
        %p387 = pneg %p115
        %p388 = pneg %p112
        %s389 = sand.u32 %s28, 1
        %s390 = scalar_lea.sflag [#allocation10], %s389
        %s391 = sand.u32 %s128, 1
        %s392 = smul.addr %s391, 2
        %s393 = scalar_lea.vmem [#allocation9], %s392
        %p394 = pneg %p141
        %p395 = pneg %p138
        %s396 = sand.u32 %s28, 1
        %s397 = scalar_lea.sflag [#allocation10], %s396
        %s398 = sand.u32 %s154, 1
        %s399 = smul.addr %s398, 512
        %s400 = scalar_lea.vmem [#allocation11], %s399
        %p401 = pneg %p167
        %p402 = pneg %p164
        %p403 = pneg %p193
        %p404 = pneg %p190
        %s405 = sand.u32 %s180, 1
        %s406 = scalar_lea.sflag [#allocation5], %s405
        %s407 = sand.u32 %s180, 1
        %s408 = smul.addr %s407, 512
        %s409 = scalar_lea.vmem [#allocation12], %s408
        %s410 = smul.u32 10, %s33
        %s411 = smul.u32 160, %s33
        %s412 = smul.u32 2, %s32
        %s413 = smul.u32 2, %s32
        %s414 = smul.u32 2, %s32
        %s415 = smul.u32 2, %s32
        %s416 = smul.u32 2, %s32
        %p417 = scmp.eq.s32.totalorder %s33, 0
        // Predicated region
        $region61: #{tpu_custom_call.1} parent=39 // pred_check
          %p418 = pneg %p417
        $region62: #{tpu_custom_call.1} parent=39 // pred_check_branch
          %420 = sbr.rel (%p418) target = $region64
        $region63: #{tpu_custom_call.1} parent=39 // pred_region
          %421 = vst [vmem:[#allocation2] sm:$0xff] 0.0
          %422 = vst [vmem:[#allocation2 + $0x8] sm:$0xff] 0.0
          %423 = vst [vmem:[#allocation2 + $0x10] sm:$0xff] 0.0
          %424 = vst [vmem:[#allocation2 + $0x18] sm:$0xff] 0.0
          %425 = vst [vmem:[#allocation2 + $0x20] sm:$0xff] 0.0
          %426 = vst [vmem:[#allocation2 + $0x28] sm:$0xff] 0.0
          %427 = vst [vmem:[#allocation2 + $0x30] sm:$0xff] 0.0
          %428 = vst [vmem:[#allocation2 + $0x38] sm:$0xff] 0.0
          %429 = vst [vmem:[#allocation2 + $0x40] sm:$0xff] 0.0
          %430 = vst [vmem:[#allocation2 + $0x48] sm:$0xff] 0.0
          %431 = vst [vmem:[#allocation2 + $0x50] sm:$0xff] 0.0
          %432 = vst [vmem:[#allocation2 + $0x58] sm:$0xff] 0.0
          %433 = vst [vmem:[#allocation2 + $0x60] sm:$0xff] 0.0
          %434 = vst [vmem:[#allocation2 + $0x68] sm:$0xff] 0.0
          %435 = vst [vmem:[#allocation2 + $0x70] sm:$0xff] 0.0
          %436 = vst [vmem:[#allocation2 + $0x78] sm:$0xff] 0.0
          %437 = vst [vmem:[#allocation2 + $0x80] sm:$0xff] 0.0
          %438 = vst [vmem:[#allocation2 + $0x88] sm:$0xff] 0.0
          %439 = vst [vmem:[#allocation2 + $0x90] sm:$0xff] 0.0
          %440 = vst [vmem:[#allocation2 + $0x98] sm:$0xff] 0.0
          %441 = vst [vmem:[#allocation2 + $0xa0] sm:$0xff] 0.0
          %442 = vst [vmem:[#allocation2 + $0xa8] sm:$0xff] 0.0
          %443 = vst [vmem:[#allocation2 + $0xb0] sm:$0xff] 0.0
          %444 = vst [vmem:[#allocation2 + $0xb8] sm:$0xff] 0.0
          %445 = vst [vmem:[#allocation2 + $0xc0] sm:$0xff] 0.0
          %446 = vst [vmem:[#allocation2 + $0xc8] sm:$0xff] 0.0
          %447 = vst [vmem:[#allocation2 + $0xd0] sm:$0xff] 0.0
          %448 = vst [vmem:[#allocation2 + $0xd8] sm:$0xff] 0.0
          %449 = vst [vmem:[#allocation2 + $0xe0] sm:$0xff] 0.0
          %450 = vst [vmem:[#allocation2 + $0xe8] sm:$0xff] 0.0
          %451 = vst [vmem:[#allocation2 + $0xf0] sm:$0xff] 0.0
          %452 = vst [vmem:[#allocation2 + $0xf8] sm:$0xff] 0.0
          %453 = vst [vmem:[#allocation2 + $0x100] sm:$0xff] 0.0
          %454 = vst [vmem:[#allocation2 + $0x108] sm:$0xff] 0.0
          %455 = vst [vmem:[#allocation2 + $0x110] sm:$0xff] 0.0
          %456 = vst [vmem:[#allocation2 + $0x118] sm:$0xff] 0.0
          %457 = vst [vmem:[#allocation2 + $0x120] sm:$0xff] 0.0
          %458 = vst [vmem:[#allocation2 + $0x128] sm:$0xff] 0.0
          %459 = vst [vmem:[#allocation2 + $0x130] sm:$0xff] 0.0
          %460 = vst [vmem:[#allocation2 + $0x138] sm:$0xff] 0.0
          %461 = vst [vmem:[#allocation2 + $0x140] sm:$0xff] 0.0
          %462 = vst [vmem:[#allocation2 + $0x148] sm:$0xff] 0.0
          %463 = vst [vmem:[#allocation2 + $0x150] sm:$0xff] 0.0
          %464 = vst [vmem:[#allocation2 + $0x158] sm:$0xff] 0.0
          %465 = vst [vmem:[#allocation2 + $0x160] sm:$0xff] 0.0
          %466 = vst [vmem:[#allocation2 + $0x168] sm:$0xff] 0.0
          %467 = vst [vmem:[#allocation2 + $0x170] sm:$0xff] 0.0
          %468 = vst [vmem:[#allocation2 + $0x178] sm:$0xff] 0.0
          %469 = vst [vmem:[#allocation2 + $0x180] sm:$0xff] 0.0
          %470 = vst [vmem:[#allocation2 + $0x188] sm:$0xff] 0.0
          %471 = vst [vmem:[#allocation2 + $0x190] sm:$0xff] 0.0
          %472 = vst [vmem:[#allocation2 + $0x198] sm:$0xff] 0.0
          %473 = vst [vmem:[#allocation2 + $0x1a0] sm:$0xff] 0.0
          %474 = vst [vmem:[#allocation2 + $0x1a8] sm:$0xff] 0.0
          %475 = vst [vmem:[#allocation2 + $0x1b0] sm:$0xff] 0.0
          %476 = vst [vmem:[#allocation2 + $0x1b8] sm:$0xff] 0.0
          %477 = vst [vmem:[#allocation2 + $0x1c0] sm:$0xff] 0.0
          %478 = vst [vmem:[#allocation2 + $0x1c8] sm:$0xff] 0.0
          %479 = vst [vmem:[#allocation2 + $0x1d0] sm:$0xff] 0.0
          %480 = vst [vmem:[#allocation2 + $0x1d8] sm:$0xff] 0.0
          %481 = vst [vmem:[#allocation2 + $0x1e0] sm:$0xff] 0.0
          %482 = vst [vmem:[#allocation2 + $0x1e8] sm:$0xff] 0.0
          %483 = vst [vmem:[#allocation2 + $0x1f0] sm:$0xff] 0.0
          %484 = vst [vmem:[#allocation2 + $0x1f8] sm:$0xff] 0.0
          %485 = vst [vmem:[#allocation2 + $0x200] sm:$0xff] 0.0
          %486 = vst [vmem:[#allocation2 + $0x208] sm:$0xff] 0.0
          %487 = vst [vmem:[#allocation2 + $0x210] sm:$0xff] 0.0
          %488 = vst [vmem:[#allocation2 + $0x218] sm:$0xff] 0.0
          %489 = vst [vmem:[#allocation2 + $0x220] sm:$0xff] 0.0
          %490 = vst [vmem:[#allocation2 + $0x228] sm:$0xff] 0.0
          %491 = vst [vmem:[#allocation2 + $0x230] sm:$0xff] 0.0
          %492 = vst [vmem:[#allocation2 + $0x238] sm:$0xff] 0.0
          %493 = vst [vmem:[#allocation2 + $0x240] sm:$0xff] 0.0
          %494 = vst [vmem:[#allocation2 + $0x248] sm:$0xff] 0.0
          %495 = vst [vmem:[#allocation2 + $0x250] sm:$0xff] 0.0
          %496 = vst [vmem:[#allocation2 + $0x258] sm:$0xff] 0.0
          %497 = vst [vmem:[#allocation2 + $0x260] sm:$0xff] 0.0
          %498 = vst [vmem:[#allocation2 + $0x268] sm:$0xff] 0.0
          %499 = vst [vmem:[#allocation2 + $0x270] sm:$0xff] 0.0
          %500 = vst [vmem:[#allocation2 + $0x278] sm:$0xff] 0.0
          %501 = vst [vmem:[#allocation2 + $0x280] sm:$0xff] 0.0
          %502 = vst [vmem:[#allocation2 + $0x288] sm:$0xff] 0.0
          %503 = vst [vmem:[#allocation2 + $0x290] sm:$0xff] 0.0
          %504 = vst [vmem:[#allocation2 + $0x298] sm:$0xff] 0.0
          %505 = vst [vmem:[#allocation2 + $0x2a0] sm:$0xff] 0.0
          %506 = vst [vmem:[#allocation2 + $0x2a8] sm:$0xff] 0.0
          %507 = vst [vmem:[#allocation2 + $0x2b0] sm:$0xff] 0.0
          %508 = vst [vmem:[#allocation2 + $0x2b8] sm:$0xff] 0.0
          %509 = vst [vmem:[#allocation2 + $0x2c0] sm:$0xff] 0.0
          %510 = vst [vmem:[#allocation2 + $0x2c8] sm:$0xff] 0.0
          %511 = vst [vmem:[#allocation2 + $0x2d0] sm:$0xff] 0.0
          %512 = vst [vmem:[#allocation2 + $0x2d8] sm:$0xff] 0.0
          %513 = vst [vmem:[#allocation2 + $0x2e0] sm:$0xff] 0.0
          %514 = vst [vmem:[#allocation2 + $0x2e8] sm:$0xff] 0.0
          %515 = vst [vmem:[#allocation2 + $0x2f0] sm:$0xff] 0.0
          %516 = vst [vmem:[#allocation2 + $0x2f8] sm:$0xff] 0.0
          %517 = vst [vmem:[#allocation2 + $0x300] sm:$0xff] 0.0
          %518 = vst [vmem:[#allocation2 + $0x308] sm:$0xff] 0.0
          %519 = vst [vmem:[#allocation2 + $0x310] sm:$0xff] 0.0
          %520 = vst [vmem:[#allocation2 + $0x318] sm:$0xff] 0.0
          %521 = vst [vmem:[#allocation2 + $0x320] sm:$0xff] 0.0
          %522 = vst [vmem:[#allocation2 + $0x328] sm:$0xff] 0.0
          %523 = vst [vmem:[#allocation2 + $0x330] sm:$0xff] 0.0
          %524 = vst [vmem:[#allocation2 + $0x338] sm:$0xff] 0.0
          %525 = vst [vmem:[#allocation2 + $0x340] sm:$0xff] 0.0
          %526 = vst [vmem:[#allocation2 + $0x348] sm:$0xff] 0.0
          %527 = vst [vmem:[#allocation2 + $0x350] sm:$0xff] 0.0
          %528 = vst [vmem:[#allocation2 + $0x358] sm:$0xff] 0.0
          %529 = vst [vmem:[#allocation2 + $0x360] sm:$0xff] 0.0
          %530 = vst [vmem:[#allocation2 + $0x368] sm:$0xff] 0.0
          %531 = vst [vmem:[#allocation2 + $0x370] sm:$0xff] 0.0
          %532 = vst [vmem:[#allocation2 + $0x378] sm:$0xff] 0.0
          %533 = vst [vmem:[#allocation2 + $0x380] sm:$0xff] 0.0
          %534 = vst [vmem:[#allocation2 + $0x388] sm:$0xff] 0.0
          %535 = vst [vmem:[#allocation2 + $0x390] sm:$0xff] 0.0
          %536 = vst [vmem:[#allocation2 + $0x398] sm:$0xff] 0.0
          %537 = vst [vmem:[#allocation2 + $0x3a0] sm:$0xff] 0.0
          %538 = vst [vmem:[#allocation2 + $0x3a8] sm:$0xff] 0.0
          %539 = vst [vmem:[#allocation2 + $0x3b0] sm:$0xff] 0.0
          %540 = vst [vmem:[#allocation2 + $0x3b8] sm:$0xff] 0.0
          %541 = vst [vmem:[#allocation2 + $0x3c0] sm:$0xff] 0.0
          %542 = vst [vmem:[#allocation2 + $0x3c8] sm:$0xff] 0.0
          %543 = vst [vmem:[#allocation2 + $0x3d0] sm:$0xff] 0.0
          %544 = vst [vmem:[#allocation2 + $0x3d8] sm:$0xff] 0.0
          %545 = vst [vmem:[#allocation2 + $0x3e0] sm:$0xff] 0.0
          %546 = vst [vmem:[#allocation2 + $0x3e8] sm:$0xff] 0.0
          %547 = vst [vmem:[#allocation2 + $0x3f0] sm:$0xff] 0.0
          %548 = vst [vmem:[#allocation2 + $0x3f8] sm:$0xff] 0.0
        $region64: #{tpu_custom_call.1} parent=39 // pred_fallthru
          _
        %v549 = vld [vmem:[#allocation2] sm:$0xff]
        %v550 = vld [vmem:[#allocation2 + $0x8] sm:$0xff]
        %v551 = vld [vmem:[#allocation2 + $0x10] sm:$0xff]
        %v552 = vld [vmem:[#allocation2 + $0x18] sm:$0xff]
        %v553 = vld [vmem:[#allocation2 + $0x20] sm:$0xff]
        %v554 = vld [vmem:[#allocation2 + $0x28] sm:$0xff]
        %v555 = vld [vmem:[#allocation2 + $0x30] sm:$0xff]
        %v556 = vld [vmem:[#allocation2 + $0x38] sm:$0xff]
        %v557 = vld [vmem:[#allocation2 + $0x40] sm:$0xff]
        %v558 = vld [vmem:[#allocation2 + $0x48] sm:$0xff]
        %v559 = vld [vmem:[#allocation2 + $0x50] sm:$0xff]
        %v560 = vld [vmem:[#allocation2 + $0x58] sm:$0xff]
        %v561 = vld [vmem:[#allocation2 + $0x60] sm:$0xff]
        %v562 = vld [vmem:[#allocation2 + $0x68] sm:$0xff]
        %v563 = vld [vmem:[#allocation2 + $0x70] sm:$0xff]
        %v564 = vld [vmem:[#allocation2 + $0x78] sm:$0xff]
        %v565 = vld [vmem:[#allocation2 + $0x80] sm:$0xff]
        %v566 = vld [vmem:[#allocation2 + $0x88] sm:$0xff]
        %v567 = vld [vmem:[#allocation2 + $0x90] sm:$0xff]
        %v568 = vld [vmem:[#allocation2 + $0x98] sm:$0xff]
        %v569 = vld [vmem:[#allocation2 + $0xa0] sm:$0xff]
        %v570 = vld [vmem:[#allocation2 + $0xa8] sm:$0xff]
        %v571 = vld [vmem:[#allocation2 + $0xb0] sm:$0xff]
        %v572 = vld [vmem:[#allocation2 + $0xb8] sm:$0xff]
        %v573 = vld [vmem:[#allocation2 + $0xc0] sm:$0xff]
        %v574 = vld [vmem:[#allocation2 + $0xc8] sm:$0xff]
        %v575 = vld [vmem:[#allocation2 + $0xd0] sm:$0xff]
        %v576 = vld [vmem:[#allocation2 + $0xd8] sm:$0xff]
        %v577 = vld [vmem:[#allocation2 + $0xe0] sm:$0xff]
        %v578 = vld [vmem:[#allocation2 + $0xe8] sm:$0xff]
        %v579 = vld [vmem:[#allocation2 + $0xf0] sm:$0xff]
        %v580 = vld [vmem:[#allocation2 + $0xf8] sm:$0xff]
        %v581 = vld [vmem:[#allocation2 + $0x100] sm:$0xff]
        %v582 = vld [vmem:[#allocation2 + $0x108] sm:$0xff]
        %v583 = vld [vmem:[#allocation2 + $0x110] sm:$0xff]
        %v584 = vld [vmem:[#allocation2 + $0x118] sm:$0xff]
        %v585 = vld [vmem:[#allocation2 + $0x120] sm:$0xff]
        %v586 = vld [vmem:[#allocation2 + $0x128] sm:$0xff]
        %v587 = vld [vmem:[#allocation2 + $0x130] sm:$0xff]
        %v588 = vld [vmem:[#allocation2 + $0x138] sm:$0xff]
        %v589 = vld [vmem:[#allocation2 + $0x140] sm:$0xff]
        %v590 = vld [vmem:[#allocation2 + $0x148] sm:$0xff]
        %v591 = vld [vmem:[#allocation2 + $0x150] sm:$0xff]
        %v592 = vld [vmem:[#allocation2 + $0x158] sm:$0xff]
        %v593 = vld [vmem:[#allocation2 + $0x160] sm:$0xff]
        %v594 = vld [vmem:[#allocation2 + $0x168] sm:$0xff]
        %v595 = vld [vmem:[#allocation2 + $0x170] sm:$0xff]
        %v596 = vld [vmem:[#allocation2 + $0x178] sm:$0xff]
        %v597 = vld [vmem:[#allocation2 + $0x180] sm:$0xff]
        %v598 = vld [vmem:[#allocation2 + $0x188] sm:$0xff]
        %v599 = vld [vmem:[#allocation2 + $0x190] sm:$0xff]
        %v600 = vld [vmem:[#allocation2 + $0x198] sm:$0xff]
        %v601 = vld [vmem:[#allocation2 + $0x1a0] sm:$0xff]
        %v602 = vld [vmem:[#allocation2 + $0x1a8] sm:$0xff]
        %v603 = vld [vmem:[#allocation2 + $0x1b0] sm:$0xff]
        %v604 = vld [vmem:[#allocation2 + $0x1b8] sm:$0xff]
        %v605 = vld [vmem:[#allocation2 + $0x1c0] sm:$0xff]
        %v606 = vld [vmem:[#allocation2 + $0x1c8] sm:$0xff]
        %v607 = vld [vmem:[#allocation2 + $0x1d0] sm:$0xff]
        %v608 = vld [vmem:[#allocation2 + $0x1d8] sm:$0xff]
        %v609 = vld [vmem:[#allocation2 + $0x1e0] sm:$0xff]
        %v610 = vld [vmem:[#allocation2 + $0x1e8] sm:$0xff]
        %v611 = vld [vmem:[#allocation2 + $0x1f0] sm:$0xff]
        %v612 = vld [vmem:[#allocation2 + $0x1f8] sm:$0xff]
        %v613 = vld [vmem:[#allocation2 + $0x200] sm:$0xff]
        %v614 = vld [vmem:[#allocation2 + $0x208] sm:$0xff]
        %v615 = vld [vmem:[#allocation2 + $0x210] sm:$0xff]
        %v616 = vld [vmem:[#allocation2 + $0x218] sm:$0xff]
        %v617 = vld [vmem:[#allocation2 + $0x220] sm:$0xff]
        %v618 = vld [vmem:[#allocation2 + $0x228] sm:$0xff]
        %v619 = vld [vmem:[#allocation2 + $0x230] sm:$0xff]
        %v620 = vld [vmem:[#allocation2 + $0x238] sm:$0xff]
        %v621 = vld [vmem:[#allocation2 + $0x240] sm:$0xff]
        %v622 = vld [vmem:[#allocation2 + $0x248] sm:$0xff]
        %v623 = vld [vmem:[#allocation2 + $0x250] sm:$0xff]
        %v624 = vld [vmem:[#allocation2 + $0x258] sm:$0xff]
        %v625 = vld [vmem:[#allocation2 + $0x260] sm:$0xff]
        %v626 = vld [vmem:[#allocation2 + $0x268] sm:$0xff]
        %v627 = vld [vmem:[#allocation2 + $0x270] sm:$0xff]
        %v628 = vld [vmem:[#allocation2 + $0x278] sm:$0xff]
        %v629 = vld [vmem:[#allocation2 + $0x280] sm:$0xff]
        %v630 = vld [vmem:[#allocation2 + $0x288] sm:$0xff]
        %v631 = vld [vmem:[#allocation2 + $0x290] sm:$0xff]
        %v632 = vld [vmem:[#allocation2 + $0x298] sm:$0xff]
        %v633 = vld [vmem:[#allocation2 + $0x2a0] sm:$0xff]
        %v634 = vld [vmem:[#allocation2 + $0x2a8] sm:$0xff]
        %v635 = vld [vmem:[#allocation2 + $0x2b0] sm:$0xff]
        %v636 = vld [vmem:[#allocation2 + $0x2b8] sm:$0xff]
        %v637 = vld [vmem:[#allocation2 + $0x2c0] sm:$0xff]
        %v638 = vld [vmem:[#allocation2 + $0x2c8] sm:$0xff]
        %v639 = vld [vmem:[#allocation2 + $0x2d0] sm:$0xff]
        %v640 = vld [vmem:[#allocation2 + $0x2d8] sm:$0xff]
        %v641 = vld [vmem:[#allocation2 + $0x2e0] sm:$0xff]
        %v642 = vld [vmem:[#allocation2 + $0x2e8] sm:$0xff]
        %v643 = vld [vmem:[#allocation2 + $0x2f0] sm:$0xff]
        %v644 = vld [vmem:[#allocation2 + $0x2f8] sm:$0xff]
        %v645 = vld [vmem:[#allocation2 + $0x300] sm:$0xff]
        %v646 = vld [vmem:[#allocation2 + $0x308] sm:$0xff]
        %v647 = vld [vmem:[#allocation2 + $0x310] sm:$0xff]
        %v648 = vld [vmem:[#allocation2 + $0x318] sm:$0xff]
        %v649 = vld [vmem:[#allocation2 + $0x320] sm:$0xff]
        %v650 = vld [vmem:[#allocation2 + $0x328] sm:$0xff]
        %v651 = vld [vmem:[#allocation2 + $0x330] sm:$0xff]
        %v652 = vld [vmem:[#allocation2 + $0x338] sm:$0xff]
        %v653 = vld [vmem:[#allocation2 + $0x340] sm:$0xff]
        %v654 = vld [vmem:[#allocation2 + $0x348] sm:$0xff]
        %v655 = vld [vmem:[#allocation2 + $0x350] sm:$0xff]
        %v656 = vld [vmem:[#allocation2 + $0x358] sm:$0xff]
        %v657 = vld [vmem:[#allocation2 + $0x360] sm:$0xff]
        %v658 = vld [vmem:[#allocation2 + $0x368] sm:$0xff]
        %v659 = vld [vmem:[#allocation2 + $0x370] sm:$0xff]
        %v660 = vld [vmem:[#allocation2 + $0x378] sm:$0xff]
        %v661 = vld [vmem:[#allocation2 + $0x380] sm:$0xff]
        %v662 = vld [vmem:[#allocation2 + $0x388] sm:$0xff]
        %v663 = vld [vmem:[#allocation2 + $0x390] sm:$0xff]
        %v664 = vld [vmem:[#allocation2 + $0x398] sm:$0xff]
        %v665 = vld [vmem:[#allocation2 + $0x3a0] sm:$0xff]
        %v666 = vld [vmem:[#allocation2 + $0x3a8] sm:$0xff]
        %v667 = vld [vmem:[#allocation2 + $0x3b0] sm:$0xff]
        %v668 = vld [vmem:[#allocation2 + $0x3b8] sm:$0xff]
        %v669 = vld [vmem:[#allocation2 + $0x3c0] sm:$0xff]
        %v670 = vld [vmem:[#allocation2 + $0x3c8] sm:$0xff]
        %v671 = vld [vmem:[#allocation2 + $0x3d0] sm:$0xff]
        %v672 = vld [vmem:[#allocation2 + $0x3d8] sm:$0xff]
        %v673 = vld [vmem:[#allocation2 + $0x3e0] sm:$0xff]
        %v674 = vld [vmem:[#allocation2 + $0x3e8] sm:$0xff]
        %v675 = vld [vmem:[#allocation2 + $0x3f0] sm:$0xff]
        %v676 = vld [vmem:[#allocation2 + $0x3f8] sm:$0xff]
        %v677 = vld [vmem:[%s327] sm:$0xff]
        %v678 = vld [vmem:[%s327 + $0x8] sm:$0xff]
        %v679 = vld [vmem:[%s327 + $0x10] sm:$0xff]
        %v680 = vld [vmem:[%s327 + $0x18] sm:$0xff]
        %v681 = vld [vmem:[%s327 + $0x20] sm:$0xff]
        %v682 = vld [vmem:[%s327 + $0x28] sm:$0xff]
        %v683 = vld [vmem:[%s327 + $0x30] sm:$0xff]
        %v684 = vld [vmem:[%s327 + $0x38] sm:$0xff]
        %v685 = vld [vmem:[%s327 + $0x40] sm:$0xff]
        %v686 = vld [vmem:[%s327 + $0x48] sm:$0xff]
        %v687 = vld [vmem:[%s327 + $0x50] sm:$0xff]
        %v688 = vld [vmem:[%s327 + $0x58] sm:$0xff]
        %v689 = vld [vmem:[%s327 + $0x60] sm:$0xff]
        %v690 = vld [vmem:[%s327 + $0x68] sm:$0xff]
        %v691 = vld [vmem:[%s327 + $0x70] sm:$0xff]
        %v692 = vld [vmem:[%s327 + $0x78] sm:$0xff]
        %v693 = vld [vmem:[%s327 + $0x80] sm:$0xff]
        %v694 = vld [vmem:[%s327 + $0x88] sm:$0xff]
        %v695 = vld [vmem:[%s327 + $0x90] sm:$0xff]
        %v696 = vld [vmem:[%s327 + $0x98] sm:$0xff]
        %v697 = vld [vmem:[%s327 + $0xa0] sm:$0xff]
        %v698 = vld [vmem:[%s327 + $0xa8] sm:$0xff]
        %v699 = vld [vmem:[%s327 + $0xb0] sm:$0xff]
        %v700 = vld [vmem:[%s327 + $0xb8] sm:$0xff]
        %v701 = vld [vmem:[%s327 + $0xc0] sm:$0xff]
        %v702 = vld [vmem:[%s327 + $0xc8] sm:$0xff]
        %v703 = vld [vmem:[%s327 + $0xd0] sm:$0xff]
        %v704 = vld [vmem:[%s327 + $0xd8] sm:$0xff]
        %v705 = vld [vmem:[%s327 + $0xe0] sm:$0xff]
        %v706 = vld [vmem:[%s327 + $0xe8] sm:$0xff]
        %v707 = vld [vmem:[%s327 + $0xf0] sm:$0xff]
        %v708 = vld [vmem:[%s327 + $0xf8] sm:$0xff]
        %v709 = vld [vmem:[%s327 + $0x100] sm:$0xff]
        %v710 = vld [vmem:[%s327 + $0x108] sm:$0xff]
        %v711 = vld [vmem:[%s327 + $0x110] sm:$0xff]
        %v712 = vld [vmem:[%s327 + $0x118] sm:$0xff]
        %v713 = vld [vmem:[%s327 + $0x120] sm:$0xff]
        %v714 = vld [vmem:[%s327 + $0x128] sm:$0xff]
        %v715 = vld [vmem:[%s327 + $0x130] sm:$0xff]
        %v716 = vld [vmem:[%s327 + $0x138] sm:$0xff]
        %v717 = vld [vmem:[%s327 + $0x140] sm:$0xff]
        %v718 = vld [vmem:[%s327 + $0x148] sm:$0xff]
        %v719 = vld [vmem:[%s327 + $0x150] sm:$0xff]
        %v720 = vld [vmem:[%s327 + $0x158] sm:$0xff]
        %v721 = vld [vmem:[%s327 + $0x160] sm:$0xff]
        %v722 = vld [vmem:[%s327 + $0x168] sm:$0xff]
        %v723 = vld [vmem:[%s327 + $0x170] sm:$0xff]
        %v724 = vld [vmem:[%s327 + $0x178] sm:$0xff]
        %v725 = vld [vmem:[%s327 + $0x180] sm:$0xff]
        %v726 = vld [vmem:[%s327 + $0x188] sm:$0xff]
        %v727 = vld [vmem:[%s327 + $0x190] sm:$0xff]
        %v728 = vld [vmem:[%s327 + $0x198] sm:$0xff]
        %v729 = vld [vmem:[%s327 + $0x1a0] sm:$0xff]
        %v730 = vld [vmem:[%s327 + $0x1a8] sm:$0xff]
        %v731 = vld [vmem:[%s327 + $0x1b0] sm:$0xff]
        %v732 = vld [vmem:[%s327 + $0x1b8] sm:$0xff]
        %v733 = vld [vmem:[%s327 + $0x1c0] sm:$0xff]
        %v734 = vld [vmem:[%s327 + $0x1c8] sm:$0xff]
        %v735 = vld [vmem:[%s327 + $0x1d0] sm:$0xff]
        %v736 = vld [vmem:[%s327 + $0x1d8] sm:$0xff]
        %v737 = vld [vmem:[%s327 + $0x1e0] sm:$0xff]
        %v738 = vld [vmem:[%s327 + $0x1e8] sm:$0xff]
        %v739 = vld [vmem:[%s327 + $0x1f0] sm:$0xff]
        %v740 = vld [vmem:[%s327 + $0x1f8] sm:$0xff]
        %v741 = vld [vmem:[%s327 + $0x200] sm:$0xff]
        %v742 = vld [vmem:[%s327 + $0x208] sm:$0xff]
        %v743 = vld [vmem:[%s327 + $0x210] sm:$0xff]
        %v744 = vld [vmem:[%s327 + $0x218] sm:$0xff]
        %v745 = vld [vmem:[%s327 + $0x220] sm:$0xff]
        %v746 = vld [vmem:[%s327 + $0x228] sm:$0xff]
        %v747 = vld [vmem:[%s327 + $0x230] sm:$0xff]
        %v748 = vld [vmem:[%s327 + $0x238] sm:$0xff]
        %v749 = vld [vmem:[%s327 + $0x240] sm:$0xff]
        %v750 = vld [vmem:[%s327 + $0x248] sm:$0xff]
        %v751 = vld [vmem:[%s327 + $0x250] sm:$0xff]
        %v752 = vld [vmem:[%s327 + $0x258] sm:$0xff]
        %v753 = vld [vmem:[%s327 + $0x260] sm:$0xff]
        %v754 = vld [vmem:[%s327 + $0x268] sm:$0xff]
        %v755 = vld [vmem:[%s327 + $0x270] sm:$0xff]
        %v756 = vld [vmem:[%s327 + $0x278] sm:$0xff]
        %v757 = vld [vmem:[%s327 + $0x280] sm:$0xff]
        %v758 = vld [vmem:[%s327 + $0x288] sm:$0xff]
        %v759 = vld [vmem:[%s327 + $0x290] sm:$0xff]
        %v760 = vld [vmem:[%s327 + $0x298] sm:$0xff]
        %v761 = vld [vmem:[%s327 + $0x2a0] sm:$0xff]
        %v762 = vld [vmem:[%s327 + $0x2a8] sm:$0xff]
        %v763 = vld [vmem:[%s327 + $0x2b0] sm:$0xff]
        %v764 = vld [vmem:[%s327 + $0x2b8] sm:$0xff]
        %v765 = vld [vmem:[%s327 + $0x2c0] sm:$0xff]
        %v766 = vld [vmem:[%s327 + $0x2c8] sm:$0xff]
        %v767 = vld [vmem:[%s327 + $0x2d0] sm:$0xff]
        %v768 = vld [vmem:[%s327 + $0x2d8] sm:$0xff]
        %v769 = vld [vmem:[%s327 + $0x2e0] sm:$0xff]
        %v770 = vld [vmem:[%s327 + $0x2e8] sm:$0xff]
        %v771 = vld [vmem:[%s327 + $0x2f0] sm:$0xff]
        %v772 = vld [vmem:[%s327 + $0x2f8] sm:$0xff]
        %v773 = vld [vmem:[%s327 + $0x300] sm:$0xff]
        %v774 = vld [vmem:[%s327 + $0x308] sm:$0xff]
        %v775 = vld [vmem:[%s327 + $0x310] sm:$0xff]
        %v776 = vld [vmem:[%s327 + $0x318] sm:$0xff]
        %v777 = vld [vmem:[%s327 + $0x320] sm:$0xff]
        %v778 = vld [vmem:[%s327 + $0x328] sm:$0xff]
        %v779 = vld [vmem:[%s327 + $0x330] sm:$0xff]
        %v780 = vld [vmem:[%s327 + $0x338] sm:$0xff]
        %v781 = vld [vmem:[%s327 + $0x340] sm:$0xff]
        %v782 = vld [vmem:[%s327 + $0x348] sm:$0xff]
        %v783 = vld [vmem:[%s327 + $0x350] sm:$0xff]
        %v784 = vld [vmem:[%s327 + $0x358] sm:$0xff]
        %v785 = vld [vmem:[%s327 + $0x360] sm:$0xff]
        %v786 = vld [vmem:[%s327 + $0x368] sm:$0xff]
        %v787 = vld [vmem:[%s327 + $0x370] sm:$0xff]
        %v788 = vld [vmem:[%s327 + $0x378] sm:$0xff]
        %v789 = vld [vmem:[%s327 + $0x380] sm:$0xff]
        %v790 = vld [vmem:[%s327 + $0x388] sm:$0xff]
        %v791 = vld [vmem:[%s327 + $0x390] sm:$0xff]
        %v792 = vld [vmem:[%s327 + $0x398] sm:$0xff]
        %v793 = vld [vmem:[%s327 + $0x3a0] sm:$0xff]
        %v794 = vld [vmem:[%s327 + $0x3a8] sm:$0xff]
        %v795 = vld [vmem:[%s327 + $0x3b0] sm:$0xff]
        %v796 = vld [vmem:[%s327 + $0x3b8] sm:$0xff]
        %v797 = vld [vmem:[%s327 + $0x3c0] sm:$0xff]
        %v798 = vld [vmem:[%s327 + $0x3c8] sm:$0xff]
        %v799 = vld [vmem:[%s327 + $0x3d0] sm:$0xff]
        %v800 = vld [vmem:[%s327 + $0x3d8] sm:$0xff]
        %v801 = vld [vmem:[%s327 + $0x3e0] sm:$0xff]
        %v802 = vld [vmem:[%s327 + $0x3e8] sm:$0xff]
        %v803 = vld [vmem:[%s327 + $0x3f0] sm:$0xff]
        %v804 = vld [vmem:[%s327 + $0x3f8] sm:$0xff]
        %v805 = vld [vmem:[%s327 + $0x400] sm:$0xff]
        %v806 = vld [vmem:[%s327 + $0x408] sm:$0xff]
        %v807 = vld [vmem:[%s327 + $0x410] sm:$0xff]
        %v808 = vld [vmem:[%s327 + $0x418] sm:$0xff]
        %v809 = vld [vmem:[%s327 + $0x420] sm:$0xff]
        %v810 = vld [vmem:[%s327 + $0x428] sm:$0xff]
        %v811 = vld [vmem:[%s327 + $0x430] sm:$0xff]
        %v812 = vld [vmem:[%s327 + $0x438] sm:$0xff]
        %v813 = vld [vmem:[%s327 + $0x440] sm:$0xff]
        %v814 = vld [vmem:[%s327 + $0x448] sm:$0xff]
        %v815 = vld [vmem:[%s327 + $0x450] sm:$0xff]
        %v816 = vld [vmem:[%s327 + $0x458] sm:$0xff]
        %v817 = vld [vmem:[%s327 + $0x460] sm:$0xff]
        %v818 = vld [vmem:[%s327 + $0x468] sm:$0xff]
        %v819 = vld [vmem:[%s327 + $0x470] sm:$0xff]
        %v820 = vld [vmem:[%s327 + $0x478] sm:$0xff]
        %v821 = vld [vmem:[%s327 + $0x480] sm:$0xff]
        %v822 = vld [vmem:[%s327 + $0x488] sm:$0xff]
        %v823 = vld [vmem:[%s327 + $0x490] sm:$0xff]
        %v824 = vld [vmem:[%s327 + $0x498] sm:$0xff]
        %v825 = vld [vmem:[%s327 + $0x4a0] sm:$0xff]
        %v826 = vld [vmem:[%s327 + $0x4a8] sm:$0xff]
        %v827 = vld [vmem:[%s327 + $0x4b0] sm:$0xff]
        %v828 = vld [vmem:[%s327 + $0x4b8] sm:$0xff]
        %v829 = vld [vmem:[%s327 + $0x4c0] sm:$0xff]
        %v830 = vld [vmem:[%s327 + $0x4c8] sm:$0xff]
        %v831 = vld [vmem:[%s327 + $0x4d0] sm:$0xff]
        %v832 = vld [vmem:[%s327 + $0x4d8] sm:$0xff]
        %v833 = vld [vmem:[%s327 + $0x4e0] sm:$0xff]
        %v834 = vld [vmem:[%s327 + $0x4e8] sm:$0xff]
        %v835 = vld [vmem:[%s327 + $0x4f0] sm:$0xff]
        %v836 = vld [vmem:[%s327 + $0x4f8] sm:$0xff]
        %v837 = vld [vmem:[%s327 + $0x500] sm:$0xff]
        %v838 = vld [vmem:[%s327 + $0x508] sm:$0xff]
        %v839 = vld [vmem:[%s327 + $0x510] sm:$0xff]
        %v840 = vld [vmem:[%s327 + $0x518] sm:$0xff]
        %v841 = vld [vmem:[%s327 + $0x520] sm:$0xff]
        %v842 = vld [vmem:[%s327 + $0x528] sm:$0xff]
        %v843 = vld [vmem:[%s327 + $0x530] sm:$0xff]
        %v844 = vld [vmem:[%s327 + $0x538] sm:$0xff]
        %v845 = vld [vmem:[%s327 + $0x540] sm:$0xff]
        %v846 = vld [vmem:[%s327 + $0x548] sm:$0xff]
        %v847 = vld [vmem:[%s327 + $0x550] sm:$0xff]
        %v848 = vld [vmem:[%s327 + $0x558] sm:$0xff]
        %v849 = vld [vmem:[%s327 + $0x560] sm:$0xff]
        %v850 = vld [vmem:[%s327 + $0x568] sm:$0xff]
        %v851 = vld [vmem:[%s327 + $0x570] sm:$0xff]
        %v852 = vld [vmem:[%s327 + $0x578] sm:$0xff]
        %v853 = vld [vmem:[%s327 + $0x580] sm:$0xff]
        %v854 = vld [vmem:[%s327 + $0x588] sm:$0xff]
        %v855 = vld [vmem:[%s327 + $0x590] sm:$0xff]
        %v856 = vld [vmem:[%s327 + $0x598] sm:$0xff]
        %v857 = vld [vmem:[%s327 + $0x5a0] sm:$0xff]
        %v858 = vld [vmem:[%s327 + $0x5a8] sm:$0xff]
        %v859 = vld [vmem:[%s327 + $0x5b0] sm:$0xff]
        %v860 = vld [vmem:[%s327 + $0x5b8] sm:$0xff]
        %v861 = vld [vmem:[%s327 + $0x5c0] sm:$0xff]
        %v862 = vld [vmem:[%s327 + $0x5c8] sm:$0xff]
        %v863 = vld [vmem:[%s327 + $0x5d0] sm:$0xff]
        %v864 = vld [vmem:[%s327 + $0x5d8] sm:$0xff]
        %v865 = vld [vmem:[%s327 + $0x5e0] sm:$0xff]
        %v866 = vld [vmem:[%s327 + $0x5e8] sm:$0xff]
        %v867 = vld [vmem:[%s327 + $0x5f0] sm:$0xff]
        %v868 = vld [vmem:[%s327 + $0x5f8] sm:$0xff]
        %v869 = vld [vmem:[%s327 + $0x600] sm:$0xff]
        %v870 = vld [vmem:[%s327 + $0x608] sm:$0xff]
        %v871 = vld [vmem:[%s327 + $0x610] sm:$0xff]
        %v872 = vld [vmem:[%s327 + $0x618] sm:$0xff]
        %v873 = vld [vmem:[%s327 + $0x620] sm:$0xff]
        %v874 = vld [vmem:[%s327 + $0x628] sm:$0xff]
        %v875 = vld [vmem:[%s327 + $0x630] sm:$0xff]
        %v876 = vld [vmem:[%s327 + $0x638] sm:$0xff]
        %v877 = vld [vmem:[%s327 + $0x640] sm:$0xff]
        %v878 = vld [vmem:[%s327 + $0x648] sm:$0xff]
        %v879 = vld [vmem:[%s327 + $0x650] sm:$0xff]
        %v880 = vld [vmem:[%s327 + $0x658] sm:$0xff]
        %v881 = vld [vmem:[%s327 + $0x660] sm:$0xff]
        %v882 = vld [vmem:[%s327 + $0x668] sm:$0xff]
        %v883 = vld [vmem:[%s327 + $0x670] sm:$0xff]
        %v884 = vld [vmem:[%s327 + $0x678] sm:$0xff]
        %v885 = vld [vmem:[%s327 + $0x680] sm:$0xff]
        %v886 = vld [vmem:[%s327 + $0x688] sm:$0xff]
        %v887 = vld [vmem:[%s327 + $0x690] sm:$0xff]
        %v888 = vld [vmem:[%s327 + $0x698] sm:$0xff]
        %v889 = vld [vmem:[%s327 + $0x6a0] sm:$0xff]
        %v890 = vld [vmem:[%s327 + $0x6a8] sm:$0xff]
        %v891 = vld [vmem:[%s327 + $0x6b0] sm:$0xff]
        %v892 = vld [vmem:[%s327 + $0x6b8] sm:$0xff]
        %v893 = vld [vmem:[%s327 + $0x6c0] sm:$0xff]
        %v894 = vld [vmem:[%s327 + $0x6c8] sm:$0xff]
        %v895 = vld [vmem:[%s327 + $0x6d0] sm:$0xff]
        %v896 = vld [vmem:[%s327 + $0x6d8] sm:$0xff]
        %v897 = vld [vmem:[%s327 + $0x6e0] sm:$0xff]
        %v898 = vld [vmem:[%s327 + $0x6e8] sm:$0xff]
        %v899 = vld [vmem:[%s327 + $0x6f0] sm:$0xff]
        %v900 = vld [vmem:[%s327 + $0x6f8] sm:$0xff]
        %v901 = vld [vmem:[%s327 + $0x700] sm:$0xff]
        %v902 = vld [vmem:[%s327 + $0x708] sm:$0xff]
        %v903 = vld [vmem:[%s327 + $0x710] sm:$0xff]
        %v904 = vld [vmem:[%s327 + $0x718] sm:$0xff]
        %v905 = vld [vmem:[%s327 + $0x720] sm:$0xff]
        %v906 = vld [vmem:[%s327 + $0x728] sm:$0xff]
        %v907 = vld [vmem:[%s327 + $0x730] sm:$0xff]
        %v908 = vld [vmem:[%s327 + $0x738] sm:$0xff]
        %v909 = vld [vmem:[%s327 + $0x740] sm:$0xff]
        %v910 = vld [vmem:[%s327 + $0x748] sm:$0xff]
        %v911 = vld [vmem:[%s327 + $0x750] sm:$0xff]
        %v912 = vld [vmem:[%s327 + $0x758] sm:$0xff]
        %v913 = vld [vmem:[%s327 + $0x760] sm:$0xff]
        %v914 = vld [vmem:[%s327 + $0x768] sm:$0xff]
        %v915 = vld [vmem:[%s327 + $0x770] sm:$0xff]
        %v916 = vld [vmem:[%s327 + $0x778] sm:$0xff]
        %v917 = vld [vmem:[%s327 + $0x780] sm:$0xff]
        %v918 = vld [vmem:[%s327 + $0x788] sm:$0xff]
        %v919 = vld [vmem:[%s327 + $0x790] sm:$0xff]
        %v920 = vld [vmem:[%s327 + $0x798] sm:$0xff]
        %v921 = vld [vmem:[%s327 + $0x7a0] sm:$0xff]
        %v922 = vld [vmem:[%s327 + $0x7a8] sm:$0xff]
        %v923 = vld [vmem:[%s327 + $0x7b0] sm:$0xff]
        %v924 = vld [vmem:[%s327 + $0x7b8] sm:$0xff]
        %v925 = vld [vmem:[%s327 + $0x7c0] sm:$0xff]
        %v926 = vld [vmem:[%s327 + $0x7c8] sm:$0xff]
        %v927 = vld [vmem:[%s327 + $0x7d0] sm:$0xff]
        %v928 = vld [vmem:[%s327 + $0x7d8] sm:$0xff]
        %v929 = vld [vmem:[%s327 + $0x7e0] sm:$0xff]
        %v930 = vld [vmem:[%s327 + $0x7e8] sm:$0xff]
        %v931 = vld [vmem:[%s327 + $0x7f0] sm:$0xff]
        %v932 = vld [vmem:[%s327 + $0x7f8] sm:$0xff]
        %v933 = vld [vmem:[%s327 + $0x800] sm:$0xff]
        %v934 = vld [vmem:[%s327 + $0x808] sm:$0xff]
        %v935 = vld [vmem:[%s327 + $0x810] sm:$0xff]
        %v936 = vld [vmem:[%s327 + $0x818] sm:$0xff]
        %v937 = vld [vmem:[%s327 + $0x820] sm:$0xff]
        %v938 = vld [vmem:[%s327 + $0x828] sm:$0xff]
        %v939 = vld [vmem:[%s327 + $0x830] sm:$0xff]
        %v940 = vld [vmem:[%s327 + $0x838] sm:$0xff]
        %v941 = vld [vmem:[%s327 + $0x840] sm:$0xff]
        %v942 = vld [vmem:[%s327 + $0x848] sm:$0xff]
        %v943 = vld [vmem:[%s327 + $0x850] sm:$0xff]
        %v944 = vld [vmem:[%s327 + $0x858] sm:$0xff]
        %v945 = vld [vmem:[%s327 + $0x860] sm:$0xff]
        %v946 = vld [vmem:[%s327 + $0x868] sm:$0xff]
        %v947 = vld [vmem:[%s327 + $0x870] sm:$0xff]
        %v948 = vld [vmem:[%s327 + $0x878] sm:$0xff]
        %v949 = vld [vmem:[%s327 + $0x880] sm:$0xff]
        %v950 = vld [vmem:[%s327 + $0x888] sm:$0xff]
        %v951 = vld [vmem:[%s327 + $0x890] sm:$0xff]
        %v952 = vld [vmem:[%s327 + $0x898] sm:$0xff]
        %v953 = vld [vmem:[%s327 + $0x8a0] sm:$0xff]
        %v954 = vld [vmem:[%s327 + $0x8a8] sm:$0xff]
        %v955 = vld [vmem:[%s327 + $0x8b0] sm:$0xff]
        %v956 = vld [vmem:[%s327 + $0x8b8] sm:$0xff]
        %v957 = vld [vmem:[%s327 + $0x8c0] sm:$0xff]
        %v958 = vld [vmem:[%s327 + $0x8c8] sm:$0xff]
        %v959 = vld [vmem:[%s327 + $0x8d0] sm:$0xff]
        %v960 = vld [vmem:[%s327 + $0x8d8] sm:$0xff]
        %v961 = vld [vmem:[%s327 + $0x8e0] sm:$0xff]
        %v962 = vld [vmem:[%s327 + $0x8e8] sm:$0xff]
        %v963 = vld [vmem:[%s327 + $0x8f0] sm:$0xff]
        %v964 = vld [vmem:[%s327 + $0x8f8] sm:$0xff]
        %v965 = vld [vmem:[%s327 + $0x900] sm:$0xff]
        %v966 = vld [vmem:[%s327 + $0x908] sm:$0xff]
        %v967 = vld [vmem:[%s327 + $0x910] sm:$0xff]
        %v968 = vld [vmem:[%s327 + $0x918] sm:$0xff]
        %v969 = vld [vmem:[%s327 + $0x920] sm:$0xff]
        %v970 = vld [vmem:[%s327 + $0x928] sm:$0xff]
        %v971 = vld [vmem:[%s327 + $0x930] sm:$0xff]
        %v972 = vld [vmem:[%s327 + $0x938] sm:$0xff]
        %v973 = vld [vmem:[%s327 + $0x940] sm:$0xff]
        %v974 = vld [vmem:[%s327 + $0x948] sm:$0xff]
        %v975 = vld [vmem:[%s327 + $0x950] sm:$0xff]
        %v976 = vld [vmem:[%s327 + $0x958] sm:$0xff]
        %v977 = vld [vmem:[%s327 + $0x960] sm:$0xff]
        %v978 = vld [vmem:[%s327 + $0x968] sm:$0xff]
        %v979 = vld [vmem:[%s327 + $0x970] sm:$0xff]
        %v980 = vld [vmem:[%s327 + $0x978] sm:$0xff]
        %v981 = vld [vmem:[%s327 + $0x980] sm:$0xff]
        %v982 = vld [vmem:[%s327 + $0x988] sm:$0xff]
        %v983 = vld [vmem:[%s327 + $0x990] sm:$0xff]
        %v984 = vld [vmem:[%s327 + $0x998] sm:$0xff]
        %v985 = vld [vmem:[%s327 + $0x9a0] sm:$0xff]
        %v986 = vld [vmem:[%s327 + $0x9a8] sm:$0xff]
        %v987 = vld [vmem:[%s327 + $0x9b0] sm:$0xff]
        %v988 = vld [vmem:[%s327 + $0x9b8] sm:$0xff]
        %v989 = vld [vmem:[%s327 + $0x9c0] sm:$0xff]
        %v990 = vld [vmem:[%s327 + $0x9c8] sm:$0xff]
        %v991 = vld [vmem:[%s327 + $0x9d0] sm:$0xff]
        %v992 = vld [vmem:[%s327 + $0x9d8] sm:$0xff]
        %v993 = vld [vmem:[%s327 + $0x9e0] sm:$0xff]
        %v994 = vld [vmem:[%s327 + $0x9e8] sm:$0xff]
        %v995 = vld [vmem:[%s327 + $0x9f0] sm:$0xff]
        %v996 = vld [vmem:[%s327 + $0x9f8] sm:$0xff]
        %v997 = vld [vmem:[%s336] sm:$0xff]
        %v998 = vld [vmem:[%s336 + $0x8] sm:$0xff]
        %v999 = vld [vmem:[%s336 + $0x10] sm:$0xff]
        %v1000 = vld [vmem:[%s336 + $0x18] sm:$0xff]
        %v1001 = vld [vmem:[%s336 + $0x20] sm:$0xff]
        %v1002 = vld [vmem:[%s336 + $0x28] sm:$0xff]
        %v1003 = vld [vmem:[%s336 + $0x30] sm:$0xff]
        %v1004 = vld [vmem:[%s336 + $0x38] sm:$0xff]
        %v1005 = vld [vmem:[%s336 + $0x40] sm:$0xff]
        %v1006 = vld [vmem:[%s336 + $0x48] sm:$0xff]
        %v1007 = vld [vmem:[%s336 + $0x50] sm:$0xff]
        %v1008 = vld [vmem:[%s336 + $0x58] sm:$0xff]
        %v1009 = vld [vmem:[%s336 + $0x60] sm:$0xff]
        %v1010 = vld [vmem:[%s336 + $0x68] sm:$0xff]
        %v1011 = vld [vmem:[%s336 + $0x70] sm:$0xff]
        %v1012 = vld [vmem:[%s336 + $0x78] sm:$0xff]
        %v1013 = vld [vmem:[%s336 + $0x80] sm:$0xff]
        %v1014 = vld [vmem:[%s336 + $0x88] sm:$0xff]
        %v1015 = vld [vmem:[%s336 + $0x90] sm:$0xff]
        %v1016 = vld [vmem:[%s336 + $0x98] sm:$0xff]
        %v1017 = vld [vmem:[%s336 + $0xa0] sm:$0xff]
        %v1018 = vld [vmem:[%s336 + $0xa8] sm:$0xff]
        %v1019 = vld [vmem:[%s336 + $0xb0] sm:$0xff]
        %v1020 = vld [vmem:[%s336 + $0xb8] sm:$0xff]
        %v1021 = vld [vmem:[%s336 + $0xc0] sm:$0xff]
        %v1022 = vld [vmem:[%s336 + $0xc8] sm:$0xff]
        %v1023 = vld [vmem:[%s336 + $0xd0] sm:$0xff]
        %v1024 = vld [vmem:[%s336 + $0xd8] sm:$0xff]
        %v1025 = vld [vmem:[%s336 + $0xe0] sm:$0xff]
        %v1026 = vld [vmem:[%s336 + $0xe8] sm:$0xff]
        %v1027 = vld [vmem:[%s336 + $0xf0] sm:$0xff]
        %v1028 = vld [vmem:[%s336 + $0xf8] sm:$0xff]
        %v1029 = vld [vmem:[%s336 + $0x100] sm:$0xff]
        %v1030 = vld [vmem:[%s336 + $0x108] sm:$0xff]
        %v1031 = vld [vmem:[%s336 + $0x110] sm:$0xff]
        %v1032 = vld [vmem:[%s336 + $0x118] sm:$0xff]
        %v1033 = vld [vmem:[%s336 + $0x120] sm:$0xff]
        %v1034 = vld [vmem:[%s336 + $0x128] sm:$0xff]
        %v1035 = vld [vmem:[%s336 + $0x130] sm:$0xff]
        %v1036 = vld [vmem:[%s336 + $0x138] sm:$0xff]
        %v1037 = vld [vmem:[%s336 + $0x140] sm:$0xff]
        %v1038 = vld [vmem:[%s336 + $0x148] sm:$0xff]
        %v1039 = vld [vmem:[%s336 + $0x150] sm:$0xff]
        %v1040 = vld [vmem:[%s336 + $0x158] sm:$0xff]
        %v1041 = vld [vmem:[%s336 + $0x160] sm:$0xff]
        %v1042 = vld [vmem:[%s336 + $0x168] sm:$0xff]
        %v1043 = vld [vmem:[%s336 + $0x170] sm:$0xff]
        %v1044 = vld [vmem:[%s336 + $0x178] sm:$0xff]
        %v1045 = vld [vmem:[%s336 + $0x180] sm:$0xff]
        %v1046 = vld [vmem:[%s336 + $0x188] sm:$0xff]
        %v1047 = vld [vmem:[%s336 + $0x190] sm:$0xff]
        %v1048 = vld [vmem:[%s336 + $0x198] sm:$0xff]
        %v1049 = vld [vmem:[%s336 + $0x1a0] sm:$0xff]
        %v1050 = vld [vmem:[%s336 + $0x1a8] sm:$0xff]
        %v1051 = vld [vmem:[%s336 + $0x1b0] sm:$0xff]
        %v1052 = vld [vmem:[%s336 + $0x1b8] sm:$0xff]
        %v1053 = vld [vmem:[%s336 + $0x1c0] sm:$0xff]
        %v1054 = vld [vmem:[%s336 + $0x1c8] sm:$0xff]
        %v1055 = vld [vmem:[%s336 + $0x1d0] sm:$0xff]
        %v1056 = vld [vmem:[%s336 + $0x1d8] sm:$0xff]
        %v1057 = vld [vmem:[%s336 + $0x1e0] sm:$0xff]
        %v1058 = vld [vmem:[%s336 + $0x1e8] sm:$0xff]
        %v1059 = vld [vmem:[%s336 + $0x1f0] sm:$0xff]
        %v1060 = vld [vmem:[%s336 + $0x1f8] sm:$0xff]
        %v1061 = vld [vmem:[%s336 + $0x200] sm:$0xff]
        %v1062 = vld [vmem:[%s336 + $0x208] sm:$0xff]
        %v1063 = vld [vmem:[%s336 + $0x210] sm:$0xff]
        %v1064 = vld [vmem:[%s336 + $0x218] sm:$0xff]
        %v1065 = vld [vmem:[%s336 + $0x220] sm:$0xff]
        %v1066 = vld [vmem:[%s336 + $0x228] sm:$0xff]
        %v1067 = vld [vmem:[%s336 + $0x230] sm:$0xff]
        %v1068 = vld [vmem:[%s336 + $0x238] sm:$0xff]
        %v1069 = vld [vmem:[%s336 + $0x240] sm:$0xff]
        %v1070 = vld [vmem:[%s336 + $0x248] sm:$0xff]
        %v1071 = vld [vmem:[%s336 + $0x250] sm:$0xff]
        %v1072 = vld [vmem:[%s336 + $0x258] sm:$0xff]
        %v1073 = vld [vmem:[%s336 + $0x260] sm:$0xff]
        %v1074 = vld [vmem:[%s336 + $0x268] sm:$0xff]
        %v1075 = vld [vmem:[%s336 + $0x270] sm:$0xff]
        %v1076 = vld [vmem:[%s336 + $0x278] sm:$0xff]
        %v1077 = vld [vmem:[%s336 + $0x280] sm:$0xff]
        %v1078 = vld [vmem:[%s336 + $0x288] sm:$0xff]
        %v1079 = vld [vmem:[%s336 + $0x290] sm:$0xff]
        %v1080 = vld [vmem:[%s336 + $0x298] sm:$0xff]
        %v1081 = vld [vmem:[%s336 + $0x2a0] sm:$0xff]
        %v1082 = vld [vmem:[%s336 + $0x2a8] sm:$0xff]
        %v1083 = vld [vmem:[%s336 + $0x2b0] sm:$0xff]
        %v1084 = vld [vmem:[%s336 + $0x2b8] sm:$0xff]
        %v1085 = vld [vmem:[%s336 + $0x2c0] sm:$0xff]
        %v1086 = vld [vmem:[%s336 + $0x2c8] sm:$0xff]
        %v1087 = vld [vmem:[%s336 + $0x2d0] sm:$0xff]
        %v1088 = vld [vmem:[%s336 + $0x2d8] sm:$0xff]
        %v1089 = vld [vmem:[%s336 + $0x2e0] sm:$0xff]
        %v1090 = vld [vmem:[%s336 + $0x2e8] sm:$0xff]
        %v1091 = vld [vmem:[%s336 + $0x2f0] sm:$0xff]
        %v1092 = vld [vmem:[%s336 + $0x2f8] sm:$0xff]
        %v1093 = vld [vmem:[%s336 + $0x300] sm:$0xff]
        %v1094 = vld [vmem:[%s336 + $0x308] sm:$0xff]
        %v1095 = vld [vmem:[%s336 + $0x310] sm:$0xff]
        %v1096 = vld [vmem:[%s336 + $0x318] sm:$0xff]
        %v1097 = vld [vmem:[%s336 + $0x320] sm:$0xff]
        %v1098 = vld [vmem:[%s336 + $0x328] sm:$0xff]
        %v1099 = vld [vmem:[%s336 + $0x330] sm:$0xff]
        %v1100 = vld [vmem:[%s336 + $0x338] sm:$0xff]
        %v1101 = vld [vmem:[%s336 + $0x340] sm:$0xff]
        %v1102 = vld [vmem:[%s336 + $0x348] sm:$0xff]
        %v1103 = vld [vmem:[%s336 + $0x350] sm:$0xff]
        %v1104 = vld [vmem:[%s336 + $0x358] sm:$0xff]
        %v1105 = vld [vmem:[%s336 + $0x360] sm:$0xff]
        %v1106 = vld [vmem:[%s336 + $0x368] sm:$0xff]
        %v1107 = vld [vmem:[%s336 + $0x370] sm:$0xff]
        %v1108 = vld [vmem:[%s336 + $0x378] sm:$0xff]
        %v1109 = vld [vmem:[%s336 + $0x380] sm:$0xff]
        %v1110 = vld [vmem:[%s336 + $0x388] sm:$0xff]
        %v1111 = vld [vmem:[%s336 + $0x390] sm:$0xff]
        %v1112 = vld [vmem:[%s336 + $0x398] sm:$0xff]
        %v1113 = vld [vmem:[%s336 + $0x3a0] sm:$0xff]
        %v1114 = vld [vmem:[%s336 + $0x3a8] sm:$0xff]
        %v1115 = vld [vmem:[%s336 + $0x3b0] sm:$0xff]
        %v1116 = vld [vmem:[%s336 + $0x3b8] sm:$0xff]
        %v1117 = vld [vmem:[%s336 + $0x3c0] sm:$0xff]
        %v1118 = vld [vmem:[%s336 + $0x3c8] sm:$0xff]
        %v1119 = vld [vmem:[%s336 + $0x3d0] sm:$0xff]
        %v1120 = vld [vmem:[%s336 + $0x3d8] sm:$0xff]
        %v1121 = vld [vmem:[%s336 + $0x3e0] sm:$0xff]
        %v1122 = vld [vmem:[%s336 + $0x3e8] sm:$0xff]
        %v1123 = vld [vmem:[%s336 + $0x3f0] sm:$0xff]
        %v1124 = vld [vmem:[%s336 + $0x3f8] sm:$0xff]
        %v1125 = vld [vmem:[%s336 + $0x400] sm:$0xff]
        %v1126 = vld [vmem:[%s336 + $0x408] sm:$0xff]
        %v1127 = vld [vmem:[%s336 + $0x410] sm:$0xff]
        %v1128 = vld [vmem:[%s336 + $0x418] sm:$0xff]
        %v1129 = vld [vmem:[%s336 + $0x420] sm:$0xff]
        %v1130 = vld [vmem:[%s336 + $0x428] sm:$0xff]
        %v1131 = vld [vmem:[%s336 + $0x430] sm:$0xff]
        %v1132 = vld [vmem:[%s336 + $0x438] sm:$0xff]
        %v1133 = vld [vmem:[%s336 + $0x440] sm:$0xff]
        %v1134 = vld [vmem:[%s336 + $0x448] sm:$0xff]
        %v1135 = vld [vmem:[%s336 + $0x450] sm:$0xff]
        %v1136 = vld [vmem:[%s336 + $0x458] sm:$0xff]
        %v1137 = vld [vmem:[%s336 + $0x460] sm:$0xff]
        %v1138 = vld [vmem:[%s336 + $0x468] sm:$0xff]
        %v1139 = vld [vmem:[%s336 + $0x470] sm:$0xff]
        %v1140 = vld [vmem:[%s336 + $0x478] sm:$0xff]
        %v1141 = vld [vmem:[%s336 + $0x480] sm:$0xff]
        %v1142 = vld [vmem:[%s336 + $0x488] sm:$0xff]
        %v1143 = vld [vmem:[%s336 + $0x490] sm:$0xff]
        %v1144 = vld [vmem:[%s336 + $0x498] sm:$0xff]
        %v1145 = vld [vmem:[%s336 + $0x4a0] sm:$0xff]
        %v1146 = vld [vmem:[%s336 + $0x4a8] sm:$0xff]
        %v1147 = vld [vmem:[%s336 + $0x4b0] sm:$0xff]
        %v1148 = vld [vmem:[%s336 + $0x4b8] sm:$0xff]
        %v1149 = vld [vmem:[%s336 + $0x4c0] sm:$0xff]
        %v1150 = vld [vmem:[%s336 + $0x4c8] sm:$0xff]
        %v1151 = vld [vmem:[%s336 + $0x4d0] sm:$0xff]
        %v1152 = vld [vmem:[%s336 + $0x4d8] sm:$0xff]
        %v1153 = vld [vmem:[%s336 + $0x4e0] sm:$0xff]
        %v1154 = vld [vmem:[%s336 + $0x4e8] sm:$0xff]
        %v1155 = vld [vmem:[%s336 + $0x4f0] sm:$0xff]
        %v1156 = vld [vmem:[%s336 + $0x4f8] sm:$0xff]
        %v1477 = vunpack.c.l.b16 %v677
        %v1478 = vunpack.c.h.b16 %v677
        %v1479 = vunpack.c.l.b16 %v678
        %v1480 = vunpack.c.h.b16 %v678
        %v1481 = vunpack.c.l.b16 %v679
        %v1482 = vunpack.c.h.b16 %v679
        %v1483 = vunpack.c.l.b16 %v680
        %v1484 = vunpack.c.h.b16 %v680
        %v1485 = vunpack.c.l.b16 %v681
        %v1486 = vunpack.c.h.b16 %v681
        %v1487 = vunpack.c.l.b16 %v682
        %v1488 = vunpack.c.h.b16 %v682
        %v1489 = vunpack.c.l.b16 %v683
        %v1490 = vunpack.c.h.b16 %v683
        %v1491 = vunpack.c.l.b16 %v684
        %v1492 = vunpack.c.h.b16 %v684
        %v1493 = vunpack.c.l.b16 %v685
        %v1494 = vunpack.c.h.b16 %v685
        %v1495 = vunpack.c.l.b16 %v686
        %v1496 = vunpack.c.h.b16 %v686
        %v1497 = vunpack.c.l.b16 %v687
        %v1498 = vunpack.c.h.b16 %v687
        %v1499 = vunpack.c.l.b16 %v688
        %v1500 = vunpack.c.h.b16 %v688
        %v1501 = vunpack.c.l.b16 %v689
        %v1502 = vunpack.c.h.b16 %v689
        %v1503 = vunpack.c.l.b16 %v690
        %v1504 = vunpack.c.h.b16 %v690
        %v1505 = vunpack.c.l.b16 %v691
        %v1506 = vunpack.c.h.b16 %v691
        %v1507 = vunpack.c.l.b16 %v692
        %v1508 = vunpack.c.h.b16 %v692
        %v1509 = vunpack.c.l.b16 %v693
        %v1510 = vunpack.c.h.b16 %v693
        %v1511 = vunpack.c.l.b16 %v694
        %v1512 = vunpack.c.h.b16 %v694
        %v1513 = vunpack.c.l.b16 %v695
        %v1514 = vunpack.c.h.b16 %v695
        %v1515 = vunpack.c.l.b16 %v696
        %v1516 = vunpack.c.h.b16 %v696
        %v1517 = vunpack.c.l.b16 %v697
        %v1518 = vunpack.c.h.b16 %v697
        %v1519 = vunpack.c.l.b16 %v698
        %v1520 = vunpack.c.h.b16 %v698
        %v1521 = vunpack.c.l.b16 %v699
        %v1522 = vunpack.c.h.b16 %v699
        %v1523 = vunpack.c.l.b16 %v700
        %v1524 = vunpack.c.h.b16 %v700
        %v1525 = vunpack.c.l.b16 %v701
        %v1526 = vunpack.c.h.b16 %v701
        %v1527 = vunpack.c.l.b16 %v702
        %v1528 = vunpack.c.h.b16 %v702
        %v1529 = vunpack.c.l.b16 %v703
        %v1530 = vunpack.c.h.b16 %v703
        %v1531 = vunpack.c.l.b16 %v704
        %v1532 = vunpack.c.h.b16 %v704
        %v1533 = vunpack.c.l.b16 %v705
        %v1534 = vunpack.c.h.b16 %v705
        %v1535 = vunpack.c.l.b16 %v706
        %v1536 = vunpack.c.h.b16 %v706
        %v1537 = vunpack.c.l.b16 %v707
        %v1538 = vunpack.c.h.b16 %v707
        %v1539 = vunpack.c.l.b16 %v708
        %v1540 = vunpack.c.h.b16 %v708
        %v1541 = vunpack.c.l.b16 %v709
        %v1542 = vunpack.c.h.b16 %v709
        %v1543 = vunpack.c.l.b16 %v710
        %v1544 = vunpack.c.h.b16 %v710
        %v1545 = vunpack.c.l.b16 %v711
        %v1546 = vunpack.c.h.b16 %v711
        %v1547 = vunpack.c.l.b16 %v712
        %v1548 = vunpack.c.h.b16 %v712
        %v1549 = vunpack.c.l.b16 %v713
        %v1550 = vunpack.c.h.b16 %v713
        %v1551 = vunpack.c.l.b16 %v714
        %v1552 = vunpack.c.h.b16 %v714
        %v1553 = vunpack.c.l.b16 %v715
        %v1554 = vunpack.c.h.b16 %v715
        %v1555 = vunpack.c.l.b16 %v716
        %v1556 = vunpack.c.h.b16 %v716
        %v1557 = vunpack.c.l.b16 %v717
        %v1558 = vunpack.c.h.b16 %v717
        %v1559 = vunpack.c.l.b16 %v718
        %v1560 = vunpack.c.h.b16 %v718
        %v1561 = vunpack.c.l.b16 %v719
        %v1562 = vunpack.c.h.b16 %v719
        %v1563 = vunpack.c.l.b16 %v720
        %v1564 = vunpack.c.h.b16 %v720
        %v1565 = vunpack.c.l.b16 %v721
        %v1566 = vunpack.c.h.b16 %v721
        %v1567 = vunpack.c.l.b16 %v722
        %v1568 = vunpack.c.h.b16 %v722
        %v1569 = vunpack.c.l.b16 %v723
        %v1570 = vunpack.c.h.b16 %v723
        %v1571 = vunpack.c.l.b16 %v724
        %v1572 = vunpack.c.h.b16 %v724
        %v1573 = vunpack.c.l.b16 %v725
        %v1574 = vunpack.c.h.b16 %v725
        %v1575 = vunpack.c.l.b16 %v726
        %v1576 = vunpack.c.h.b16 %v726
        %v1577 = vunpack.c.l.b16 %v727
        %v1578 = vunpack.c.h.b16 %v727
        %v1579 = vunpack.c.l.b16 %v728
        %v1580 = vunpack.c.h.b16 %v728
        %v1581 = vunpack.c.l.b16 %v729
        %v1582 = vunpack.c.h.b16 %v729
        %v1583 = vunpack.c.l.b16 %v730
        %v1584 = vunpack.c.h.b16 %v730
        %v1585 = vunpack.c.l.b16 %v731
        %v1586 = vunpack.c.h.b16 %v731
        %v1587 = vunpack.c.l.b16 %v732
        %v1588 = vunpack.c.h.b16 %v732
        %v1589 = vunpack.c.l.b16 %v733
        %v1590 = vunpack.c.h.b16 %v733
        %v1591 = vunpack.c.l.b16 %v734
        %v1592 = vunpack.c.h.b16 %v734
        %v1593 = vunpack.c.l.b16 %v735
        %v1594 = vunpack.c.h.b16 %v735
        %v1595 = vunpack.c.l.b16 %v736
        %v1596 = vunpack.c.h.b16 %v736
        %v1597 = vunpack.c.l.b16 %v737
        %v1598 = vunpack.c.h.b16 %v737
        %v1599 = vunpack.c.l.b16 %v738
        %v1600 = vunpack.c.h.b16 %v738
        %v1601 = vunpack.c.l.b16 %v739
        %v1602 = vunpack.c.h.b16 %v739
        %v1603 = vunpack.c.l.b16 %v740
        %v1604 = vunpack.c.h.b16 %v740
        %v1605 = vunpack.c.l.b16 %v741
        %v1606 = vunpack.c.h.b16 %v741
        %v1607 = vunpack.c.l.b16 %v742
        %v1608 = vunpack.c.h.b16 %v742
        %v1609 = vunpack.c.l.b16 %v743
        %v1610 = vunpack.c.h.b16 %v743
        %v1611 = vunpack.c.l.b16 %v744
        %v1612 = vunpack.c.h.b16 %v744
        %v1613 = vunpack.c.l.b16 %v745
        %v1614 = vunpack.c.h.b16 %v745
        %v1615 = vunpack.c.l.b16 %v746
        %v1616 = vunpack.c.h.b16 %v746
        %v1617 = vunpack.c.l.b16 %v747
        %v1618 = vunpack.c.h.b16 %v747
        %v1619 = vunpack.c.l.b16 %v748
        %v1620 = vunpack.c.h.b16 %v748
        %v1621 = vunpack.c.l.b16 %v749
        %v1622 = vunpack.c.h.b16 %v749
        %v1623 = vunpack.c.l.b16 %v750
        %v1624 = vunpack.c.h.b16 %v750
        %v1625 = vunpack.c.l.b16 %v751
        %v1626 = vunpack.c.h.b16 %v751
        %v1627 = vunpack.c.l.b16 %v752
        %v1628 = vunpack.c.h.b16 %v752
        %v1629 = vunpack.c.l.b16 %v753
        %v1630 = vunpack.c.h.b16 %v753
        %v1631 = vunpack.c.l.b16 %v754
        %v1632 = vunpack.c.h.b16 %v754
        %v1633 = vunpack.c.l.b16 %v755
        %v1634 = vunpack.c.h.b16 %v755
        %v1635 = vunpack.c.l.b16 %v756
        %v1636 = vunpack.c.h.b16 %v756
        %v1637 = vunpack.c.l.b16 %v757
        %v1638 = vunpack.c.h.b16 %v757
        %v1639 = vunpack.c.l.b16 %v758
        %v1640 = vunpack.c.h.b16 %v758
        %v1641 = vunpack.c.l.b16 %v759
        %v1642 = vunpack.c.h.b16 %v759
        %v1643 = vunpack.c.l.b16 %v760
        %v1644 = vunpack.c.h.b16 %v760
        %v1645 = vunpack.c.l.b16 %v761
        %v1646 = vunpack.c.h.b16 %v761
        %v1647 = vunpack.c.l.b16 %v762
        %v1648 = vunpack.c.h.b16 %v762
        %v1649 = vunpack.c.l.b16 %v763
        %v1650 = vunpack.c.h.b16 %v763
        %v1651 = vunpack.c.l.b16 %v764
        %v1652 = vunpack.c.h.b16 %v764
        %v1653 = vunpack.c.l.b16 %v765
        %v1654 = vunpack.c.h.b16 %v765
        %v1655 = vunpack.c.l.b16 %v766
        %v1656 = vunpack.c.h.b16 %v766
        %v1657 = vunpack.c.l.b16 %v767
        %v1658 = vunpack.c.h.b16 %v767
        %v1659 = vunpack.c.l.b16 %v768
        %v1660 = vunpack.c.h.b16 %v768
        %v1661 = vunpack.c.l.b16 %v769
        %v1662 = vunpack.c.h.b16 %v769
        %v1663 = vunpack.c.l.b16 %v770
        %v1664 = vunpack.c.h.b16 %v770
        %v1665 = vunpack.c.l.b16 %v771
        %v1666 = vunpack.c.h.b16 %v771
        %v1667 = vunpack.c.l.b16 %v772
        %v1668 = vunpack.c.h.b16 %v772
        %v1669 = vunpack.c.l.b16 %v773
        %v1670 = vunpack.c.h.b16 %v773
        %v1671 = vunpack.c.l.b16 %v774
        %v1672 = vunpack.c.h.b16 %v774
        %v1673 = vunpack.c.l.b16 %v775
        %v1674 = vunpack.c.h.b16 %v775
        %v1675 = vunpack.c.l.b16 %v776
        %v1676 = vunpack.c.h.b16 %v776
        %v1677 = vunpack.c.l.b16 %v777
        %v1678 = vunpack.c.h.b16 %v777
        %v1679 = vunpack.c.l.b16 %v778
        %v1680 = vunpack.c.h.b16 %v778
        %v1681 = vunpack.c.l.b16 %v779
        %v1682 = vunpack.c.h.b16 %v779
        %v1683 = vunpack.c.l.b16 %v780
        %v1684 = vunpack.c.h.b16 %v780
        %v1685 = vunpack.c.l.b16 %v781
        %v1686 = vunpack.c.h.b16 %v781
        %v1687 = vunpack.c.l.b16 %v782
        %v1688 = vunpack.c.h.b16 %v782
        %v1689 = vunpack.c.l.b16 %v783
        %v1690 = vunpack.c.h.b16 %v783
        %v1691 = vunpack.c.l.b16 %v784
        %v1692 = vunpack.c.h.b16 %v784
        %v1693 = vunpack.c.l.b16 %v785
        %v1694 = vunpack.c.h.b16 %v785
        %v1695 = vunpack.c.l.b16 %v786
        %v1696 = vunpack.c.h.b16 %v786
        %v1697 = vunpack.c.l.b16 %v787
        %v1698 = vunpack.c.h.b16 %v787
        %v1699 = vunpack.c.l.b16 %v788
        %v1700 = vunpack.c.h.b16 %v788
        %v1701 = vunpack.c.l.b16 %v789
        %v1702 = vunpack.c.h.b16 %v789
        %v1703 = vunpack.c.l.b16 %v790
        %v1704 = vunpack.c.h.b16 %v790
        %v1705 = vunpack.c.l.b16 %v791
        %v1706 = vunpack.c.h.b16 %v791
        %v1707 = vunpack.c.l.b16 %v792
        %v1708 = vunpack.c.h.b16 %v792
        %v1709 = vunpack.c.l.b16 %v793
        %v1710 = vunpack.c.h.b16 %v793
        %v1711 = vunpack.c.l.b16 %v794
        %v1712 = vunpack.c.h.b16 %v794
        %v1713 = vunpack.c.l.b16 %v795
        %v1714 = vunpack.c.h.b16 %v795
        %v1715 = vunpack.c.l.b16 %v796
        %v1716 = vunpack.c.h.b16 %v796
        %v1717 = vunpack.c.l.b16 %v797
        %v1718 = vunpack.c.h.b16 %v797
        %v1719 = vunpack.c.l.b16 %v798
        %v1720 = vunpack.c.h.b16 %v798
        %v1721 = vunpack.c.l.b16 %v799
        %v1722 = vunpack.c.h.b16 %v799
        %v1723 = vunpack.c.l.b16 %v800
        %v1724 = vunpack.c.h.b16 %v800
        %v1725 = vunpack.c.l.b16 %v801
        %v1726 = vunpack.c.h.b16 %v801
        %v1727 = vunpack.c.l.b16 %v802
        %v1728 = vunpack.c.h.b16 %v802
        %v1729 = vunpack.c.l.b16 %v803
        %v1730 = vunpack.c.h.b16 %v803
        %v1731 = vunpack.c.l.b16 %v804
        %v1732 = vunpack.c.h.b16 %v804
        %v1733 = vunpack.c.l.b16 %v805
        %v1734 = vunpack.c.h.b16 %v805
        %v1735 = vunpack.c.l.b16 %v806
        %v1736 = vunpack.c.h.b16 %v806
        %v1737 = vunpack.c.l.b16 %v807
        %v1738 = vunpack.c.h.b16 %v807
        %v1739 = vunpack.c.l.b16 %v808
        %v1740 = vunpack.c.h.b16 %v808
        %v1741 = vunpack.c.l.b16 %v809
        %v1742 = vunpack.c.h.b16 %v809
        %v1743 = vunpack.c.l.b16 %v810
        %v1744 = vunpack.c.h.b16 %v810
        %v1745 = vunpack.c.l.b16 %v811
        %v1746 = vunpack.c.h.b16 %v811
        %v1747 = vunpack.c.l.b16 %v812
        %v1748 = vunpack.c.h.b16 %v812
        %v1749 = vunpack.c.l.b16 %v813
        %v1750 = vunpack.c.h.b16 %v813
        %v1751 = vunpack.c.l.b16 %v814
        %v1752 = vunpack.c.h.b16 %v814
        %v1753 = vunpack.c.l.b16 %v815
        %v1754 = vunpack.c.h.b16 %v815
        %v1755 = vunpack.c.l.b16 %v816
        %v1756 = vunpack.c.h.b16 %v816
        %v1757 = vunpack.c.l.b16 %v817
        %v1758 = vunpack.c.h.b16 %v817
        %v1759 = vunpack.c.l.b16 %v818
        %v1760 = vunpack.c.h.b16 %v818
        %v1761 = vunpack.c.l.b16 %v819
        %v1762 = vunpack.c.h.b16 %v819
        %v1763 = vunpack.c.l.b16 %v820
        %v1764 = vunpack.c.h.b16 %v820
        %v1765 = vunpack.c.l.b16 %v821
        %v1766 = vunpack.c.h.b16 %v821
        %v1767 = vunpack.c.l.b16 %v822
        %v1768 = vunpack.c.h.b16 %v822
        %v1769 = vunpack.c.l.b16 %v823
        %v1770 = vunpack.c.h.b16 %v823
        %v1771 = vunpack.c.l.b16 %v824
        %v1772 = vunpack.c.h.b16 %v824
        %v1773 = vunpack.c.l.b16 %v825
        %v1774 = vunpack.c.h.b16 %v825
        %v1775 = vunpack.c.l.b16 %v826
        %v1776 = vunpack.c.h.b16 %v826
        %v1777 = vunpack.c.l.b16 %v827
        %v1778 = vunpack.c.h.b16 %v827
        %v1779 = vunpack.c.l.b16 %v828
        %v1780 = vunpack.c.h.b16 %v828
        %v1781 = vunpack.c.l.b16 %v829
        %v1782 = vunpack.c.h.b16 %v829
        %v1783 = vunpack.c.l.b16 %v830
        %v1784 = vunpack.c.h.b16 %v830
        %v1785 = vunpack.c.l.b16 %v831
        %v1786 = vunpack.c.h.b16 %v831
        %v1787 = vunpack.c.l.b16 %v832
        %v1788 = vunpack.c.h.b16 %v832
        %v1789 = vunpack.c.l.b16 %v833
        %v1790 = vunpack.c.h.b16 %v833
        %v1791 = vunpack.c.l.b16 %v834
        %v1792 = vunpack.c.h.b16 %v834
        %v1793 = vunpack.c.l.b16 %v835
        %v1794 = vunpack.c.h.b16 %v835
        %v1795 = vunpack.c.l.b16 %v836
        %v1796 = vunpack.c.h.b16 %v836
        %v1797 = vunpack.c.l.b16 %v837
        %v1798 = vunpack.c.h.b16 %v837
        %v1799 = vunpack.c.l.b16 %v838
        %v1800 = vunpack.c.h.b16 %v838
        %v1801 = vunpack.c.l.b16 %v839
        %v1802 = vunpack.c.h.b16 %v839
        %v1803 = vunpack.c.l.b16 %v840
        %v1804 = vunpack.c.h.b16 %v840
        %v1805 = vunpack.c.l.b16 %v841
        %v1806 = vunpack.c.h.b16 %v841
        %v1807 = vunpack.c.l.b16 %v842
        %v1808 = vunpack.c.h.b16 %v842
        %v1809 = vunpack.c.l.b16 %v843
        %v1810 = vunpack.c.h.b16 %v843
        %v1811 = vunpack.c.l.b16 %v844
        %v1812 = vunpack.c.h.b16 %v844
        %v1813 = vunpack.c.l.b16 %v845
        %v1814 = vunpack.c.h.b16 %v845
        %v1815 = vunpack.c.l.b16 %v846
        %v1816 = vunpack.c.h.b16 %v846
        %v1817 = vunpack.c.l.b16 %v847
        %v1818 = vunpack.c.h.b16 %v847
        %v1819 = vunpack.c.l.b16 %v848
        %v1820 = vunpack.c.h.b16 %v848
        %v1821 = vunpack.c.l.b16 %v849
        %v1822 = vunpack.c.h.b16 %v849
        %v1823 = vunpack.c.l.b16 %v850
        %v1824 = vunpack.c.h.b16 %v850
        %v1825 = vunpack.c.l.b16 %v851
        %v1826 = vunpack.c.h.b16 %v851
        %v1827 = vunpack.c.l.b16 %v852
        %v1828 = vunpack.c.h.b16 %v852
        %v1829 = vunpack.c.l.b16 %v853
        %v1830 = vunpack.c.h.b16 %v853
        %v1831 = vunpack.c.l.b16 %v854
        %v1832 = vunpack.c.h.b16 %v854
        %v1833 = vunpack.c.l.b16 %v855
        %v1834 = vunpack.c.h.b16 %v855
        %v1835 = vunpack.c.l.b16 %v856
        %v1836 = vunpack.c.h.b16 %v856
        %v1837 = vunpack.c.l.b16 %v857
        %v1838 = vunpack.c.h.b16 %v857
        %v1839 = vunpack.c.l.b16 %v858
        %v1840 = vunpack.c.h.b16 %v858
        %v1841 = vunpack.c.l.b16 %v859
        %v1842 = vunpack.c.h.b16 %v859
        %v1843 = vunpack.c.l.b16 %v860
        %v1844 = vunpack.c.h.b16 %v860
        %v1845 = vunpack.c.l.b16 %v861
        %v1846 = vunpack.c.h.b16 %v861
        %v1847 = vunpack.c.l.b16 %v862
        %v1848 = vunpack.c.h.b16 %v862
        %v1849 = vunpack.c.l.b16 %v863
        %v1850 = vunpack.c.h.b16 %v863
        %v1851 = vunpack.c.l.b16 %v864
        %v1852 = vunpack.c.h.b16 %v864
        %v1853 = vunpack.c.l.b16 %v865
        %v1854 = vunpack.c.h.b16 %v865
        %v1855 = vunpack.c.l.b16 %v866
        %v1856 = vunpack.c.h.b16 %v866
        %v1857 = vunpack.c.l.b16 %v867
        %v1858 = vunpack.c.h.b16 %v867
        %v1859 = vunpack.c.l.b16 %v868
        %v1860 = vunpack.c.h.b16 %v868
        %v1861 = vunpack.c.l.b16 %v869
        %v1862 = vunpack.c.h.b16 %v869
        %v1863 = vunpack.c.l.b16 %v870
        %v1864 = vunpack.c.h.b16 %v870
        %v1865 = vunpack.c.l.b16 %v871
        %v1866 = vunpack.c.h.b16 %v871
        %v1867 = vunpack.c.l.b16 %v872
        %v1868 = vunpack.c.h.b16 %v872
        %v1869 = vunpack.c.l.b16 %v873
        %v1870 = vunpack.c.h.b16 %v873
        %v1871 = vunpack.c.l.b16 %v874
        %v1872 = vunpack.c.h.b16 %v874
        %v1873 = vunpack.c.l.b16 %v875
        %v1874 = vunpack.c.h.b16 %v875
        %v1875 = vunpack.c.l.b16 %v876
        %v1876 = vunpack.c.h.b16 %v876
        %v1877 = vunpack.c.l.b16 %v877
        %v1878 = vunpack.c.h.b16 %v877
        %v1879 = vunpack.c.l.b16 %v878
        %v1880 = vunpack.c.h.b16 %v878
        %v1881 = vunpack.c.l.b16 %v879
        %v1882 = vunpack.c.h.b16 %v879
        %v1883 = vunpack.c.l.b16 %v880
        %v1884 = vunpack.c.h.b16 %v880
        %v1885 = vunpack.c.l.b16 %v881
        %v1886 = vunpack.c.h.b16 %v881
        %v1887 = vunpack.c.l.b16 %v882
        %v1888 = vunpack.c.h.b16 %v882
        %v1889 = vunpack.c.l.b16 %v883
        %v1890 = vunpack.c.h.b16 %v883
        %v1891 = vunpack.c.l.b16 %v884
        %v1892 = vunpack.c.h.b16 %v884
        %v1893 = vunpack.c.l.b16 %v885
        %v1894 = vunpack.c.h.b16 %v885
        %v1895 = vunpack.c.l.b16 %v886
        %v1896 = vunpack.c.h.b16 %v886
        %v1897 = vunpack.c.l.b16 %v887
        %v1898 = vunpack.c.h.b16 %v887
        %v1899 = vunpack.c.l.b16 %v888
        %v1900 = vunpack.c.h.b16 %v888
        %v1901 = vunpack.c.l.b16 %v889
        %v1902 = vunpack.c.h.b16 %v889
        %v1903 = vunpack.c.l.b16 %v890
        %v1904 = vunpack.c.h.b16 %v890
        %v1905 = vunpack.c.l.b16 %v891
        %v1906 = vunpack.c.h.b16 %v891
        %v1907 = vunpack.c.l.b16 %v892
        %v1908 = vunpack.c.h.b16 %v892
        %v1909 = vunpack.c.l.b16 %v893
        %v1910 = vunpack.c.h.b16 %v893
        %v1911 = vunpack.c.l.b16 %v894
        %v1912 = vunpack.c.h.b16 %v894
        %v1913 = vunpack.c.l.b16 %v895
        %v1914 = vunpack.c.h.b16 %v895
        %v1915 = vunpack.c.l.b16 %v896
        %v1916 = vunpack.c.h.b16 %v896
        %v1917 = vunpack.c.l.b16 %v897
        %v1918 = vunpack.c.h.b16 %v897
        %v1919 = vunpack.c.l.b16 %v898
        %v1920 = vunpack.c.h.b16 %v898
        %v1921 = vunpack.c.l.b16 %v899
        %v1922 = vunpack.c.h.b16 %v899
        %v1923 = vunpack.c.l.b16 %v900
        %v1924 = vunpack.c.h.b16 %v900
        %v1925 = vunpack.c.l.b16 %v901
        %v1926 = vunpack.c.h.b16 %v901
        %v1927 = vunpack.c.l.b16 %v902
        %v1928 = vunpack.c.h.b16 %v902
        %v1929 = vunpack.c.l.b16 %v903
        %v1930 = vunpack.c.h.b16 %v903
        %v1931 = vunpack.c.l.b16 %v904
        %v1932 = vunpack.c.h.b16 %v904
        %v1933 = vunpack.c.l.b16 %v905
        %v1934 = vunpack.c.h.b16 %v905
        %v1935 = vunpack.c.l.b16 %v906
        %v1936 = vunpack.c.h.b16 %v906
        %v1937 = vunpack.c.l.b16 %v907
        %v1938 = vunpack.c.h.b16 %v907
        %v1939 = vunpack.c.l.b16 %v908
        %v1940 = vunpack.c.h.b16 %v908
        %v1941 = vunpack.c.l.b16 %v909
        %v1942 = vunpack.c.h.b16 %v909
        %v1943 = vunpack.c.l.b16 %v910
        %v1944 = vunpack.c.h.b16 %v910
        %v1945 = vunpack.c.l.b16 %v911
        %v1946 = vunpack.c.h.b16 %v911
        %v1947 = vunpack.c.l.b16 %v912
        %v1948 = vunpack.c.h.b16 %v912
        %v1949 = vunpack.c.l.b16 %v913
        %v1950 = vunpack.c.h.b16 %v913
        %v1951 = vunpack.c.l.b16 %v914
        %v1952 = vunpack.c.h.b16 %v914
        %v1953 = vunpack.c.l.b16 %v915
        %v1954 = vunpack.c.h.b16 %v915
        %v1955 = vunpack.c.l.b16 %v916
        %v1956 = vunpack.c.h.b16 %v916
        %v1957 = vunpack.c.l.b16 %v917
        %v1958 = vunpack.c.h.b16 %v917
        %v1959 = vunpack.c.l.b16 %v918
        %v1960 = vunpack.c.h.b16 %v918
        %v1961 = vunpack.c.l.b16 %v919
        %v1962 = vunpack.c.h.b16 %v919
        %v1963 = vunpack.c.l.b16 %v920
        %v1964 = vunpack.c.h.b16 %v920
        %v1965 = vunpack.c.l.b16 %v921
        %v1966 = vunpack.c.h.b16 %v921
        %v1967 = vunpack.c.l.b16 %v922
        %v1968 = vunpack.c.h.b16 %v922
        %v1969 = vunpack.c.l.b16 %v923
        %v1970 = vunpack.c.h.b16 %v923
        %v1971 = vunpack.c.l.b16 %v924
        %v1972 = vunpack.c.h.b16 %v924
        %v1973 = vunpack.c.l.b16 %v925
        %v1974 = vunpack.c.h.b16 %v925
        %v1975 = vunpack.c.l.b16 %v926
        %v1976 = vunpack.c.h.b16 %v926
        %v1977 = vunpack.c.l.b16 %v927
        %v1978 = vunpack.c.h.b16 %v927
        %v1979 = vunpack.c.l.b16 %v928
        %v1980 = vunpack.c.h.b16 %v928
        %v1981 = vunpack.c.l.b16 %v929
        %v1982 = vunpack.c.h.b16 %v929
        %v1983 = vunpack.c.l.b16 %v930
        %v1984 = vunpack.c.h.b16 %v930
        %v1985 = vunpack.c.l.b16 %v931
        %v1986 = vunpack.c.h.b16 %v931
        %v1987 = vunpack.c.l.b16 %v932
        %v1988 = vunpack.c.h.b16 %v932
        %v1989 = vunpack.c.l.b16 %v933
        %v1990 = vunpack.c.h.b16 %v933
        %v1991 = vunpack.c.l.b16 %v934
        %v1992 = vunpack.c.h.b16 %v934
        %v1993 = vunpack.c.l.b16 %v935
        %v1994 = vunpack.c.h.b16 %v935
        %v1995 = vunpack.c.l.b16 %v936
        %v1996 = vunpack.c.h.b16 %v936
        %v1997 = vunpack.c.l.b16 %v937
        %v1998 = vunpack.c.h.b16 %v937
        %v1999 = vunpack.c.l.b16 %v938
        %v2000 = vunpack.c.h.b16 %v938
        %v2001 = vunpack.c.l.b16 %v939
        %v2002 = vunpack.c.h.b16 %v939
        %v2003 = vunpack.c.l.b16 %v940
        %v2004 = vunpack.c.h.b16 %v940
        %v2005 = vunpack.c.l.b16 %v941
        %v2006 = vunpack.c.h.b16 %v941
        %v2007 = vunpack.c.l.b16 %v942
        %v2008 = vunpack.c.h.b16 %v942
        %v2009 = vunpack.c.l.b16 %v943
        %v2010 = vunpack.c.h.b16 %v943
        %v2011 = vunpack.c.l.b16 %v944
        %v2012 = vunpack.c.h.b16 %v944
        %v2013 = vunpack.c.l.b16 %v945
        %v2014 = vunpack.c.h.b16 %v945
        %v2015 = vunpack.c.l.b16 %v946
        %v2016 = vunpack.c.h.b16 %v946
        %v2017 = vunpack.c.l.b16 %v947
        %v2018 = vunpack.c.h.b16 %v947
        %v2019 = vunpack.c.l.b16 %v948
        %v2020 = vunpack.c.h.b16 %v948
        %v2021 = vunpack.c.l.b16 %v949
        %v2022 = vunpack.c.h.b16 %v949
        %v2023 = vunpack.c.l.b16 %v950
        %v2024 = vunpack.c.h.b16 %v950
        %v2025 = vunpack.c.l.b16 %v951
        %v2026 = vunpack.c.h.b16 %v951
        %v2027 = vunpack.c.l.b16 %v952
        %v2028 = vunpack.c.h.b16 %v952
        %v2029 = vunpack.c.l.b16 %v953
        %v2030 = vunpack.c.h.b16 %v953
        %v2031 = vunpack.c.l.b16 %v954
        %v2032 = vunpack.c.h.b16 %v954
        %v2033 = vunpack.c.l.b16 %v955
        %v2034 = vunpack.c.h.b16 %v955
        %v2035 = vunpack.c.l.b16 %v956
        %v2036 = vunpack.c.h.b16 %v956
        %v2037 = vunpack.c.l.b16 %v957
        %v2038 = vunpack.c.h.b16 %v957
        %v2039 = vunpack.c.l.b16 %v958
        %v2040 = vunpack.c.h.b16 %v958
        %v2041 = vunpack.c.l.b16 %v959
        %v2042 = vunpack.c.h.b16 %v959
        %v2043 = vunpack.c.l.b16 %v960
        %v2044 = vunpack.c.h.b16 %v960
        %v2045 = vunpack.c.l.b16 %v961
        %v2046 = vunpack.c.h.b16 %v961
        %v2047 = vunpack.c.l.b16 %v962
        %v2048 = vunpack.c.h.b16 %v962
        %v2049 = vunpack.c.l.b16 %v963
        %v2050 = vunpack.c.h.b16 %v963
        %v2051 = vunpack.c.l.b16 %v964
        %v2052 = vunpack.c.h.b16 %v964
        %v2053 = vunpack.c.l.b16 %v965
        %v2054 = vunpack.c.h.b16 %v965
        %v2055 = vunpack.c.l.b16 %v966
        %v2056 = vunpack.c.h.b16 %v966
        %v2057 = vunpack.c.l.b16 %v967
        %v2058 = vunpack.c.h.b16 %v967
        %v2059 = vunpack.c.l.b16 %v968
        %v2060 = vunpack.c.h.b16 %v968
        %v2061 = vunpack.c.l.b16 %v969
        %v2062 = vunpack.c.h.b16 %v969
        %v2063 = vunpack.c.l.b16 %v970
        %v2064 = vunpack.c.h.b16 %v970
        %v2065 = vunpack.c.l.b16 %v971
        %v2066 = vunpack.c.h.b16 %v971
        %v2067 = vunpack.c.l.b16 %v972
        %v2068 = vunpack.c.h.b16 %v972
        %v2069 = vunpack.c.l.b16 %v973
        %v2070 = vunpack.c.h.b16 %v973
        %v2071 = vunpack.c.l.b16 %v974
        %v2072 = vunpack.c.h.b16 %v974
        %v2073 = vunpack.c.l.b16 %v975
        %v2074 = vunpack.c.h.b16 %v975
        %v2075 = vunpack.c.l.b16 %v976
        %v2076 = vunpack.c.h.b16 %v976
        %v2077 = vunpack.c.l.b16 %v977
        %v2078 = vunpack.c.h.b16 %v977
        %v2079 = vunpack.c.l.b16 %v978
        %v2080 = vunpack.c.h.b16 %v978
        %v2081 = vunpack.c.l.b16 %v979
        %v2082 = vunpack.c.h.b16 %v979
        %v2083 = vunpack.c.l.b16 %v980
        %v2084 = vunpack.c.h.b16 %v980
        %v2085 = vunpack.c.l.b16 %v981
        %v2086 = vunpack.c.h.b16 %v981
        %v2087 = vunpack.c.l.b16 %v982
        %v2088 = vunpack.c.h.b16 %v982
        %v2089 = vunpack.c.l.b16 %v983
        %v2090 = vunpack.c.h.b16 %v983
        %v2091 = vunpack.c.l.b16 %v984
        %v2092 = vunpack.c.h.b16 %v984
        %v2093 = vunpack.c.l.b16 %v985
        %v2094 = vunpack.c.h.b16 %v985
        %v2095 = vunpack.c.l.b16 %v986
        %v2096 = vunpack.c.h.b16 %v986
        %v2097 = vunpack.c.l.b16 %v987
        %v2098 = vunpack.c.h.b16 %v987
        %v2099 = vunpack.c.l.b16 %v988
        %v2100 = vunpack.c.h.b16 %v988
        %v2101 = vunpack.c.l.b16 %v989
        %v2102 = vunpack.c.h.b16 %v989
        %v2103 = vunpack.c.l.b16 %v990
        %v2104 = vunpack.c.h.b16 %v990
        %v2105 = vunpack.c.l.b16 %v991
        %v2106 = vunpack.c.h.b16 %v991
        %v2107 = vunpack.c.l.b16 %v992
        %v2108 = vunpack.c.h.b16 %v992
        %v2109 = vunpack.c.l.b16 %v993
        %v2110 = vunpack.c.h.b16 %v993
        %v2111 = vunpack.c.l.b16 %v994
        %v2112 = vunpack.c.h.b16 %v994
        %v2113 = vunpack.c.l.b16 %v995
        %v2114 = vunpack.c.h.b16 %v995
        %v2115 = vunpack.c.l.b16 %v996
        %v2116 = vunpack.c.h.b16 %v996
        %v2117 = vpack.c.b16 %v1487, %v1477
        %v2118 = vpack.c.b16 %v1488, %v1478
        %v2119 = vpack.c.b16 %v1489, %v1479
        %v2120 = vpack.c.b16 %v1490, %v1480
        %v2121 = vpack.c.b16 %v1491, %v1481
        %v2122 = vpack.c.b16 %v1492, %v1482
        %v2123 = vpack.c.b16 %v1493, %v1483
        %v2124 = vpack.c.b16 %v1494, %v1484
        %v2125 = vpack.c.b16 %v1495, %v1485
        %v2126 = vpack.c.b16 %v1496, %v1486
        %v2127 = vpack.c.b16 %v1507, %v1497
        %v2128 = vpack.c.b16 %v1508, %v1498
        %v2129 = vpack.c.b16 %v1509, %v1499
        %v2130 = vpack.c.b16 %v1510, %v1500
        %v2131 = vpack.c.b16 %v1511, %v1501
        %v2132 = vpack.c.b16 %v1512, %v1502
        %v2133 = vpack.c.b16 %v1513, %v1503
        %v2134 = vpack.c.b16 %v1514, %v1504
        %v2135 = vpack.c.b16 %v1515, %v1505
        %v2136 = vpack.c.b16 %v1516, %v1506
        %v2137 = vpack.c.b16 %v1527, %v1517
        %v2138 = vpack.c.b16 %v1528, %v1518
        %v2139 = vpack.c.b16 %v1529, %v1519
        %v2140 = vpack.c.b16 %v1530, %v1520
        %v2141 = vpack.c.b16 %v1531, %v1521
        %v2142 = vpack.c.b16 %v1532, %v1522
        %v2143 = vpack.c.b16 %v1533, %v1523
        %v2144 = vpack.c.b16 %v1534, %v1524
        %v2145 = vpack.c.b16 %v1535, %v1525
        %v2146 = vpack.c.b16 %v1536, %v1526
        %v2147 = vpack.c.b16 %v1547, %v1537
        %v2148 = vpack.c.b16 %v1548, %v1538
        %v2149 = vpack.c.b16 %v1549, %v1539
        %v2150 = vpack.c.b16 %v1550, %v1540
        %v2151 = vpack.c.b16 %v1551, %v1541
        %v2152 = vpack.c.b16 %v1552, %v1542
        %v2153 = vpack.c.b16 %v1553, %v1543
        %v2154 = vpack.c.b16 %v1554, %v1544
        %v2155 = vpack.c.b16 %v1555, %v1545
        %v2156 = vpack.c.b16 %v1556, %v1546
        %v2157 = vpack.c.b16 %v1567, %v1557
        %v2158 = vpack.c.b16 %v1568, %v1558
        %v2159 = vpack.c.b16 %v1569, %v1559
        %v2160 = vpack.c.b16 %v1570, %v1560
        %v2161 = vpack.c.b16 %v1571, %v1561
        %v2162 = vpack.c.b16 %v1572, %v1562
        %v2163 = vpack.c.b16 %v1573, %v1563
        %v2164 = vpack.c.b16 %v1574, %v1564
        %v2165 = vpack.c.b16 %v1575, %v1565
        %v2166 = vpack.c.b16 %v1576, %v1566
        %v2167 = vpack.c.b16 %v1587, %v1577
        %v2168 = vpack.c.b16 %v1588, %v1578
        %v2169 = vpack.c.b16 %v1589, %v1579
        %v2170 = vpack.c.b16 %v1590, %v1580
        %v2171 = vpack.c.b16 %v1591, %v1581
        %v2172 = vpack.c.b16 %v1592, %v1582
        %v2173 = vpack.c.b16 %v1593, %v1583
        %v2174 = vpack.c.b16 %v1594, %v1584
        %v2175 = vpack.c.b16 %v1595, %v1585
        %v2176 = vpack.c.b16 %v1596, %v1586
        %v2177 = vpack.c.b16 %v1607, %v1597
        %v2178 = vpack.c.b16 %v1608, %v1598
        %v2179 = vpack.c.b16 %v1609, %v1599
        %v2180 = vpack.c.b16 %v1610, %v1600
        %v2181 = vpack.c.b16 %v1611, %v1601
        %v2182 = vpack.c.b16 %v1612, %v1602
        %v2183 = vpack.c.b16 %v1613, %v1603
        %v2184 = vpack.c.b16 %v1614, %v1604
        %v2185 = vpack.c.b16 %v1615, %v1605
        %v2186 = vpack.c.b16 %v1616, %v1606
        %v2187 = vpack.c.b16 %v1627, %v1617
        %v2188 = vpack.c.b16 %v1628, %v1618
        %v2189 = vpack.c.b16 %v1629, %v1619
        %v2190 = vpack.c.b16 %v1630, %v1620
        %v2191 = vpack.c.b16 %v1631, %v1621
        %v2192 = vpack.c.b16 %v1632, %v1622
        %v2193 = vpack.c.b16 %v1633, %v1623
        %v2194 = vpack.c.b16 %v1634, %v1624
        %v2195 = vpack.c.b16 %v1635, %v1625
        %v2196 = vpack.c.b16 %v1636, %v1626
        %v2197 = vpack.c.b16 %v1647, %v1637
        %v2198 = vpack.c.b16 %v1648, %v1638
        %v2199 = vpack.c.b16 %v1649, %v1639
        %v2200 = vpack.c.b16 %v1650, %v1640
        %v2201 = vpack.c.b16 %v1651, %v1641
        %v2202 = vpack.c.b16 %v1652, %v1642
        %v2203 = vpack.c.b16 %v1653, %v1643
        %v2204 = vpack.c.b16 %v1654, %v1644
        %v2205 = vpack.c.b16 %v1655, %v1645
        %v2206 = vpack.c.b16 %v1656, %v1646
        %v2207 = vpack.c.b16 %v1667, %v1657
        %v2208 = vpack.c.b16 %v1668, %v1658
        %v2209 = vpack.c.b16 %v1669, %v1659
        %v2210 = vpack.c.b16 %v1670, %v1660
        %v2211 = vpack.c.b16 %v1671, %v1661
        %v2212 = vpack.c.b16 %v1672, %v1662
        %v2213 = vpack.c.b16 %v1673, %v1663
        %v2214 = vpack.c.b16 %v1674, %v1664
        %v2215 = vpack.c.b16 %v1675, %v1665
        %v2216 = vpack.c.b16 %v1676, %v1666
        %v2217 = vpack.c.b16 %v1687, %v1677
        %v2218 = vpack.c.b16 %v1688, %v1678
        %v2219 = vpack.c.b16 %v1689, %v1679
        %v2220 = vpack.c.b16 %v1690, %v1680
        %v2221 = vpack.c.b16 %v1691, %v1681
        %v2222 = vpack.c.b16 %v1692, %v1682
        %v2223 = vpack.c.b16 %v1693, %v1683
        %v2224 = vpack.c.b16 %v1694, %v1684
        %v2225 = vpack.c.b16 %v1695, %v1685
        %v2226 = vpack.c.b16 %v1696, %v1686
        %v2227 = vpack.c.b16 %v1707, %v1697
        %v2228 = vpack.c.b16 %v1708, %v1698
        %v2229 = vpack.c.b16 %v1709, %v1699
        %v2230 = vpack.c.b16 %v1710, %v1700
        %v2231 = vpack.c.b16 %v1711, %v1701
        %v2232 = vpack.c.b16 %v1712, %v1702
        %v2233 = vpack.c.b16 %v1713, %v1703
        %v2234 = vpack.c.b16 %v1714, %v1704
        %v2235 = vpack.c.b16 %v1715, %v1705
        %v2236 = vpack.c.b16 %v1716, %v1706
        %v2237 = vpack.c.b16 %v1727, %v1717
        %v2238 = vpack.c.b16 %v1728, %v1718
        %v2239 = vpack.c.b16 %v1729, %v1719
        %v2240 = vpack.c.b16 %v1730, %v1720
        %v2241 = vpack.c.b16 %v1731, %v1721
        %v2242 = vpack.c.b16 %v1732, %v1722
        %v2243 = vpack.c.b16 %v1733, %v1723
        %v2244 = vpack.c.b16 %v1734, %v1724
        %v2245 = vpack.c.b16 %v1735, %v1725
        %v2246 = vpack.c.b16 %v1736, %v1726
        %v2247 = vpack.c.b16 %v1747, %v1737
        %v2248 = vpack.c.b16 %v1748, %v1738
        %v2249 = vpack.c.b16 %v1749, %v1739
        %v2250 = vpack.c.b16 %v1750, %v1740
        %v2251 = vpack.c.b16 %v1751, %v1741
        %v2252 = vpack.c.b16 %v1752, %v1742
        %v2253 = vpack.c.b16 %v1753, %v1743
        %v2254 = vpack.c.b16 %v1754, %v1744
        %v2255 = vpack.c.b16 %v1755, %v1745
        %v2256 = vpack.c.b16 %v1756, %v1746
        %v2257 = vpack.c.b16 %v1767, %v1757
        %v2258 = vpack.c.b16 %v1768, %v1758
        %v2259 = vpack.c.b16 %v1769, %v1759
        %v2260 = vpack.c.b16 %v1770, %v1760
        %v2261 = vpack.c.b16 %v1771, %v1761
        %v2262 = vpack.c.b16 %v1772, %v1762
        %v2263 = vpack.c.b16 %v1773, %v1763
        %v2264 = vpack.c.b16 %v1774, %v1764
        %v2265 = vpack.c.b16 %v1775, %v1765
        %v2266 = vpack.c.b16 %v1776, %v1766
        %v2267 = vpack.c.b16 %v1787, %v1777
        %v2268 = vpack.c.b16 %v1788, %v1778
        %v2269 = vpack.c.b16 %v1789, %v1779
        %v2270 = vpack.c.b16 %v1790, %v1780
        %v2271 = vpack.c.b16 %v1791, %v1781
        %v2272 = vpack.c.b16 %v1792, %v1782
        %v2273 = vpack.c.b16 %v1793, %v1783
        %v2274 = vpack.c.b16 %v1794, %v1784
        %v2275 = vpack.c.b16 %v1795, %v1785
        %v2276 = vpack.c.b16 %v1796, %v1786
        %v2277 = vpack.c.b16 %v1807, %v1797
        %v2278 = vpack.c.b16 %v1808, %v1798
        %v2279 = vpack.c.b16 %v1809, %v1799
        %v2280 = vpack.c.b16 %v1810, %v1800
        %v2281 = vpack.c.b16 %v1811, %v1801
        %v2282 = vpack.c.b16 %v1812, %v1802
        %v2283 = vpack.c.b16 %v1813, %v1803
        %v2284 = vpack.c.b16 %v1814, %v1804
        %v2285 = vpack.c.b16 %v1815, %v1805
        %v2286 = vpack.c.b16 %v1816, %v1806
        %v2287 = vpack.c.b16 %v1827, %v1817
        %v2288 = vpack.c.b16 %v1828, %v1818
        %v2289 = vpack.c.b16 %v1829, %v1819
        %v2290 = vpack.c.b16 %v1830, %v1820
        %v2291 = vpack.c.b16 %v1831, %v1821
        %v2292 = vpack.c.b16 %v1832, %v1822
        %v2293 = vpack.c.b16 %v1833, %v1823
        %v2294 = vpack.c.b16 %v1834, %v1824
        %v2295 = vpack.c.b16 %v1835, %v1825
        %v2296 = vpack.c.b16 %v1836, %v1826
        %v2297 = vpack.c.b16 %v1847, %v1837
        %v2298 = vpack.c.b16 %v1848, %v1838
        %v2299 = vpack.c.b16 %v1849, %v1839
        %v2300 = vpack.c.b16 %v1850, %v1840
        %v2301 = vpack.c.b16 %v1851, %v1841
        %v2302 = vpack.c.b16 %v1852, %v1842
        %v2303 = vpack.c.b16 %v1853, %v1843
        %v2304 = vpack.c.b16 %v1854, %v1844
        %v2305 = vpack.c.b16 %v1855, %v1845
        %v2306 = vpack.c.b16 %v1856, %v1846
        %v2307 = vpack.c.b16 %v1867, %v1857
        %v2308 = vpack.c.b16 %v1868, %v1858
        %v2309 = vpack.c.b16 %v1869, %v1859
        %v2310 = vpack.c.b16 %v1870, %v1860
        %v2311 = vpack.c.b16 %v1871, %v1861
        %v2312 = vpack.c.b16 %v1872, %v1862
        %v2313 = vpack.c.b16 %v1873, %v1863
        %v2314 = vpack.c.b16 %v1874, %v1864
        %v2315 = vpack.c.b16 %v1875, %v1865
        %v2316 = vpack.c.b16 %v1876, %v1866
        %v2317 = vpack.c.b16 %v1887, %v1877
        %v2318 = vpack.c.b16 %v1888, %v1878
        %v2319 = vpack.c.b16 %v1889, %v1879
        %v2320 = vpack.c.b16 %v1890, %v1880
        %v2321 = vpack.c.b16 %v1891, %v1881
        %v2322 = vpack.c.b16 %v1892, %v1882
        %v2323 = vpack.c.b16 %v1893, %v1883
        %v2324 = vpack.c.b16 %v1894, %v1884
        %v2325 = vpack.c.b16 %v1895, %v1885
        %v2326 = vpack.c.b16 %v1896, %v1886
        %v2327 = vpack.c.b16 %v1907, %v1897
        %v2328 = vpack.c.b16 %v1908, %v1898
        %v2329 = vpack.c.b16 %v1909, %v1899
        %v2330 = vpack.c.b16 %v1910, %v1900
        %v2331 = vpack.c.b16 %v1911, %v1901
        %v2332 = vpack.c.b16 %v1912, %v1902
        %v2333 = vpack.c.b16 %v1913, %v1903
        %v2334 = vpack.c.b16 %v1914, %v1904
        %v2335 = vpack.c.b16 %v1915, %v1905
        %v2336 = vpack.c.b16 %v1916, %v1906
        %v2337 = vpack.c.b16 %v1927, %v1917
        %v2338 = vpack.c.b16 %v1928, %v1918
        %v2339 = vpack.c.b16 %v1929, %v1919
        %v2340 = vpack.c.b16 %v1930, %v1920
        %v2341 = vpack.c.b16 %v1931, %v1921
        %v2342 = vpack.c.b16 %v1932, %v1922
        %v2343 = vpack.c.b16 %v1933, %v1923
        %v2344 = vpack.c.b16 %v1934, %v1924
        %v2345 = vpack.c.b16 %v1935, %v1925
        %v2346 = vpack.c.b16 %v1936, %v1926
        %v2347 = vpack.c.b16 %v1947, %v1937
        %v2348 = vpack.c.b16 %v1948, %v1938
        %v2349 = vpack.c.b16 %v1949, %v1939
        %v2350 = vpack.c.b16 %v1950, %v1940
        %v2351 = vpack.c.b16 %v1951, %v1941
        %v2352 = vpack.c.b16 %v1952, %v1942
        %v2353 = vpack.c.b16 %v1953, %v1943
        %v2354 = vpack.c.b16 %v1954, %v1944
        %v2355 = vpack.c.b16 %v1955, %v1945
        %v2356 = vpack.c.b16 %v1956, %v1946
        %v2357 = vpack.c.b16 %v1967, %v1957
        %v2358 = vpack.c.b16 %v1968, %v1958
        %v2359 = vpack.c.b16 %v1969, %v1959
        %v2360 = vpack.c.b16 %v1970, %v1960
        %v2361 = vpack.c.b16 %v1971, %v1961
        %v2362 = vpack.c.b16 %v1972, %v1962
        %v2363 = vpack.c.b16 %v1973, %v1963
        %v2364 = vpack.c.b16 %v1974, %v1964
        %v2365 = vpack.c.b16 %v1975, %v1965
        %v2366 = vpack.c.b16 %v1976, %v1966
        %v2367 = vpack.c.b16 %v1987, %v1977
        %v2368 = vpack.c.b16 %v1988, %v1978
        %v2369 = vpack.c.b16 %v1989, %v1979
        %v2370 = vpack.c.b16 %v1990, %v1980
        %v2371 = vpack.c.b16 %v1991, %v1981
        %v2372 = vpack.c.b16 %v1992, %v1982
        %v2373 = vpack.c.b16 %v1993, %v1983
        %v2374 = vpack.c.b16 %v1994, %v1984
        %v2375 = vpack.c.b16 %v1995, %v1985
        %v2376 = vpack.c.b16 %v1996, %v1986
        %v2377 = vpack.c.b16 %v2007, %v1997
        %v2378 = vpack.c.b16 %v2008, %v1998
        %v2379 = vpack.c.b16 %v2009, %v1999
        %v2380 = vpack.c.b16 %v2010, %v2000
        %v2381 = vpack.c.b16 %v2011, %v2001
        %v2382 = vpack.c.b16 %v2012, %v2002
        %v2383 = vpack.c.b16 %v2013, %v2003
        %v2384 = vpack.c.b16 %v2014, %v2004
        %v2385 = vpack.c.b16 %v2015, %v2005
        %v2386 = vpack.c.b16 %v2016, %v2006
        %v2387 = vpack.c.b16 %v2027, %v2017
        %v2388 = vpack.c.b16 %v2028, %v2018
        %v2389 = vpack.c.b16 %v2029, %v2019
        %v2390 = vpack.c.b16 %v2030, %v2020
        %v2391 = vpack.c.b16 %v2031, %v2021
        %v2392 = vpack.c.b16 %v2032, %v2022
        %v2393 = vpack.c.b16 %v2033, %v2023
        %v2394 = vpack.c.b16 %v2034, %v2024
        %v2395 = vpack.c.b16 %v2035, %v2025
        %v2396 = vpack.c.b16 %v2036, %v2026
        %v2397 = vpack.c.b16 %v2047, %v2037
        %v2398 = vpack.c.b16 %v2048, %v2038
        %v2399 = vpack.c.b16 %v2049, %v2039
        %v2400 = vpack.c.b16 %v2050, %v2040
        %v2401 = vpack.c.b16 %v2051, %v2041
        %v2402 = vpack.c.b16 %v2052, %v2042
        %v2403 = vpack.c.b16 %v2053, %v2043
        %v2404 = vpack.c.b16 %v2054, %v2044
        %v2405 = vpack.c.b16 %v2055, %v2045
        %v2406 = vpack.c.b16 %v2056, %v2046
        %v2407 = vpack.c.b16 %v2067, %v2057
        %v2408 = vpack.c.b16 %v2068, %v2058
        %v2409 = vpack.c.b16 %v2069, %v2059
        %v2410 = vpack.c.b16 %v2070, %v2060
        %v2411 = vpack.c.b16 %v2071, %v2061
        %v2412 = vpack.c.b16 %v2072, %v2062
        %v2413 = vpack.c.b16 %v2073, %v2063
        %v2414 = vpack.c.b16 %v2074, %v2064
        %v2415 = vpack.c.b16 %v2075, %v2065
        %v2416 = vpack.c.b16 %v2076, %v2066
        %v2417 = vpack.c.b16 %v2087, %v2077
        %v2418 = vpack.c.b16 %v2088, %v2078
        %v2419 = vpack.c.b16 %v2089, %v2079
        %v2420 = vpack.c.b16 %v2090, %v2080
        %v2421 = vpack.c.b16 %v2091, %v2081
        %v2422 = vpack.c.b16 %v2092, %v2082
        %v2423 = vpack.c.b16 %v2093, %v2083
        %v2424 = vpack.c.b16 %v2094, %v2084
        %v2425 = vpack.c.b16 %v2095, %v2085
        %v2426 = vpack.c.b16 %v2096, %v2086
        %v2427 = vpack.c.b16 %v2107, %v2097
        %v2428 = vpack.c.b16 %v2108, %v2098
        %v2429 = vpack.c.b16 %v2109, %v2099
        %v2430 = vpack.c.b16 %v2110, %v2100
        %v2431 = vpack.c.b16 %v2111, %v2101
        %v2432 = vpack.c.b16 %v2112, %v2102
        %v2433 = vpack.c.b16 %v2113, %v2103
        %v2434 = vpack.c.b16 %v2114, %v2104
        %v2435 = vpack.c.b16 %v2115, %v2105
        %v2436 = vpack.c.b16 %v2116, %v2106
        %v2917 = vunpack.c.l.b16 %v997
        %v2918 = vunpack.c.h.b16 %v997
        %v2919 = vunpack.c.l.b16 %v998
        %v2920 = vunpack.c.h.b16 %v998
        %v2921 = vunpack.c.l.b16 %v999
        %v2922 = vunpack.c.h.b16 %v999
        %v2923 = vunpack.c.l.b16 %v1000
        %v2924 = vunpack.c.h.b16 %v1000
        %v2925 = vunpack.c.l.b16 %v1001
        %v2926 = vunpack.c.h.b16 %v1001
        %v2927 = vunpack.c.l.b16 %v1002
        %v2928 = vunpack.c.h.b16 %v1002
        %v2929 = vunpack.c.l.b16 %v1003
        %v2930 = vunpack.c.h.b16 %v1003
        %v2931 = vunpack.c.l.b16 %v1004
        %v2932 = vunpack.c.h.b16 %v1004
        %v2933 = vunpack.c.l.b16 %v1005
        %v2934 = vunpack.c.h.b16 %v1005
        %v2935 = vunpack.c.l.b16 %v1006
        %v2936 = vunpack.c.h.b16 %v1006
        %v2937 = vunpack.c.l.b16 %v1007
        %v2938 = vunpack.c.h.b16 %v1007
        %v2939 = vunpack.c.l.b16 %v1008
        %v2940 = vunpack.c.h.b16 %v1008
        %v2941 = vunpack.c.l.b16 %v1009
        %v2942 = vunpack.c.h.b16 %v1009
        %v2943 = vunpack.c.l.b16 %v1010
        %v2944 = vunpack.c.h.b16 %v1010
        %v2945 = vunpack.c.l.b16 %v1011
        %v2946 = vunpack.c.h.b16 %v1011
        %v2947 = vunpack.c.l.b16 %v1012
        %v2948 = vunpack.c.h.b16 %v1012
        %v2949 = vunpack.c.l.b16 %v1013
        %v2950 = vunpack.c.h.b16 %v1013
        %v2951 = vunpack.c.l.b16 %v1014
        %v2952 = vunpack.c.h.b16 %v1014
        %v2953 = vunpack.c.l.b16 %v1015
        %v2954 = vunpack.c.h.b16 %v1015
        %v2955 = vunpack.c.l.b16 %v1016
        %v2956 = vunpack.c.h.b16 %v1016
        %v2957 = vunpack.c.l.b16 %v1017
        %v2958 = vunpack.c.h.b16 %v1017
        %v2959 = vunpack.c.l.b16 %v1018
        %v2960 = vunpack.c.h.b16 %v1018
        %v2961 = vunpack.c.l.b16 %v1019
        %v2962 = vunpack.c.h.b16 %v1019
        %v2963 = vunpack.c.l.b16 %v1020
        %v2964 = vunpack.c.h.b16 %v1020
        %v2965 = vunpack.c.l.b16 %v1021
        %v2966 = vunpack.c.h.b16 %v1021
        %v2967 = vunpack.c.l.b16 %v1022
        %v2968 = vunpack.c.h.b16 %v1022
        %v2969 = vunpack.c.l.b16 %v1023
        %v2970 = vunpack.c.h.b16 %v1023
        %v2971 = vunpack.c.l.b16 %v1024
        %v2972 = vunpack.c.h.b16 %v1024
        %v2973 = vunpack.c.l.b16 %v1025
        %v2974 = vunpack.c.h.b16 %v1025
        %v2975 = vunpack.c.l.b16 %v1026
        %v2976 = vunpack.c.h.b16 %v1026
        %v2977 = vunpack.c.l.b16 %v1027
        %v2978 = vunpack.c.h.b16 %v1027
        %v2979 = vunpack.c.l.b16 %v1028
        %v2980 = vunpack.c.h.b16 %v1028
        %v2981 = vunpack.c.l.b16 %v1029
        %v2982 = vunpack.c.h.b16 %v1029
        %v2983 = vunpack.c.l.b16 %v1030
        %v2984 = vunpack.c.h.b16 %v1030
        %v2985 = vunpack.c.l.b16 %v1031
        %v2986 = vunpack.c.h.b16 %v1031
        %v2987 = vunpack.c.l.b16 %v1032
        %v2988 = vunpack.c.h.b16 %v1032
        %v2989 = vunpack.c.l.b16 %v1033
        %v2990 = vunpack.c.h.b16 %v1033
        %v2991 = vunpack.c.l.b16 %v1034
        %v2992 = vunpack.c.h.b16 %v1034
        %v2993 = vunpack.c.l.b16 %v1035
        %v2994 = vunpack.c.h.b16 %v1035
        %v2995 = vunpack.c.l.b16 %v1036
        %v2996 = vunpack.c.h.b16 %v1036
        %v2997 = vunpack.c.l.b16 %v1037
        %v2998 = vunpack.c.h.b16 %v1037
        %v2999 = vunpack.c.l.b16 %v1038
        %v3000 = vunpack.c.h.b16 %v1038
        %v3001 = vunpack.c.l.b16 %v1039
        %v3002 = vunpack.c.h.b16 %v1039
        %v3003 = vunpack.c.l.b16 %v1040
        %v3004 = vunpack.c.h.b16 %v1040
        %v3005 = vunpack.c.l.b16 %v1041
        %v3006 = vunpack.c.h.b16 %v1041
        %v3007 = vunpack.c.l.b16 %v1042
        %v3008 = vunpack.c.h.b16 %v1042
        %v3009 = vunpack.c.l.b16 %v1043
        %v3010 = vunpack.c.h.b16 %v1043
        %v3011 = vunpack.c.l.b16 %v1044
        %v3012 = vunpack.c.h.b16 %v1044
        %v3013 = vunpack.c.l.b16 %v1045
        %v3014 = vunpack.c.h.b16 %v1045
        %v3015 = vunpack.c.l.b16 %v1046
        %v3016 = vunpack.c.h.b16 %v1046
        %v3017 = vunpack.c.l.b16 %v1047
        %v3018 = vunpack.c.h.b16 %v1047
        %v3019 = vunpack.c.l.b16 %v1048
        %v3020 = vunpack.c.h.b16 %v1048
        %v3021 = vunpack.c.l.b16 %v1049
        %v3022 = vunpack.c.h.b16 %v1049
        %v3023 = vunpack.c.l.b16 %v1050
        %v3024 = vunpack.c.h.b16 %v1050
        %v3025 = vunpack.c.l.b16 %v1051
        %v3026 = vunpack.c.h.b16 %v1051
        %v3027 = vunpack.c.l.b16 %v1052
        %v3028 = vunpack.c.h.b16 %v1052
        %v3029 = vunpack.c.l.b16 %v1053
        %v3030 = vunpack.c.h.b16 %v1053
        %v3031 = vunpack.c.l.b16 %v1054
        %v3032 = vunpack.c.h.b16 %v1054
        %v3033 = vunpack.c.l.b16 %v1055
        %v3034 = vunpack.c.h.b16 %v1055
        %v3035 = vunpack.c.l.b16 %v1056
        %v3036 = vunpack.c.h.b16 %v1056
        %v3037 = vunpack.c.l.b16 %v1057
        %v3038 = vunpack.c.h.b16 %v1057
        %v3039 = vunpack.c.l.b16 %v1058
        %v3040 = vunpack.c.h.b16 %v1058
        %v3041 = vunpack.c.l.b16 %v1059
        %v3042 = vunpack.c.h.b16 %v1059
        %v3043 = vunpack.c.l.b16 %v1060
        %v3044 = vunpack.c.h.b16 %v1060
        %v3045 = vunpack.c.l.b16 %v1061
        %v3046 = vunpack.c.h.b16 %v1061
        %v3047 = vunpack.c.l.b16 %v1062
        %v3048 = vunpack.c.h.b16 %v1062
        %v3049 = vunpack.c.l.b16 %v1063
        %v3050 = vunpack.c.h.b16 %v1063
        %v3051 = vunpack.c.l.b16 %v1064
        %v3052 = vunpack.c.h.b16 %v1064
        %v3053 = vunpack.c.l.b16 %v1065
        %v3054 = vunpack.c.h.b16 %v1065
        %v3055 = vunpack.c.l.b16 %v1066
        %v3056 = vunpack.c.h.b16 %v1066
        %v3057 = vunpack.c.l.b16 %v1067
        %v3058 = vunpack.c.h.b16 %v1067
        %v3059 = vunpack.c.l.b16 %v1068
        %v3060 = vunpack.c.h.b16 %v1068
        %v3061 = vunpack.c.l.b16 %v1069
        %v3062 = vunpack.c.h.b16 %v1069
        %v3063 = vunpack.c.l.b16 %v1070
        %v3064 = vunpack.c.h.b16 %v1070
        %v3065 = vunpack.c.l.b16 %v1071
        %v3066 = vunpack.c.h.b16 %v1071
        %v3067 = vunpack.c.l.b16 %v1072
        %v3068 = vunpack.c.h.b16 %v1072
        %v3069 = vunpack.c.l.b16 %v1073
        %v3070 = vunpack.c.h.b16 %v1073
        %v3071 = vunpack.c.l.b16 %v1074
        %v3072 = vunpack.c.h.b16 %v1074
        %v3073 = vunpack.c.l.b16 %v1075
        %v3074 = vunpack.c.h.b16 %v1075
        %v3075 = vunpack.c.l.b16 %v1076
        %v3076 = vunpack.c.h.b16 %v1076
        %v3077 = vunpack.c.l.b16 %v1077
        %v3078 = vunpack.c.h.b16 %v1077
        %v3079 = vunpack.c.l.b16 %v1078
        %v3080 = vunpack.c.h.b16 %v1078
        %v3081 = vunpack.c.l.b16 %v1079
        %v3082 = vunpack.c.h.b16 %v1079
        %v3083 = vunpack.c.l.b16 %v1080
        %v3084 = vunpack.c.h.b16 %v1080
        %v3085 = vunpack.c.l.b16 %v1081
        %v3086 = vunpack.c.h.b16 %v1081
        %v3087 = vunpack.c.l.b16 %v1082
        %v3088 = vunpack.c.h.b16 %v1082
        %v3089 = vunpack.c.l.b16 %v1083
        %v3090 = vunpack.c.h.b16 %v1083
        %v3091 = vunpack.c.l.b16 %v1084
        %v3092 = vunpack.c.h.b16 %v1084
        %v3093 = vunpack.c.l.b16 %v1085
        %v3094 = vunpack.c.h.b16 %v1085
        %v3095 = vunpack.c.l.b16 %v1086
        %v3096 = vunpack.c.h.b16 %v1086
        %v3097 = vunpack.c.l.b16 %v1087
        %v3098 = vunpack.c.h.b16 %v1087
        %v3099 = vunpack.c.l.b16 %v1088
        %v3100 = vunpack.c.h.b16 %v1088
        %v3101 = vunpack.c.l.b16 %v1089
        %v3102 = vunpack.c.h.b16 %v1089
        %v3103 = vunpack.c.l.b16 %v1090
        %v3104 = vunpack.c.h.b16 %v1090
        %v3105 = vunpack.c.l.b16 %v1091
        %v3106 = vunpack.c.h.b16 %v1091
        %v3107 = vunpack.c.l.b16 %v1092
        %v3108 = vunpack.c.h.b16 %v1092
        %v3109 = vunpack.c.l.b16 %v1093
        %v3110 = vunpack.c.h.b16 %v1093
        %v3111 = vunpack.c.l.b16 %v1094
        %v3112 = vunpack.c.h.b16 %v1094
        %v3113 = vunpack.c.l.b16 %v1095
        %v3114 = vunpack.c.h.b16 %v1095
        %v3115 = vunpack.c.l.b16 %v1096
        %v3116 = vunpack.c.h.b16 %v1096
        %v3117 = vunpack.c.l.b16 %v1097
        %v3118 = vunpack.c.h.b16 %v1097
        %v3119 = vunpack.c.l.b16 %v1098
        %v3120 = vunpack.c.h.b16 %v1098
        %v3121 = vunpack.c.l.b16 %v1099
        %v3122 = vunpack.c.h.b16 %v1099
        %v3123 = vunpack.c.l.b16 %v1100
        %v3124 = vunpack.c.h.b16 %v1100
        %v3125 = vunpack.c.l.b16 %v1101
        %v3126 = vunpack.c.h.b16 %v1101
        %v3127 = vunpack.c.l.b16 %v1102
        %v3128 = vunpack.c.h.b16 %v1102
        %v3129 = vunpack.c.l.b16 %v1103
        %v3130 = vunpack.c.h.b16 %v1103
        %v3131 = vunpack.c.l.b16 %v1104
        %v3132 = vunpack.c.h.b16 %v1104
        %v3133 = vunpack.c.l.b16 %v1105
        %v3134 = vunpack.c.h.b16 %v1105
        %v3135 = vunpack.c.l.b16 %v1106
        %v3136 = vunpack.c.h.b16 %v1106
        %v3137 = vunpack.c.l.b16 %v1107
        %v3138 = vunpack.c.h.b16 %v1107
        %v3139 = vunpack.c.l.b16 %v1108
        %v3140 = vunpack.c.h.b16 %v1108
        %v3141 = vunpack.c.l.b16 %v1109
        %v3142 = vunpack.c.h.b16 %v1109
        %v3143 = vunpack.c.l.b16 %v1110
        %v3144 = vunpack.c.h.b16 %v1110
        %v3145 = vunpack.c.l.b16 %v1111
        %v3146 = vunpack.c.h.b16 %v1111
        %v3147 = vunpack.c.l.b16 %v1112
        %v3148 = vunpack.c.h.b16 %v1112
        %v3149 = vunpack.c.l.b16 %v1113
        %v3150 = vunpack.c.h.b16 %v1113
        %v3151 = vunpack.c.l.b16 %v1114
        %v3152 = vunpack.c.h.b16 %v1114
        %v3153 = vunpack.c.l.b16 %v1115
        %v3154 = vunpack.c.h.b16 %v1115
        %v3155 = vunpack.c.l.b16 %v1116
        %v3156 = vunpack.c.h.b16 %v1116
        %v3157 = vunpack.c.l.b16 %v1117
        %v3158 = vunpack.c.h.b16 %v1117
        %v3159 = vunpack.c.l.b16 %v1118
        %v3160 = vunpack.c.h.b16 %v1118
        %v3161 = vunpack.c.l.b16 %v1119
        %v3162 = vunpack.c.h.b16 %v1119
        %v3163 = vunpack.c.l.b16 %v1120
        %v3164 = vunpack.c.h.b16 %v1120
        %v3165 = vunpack.c.l.b16 %v1121
        %v3166 = vunpack.c.h.b16 %v1121
        %v3167 = vunpack.c.l.b16 %v1122
        %v3168 = vunpack.c.h.b16 %v1122
        %v3169 = vunpack.c.l.b16 %v1123
        %v3170 = vunpack.c.h.b16 %v1123
        %v3171 = vunpack.c.l.b16 %v1124
        %v3172 = vunpack.c.h.b16 %v1124
        %v3173 = vunpack.c.l.b16 %v1125
        %v3174 = vunpack.c.h.b16 %v1125
        %v3175 = vunpack.c.l.b16 %v1126
        %v3176 = vunpack.c.h.b16 %v1126
        %v3177 = vunpack.c.l.b16 %v1127
        %v3178 = vunpack.c.h.b16 %v1127
        %v3179 = vunpack.c.l.b16 %v1128
        %v3180 = vunpack.c.h.b16 %v1128
        %v3181 = vunpack.c.l.b16 %v1129
        %v3182 = vunpack.c.h.b16 %v1129
        %v3183 = vunpack.c.l.b16 %v1130
        %v3184 = vunpack.c.h.b16 %v1130
        %v3185 = vunpack.c.l.b16 %v1131
        %v3186 = vunpack.c.h.b16 %v1131
        %v3187 = vunpack.c.l.b16 %v1132
        %v3188 = vunpack.c.h.b16 %v1132
        %v3189 = vunpack.c.l.b16 %v1133
        %v3190 = vunpack.c.h.b16 %v1133
        %v3191 = vunpack.c.l.b16 %v1134
        %v3192 = vunpack.c.h.b16 %v1134
        %v3193 = vunpack.c.l.b16 %v1135
        %v3194 = vunpack.c.h.b16 %v1135
        %v3195 = vunpack.c.l.b16 %v1136
        %v3196 = vunpack.c.h.b16 %v1136
        %v3197 = vunpack.c.l.b16 %v1137
        %v3198 = vunpack.c.h.b16 %v1137
        %v3199 = vunpack.c.l.b16 %v1138
        %v3200 = vunpack.c.h.b16 %v1138
        %v3201 = vunpack.c.l.b16 %v1139
        %v3202 = vunpack.c.h.b16 %v1139
        %v3203 = vunpack.c.l.b16 %v1140
        %v3204 = vunpack.c.h.b16 %v1140
        %v3205 = vunpack.c.l.b16 %v1141
        %v3206 = vunpack.c.h.b16 %v1141
        %v3207 = vunpack.c.l.b16 %v1142
        %v3208 = vunpack.c.h.b16 %v1142
        %v3209 = vunpack.c.l.b16 %v1143
        %v3210 = vunpack.c.h.b16 %v1143
        %v3211 = vunpack.c.l.b16 %v1144
        %v3212 = vunpack.c.h.b16 %v1144
        %v3213 = vunpack.c.l.b16 %v1145
        %v3214 = vunpack.c.h.b16 %v1145
        %v3215 = vunpack.c.l.b16 %v1146
        %v3216 = vunpack.c.h.b16 %v1146
        %v3217 = vunpack.c.l.b16 %v1147
        %v3218 = vunpack.c.h.b16 %v1147
        %v3219 = vunpack.c.l.b16 %v1148
        %v3220 = vunpack.c.h.b16 %v1148
        %v3221 = vunpack.c.l.b16 %v1149
        %v3222 = vunpack.c.h.b16 %v1149
        %v3223 = vunpack.c.l.b16 %v1150
        %v3224 = vunpack.c.h.b16 %v1150
        %v3225 = vunpack.c.l.b16 %v1151
        %v3226 = vunpack.c.h.b16 %v1151
        %v3227 = vunpack.c.l.b16 %v1152
        %v3228 = vunpack.c.h.b16 %v1152
        %v3229 = vunpack.c.l.b16 %v1153
        %v3230 = vunpack.c.h.b16 %v1153
        %v3231 = vunpack.c.l.b16 %v1154
        %v3232 = vunpack.c.h.b16 %v1154
        %v3233 = vunpack.c.l.b16 %v1155
        %v3234 = vunpack.c.h.b16 %v1155
        %v3235 = vunpack.c.l.b16 %v1156
        %v3236 = vunpack.c.h.b16 %v1156
        %v3237 = vpack.c.b16 %v2919, %v2917
        %v3238 = vpack.c.b16 %v2920, %v2918
        %v3239 = vpack.c.b16 %v2923, %v2921
        %v3240 = vpack.c.b16 %v2924, %v2922
        %v3241 = vpack.c.b16 %v2927, %v2925
        %v3242 = vpack.c.b16 %v2928, %v2926
        %v3243 = vpack.c.b16 %v2931, %v2929
        %v3244 = vpack.c.b16 %v2932, %v2930
        %v3245 = vpack.c.b16 %v2935, %v2933
        %v3246 = vpack.c.b16 %v2936, %v2934
        %v3247 = vpack.c.b16 %v2939, %v2937
        %v3248 = vpack.c.b16 %v2940, %v2938
        %v3249 = vpack.c.b16 %v2943, %v2941
        %v3250 = vpack.c.b16 %v2944, %v2942
        %v3251 = vpack.c.b16 %v2947, %v2945
        %v3252 = vpack.c.b16 %v2948, %v2946
        %v3253 = vpack.c.b16 %v2951, %v2949
        %v3254 = vpack.c.b16 %v2952, %v2950
        %v3255 = vpack.c.b16 %v2955, %v2953
        %v3256 = vpack.c.b16 %v2956, %v2954
        %v3257 = vpack.c.b16 %v2959, %v2957
        %v3258 = vpack.c.b16 %v2960, %v2958
        %v3259 = vpack.c.b16 %v2963, %v2961
        %v3260 = vpack.c.b16 %v2964, %v2962
        %v3261 = vpack.c.b16 %v2967, %v2965
        %v3262 = vpack.c.b16 %v2968, %v2966
        %v3263 = vpack.c.b16 %v2971, %v2969
        %v3264 = vpack.c.b16 %v2972, %v2970
        %v3265 = vpack.c.b16 %v2975, %v2973
        %v3266 = vpack.c.b16 %v2976, %v2974
        %v3267 = vpack.c.b16 %v2979, %v2977
        %v3268 = vpack.c.b16 %v2980, %v2978
        %v3269 = vpack.c.b16 %v2983, %v2981
        %v3270 = vpack.c.b16 %v2984, %v2982
        %v3271 = vpack.c.b16 %v2987, %v2985
        %v3272 = vpack.c.b16 %v2988, %v2986
        %v3273 = vpack.c.b16 %v2991, %v2989
        %v3274 = vpack.c.b16 %v2992, %v2990
        %v3275 = vpack.c.b16 %v2995, %v2993
        %v3276 = vpack.c.b16 %v2996, %v2994
        %v3277 = vpack.c.b16 %v2999, %v2997
        %v3278 = vpack.c.b16 %v3000, %v2998
        %v3279 = vpack.c.b16 %v3003, %v3001
        %v3280 = vpack.c.b16 %v3004, %v3002
        %v3281 = vpack.c.b16 %v3007, %v3005
        %v3282 = vpack.c.b16 %v3008, %v3006
        %v3283 = vpack.c.b16 %v3011, %v3009
        %v3284 = vpack.c.b16 %v3012, %v3010
        %v3285 = vpack.c.b16 %v3015, %v3013
        %v3286 = vpack.c.b16 %v3016, %v3014
        %v3287 = vpack.c.b16 %v3019, %v3017
        %v3288 = vpack.c.b16 %v3020, %v3018
        %v3289 = vpack.c.b16 %v3023, %v3021
        %v3290 = vpack.c.b16 %v3024, %v3022
        %v3291 = vpack.c.b16 %v3027, %v3025
        %v3292 = vpack.c.b16 %v3028, %v3026
        %v3293 = vpack.c.b16 %v3031, %v3029
        %v3294 = vpack.c.b16 %v3032, %v3030
        %v3295 = vpack.c.b16 %v3035, %v3033
        %v3296 = vpack.c.b16 %v3036, %v3034
        %v3297 = vpack.c.b16 %v3039, %v3037
        %v3298 = vpack.c.b16 %v3040, %v3038
        %v3299 = vpack.c.b16 %v3043, %v3041
        %v3300 = vpack.c.b16 %v3044, %v3042
        %v3301 = vpack.c.b16 %v3047, %v3045
        %v3302 = vpack.c.b16 %v3048, %v3046
        %v3303 = vpack.c.b16 %v3051, %v3049
        %v3304 = vpack.c.b16 %v3052, %v3050
        %v3305 = vpack.c.b16 %v3055, %v3053
        %v3306 = vpack.c.b16 %v3056, %v3054
        %v3307 = vpack.c.b16 %v3059, %v3057
        %v3308 = vpack.c.b16 %v3060, %v3058
        %v3309 = vpack.c.b16 %v3063, %v3061
        %v3310 = vpack.c.b16 %v3064, %v3062
        %v3311 = vpack.c.b16 %v3067, %v3065
        %v3312 = vpack.c.b16 %v3068, %v3066
        %v3313 = vpack.c.b16 %v3071, %v3069
        %v3314 = vpack.c.b16 %v3072, %v3070
        %v3315 = vpack.c.b16 %v3075, %v3073
        %v3316 = vpack.c.b16 %v3076, %v3074
        %v3317 = vpack.c.b16 %v3079, %v3077
        %v3318 = vpack.c.b16 %v3080, %v3078
        %v3319 = vpack.c.b16 %v3083, %v3081
        %v3320 = vpack.c.b16 %v3084, %v3082
        %v3321 = vpack.c.b16 %v3087, %v3085
        %v3322 = vpack.c.b16 %v3088, %v3086
        %v3323 = vpack.c.b16 %v3091, %v3089
        %v3324 = vpack.c.b16 %v3092, %v3090
        %v3325 = vpack.c.b16 %v3095, %v3093
        %v3326 = vpack.c.b16 %v3096, %v3094
        %v3327 = vpack.c.b16 %v3099, %v3097
        %v3328 = vpack.c.b16 %v3100, %v3098
        %v3329 = vpack.c.b16 %v3103, %v3101
        %v3330 = vpack.c.b16 %v3104, %v3102
        %v3331 = vpack.c.b16 %v3107, %v3105
        %v3332 = vpack.c.b16 %v3108, %v3106
        %v3333 = vpack.c.b16 %v3111, %v3109
        %v3334 = vpack.c.b16 %v3112, %v3110
        %v3335 = vpack.c.b16 %v3115, %v3113
        %v3336 = vpack.c.b16 %v3116, %v3114
        %v3337 = vpack.c.b16 %v3119, %v3117
        %v3338 = vpack.c.b16 %v3120, %v3118
        %v3339 = vpack.c.b16 %v3123, %v3121
        %v3340 = vpack.c.b16 %v3124, %v3122
        %v3341 = vpack.c.b16 %v3127, %v3125
        %v3342 = vpack.c.b16 %v3128, %v3126
        %v3343 = vpack.c.b16 %v3131, %v3129
        %v3344 = vpack.c.b16 %v3132, %v3130
        %v3345 = vpack.c.b16 %v3135, %v3133
        %v3346 = vpack.c.b16 %v3136, %v3134
        %v3347 = vpack.c.b16 %v3139, %v3137
        %v3348 = vpack.c.b16 %v3140, %v3138
        %v3349 = vpack.c.b16 %v3143, %v3141
        %v3350 = vpack.c.b16 %v3144, %v3142
        %v3351 = vpack.c.b16 %v3147, %v3145
        %v3352 = vpack.c.b16 %v3148, %v3146
        %v3353 = vpack.c.b16 %v3151, %v3149
        %v3354 = vpack.c.b16 %v3152, %v3150
        %v3355 = vpack.c.b16 %v3155, %v3153
        %v3356 = vpack.c.b16 %v3156, %v3154
        %v3357 = vpack.c.b16 %v3159, %v3157
        %v3358 = vpack.c.b16 %v3160, %v3158
        %v3359 = vpack.c.b16 %v3163, %v3161
        %v3360 = vpack.c.b16 %v3164, %v3162
        %v3361 = vpack.c.b16 %v3167, %v3165
        %v3362 = vpack.c.b16 %v3168, %v3166
        %v3363 = vpack.c.b16 %v3171, %v3169
        %v3364 = vpack.c.b16 %v3172, %v3170
        %v3365 = vpack.c.b16 %v3175, %v3173
        %v3366 = vpack.c.b16 %v3176, %v3174
        %v3367 = vpack.c.b16 %v3179, %v3177
        %v3368 = vpack.c.b16 %v3180, %v3178
        %v3369 = vpack.c.b16 %v3183, %v3181
        %v3370 = vpack.c.b16 %v3184, %v3182
        %v3371 = vpack.c.b16 %v3187, %v3185
        %v3372 = vpack.c.b16 %v3188, %v3186
        %v3373 = vpack.c.b16 %v3191, %v3189
        %v3374 = vpack.c.b16 %v3192, %v3190
        %v3375 = vpack.c.b16 %v3195, %v3193
        %v3376 = vpack.c.b16 %v3196, %v3194
        %v3377 = vpack.c.b16 %v3199, %v3197
        %v3378 = vpack.c.b16 %v3200, %v3198
        %v3379 = vpack.c.b16 %v3203, %v3201
        %v3380 = vpack.c.b16 %v3204, %v3202
        %v3381 = vpack.c.b16 %v3207, %v3205
        %v3382 = vpack.c.b16 %v3208, %v3206
        %v3383 = vpack.c.b16 %v3211, %v3209
        %v3384 = vpack.c.b16 %v3212, %v3210
        %v3385 = vpack.c.b16 %v3215, %v3213
        %v3386 = vpack.c.b16 %v3216, %v3214
        %v3387 = vpack.c.b16 %v3219, %v3217
        %v3388 = vpack.c.b16 %v3220, %v3218
        %v3389 = vpack.c.b16 %v3223, %v3221
        %v3390 = vpack.c.b16 %v3224, %v3222
        %v3391 = vpack.c.b16 %v3227, %v3225
        %v3392 = vpack.c.b16 %v3228, %v3226
        %v3393 = vpack.c.b16 %v3231, %v3229
        %v3394 = vpack.c.b16 %v3232, %v3230
        %v3395 = vpack.c.b16 %v3235, %v3233
        %v3396 = vpack.c.b16 %v3236, %v3234
        %3557 = vmatprep.subr.bf16.mxu0 %v3238
        %3558 = vmatpush1.bf16.msra.mxu0 %v3237
        %3559 = vmatprep.subr.bf16.mxu0 %v3240
        %3560 = vmatpush1.bf16.msra.mxu0 %v3239
        %3561 = vmatprep.subr.bf16.mxu0 %v3242
        %3562 = vmatpush1.bf16.msra.mxu0 %v3241
        %3563 = vmatprep.subr.bf16.mxu0 %v3244
        %3564 = vmatpush1.bf16.msra.mxu0 %v3243
        %3565 = vmatprep.subr.bf16.mxu0 %v3246
        %3566 = vmatpush1.bf16.msra.mxu0 %v3245
        %3567 = vmatprep.subr.bf16.mxu0 %v3248
        %3568 = vmatpush1.bf16.msra.mxu0 %v3247
        %3569 = vmatprep.subr.bf16.mxu0 %v3250
        %3570 = vmatpush1.bf16.msra.mxu0 %v3249
        %3571 = vmatprep.subr.bf16.mxu0 %v3252
        %3572 = vmatpush1.bf16.msra.mxu0 %v3251
        %3573 = vmatprep.subr.bf16.mxu0 %v3254
        %3574 = vmatpush1.bf16.msra.mxu0 %v3253
        %3575 = vmatprep.subr.bf16.mxu0 %v3256
        %3576 = vmatpush1.bf16.msra.mxu0 %v3255
        %3577 = vmatprep.subr.bf16.mxu0 %v3258
        %3578 = vmatpush1.bf16.msra.mxu0 %v3257
        %3579 = vmatprep.subr.bf16.mxu0 %v3260
        %3580 = vmatpush1.bf16.msra.mxu0 %v3259
        %3581 = vmatprep.subr.bf16.mxu0 %v3262
        %3582 = vmatpush1.bf16.msra.mxu0 %v3261
        %3583 = vmatprep.subr.bf16.mxu0 %v3264
        %3584 = vmatpush1.bf16.msra.mxu0 %v3263
        %3585 = vmatprep.subr.bf16.mxu0 %v3266
        %3586 = vmatpush1.bf16.msra.mxu0 %v3265
        %3587 = vmatprep.subr.bf16.mxu0 %v3268
        %3588 = vmatpush1.bf16.msra.mxu0 %v3267
        %3589 = vmatprep.mubr.bf16.mxu0 %v2118
        %3590 = vmatmul.mubr.bf16.gmra.mrb[0].mxu0 %v2117
        %v3591 = vpop.f32.mrb[0].mxu0
        %v3592 = vadd.f32 0.0, %v3591
        %v3593 = vpop.f32.mrb[0].mxu0
        %v3594 = vadd.f32 0.0, %v3593
        %v3595 = vpop.f32.mrb[0].mxu0
        %v3596 = vadd.f32 0.0, %v3595
        %v3597 = vpop.f32.mrb[0].mxu0
        %v3598 = vadd.f32 0.0, %v3597
        %3599 = vmatprep.mubr.bf16.mxu0 %v2128
        %3600 = vmatmul.mubr.bf16.gmra.mrb[0].mxu0 %v2127
        %v3601 = vpop.f32.mrb[0].mxu0
        %v3602 = vadd.f32 0.0, %v3601
        %v3603 = vpop.f32.mrb[0].mxu0
        %v3604 = vadd.f32 0.0, %v3603
        %v3605 = vpop.f32.mrb[0].mxu0
        %v3606 = vadd.f32 0.0, %v3605
        %v3607 = vpop.f32.mrb[0].mxu0
        %v3608 = vadd.f32 0.0, %v3607
        %3609 = vmatprep.mubr.bf16.mxu0 %v2138
        %3610 = vmatmul.mubr.bf16.gmra.mrb[0].mxu0 %v2137
        %v3611 = vpop.f32.mrb[0].mxu0
        %v3612 = vadd.f32 0.0, %v3611
        %v3613 = vpop.f32.mrb[0].mxu0
        %v3614 = vadd.f32 0.0, %v3613
        %v3615 = vpop.f32.mrb[0].mxu0
        %v3616 = vadd.f32 0.0, %v3615
        %v3617 = vpop.f32.mrb[0].mxu0
        %v3618 = vadd.f32 0.0, %v3617
        %3619 = vmatprep.mubr.bf16.mxu0 %v2148
        %3620 = vmatmul.mubr.bf16.gmra.mrb[0].mxu0 %v2147
        %v3621 = vpop.f32.mrb[0].mxu0
        %v3622 = vadd.f32 0.0, %v3621
        %v3623 = vpop.f32.mrb[0].mxu0
        %v3624 = vadd.f32 0.0, %v3623
        %v3625 = vpop.f32.mrb[0].mxu0
        %v3626 = vadd.f32 0.0, %v3625
        %v3627 = vpop.f32.mrb[0].mxu0
        %v3628 = vadd.f32 0.0, %v3627
        %3629 = vmatprep.mubr.bf16.mxu0 %v2158
        %3630 = vmatmul.mubr.bf16.gmra.mrb[0].mxu0 %v2157
        %v3631 = vpop.f32.mrb[0].mxu0
        %v3632 = vadd.f32 0.0, %v3631
        %v3633 = vpop.f32.mrb[0].mxu0
        %v3634 = vadd.f32 0.0, %v3633
        %v3635 = vpop.f32.mrb[0].mxu0
        %v3636 = vadd.f32 0.0, %v3635
        %v3637 = vpop.f32.mrb[0].mxu0
        %v3638 = vadd.f32 0.0, %v3637
        %3639 = vmatprep.mubr.bf16.mxu0 %v2168
        %3640 = vmatmul.mubr.bf16.gmra.mrb[0].mxu0 %v2167
        %v3641 = vpop.f32.mrb[0].mxu0
        %v3642 = vadd.f32 0.0, %v3641
        %v3643 = vpop.f32.mrb[0].mxu0
        %v3644 = vadd.f32 0.0, %v3643
        %v3645 = vpop.f32.mrb[0].mxu0
        %v3646 = vadd.f32 0.0, %v3645
        %v3647 = vpop.f32.mrb[0].mxu0
        %v3648 = vadd.f32 0.0, %v3647
        %3649 = vmatprep.mubr.bf16.mxu0 %v2178
        %3650 = vmatmul.mubr.bf16.gmra.mrb[0].mxu0 %v2177
        %v3651 = vpop.f32.mrb[0].mxu0
        %v3652 = vadd.f32 0.0, %v3651
        %v3653 = vpop.f32.mrb[0].mxu0
        %v3654 = vadd.f32 0.0, %v3653
        %v3655 = vpop.f32.mrb[0].mxu0
        %v3656 = vadd.f32 0.0, %v3655
        %v3657 = vpop.f32.mrb[0].mxu0
        %v3658 = vadd.f32 0.0, %v3657
        %3659 = vmatprep.mubr.bf16.mxu0 %v2188
        %3660 = vmatmul.mubr.bf16.gmra.mrb[0].mxu0 %v2187
        %v3661 = vpop.f32.mrb[0].mxu0
        %v3662 = vadd.f32 0.0, %v3661
        %v3663 = vpop.f32.mrb[0].mxu0
        %v3664 = vadd.f32 0.0, %v3663
        %v3665 = vpop.f32.mrb[0].mxu0
        %v3666 = vadd.f32 0.0, %v3665
        %v3667 = vpop.f32.mrb[0].mxu0
        %v3668 = vadd.f32 0.0, %v3667
        %3669 = vmatprep.mubr.bf16.mxu0 %v2198
        %3670 = vmatmul.mubr.bf16.gmra.mrb[0].mxu0 %v2197
        %v3671 = vpop.f32.mrb[0].mxu0
        %v3672 = vadd.f32 0.0, %v3671
        %v3673 = vpop.f32.mrb[0].mxu0
        %v3674 = vadd.f32 0.0, %v3673
        %v3675 = vpop.f32.mrb[0].mxu0
        %v3676 = vadd.f32 0.0, %v3675
        %v3677 = vpop.f32.mrb[0].mxu0
        %v3678 = vadd.f32 0.0, %v3677
        %3679 = vmatprep.mubr.bf16.mxu0 %v2208
        %3680 = vmatmul.mubr.bf16.gmra.mrb[0].mxu0 %v2207
        %v3681 = vpop.f32.mrb[0].mxu0
        %v3682 = vadd.f32 0.0, %v3681
        %v3683 = vpop.f32.mrb[0].mxu0
        %v3684 = vadd.f32 0.0, %v3683
        %v3685 = vpop.f32.mrb[0].mxu0
        %v3686 = vadd.f32 0.0, %v3685
        %v3687 = vpop.f32.mrb[0].mxu0
        %v3688 = vadd.f32 0.0, %v3687
        %3689 = vmatprep.mubr.bf16.mxu0 %v2218
        %3690 = vmatmul.mubr.bf16.gmra.mrb[0].mxu0 %v2217
        %v3691 = vpop.f32.mrb[0].mxu0
        %v3692 = vadd.f32 0.0, %v3691
        %v3693 = vpop.f32.mrb[0].mxu0
        %v3694 = vadd.f32 0.0, %v3693
        %v3695 = vpop.f32.mrb[0].mxu0
        %v3696 = vadd.f32 0.0, %v3695
        %v3697 = vpop.f32.mrb[0].mxu0
        %v3698 = vadd.f32 0.0, %v3697
        %3699 = vmatprep.mubr.bf16.mxu0 %v2228
        %3700 = vmatmul.mubr.bf16.gmra.mrb[0].mxu0 %v2227
        %v3701 = vpop.f32.mrb[0].mxu0
        %v3702 = vadd.f32 0.0, %v3701
        %v3703 = vpop.f32.mrb[0].mxu0
        %v3704 = vadd.f32 0.0, %v3703
        %v3705 = vpop.f32.mrb[0].mxu0
        %v3706 = vadd.f32 0.0, %v3705
        %v3707 = vpop.f32.mrb[0].mxu0
        %v3708 = vadd.f32 0.0, %v3707
        %3709 = vmatprep.mubr.bf16.mxu0 %v2238
        %3710 = vmatmul.mubr.bf16.gmra.mrb[0].mxu0 %v2237
        %v3711 = vpop.f32.mrb[0].mxu0
        %v3712 = vadd.f32 0.0, %v3711
        %v3713 = vpop.f32.mrb[0].mxu0
        %v3714 = vadd.f32 0.0, %v3713
        %v3715 = vpop.f32.mrb[0].mxu0
        %v3716 = vadd.f32 0.0, %v3715
        %v3717 = vpop.f32.mrb[0].mxu0
        %v3718 = vadd.f32 0.0, %v3717
        %3719 = vmatprep.mubr.bf16.mxu0 %v2248
        %3720 = vmatmul.mubr.bf16.gmra.mrb[0].mxu0 %v2247
        %v3721 = vpop.f32.mrb[0].mxu0
        %v3722 = vadd.f32 0.0, %v3721
        %v3723 = vpop.f32.mrb[0].mxu0
        %v3724 = vadd.f32 0.0, %v3723
        %v3725 = vpop.f32.mrb[0].mxu0
        %v3726 = vadd.f32 0.0, %v3725
        %v3727 = vpop.f32.mrb[0].mxu0
        %v3728 = vadd.f32 0.0, %v3727
        %3729 = vmatprep.mubr.bf16.mxu0 %v2258
        %3730 = vmatmul.mubr.bf16.gmra.mrb[0].mxu0 %v2257
        %v3731 = vpop.f32.mrb[0].mxu0
        %v3732 = vadd.f32 0.0, %v3731
        %v3733 = vpop.f32.mrb[0].mxu0
        %v3734 = vadd.f32 0.0, %v3733
        %v3735 = vpop.f32.mrb[0].mxu0
        %v3736 = vadd.f32 0.0, %v3735
        %v3737 = vpop.f32.mrb[0].mxu0
        %v3738 = vadd.f32 0.0, %v3737
        %3739 = vmatprep.mubr.bf16.mxu0 %v2268
        %3740 = vmatmul.mubr.bf16.gmra.mrb[0].mxu0 %v2267
        %v3741 = vpop.f32.mrb[0].mxu0
        %v3742 = vadd.f32 0.0, %v3741
        %v3743 = vpop.f32.mrb[0].mxu0
        %v3744 = vadd.f32 0.0, %v3743
        %v3745 = vpop.f32.mrb[0].mxu0
        %v3746 = vadd.f32 0.0, %v3745
        %v3747 = vpop.f32.mrb[0].mxu0
        %v3748 = vadd.f32 0.0, %v3747
        %3749 = vmatprep.mubr.bf16.mxu0 %v2278
        %3750 = vmatmul.mubr.bf16.gmra.mrb[0].mxu0 %v2277
        %v3751 = vpop.f32.mrb[0].mxu0
        %v3752 = vadd.f32 0.0, %v3751
        %v3753 = vpop.f32.mrb[0].mxu0
        %v3754 = vadd.f32 0.0, %v3753
        %v3755 = vpop.f32.mrb[0].mxu0
        %v3756 = vadd.f32 0.0, %v3755
        %v3757 = vpop.f32.mrb[0].mxu0
        %v3758 = vadd.f32 0.0, %v3757
        %3759 = vmatprep.mubr.bf16.mxu0 %v2288
        %3760 = vmatmul.mubr.bf16.gmra.mrb[0].mxu0 %v2287
        %v3761 = vpop.f32.mrb[0].mxu0
        %v3762 = vadd.f32 0.0, %v3761
        %v3763 = vpop.f32.mrb[0].mxu0
        %v3764 = vadd.f32 0.0, %v3763
        %v3765 = vpop.f32.mrb[0].mxu0
        %v3766 = vadd.f32 0.0, %v3765
        %v3767 = vpop.f32.mrb[0].mxu0
        %v3768 = vadd.f32 0.0, %v3767
        %3769 = vmatprep.mubr.bf16.mxu0 %v2298
        %3770 = vmatmul.mubr.bf16.gmra.mrb[0].mxu0 %v2297
        %v3771 = vpop.f32.mrb[0].mxu0
        %v3772 = vadd.f32 0.0, %v3771
        %v3773 = vpop.f32.mrb[0].mxu0
        %v3774 = vadd.f32 0.0, %v3773
        %v3775 = vpop.f32.mrb[0].mxu0
        %v3776 = vadd.f32 0.0, %v3775
        %v3777 = vpop.f32.mrb[0].mxu0
        %v3778 = vadd.f32 0.0, %v3777
        %3779 = vmatprep.mubr.bf16.mxu0 %v2308
        %3780 = vmatmul.mubr.bf16.gmra.mrb[0].mxu0 %v2307
        %v3781 = vpop.f32.mrb[0].mxu0
        %v3782 = vadd.f32 0.0, %v3781
        %v3783 = vpop.f32.mrb[0].mxu0
        %v3784 = vadd.f32 0.0, %v3783
        %v3785 = vpop.f32.mrb[0].mxu0
        %v3786 = vadd.f32 0.0, %v3785
        %v3787 = vpop.f32.mrb[0].mxu0
        %v3788 = vadd.f32 0.0, %v3787
        %3789 = vmatprep.mubr.bf16.mxu0 %v2318
        %3790 = vmatmul.mubr.bf16.gmra.mrb[0].mxu0 %v2317
        %v3791 = vpop.f32.mrb[0].mxu0
        %v3792 = vadd.f32 0.0, %v3791
        %v3793 = vpop.f32.mrb[0].mxu0
        %v3794 = vadd.f32 0.0, %v3793
        %v3795 = vpop.f32.mrb[0].mxu0
        %v3796 = vadd.f32 0.0, %v3795
        %v3797 = vpop.f32.mrb[0].mxu0
        %v3798 = vadd.f32 0.0, %v3797
        %3799 = vmatprep.mubr.bf16.mxu0 %v2328
        %3800 = vmatmul.mubr.bf16.gmra.mrb[0].mxu0 %v2327
        %v3801 = vpop.f32.mrb[0].mxu0
        %v3802 = vadd.f32 0.0, %v3801
        %v3803 = vpop.f32.mrb[0].mxu0
        %v3804 = vadd.f32 0.0, %v3803
        %v3805 = vpop.f32.mrb[0].mxu0
        %v3806 = vadd.f32 0.0, %v3805
        %v3807 = vpop.f32.mrb[0].mxu0
        %v3808 = vadd.f32 0.0, %v3807
        %3809 = vmatprep.mubr.bf16.mxu0 %v2338
        %3810 = vmatmul.mubr.bf16.gmra.mrb[0].mxu0 %v2337
        %v3811 = vpop.f32.mrb[0].mxu0
        %v3812 = vadd.f32 0.0, %v3811
        %v3813 = vpop.f32.mrb[0].mxu0
        %v3814 = vadd.f32 0.0, %v3813
        %v3815 = vpop.f32.mrb[0].mxu0
        %v3816 = vadd.f32 0.0, %v3815
        %v3817 = vpop.f32.mrb[0].mxu0
        %v3818 = vadd.f32 0.0, %v3817
        %3819 = vmatprep.mubr.bf16.mxu0 %v2348
        %3820 = vmatmul.mubr.bf16.gmra.mrb[0].mxu0 %v2347
        %v3821 = vpop.f32.mrb[0].mxu0
        %v3822 = vadd.f32 0.0, %v3821
        %v3823 = vpop.f32.mrb[0].mxu0
        %v3824 = vadd.f32 0.0, %v3823
        %v3825 = vpop.f32.mrb[0].mxu0
        %v3826 = vadd.f32 0.0, %v3825
        %v3827 = vpop.f32.mrb[0].mxu0
        %v3828 = vadd.f32 0.0, %v3827
        %3829 = vmatprep.mubr.bf16.mxu0 %v2358
        %3830 = vmatmul.mubr.bf16.gmra.mrb[0].mxu0 %v2357
        %v3831 = vpop.f32.mrb[0].mxu0
        %v3832 = vadd.f32 0.0, %v3831
        %v3833 = vpop.f32.mrb[0].mxu0
        %v3834 = vadd.f32 0.0, %v3833
        %v3835 = vpop.f32.mrb[0].mxu0
        %v3836 = vadd.f32 0.0, %v3835
        %v3837 = vpop.f32.mrb[0].mxu0
        %v3838 = vadd.f32 0.0, %v3837
        %3839 = vmatprep.mubr.bf16.mxu0 %v2368
        %3840 = vmatmul.mubr.bf16.gmra.mrb[0].mxu0 %v2367
        %v3841 = vpop.f32.mrb[0].mxu0
        %v3842 = vadd.f32 0.0, %v3841
        %v3843 = vpop.f32.mrb[0].mxu0
        %v3844 = vadd.f32 0.0, %v3843
        %v3845 = vpop.f32.mrb[0].mxu0
        %v3846 = vadd.f32 0.0, %v3845
        %v3847 = vpop.f32.mrb[0].mxu0
        %v3848 = vadd.f32 0.0, %v3847
        %3849 = vmatprep.mubr.bf16.mxu0 %v2378
        %3850 = vmatmul.mubr.bf16.gmra.mrb[0].mxu0 %v2377
        %v3851 = vpop.f32.mrb[0].mxu0
        %v3852 = vadd.f32 0.0, %v3851
        %v3853 = vpop.f32.mrb[0].mxu0
        %v3854 = vadd.f32 0.0, %v3853
        %v3855 = vpop.f32.mrb[0].mxu0
        %v3856 = vadd.f32 0.0, %v3855
        %v3857 = vpop.f32.mrb[0].mxu0
        %v3858 = vadd.f32 0.0, %v3857
        %3859 = vmatprep.mubr.bf16.mxu0 %v2388
        %3860 = vmatmul.mubr.bf16.gmra.mrb[0].mxu0 %v2387
        %v3861 = vpop.f32.mrb[0].mxu0
        %v3862 = vadd.f32 0.0, %v3861
        %v3863 = vpop.f32.mrb[0].mxu0
        %v3864 = vadd.f32 0.0, %v3863
        %v3865 = vpop.f32.mrb[0].mxu0
        %v3866 = vadd.f32 0.0, %v3865
        %v3867 = vpop.f32.mrb[0].mxu0
        %v3868 = vadd.f32 0.0, %v3867
        %3869 = vmatprep.mubr.bf16.mxu0 %v2398
        %3870 = vmatmul.mubr.bf16.gmra.mrb[0].mxu0 %v2397
        %v3871 = vpop.f32.mrb[0].mxu0
        %v3872 = vadd.f32 0.0, %v3871
        %v3873 = vpop.f32.mrb[0].mxu0
        %v3874 = vadd.f32 0.0, %v3873
        %v3875 = vpop.f32.mrb[0].mxu0
        %v3876 = vadd.f32 0.0, %v3875
        %v3877 = vpop.f32.mrb[0].mxu0
        %v3878 = vadd.f32 0.0, %v3877
        %3879 = vmatprep.mubr.bf16.mxu0 %v2408
        %3880 = vmatmul.mubr.bf16.gmra.mrb[0].mxu0 %v2407
        %v3881 = vpop.f32.mrb[0].mxu0
        %v3882 = vadd.f32 0.0, %v3881
        %v3883 = vpop.f32.mrb[0].mxu0
        %v3884 = vadd.f32 0.0, %v3883
        %v3885 = vpop.f32.mrb[0].mxu0
        %v3886 = vadd.f32 0.0, %v3885
        %v3887 = vpop.f32.mrb[0].mxu0
        %v3888 = vadd.f32 0.0, %v3887
        %3889 = vmatprep.mubr.bf16.mxu0 %v2418
        %3890 = vmatmul.mubr.bf16.gmra.mrb[0].mxu0 %v2417
        %v3891 = vpop.f32.mrb[0].mxu0
        %v3892 = vadd.f32 0.0, %v3891
        %v3893 = vpop.f32.mrb[0].mxu0
        %v3894 = vadd.f32 0.0, %v3893
        %v3895 = vpop.f32.mrb[0].mxu0
        %v3896 = vadd.f32 0.0, %v3895
        %v3897 = vpop.f32.mrb[0].mxu0
        %v3898 = vadd.f32 0.0, %v3897
        %3899 = vmatprep.mubr.bf16.mxu0 %v2428
        %3900 = vmatmul.mubr.bf16.gmra.mrb[0].mxu0 %v2427
        %v3901 = vpop.f32.mrb[0].mxu0
        %v3902 = vadd.f32 0.0, %v3901
        %v3903 = vpop.f32.mrb[0].mxu0
        %v3904 = vadd.f32 0.0, %v3903
        %v3905 = vpop.f32.mrb[0].mxu0
        %v3906 = vadd.f32 0.0, %v3905
        %v3907 = vpop.f32.mrb[0].mxu0
        %v3908 = vadd.f32 0.0, %v3907
        %3909 = vdwg.mxu0
        %3910 = vmatprep.subr.bf16.mxu0 %v3270
        %3911 = vmatpush1.bf16.msra.mxu0 %v3269
        %3912 = vmatprep.subr.bf16.mxu0 %v3272
        %3913 = vmatpush1.bf16.msra.mxu0 %v3271
        %3914 = vmatprep.subr.bf16.mxu0 %v3274
        %3915 = vmatpush1.bf16.msra.mxu0 %v3273
        %3916 = vmatprep.subr.bf16.mxu0 %v3276
        %3917 = vmatpush1.bf16.msra.mxu0 %v3275
        %3918 = vmatprep.subr.bf16.mxu0 %v3278
        %3919 = vmatpush1.bf16.msra.mxu0 %v3277
        %3920 = vmatprep.subr.bf16.mxu0 %v3280
        %3921 = vmatpush1.bf16.msra.mxu0 %v3279
        %3922 = vmatprep.subr.bf16.mxu0 %v3282
        %3923 = vmatpush1.bf16.msra.mxu0 %v3281
        %3924 = vmatprep.subr.bf16.mxu0 %v3284
        %3925 = vmatpush1.bf16.msra.mxu0 %v3283
        %3926 = vmatprep.subr.bf16.mxu0 %v3286
        %3927 = vmatpush1.bf16.msra.mxu0 %v3285
        %3928 = vmatprep.subr.bf16.mxu0 %v3288
        %3929 = vmatpush1.bf16.msra.mxu0 %v3287
        %3930 = vmatprep.subr.bf16.mxu0 %v3290
        %3931 = vmatpush1.bf16.msra.mxu0 %v3289
        %3932 = vmatprep.subr.bf16.mxu0 %v3292
        %3933 = vmatpush1.bf16.msra.mxu0 %v3291
        %3934 = vmatprep.subr.bf16.mxu0 %v3294
        %3935 = vmatpush1.bf16.msra.mxu0 %v3293
        %3936 = vmatprep.subr.bf16.mxu0 %v3296
        %3937 = vmatpush1.bf16.msra.mxu0 %v3295
        %3938 = vmatprep.subr.bf16.mxu0 %v3298
        %3939 = vmatpush1.bf16.msra.mxu0 %v3297
        %3940 = vmatprep.subr.bf16.mxu0 %v3300
        %3941 = vmatpush1.bf16.msra.mxu0 %v3299
        %3942 = vmatprep.mubr.bf16.mxu0 %v2120
        %3943 = vmatmul.mubr.bf16.gmra.mrb[0].mxu0 %v2119
        %v3944 = vpop.f32.mrb[0].mxu0
        %v3945 = vadd.f32 %v3592, %v3944
        %v3946 = vpop.f32.mrb[0].mxu0
        %v3947 = vadd.f32 %v3594, %v3946
        %v3948 = vpop.f32.mrb[0].mxu0
        %v3949 = vadd.f32 %v3596, %v3948
        %v3950 = vpop.f32.mrb[0].mxu0
        %v3951 = vadd.f32 %v3598, %v3950
        %3952 = vmatprep.mubr.bf16.mxu0 %v2130
        %3953 = vmatmul.mubr.bf16.gmra.mrb[0].mxu0 %v2129
        %v3954 = vpop.f32.mrb[0].mxu0
        %v3955 = vadd.f32 %v3602, %v3954
        %v3956 = vpop.f32.mrb[0].mxu0
        %v3957 = vadd.f32 %v3604, %v3956
        %v3958 = vpop.f32.mrb[0].mxu0
        %v3959 = vadd.f32 %v3606, %v3958
        %v3960 = vpop.f32.mrb[0].mxu0
        %v3961 = vadd.f32 %v3608, %v3960
        %3962 = vmatprep.mubr.bf16.mxu0 %v2140
        %3963 = vmatmul.mubr.bf16.gmra.mrb[0].mxu0 %v2139
        %v3964 = vpop.f32.mrb[0].mxu0
        %v3965 = vadd.f32 %v3612, %v3964
        %v3966 = vpop.f32.mrb[0].mxu0
        %v3967 = vadd.f32 %v3614, %v3966
        %v3968 = vpop.f32.mrb[0].mxu0
        %v3969 = vadd.f32 %v3616, %v3968
        %v3970 = vpop.f32.mrb[0].mxu0
        %v3971 = vadd.f32 %v3618, %v3970
        %3972 = vmatprep.mubr.bf16.mxu0 %v2150
        %3973 = vmatmul.mubr.bf16.gmra.mrb[0].mxu0 %v2149
        %v3974 = vpop.f32.mrb[0].mxu0
        %v3975 = vadd.f32 %v3622, %v3974
        %v3976 = vpop.f32.mrb[0].mxu0
        %v3977 = vadd.f32 %v3624, %v3976
        %v3978 = vpop.f32.mrb[0].mxu0
        %v3979 = vadd.f32 %v3626, %v3978
        %v3980 = vpop.f32.mrb[0].mxu0
        %v3981 = vadd.f32 %v3628, %v3980
        %3982 = vmatprep.mubr.bf16.mxu0 %v2160
        %3983 = vmatmul.mubr.bf16.gmra.mrb[0].mxu0 %v2159
        %v3984 = vpop.f32.mrb[0].mxu0
        %v3985 = vadd.f32 %v3632, %v3984
        %v3986 = vpop.f32.mrb[0].mxu0
        %v3987 = vadd.f32 %v3634, %v3986
        %v3988 = vpop.f32.mrb[0].mxu0
        %v3989 = vadd.f32 %v3636, %v3988
        %v3990 = vpop.f32.mrb[0].mxu0
        %v3991 = vadd.f32 %v3638, %v3990
        %3992 = vmatprep.mubr.bf16.mxu0 %v2170
        %3993 = vmatmul.mubr.bf16.gmra.mrb[0].mxu0 %v2169
        %v3994 = vpop.f32.mrb[0].mxu0
        %v3995 = vadd.f32 %v3642, %v3994
        %v3996 = vpop.f32.mrb[0].mxu0
        %v3997 = vadd.f32 %v3644, %v3996
        %v3998 = vpop.f32.mrb[0].mxu0
        %v3999 = vadd.f32 %v3646, %v3998
        %v4000 = vpop.f32.mrb[0].mxu0
        %v4001 = vadd.f32 %v3648, %v4000
        %4002 = vmatprep.mubr.bf16.mxu0 %v2180
        %4003 = vmatmul.mubr.bf16.gmra.mrb[0].mxu0 %v2179
        %v4004 = vpop.f32.mrb[0].mxu0
        %v4005 = vadd.f32 %v3652, %v4004
        %v4006 = vpop.f32.mrb[0].mxu0
        %v4007 = vadd.f32 %v3654, %v4006
        %v4008 = vpop.f32.mrb[0].mxu0
        %v4009 = vadd.f32 %v3656, %v4008
        %v4010 = vpop.f32.mrb[0].mxu0
        %v4011 = vadd.f32 %v3658, %v4010
        %4012 = vmatprep.mubr.bf16.mxu0 %v2190
        %4013 = vmatmul.mubr.bf16.gmra.mrb[0].mxu0 %v2189
        %v4014 = vpop.f32.mrb[0].mxu0
        %v4015 = vadd.f32 %v3662, %v4014
        %v4016 = vpop.f32.mrb[0].mxu0
        %v4017 = vadd.f32 %v3664, %v4016
        %v4018 = vpop.f32.mrb[0].mxu0
        %v4019 = vadd.f32 %v3666, %v4018
        %v4020 = vpop.f32.mrb[0].mxu0
        %v4021 = vadd.f32 %v3668, %v4020
        %4022 = vmatprep.mubr.bf16.mxu0 %v2200
        %4023 = vmatmul.mubr.bf16.gmra.mrb[0].mxu0 %v2199
        %v4024 = vpop.f32.mrb[0].mxu0
        %v4025 = vadd.f32 %v3672, %v4024
        %v4026 = vpop.f32.mrb[0].mxu0
        %v4027 = vadd.f32 %v3674, %v4026
        %v4028 = vpop.f32.mrb[0].mxu0
        %v4029 = vadd.f32 %v3676, %v4028
        %v4030 = vpop.f32.mrb[0].mxu0
        %v4031 = vadd.f32 %v3678, %v4030
        %4032 = vmatprep.mubr.bf16.mxu0 %v2210
        %4033 = vmatmul.mubr.bf16.gmra.mrb[0].mxu0 %v2209
        %v4034 = vpop.f32.mrb[0].mxu0
        %v4035 = vadd.f32 %v3682, %v4034
        %v4036 = vpop.f32.mrb[0].mxu0
        %v4037 = vadd.f32 %v3684, %v4036
        %v4038 = vpop.f32.mrb[0].mxu0
        %v4039 = vadd.f32 %v3686, %v4038
        %v4040 = vpop.f32.mrb[0].mxu0
        %v4041 = vadd.f32 %v3688, %v4040
        %4042 = vmatprep.mubr.bf16.mxu0 %v2220
        %4043 = vmatmul.mubr.bf16.gmra.mrb[0].mxu0 %v2219
        %v4044 = vpop.f32.mrb[0].mxu0
        %v4045 = vadd.f32 %v3692, %v4044
        %v4046 = vpop.f32.mrb[0].mxu0
        %v4047 = vadd.f32 %v3694, %v4046
        %v4048 = vpop.f32.mrb[0].mxu0
        %v4049 = vadd.f32 %v3696, %v4048
        %v4050 = vpop.f32.mrb[0].mxu0
        %v4051 = vadd.f32 %v3698, %v4050
        %4052 = vmatprep.mubr.bf16.mxu0 %v2230
        %4053 = vmatmul.mubr.bf16.gmra.mrb[0].mxu0 %v2229
        %v4054 = vpop.f32.mrb[0].mxu0
        %v4055 = vadd.f32 %v3702, %v4054
        %v4056 = vpop.f32.mrb[0].mxu0
        %v4057 = vadd.f32 %v3704, %v4056
        %v4058 = vpop.f32.mrb[0].mxu0
        %v4059 = vadd.f32 %v3706, %v4058
        %v4060 = vpop.f32.mrb[0].mxu0
        %v4061 = vadd.f32 %v3708, %v4060
        %4062 = vmatprep.mubr.bf16.mxu0 %v2240
        %4063 = vmatmul.mubr.bf16.gmra.mrb[0].mxu0 %v2239
        %v4064 = vpop.f32.mrb[0].mxu0
        %v4065 = vadd.f32 %v3712, %v4064
        %v4066 = vpop.f32.mrb[0].mxu0
        %v4067 = vadd.f32 %v3714, %v4066
        %v4068 = vpop.f32.mrb[0].mxu0
        %v4069 = vadd.f32 %v3716, %v4068
        %v4070 = vpop.f32.mrb[0].mxu0
        %v4071 = vadd.f32 %v3718, %v4070
        %4072 = vmatprep.mubr.bf16.mxu0 %v2250
        %4073 = vmatmul.mubr.bf16.gmra.mrb[0].mxu0 %v2249
        %v4074 = vpop.f32.mrb[0].mxu0
        %v4075 = vadd.f32 %v3722, %v4074
        %v4076 = vpop.f32.mrb[0].mxu0
        %v4077 = vadd.f32 %v3724, %v4076
        %v4078 = vpop.f32.mrb[0].mxu0
        %v4079 = vadd.f32 %v3726, %v4078
        %v4080 = vpop.f32.mrb[0].mxu0
        %v4081 = vadd.f32 %v3728, %v4080
        %4082 = vmatprep.mubr.bf16.mxu0 %v2260
        %4083 = vmatmul.mubr.bf16.gmra.mrb[0].mxu0 %v2259
        %v4084 = vpop.f32.mrb[0].mxu0
        %v4085 = vadd.f32 %v3732, %v4084
        %v4086 = vpop.f32.mrb[0].mxu0
        %v4087 = vadd.f32 %v3734, %v4086
        %v4088 = vpop.f32.mrb[0].mxu0
        %v4089 = vadd.f32 %v3736, %v4088
        %v4090 = vpop.f32.mrb[0].mxu0
        %v4091 = vadd.f32 %v3738, %v4090
        %4092 = vmatprep.mubr.bf16.mxu0 %v2270
        %4093 = vmatmul.mubr.bf16.gmra.mrb[0].mxu0 %v2269
        %v4094 = vpop.f32.mrb[0].mxu0
        %v4095 = vadd.f32 %v3742, %v4094
        %v4096 = vpop.f32.mrb[0].mxu0
        %v4097 = vadd.f32 %v3744, %v4096
        %v4098 = vpop.f32.mrb[0].mxu0
        %v4099 = vadd.f32 %v3746, %v4098
        %v4100 = vpop.f32.mrb[0].mxu0
        %v4101 = vadd.f32 %v3748, %v4100
        %4102 = vmatprep.mubr.bf16.mxu0 %v2280
        %4103 = vmatmul.mubr.bf16.gmra.mrb[0].mxu0 %v2279
        %v4104 = vpop.f32.mrb[0].mxu0
        %v4105 = vadd.f32 %v3752, %v4104
        %v4106 = vpop.f32.mrb[0].mxu0
        %v4107 = vadd.f32 %v3754, %v4106
        %v4108 = vpop.f32.mrb[0].mxu0
        %v4109 = vadd.f32 %v3756, %v4108
        %v4110 = vpop.f32.mrb[0].mxu0
        %v4111 = vadd.f32 %v3758, %v4110
        %4112 = vmatprep.mubr.bf16.mxu0 %v2290
        %4113 = vmatmul.mubr.bf16.gmra.mrb[0].mxu0 %v2289
        %v4114 = vpop.f32.mrb[0].mxu0
        %v4115 = vadd.f32 %v3762, %v4114
        %v4116 = vpop.f32.mrb[0].mxu0
        %v4117 = vadd.f32 %v3764, %v4116
        %v4118 = vpop.f32.mrb[0].mxu0
        %v4119 = vadd.f32 %v3766, %v4118
        %v4120 = vpop.f32.mrb[0].mxu0
        %v4121 = vadd.f32 %v3768, %v4120
        %4122 = vmatprep.mubr.bf16.mxu0 %v2300
        %4123 = vmatmul.mubr.bf16.gmra.mrb[0].mxu0 %v2299
        %v4124 = vpop.f32.mrb[0].mxu0
        %v4125 = vadd.f32 %v3772, %v4124
        %v4126 = vpop.f32.mrb[0].mxu0
        %v4127 = vadd.f32 %v3774, %v4126
        %v4128 = vpop.f32.mrb[0].mxu0
        %v4129 = vadd.f32 %v3776, %v4128
        %v4130 = vpop.f32.mrb[0].mxu0
        %v4131 = vadd.f32 %v3778, %v4130
        %4132 = vmatprep.mubr.bf16.mxu0 %v2310
        %4133 = vmatmul.mubr.bf16.gmra.mrb[0].mxu0 %v2309
        %v4134 = vpop.f32.mrb[0].mxu0
        %v4135 = vadd.f32 %v3782, %v4134
        %v4136 = vpop.f32.mrb[0].mxu0
        %v4137 = vadd.f32 %v3784, %v4136
        %v4138 = vpop.f32.mrb[0].mxu0
        %v4139 = vadd.f32 %v3786, %v4138
        %v4140 = vpop.f32.mrb[0].mxu0
        %v4141 = vadd.f32 %v3788, %v4140
        %4142 = vmatprep.mubr.bf16.mxu0 %v2320
        %4143 = vmatmul.mubr.bf16.gmra.mrb[0].mxu0 %v2319
        %v4144 = vpop.f32.mrb[0].mxu0
        %v4145 = vadd.f32 %v3792, %v4144
        %v4146 = vpop.f32.mrb[0].mxu0
        %v4147 = vadd.f32 %v3794, %v4146
        %v4148 = vpop.f32.mrb[0].mxu0
        %v4149 = vadd.f32 %v3796, %v4148
        %v4150 = vpop.f32.mrb[0].mxu0
        %v4151 = vadd.f32 %v3798, %v4150
        %4152 = vmatprep.mubr.bf16.mxu0 %v2330
        %4153 = vmatmul.mubr.bf16.gmra.mrb[0].mxu0 %v2329
        %v4154 = vpop.f32.mrb[0].mxu0
        %v4155 = vadd.f32 %v3802, %v4154
        %v4156 = vpop.f32.mrb[0].mxu0
        %v4157 = vadd.f32 %v3804, %v4156
        %v4158 = vpop.f32.mrb[0].mxu0
        %v4159 = vadd.f32 %v3806, %v4158
        %v4160 = vpop.f32.mrb[0].mxu0
        %v4161 = vadd.f32 %v3808, %v4160
        %4162 = vmatprep.mubr.bf16.mxu0 %v2340
        %4163 = vmatmul.mubr.bf16.gmra.mrb[0].mxu0 %v2339
        %v4164 = vpop.f32.mrb[0].mxu0
        %v4165 = vadd.f32 %v3812, %v4164
        %v4166 = vpop.f32.mrb[0].mxu0
        %v4167 = vadd.f32 %v3814, %v4166
        %v4168 = vpop.f32.mrb[0].mxu0
        %v4169 = vadd.f32 %v3816, %v4168
        %v4170 = vpop.f32.mrb[0].mxu0
        %v4171 = vadd.f32 %v3818, %v4170
        %4172 = vmatprep.mubr.bf16.mxu0 %v2350
        %4173 = vmatmul.mubr.bf16.gmra.mrb[0].mxu0 %v2349
        %v4174 = vpop.f32.mrb[0].mxu0
        %v4175 = vadd.f32 %v3822, %v4174
        %v4176 = vpop.f32.mrb[0].mxu0
        %v4177 = vadd.f32 %v3824, %v4176
        %v4178 = vpop.f32.mrb[0].mxu0
        %v4179 = vadd.f32 %v3826, %v4178
        %v4180 = vpop.f32.mrb[0].mxu0
        %v4181 = vadd.f32 %v3828, %v4180
        %4182 = vmatprep.mubr.bf16.mxu0 %v2360
        %4183 = vmatmul.mubr.bf16.gmra.mrb[0].mxu0 %v2359
        %v4184 = vpop.f32.mrb[0].mxu0
        %v4185 = vadd.f32 %v3832, %v4184
        %v4186 = vpop.f32.mrb[0].mxu0
        %v4187 = vadd.f32 %v3834, %v4186
        %v4188 = vpop.f32.mrb[0].mxu0
        %v4189 = vadd.f32 %v3836, %v4188
        %v4190 = vpop.f32.mrb[0].mxu0
        %v4191 = vadd.f32 %v3838, %v4190
        %4192 = vmatprep.mubr.bf16.mxu0 %v2370
        %4193 = vmatmul.mubr.bf16.gmra.mrb[0].mxu0 %v2369
        %v4194 = vpop.f32.mrb[0].mxu0
        %v4195 = vadd.f32 %v3842, %v4194
        %v4196 = vpop.f32.mrb[0].mxu0
        %v4197 = vadd.f32 %v3844, %v4196
        %v4198 = vpop.f32.mrb[0].mxu0
        %v4199 = vadd.f32 %v3846, %v4198
        %v4200 = vpop.f32.mrb[0].mxu0
        %v4201 = vadd.f32 %v3848, %v4200
        %4202 = vmatprep.mubr.bf16.mxu0 %v2380
        %4203 = vmatmul.mubr.bf16.gmra.mrb[0].mxu0 %v2379
        %v4204 = vpop.f32.mrb[0].mxu0
        %v4205 = vadd.f32 %v3852, %v4204
        %v4206 = vpop.f32.mrb[0].mxu0
        %v4207 = vadd.f32 %v3854, %v4206
        %v4208 = vpop.f32.mrb[0].mxu0
        %v4209 = vadd.f32 %v3856, %v4208
        %v4210 = vpop.f32.mrb[0].mxu0
        %v4211 = vadd.f32 %v3858, %v4210
        %4212 = vmatprep.mubr.bf16.mxu0 %v2390
        %4213 = vmatmul.mubr.bf16.gmra.mrb[0].mxu0 %v2389
        %v4214 = vpop.f32.mrb[0].mxu0
        %v4215 = vadd.f32 %v3862, %v4214
        %v4216 = vpop.f32.mrb[0].mxu0
        %v4217 = vadd.f32 %v3864, %v4216
        %v4218 = vpop.f32.mrb[0].mxu0
        %v4219 = vadd.f32 %v3866, %v4218
        %v4220 = vpop.f32.mrb[0].mxu0
        %v4221 = vadd.f32 %v3868, %v4220
        %4222 = vmatprep.mubr.bf16.mxu0 %v2400
        %4223 = vmatmul.mubr.bf16.gmra.mrb[0].mxu0 %v2399
        %v4224 = vpop.f32.mrb[0].mxu0
        %v4225 = vadd.f32 %v3872, %v4224
        %v4226 = vpop.f32.mrb[0].mxu0
        %v4227 = vadd.f32 %v3874, %v4226
        %v4228 = vpop.f32.mrb[0].mxu0
        %v4229 = vadd.f32 %v3876, %v4228
        %v4230 = vpop.f32.mrb[0].mxu0
        %v4231 = vadd.f32 %v3878, %v4230
        %4232 = vmatprep.mubr.bf16.mxu0 %v2410
        %4233 = vmatmul.mubr.bf16.gmra.mrb[0].mxu0 %v2409
        %v4234 = vpop.f32.mrb[0].mxu0
        %v4235 = vadd.f32 %v3882, %v4234
        %v4236 = vpop.f32.mrb[0].mxu0
        %v4237 = vadd.f32 %v3884, %v4236
        %v4238 = vpop.f32.mrb[0].mxu0
        %v4239 = vadd.f32 %v3886, %v4238
        %v4240 = vpop.f32.mrb[0].mxu0
        %v4241 = vadd.f32 %v3888, %v4240
        %4242 = vmatprep.mubr.bf16.mxu0 %v2420
        %4243 = vmatmul.mubr.bf16.gmra.mrb[0].mxu0 %v2419
        %v4244 = vpop.f32.mrb[0].mxu0
        %v4245 = vadd.f32 %v3892, %v4244
        %v4246 = vpop.f32.mrb[0].mxu0
        %v4247 = vadd.f32 %v3894, %v4246
        %v4248 = vpop.f32.mrb[0].mxu0
        %v4249 = vadd.f32 %v3896, %v4248
        %v4250 = vpop.f32.mrb[0].mxu0
        %v4251 = vadd.f32 %v3898, %v4250
        %4252 = vmatprep.mubr.bf16.mxu0 %v2430
        %4253 = vmatmul.mubr.bf16.gmra.mrb[0].mxu0 %v2429
        %v4254 = vpop.f32.mrb[0].mxu0
        %v4255 = vadd.f32 %v3902, %v4254
        %v4256 = vpop.f32.mrb[0].mxu0
        %v4257 = vadd.f32 %v3904, %v4256
        %v4258 = vpop.f32.mrb[0].mxu0
        %v4259 = vadd.f32 %v3906, %v4258
        %v4260 = vpop.f32.mrb[0].mxu0
        %v4261 = vadd.f32 %v3908, %v4260
        %4262 = vdwg.mxu0
        %4263 = vmatprep.subr.bf16.mxu0 %v3302
        %4264 = vmatpush1.bf16.msra.mxu0 %v3301
        %4265 = vmatprep.subr.bf16.mxu0 %v3304
        %4266 = vmatpush1.bf16.msra.mxu0 %v3303
        %4267 = vmatprep.subr.bf16.mxu0 %v3306
        %4268 = vmatpush1.bf16.msra.mxu0 %v3305
        %4269 = vmatprep.subr.bf16.mxu0 %v3308
        %4270 = vmatpush1.bf16.msra.mxu0 %v3307
        %4271 = vmatprep.subr.bf16.mxu0 %v3310
        %4272 = vmatpush1.bf16.msra.mxu0 %v3309
        %4273 = vmatprep.subr.bf16.mxu0 %v3312
        %4274 = vmatpush1.bf16.msra.mxu0 %v3311
        %4275 = vmatprep.subr.bf16.mxu0 %v3314
        %4276 = vmatpush1.bf16.msra.mxu0 %v3313
        %4277 = vmatprep.subr.bf16.mxu0 %v3316
        %4278 = vmatpush1.bf16.msra.mxu0 %v3315
        %4279 = vmatprep.subr.bf16.mxu0 %v3318
        %4280 = vmatpush1.bf16.msra.mxu0 %v3317
        %4281 = vmatprep.subr.bf16.mxu0 %v3320
        %4282 = vmatpush1.bf16.msra.mxu0 %v3319
        %4283 = vmatprep.subr.bf16.mxu0 %v3322
        %4284 = vmatpush1.bf16.msra.mxu0 %v3321
        %4285 = vmatprep.subr.bf16.mxu0 %v3324
        %4286 = vmatpush1.bf16.msra.mxu0 %v3323
        %4287 = vmatprep.subr.bf16.mxu0 %v3326
        %4288 = vmatpush1.bf16.msra.mxu0 %v3325
        %4289 = vmatprep.subr.bf16.mxu0 %v3328
        %4290 = vmatpush1.bf16.msra.mxu0 %v3327
        %4291 = vmatprep.subr.bf16.mxu0 %v3330
        %4292 = vmatpush1.bf16.msra.mxu0 %v3329
        %4293 = vmatprep.subr.bf16.mxu0 %v3332
        %4294 = vmatpush1.bf16.msra.mxu0 %v3331
        %4295 = vmatprep.mubr.bf16.mxu0 %v2122
        %4296 = vmatmul.mubr.bf16.gmra.mrb[0].mxu0 %v2121
        %v4297 = vpop.f32.mrb[0].mxu0
        %v4298 = vadd.f32 %v3945, %v4297
        %v4299 = vpop.f32.mrb[0].mxu0
        %v4300 = vadd.f32 %v3947, %v4299
        %v4301 = vpop.f32.mrb[0].mxu0
        %v4302 = vadd.f32 %v3949, %v4301
        %v4303 = vpop.f32.mrb[0].mxu0
        %v4304 = vadd.f32 %v3951, %v4303
        %4305 = vmatprep.mubr.bf16.mxu0 %v2132
        %4306 = vmatmul.mubr.bf16.gmra.mrb[0].mxu0 %v2131
        %v4307 = vpop.f32.mrb[0].mxu0
        %v4308 = vadd.f32 %v3955, %v4307
        %v4309 = vpop.f32.mrb[0].mxu0
        %v4310 = vadd.f32 %v3957, %v4309
        %v4311 = vpop.f32.mrb[0].mxu0
        %v4312 = vadd.f32 %v3959, %v4311
        %v4313 = vpop.f32.mrb[0].mxu0
        %v4314 = vadd.f32 %v3961, %v4313
        %4315 = vmatprep.mubr.bf16.mxu0 %v2142
        %4316 = vmatmul.mubr.bf16.gmra.mrb[0].mxu0 %v2141
        %v4317 = vpop.f32.mrb[0].mxu0
        %v4318 = vadd.f32 %v3965, %v4317
        %v4319 = vpop.f32.mrb[0].mxu0
        %v4320 = vadd.f32 %v3967, %v4319
        %v4321 = vpop.f32.mrb[0].mxu0
        %v4322 = vadd.f32 %v3969, %v4321
        %v4323 = vpop.f32.mrb[0].mxu0
        %v4324 = vadd.f32 %v3971, %v4323
        %4325 = vmatprep.mubr.bf16.mxu0 %v2152
        %4326 = vmatmul.mubr.bf16.gmra.mrb[0].mxu0 %v2151
        %v4327 = vpop.f32.mrb[0].mxu0
        %v4328 = vadd.f32 %v3975, %v4327
        %v4329 = vpop.f32.mrb[0].mxu0
        %v4330 = vadd.f32 %v3977, %v4329
        %v4331 = vpop.f32.mrb[0].mxu0
        %v4332 = vadd.f32 %v3979, %v4331
        %v4333 = vpop.f32.mrb[0].mxu0
        %v4334 = vadd.f32 %v3981, %v4333
        %4335 = vmatprep.mubr.bf16.mxu0 %v2162
        %4336 = vmatmul.mubr.bf16.gmra.mrb[0].mxu0 %v2161
        %v4337 = vpop.f32.mrb[0].mxu0
        %v4338 = vadd.f32 %v3985, %v4337
        %v4339 = vpop.f32.mrb[0].mxu0
        %v4340 = vadd.f32 %v3987, %v4339
        %v4341 = vpop.f32.mrb[0].mxu0
        %v4342 = vadd.f32 %v3989, %v4341
        %v4343 = vpop.f32.mrb[0].mxu0
        %v4344 = vadd.f32 %v3991, %v4343
        %4345 = vmatprep.mubr.bf16.mxu0 %v2172
        %4346 = vmatmul.mubr.bf16.gmra.mrb[0].mxu0 %v2171
        %v4347 = vpop.f32.mrb[0].mxu0
        %v4348 = vadd.f32 %v3995, %v4347
        %v4349 = vpop.f32.mrb[0].mxu0
        %v4350 = vadd.f32 %v3997, %v4349
        %v4351 = vpop.f32.mrb[0].mxu0
        %v4352 = vadd.f32 %v3999, %v4351
        %v4353 = vpop.f32.mrb[0].mxu0
        %v4354 = vadd.f32 %v4001, %v4353
        %4355 = vmatprep.mubr.bf16.mxu0 %v2182
        %4356 = vmatmul.mubr.bf16.gmra.mrb[0].mxu0 %v2181
        %v4357 = vpop.f32.mrb[0].mxu0
        %v4358 = vadd.f32 %v4005, %v4357
        %v4359 = vpop.f32.mrb[0].mxu0
        %v4360 = vadd.f32 %v4007, %v4359
        %v4361 = vpop.f32.mrb[0].mxu0
        %v4362 = vadd.f32 %v4009, %v4361
        %v4363 = vpop.f32.mrb[0].mxu0
        %v4364 = vadd.f32 %v4011, %v4363
        %4365 = vmatprep.mubr.bf16.mxu0 %v2192
        %4366 = vmatmul.mubr.bf16.gmra.mrb[0].mxu0 %v2191
        %v4367 = vpop.f32.mrb[0].mxu0
        %v4368 = vadd.f32 %v4015, %v4367
        %v4369 = vpop.f32.mrb[0].mxu0
        %v4370 = vadd.f32 %v4017, %v4369
        %v4371 = vpop.f32.mrb[0].mxu0
        %v4372 = vadd.f32 %v4019, %v4371
        %v4373 = vpop.f32.mrb[0].mxu0
        %v4374 = vadd.f32 %v4021, %v4373
        %4375 = vmatprep.mubr.bf16.mxu0 %v2202
        %4376 = vmatmul.mubr.bf16.gmra.mrb[0].mxu0 %v2201
        %v4377 = vpop.f32.mrb[0].mxu0
        %v4378 = vadd.f32 %v4025, %v4377
        %v4379 = vpop.f32.mrb[0].mxu0
        %v4380 = vadd.f32 %v4027, %v4379
        %v4381 = vpop.f32.mrb[0].mxu0
        %v4382 = vadd.f32 %v4029, %v4381
        %v4383 = vpop.f32.mrb[0].mxu0
        %v4384 = vadd.f32 %v4031, %v4383
        %4385 = vmatprep.mubr.bf16.mxu0 %v2212
        %4386 = vmatmul.mubr.bf16.gmra.mrb[0].mxu0 %v2211
        %v4387 = vpop.f32.mrb[0].mxu0
        %v4388 = vadd.f32 %v4035, %v4387
        %v4389 = vpop.f32.mrb[0].mxu0
        %v4390 = vadd.f32 %v4037, %v4389
        %v4391 = vpop.f32.mrb[0].mxu0
        %v4392 = vadd.f32 %v4039, %v4391
        %v4393 = vpop.f32.mrb[0].mxu0
        %v4394 = vadd.f32 %v4041, %v4393
        %4395 = vmatprep.mubr.bf16.mxu0 %v2222
        %4396 = vmatmul.mubr.bf16.gmra.mrb[0].mxu0 %v2221
        %v4397 = vpop.f32.mrb[0].mxu0
        %v4398 = vadd.f32 %v4045, %v4397
        %v4399 = vpop.f32.mrb[0].mxu0
        %v4400 = vadd.f32 %v4047, %v4399
        %v4401 = vpop.f32.mrb[0].mxu0
        %v4402 = vadd.f32 %v4049, %v4401
        %v4403 = vpop.f32.mrb[0].mxu0
        %v4404 = vadd.f32 %v4051, %v4403
        %4405 = vmatprep.mubr.bf16.mxu0 %v2232
        %4406 = vmatmul.mubr.bf16.gmra.mrb[0].mxu0 %v2231
        %v4407 = vpop.f32.mrb[0].mxu0
        %v4408 = vadd.f32 %v4055, %v4407
        %v4409 = vpop.f32.mrb[0].mxu0
        %v4410 = vadd.f32 %v4057, %v4409
        %v4411 = vpop.f32.mrb[0].mxu0
        %v4412 = vadd.f32 %v4059, %v4411
        %v4413 = vpop.f32.mrb[0].mxu0
        %v4414 = vadd.f32 %v4061, %v4413
        %4415 = vmatprep.mubr.bf16.mxu0 %v2242
        %4416 = vmatmul.mubr.bf16.gmra.mrb[0].mxu0 %v2241
        %v4417 = vpop.f32.mrb[0].mxu0
        %v4418 = vadd.f32 %v4065, %v4417
        %v4419 = vpop.f32.mrb[0].mxu0
        %v4420 = vadd.f32 %v4067, %v4419
        %v4421 = vpop.f32.mrb[0].mxu0
        %v4422 = vadd.f32 %v4069, %v4421
        %v4423 = vpop.f32.mrb[0].mxu0
        %v4424 = vadd.f32 %v4071, %v4423
        %4425 = vmatprep.mubr.bf16.mxu0 %v2252
        %4426 = vmatmul.mubr.bf16.gmra.mrb[0].mxu0 %v2251
        %v4427 = vpop.f32.mrb[0].mxu0
        %v4428 = vadd.f32 %v4075, %v4427
        %v4429 = vpop.f32.mrb[0].mxu0
        %v4430 = vadd.f32 %v4077, %v4429
        %v4431 = vpop.f32.mrb[0].mxu0
        %v4432 = vadd.f32 %v4079, %v4431
        %v4433 = vpop.f32.mrb[0].mxu0
        %v4434 = vadd.f32 %v4081, %v4433
        %4435 = vmatprep.mubr.bf16.mxu0 %v2262
        %4436 = vmatmul.mubr.bf16.gmra.mrb[0].mxu0 %v2261
        %v4437 = vpop.f32.mrb[0].mxu0
        %v4438 = vadd.f32 %v4085, %v4437
        %v4439 = vpop.f32.mrb[0].mxu0
        %v4440 = vadd.f32 %v4087, %v4439
        %v4441 = vpop.f32.mrb[0].mxu0
        %v4442 = vadd.f32 %v4089, %v4441
        %v4443 = vpop.f32.mrb[0].mxu0
        %v4444 = vadd.f32 %v4091, %v4443
        %4445 = vmatprep.mubr.bf16.mxu0 %v2272
        %4446 = vmatmul.mubr.bf16.gmra.mrb[0].mxu0 %v2271
        %v4447 = vpop.f32.mrb[0].mxu0
        %v4448 = vadd.f32 %v4095, %v4447
        %v4449 = vpop.f32.mrb[0].mxu0
        %v4450 = vadd.f32 %v4097, %v4449
        %v4451 = vpop.f32.mrb[0].mxu0
        %v4452 = vadd.f32 %v4099, %v4451
        %v4453 = vpop.f32.mrb[0].mxu0
        %v4454 = vadd.f32 %v4101, %v4453
        %4455 = vmatprep.mubr.bf16.mxu0 %v2282
        %4456 = vmatmul.mubr.bf16.gmra.mrb[0].mxu0 %v2281
        %v4457 = vpop.f32.mrb[0].mxu0
        %v4458 = vadd.f32 %v4105, %v4457
        %v4459 = vpop.f32.mrb[0].mxu0
        %v4460 = vadd.f32 %v4107, %v4459
        %v4461 = vpop.f32.mrb[0].mxu0
        %v4462 = vadd.f32 %v4109, %v4461
        %v4463 = vpop.f32.mrb[0].mxu0
        %v4464 = vadd.f32 %v4111, %v4463
        %4465 = vmatprep.mubr.bf16.mxu0 %v2292
        %4466 = vmatmul.mubr.bf16.gmra.mrb[0].mxu0 %v2291
        %v4467 = vpop.f32.mrb[0].mxu0
        %v4468 = vadd.f32 %v4115, %v4467
        %v4469 = vpop.f32.mrb[0].mxu0
        %v4470 = vadd.f32 %v4117, %v4469
        %v4471 = vpop.f32.mrb[0].mxu0
        %v4472 = vadd.f32 %v4119, %v4471
        %v4473 = vpop.f32.mrb[0].mxu0
        %v4474 = vadd.f32 %v4121, %v4473
        %4475 = vmatprep.mubr.bf16.mxu0 %v2302
        %4476 = vmatmul.mubr.bf16.gmra.mrb[0].mxu0 %v2301
        %v4477 = vpop.f32.mrb[0].mxu0
        %v4478 = vadd.f32 %v4125, %v4477
        %v4479 = vpop.f32.mrb[0].mxu0
        %v4480 = vadd.f32 %v4127, %v4479
        %v4481 = vpop.f32.mrb[0].mxu0
        %v4482 = vadd.f32 %v4129, %v4481
        %v4483 = vpop.f32.mrb[0].mxu0
        %v4484 = vadd.f32 %v4131, %v4483
        %4485 = vmatprep.mubr.bf16.mxu0 %v2312
        %4486 = vmatmul.mubr.bf16.gmra.mrb[0].mxu0 %v2311
        %v4487 = vpop.f32.mrb[0].mxu0
        %v4488 = vadd.f32 %v4135, %v4487
        %v4489 = vpop.f32.mrb[0].mxu0
        %v4490 = vadd.f32 %v4137, %v4489
        %v4491 = vpop.f32.mrb[0].mxu0
        %v4492 = vadd.f32 %v4139, %v4491
        %v4493 = vpop.f32.mrb[0].mxu0
        %v4494 = vadd.f32 %v4141, %v4493
        %4495 = vmatprep.mubr.bf16.mxu0 %v2322
        %4496 = vmatmul.mubr.bf16.gmra.mrb[0].mxu0 %v2321
        %v4497 = vpop.f32.mrb[0].mxu0
        %v4498 = vadd.f32 %v4145, %v4497
        %v4499 = vpop.f32.mrb[0].mxu0
        %v4500 = vadd.f32 %v4147, %v4499
        %v4501 = vpop.f32.mrb[0].mxu0
        %v4502 = vadd.f32 %v4149, %v4501
        %v4503 = vpop.f32.mrb[0].mxu0
        %v4504 = vadd.f32 %v4151, %v4503
        %4505 = vmatprep.mubr.bf16.mxu0 %v2332
        %4506 = vmatmul.mubr.bf16.gmra.mrb[0].mxu0 %v2331
        %v4507 = vpop.f32.mrb[0].mxu0
        %v4508 = vadd.f32 %v4155, %v4507
        %v4509 = vpop.f32.mrb[0].mxu0
        %v4510 = vadd.f32 %v4157, %v4509
        %v4511 = vpop.f32.mrb[0].mxu0
        %v4512 = vadd.f32 %v4159, %v4511
        %v4513 = vpop.f32.mrb[0].mxu0
        %v4514 = vadd.f32 %v4161, %v4513
        %4515 = vmatprep.mubr.bf16.mxu0 %v2342
        %4516 = vmatmul.mubr.bf16.gmra.mrb[0].mxu0 %v2341
        %v4517 = vpop.f32.mrb[0].mxu0
        %v4518 = vadd.f32 %v4165, %v4517
        %v4519 = vpop.f32.mrb[0].mxu0
        %v4520 = vadd.f32 %v4167, %v4519
        %v4521 = vpop.f32.mrb[0].mxu0
        %v4522 = vadd.f32 %v4169, %v4521
        %v4523 = vpop.f32.mrb[0].mxu0
        %v4524 = vadd.f32 %v4171, %v4523
        %4525 = vmatprep.mubr.bf16.mxu0 %v2352
        %4526 = vmatmul.mubr.bf16.gmra.mrb[0].mxu0 %v2351
        %v4527 = vpop.f32.mrb[0].mxu0
        %v4528 = vadd.f32 %v4175, %v4527
        %v4529 = vpop.f32.mrb[0].mxu0
        %v4530 = vadd.f32 %v4177, %v4529
        %v4531 = vpop.f32.mrb[0].mxu0
        %v4532 = vadd.f32 %v4179, %v4531
        %v4533 = vpop.f32.mrb[0].mxu0
        %v4534 = vadd.f32 %v4181, %v4533
        %4535 = vmatprep.mubr.bf16.mxu0 %v2362
        %4536 = vmatmul.mubr.bf16.gmra.mrb[0].mxu0 %v2361
        %v4537 = vpop.f32.mrb[0].mxu0
        %v4538 = vadd.f32 %v4185, %v4537
        %v4539 = vpop.f32.mrb[0].mxu0
        %v4540 = vadd.f32 %v4187, %v4539
        %v4541 = vpop.f32.mrb[0].mxu0
        %v4542 = vadd.f32 %v4189, %v4541
        %v4543 = vpop.f32.mrb[0].mxu0
        %v4544 = vadd.f32 %v4191, %v4543
        %4545 = vmatprep.mubr.bf16.mxu0 %v2372
        %4546 = vmatmul.mubr.bf16.gmra.mrb[0].mxu0 %v2371
        %v4547 = vpop.f32.mrb[0].mxu0
        %v4548 = vadd.f32 %v4195, %v4547
        %v4549 = vpop.f32.mrb[0].mxu0
        %v4550 = vadd.f32 %v4197, %v4549
        %v4551 = vpop.f32.mrb[0].mxu0
        %v4552 = vadd.f32 %v4199, %v4551
        %v4553 = vpop.f32.mrb[0].mxu0
        %v4554 = vadd.f32 %v4201, %v4553
        %4555 = vmatprep.mubr.bf16.mxu0 %v2382
        %4556 = vmatmul.mubr.bf16.gmra.mrb[0].mxu0 %v2381
        %v4557 = vpop.f32.mrb[0].mxu0
        %v4558 = vadd.f32 %v4205, %v4557
        %v4559 = vpop.f32.mrb[0].mxu0
        %v4560 = vadd.f32 %v4207, %v4559
        %v4561 = vpop.f32.mrb[0].mxu0
        %v4562 = vadd.f32 %v4209, %v4561
        %v4563 = vpop.f32.mrb[0].mxu0
        %v4564 = vadd.f32 %v4211, %v4563
        %4565 = vmatprep.mubr.bf16.mxu0 %v2392
        %4566 = vmatmul.mubr.bf16.gmra.mrb[0].mxu0 %v2391
        %v4567 = vpop.f32.mrb[0].mxu0
        %v4568 = vadd.f32 %v4215, %v4567
        %v4569 = vpop.f32.mrb[0].mxu0
        %v4570 = vadd.f32 %v4217, %v4569
        %v4571 = vpop.f32.mrb[0].mxu0
        %v4572 = vadd.f32 %v4219, %v4571
        %v4573 = vpop.f32.mrb[0].mxu0
        %v4574 = vadd.f32 %v4221, %v4573
        %4575 = vmatprep.mubr.bf16.mxu0 %v2402
        %4576 = vmatmul.mubr.bf16.gmra.mrb[0].mxu0 %v2401
        %v4577 = vpop.f32.mrb[0].mxu0
        %v4578 = vadd.f32 %v4225, %v4577
        %v4579 = vpop.f32.mrb[0].mxu0
        %v4580 = vadd.f32 %v4227, %v4579
        %v4581 = vpop.f32.mrb[0].mxu0
        %v4582 = vadd.f32 %v4229, %v4581
        %v4583 = vpop.f32.mrb[0].mxu0
        %v4584 = vadd.f32 %v4231, %v4583
        %4585 = vmatprep.mubr.bf16.mxu0 %v2412
        %4586 = vmatmul.mubr.bf16.gmra.mrb[0].mxu0 %v2411
        %v4587 = vpop.f32.mrb[0].mxu0
        %v4588 = vadd.f32 %v4235, %v4587
        %v4589 = vpop.f32.mrb[0].mxu0
        %v4590 = vadd.f32 %v4237, %v4589
        %v4591 = vpop.f32.mrb[0].mxu0
        %v4592 = vadd.f32 %v4239, %v4591
        %v4593 = vpop.f32.mrb[0].mxu0
        %v4594 = vadd.f32 %v4241, %v4593
        %4595 = vmatprep.mubr.bf16.mxu0 %v2422
        %4596 = vmatmul.mubr.bf16.gmra.mrb[0].mxu0 %v2421
        %v4597 = vpop.f32.mrb[0].mxu0
        %v4598 = vadd.f32 %v4245, %v4597
        %v4599 = vpop.f32.mrb[0].mxu0
        %v4600 = vadd.f32 %v4247, %v4599
        %v4601 = vpop.f32.mrb[0].mxu0
        %v4602 = vadd.f32 %v4249, %v4601
        %v4603 = vpop.f32.mrb[0].mxu0
        %v4604 = vadd.f32 %v4251, %v4603
        %4605 = vmatprep.mubr.bf16.mxu0 %v2432
        %4606 = vmatmul.mubr.bf16.gmra.mrb[0].mxu0 %v2431
        %v4607 = vpop.f32.mrb[0].mxu0
        %v4608 = vadd.f32 %v4255, %v4607
        %v4609 = vpop.f32.mrb[0].mxu0
        %v4610 = vadd.f32 %v4257, %v4609
        %v4611 = vpop.f32.mrb[0].mxu0
        %v4612 = vadd.f32 %v4259, %v4611
        %v4613 = vpop.f32.mrb[0].mxu0
        %v4614 = vadd.f32 %v4261, %v4613
        %4615 = vdwg.mxu0
        %4616 = vmatprep.subr.bf16.mxu0 %v3334
        %4617 = vmatpush1.bf16.msra.mxu0 %v3333
        %4618 = vmatprep.subr.bf16.mxu0 %v3336
        %4619 = vmatpush1.bf16.msra.mxu0 %v3335
        %4620 = vmatprep.subr.bf16.mxu0 %v3338
        %4621 = vmatpush1.bf16.msra.mxu0 %v3337
        %4622 = vmatprep.subr.bf16.mxu0 %v3340
        %4623 = vmatpush1.bf16.msra.mxu0 %v3339
        %4624 = vmatprep.subr.bf16.mxu0 %v3342
        %4625 = vmatpush1.bf16.msra.mxu0 %v3341
        %4626 = vmatprep.subr.bf16.mxu0 %v3344
        %4627 = vmatpush1.bf16.msra.mxu0 %v3343
        %4628 = vmatprep.subr.bf16.mxu0 %v3346
        %4629 = vmatpush1.bf16.msra.mxu0 %v3345
        %4630 = vmatprep.subr.bf16.mxu0 %v3348
        %4631 = vmatpush1.bf16.msra.mxu0 %v3347
        %4632 = vmatprep.subr.bf16.mxu0 %v3350
        %4633 = vmatpush1.bf16.msra.mxu0 %v3349
        %4634 = vmatprep.subr.bf16.mxu0 %v3352
        %4635 = vmatpush1.bf16.msra.mxu0 %v3351
        %4636 = vmatprep.subr.bf16.mxu0 %v3354
        %4637 = vmatpush1.bf16.msra.mxu0 %v3353
        %4638 = vmatprep.subr.bf16.mxu0 %v3356
        %4639 = vmatpush1.bf16.msra.mxu0 %v3355
        %4640 = vmatprep.subr.bf16.mxu0 %v3358
        %4641 = vmatpush1.bf16.msra.mxu0 %v3357
        %4642 = vmatprep.subr.bf16.mxu0 %v3360
        %4643 = vmatpush1.bf16.msra.mxu0 %v3359
        %4644 = vmatprep.subr.bf16.mxu0 %v3362
        %4645 = vmatpush1.bf16.msra.mxu0 %v3361
        %4646 = vmatprep.subr.bf16.mxu0 %v3364
        %4647 = vmatpush1.bf16.msra.mxu0 %v3363
        %4648 = vmatprep.mubr.bf16.mxu0 %v2124
        %4649 = vmatmul.mubr.bf16.gmra.mrb[0].mxu0 %v2123
        %v4650 = vpop.f32.mrb[0].mxu0
        %v4651 = vadd.f32 %v4298, %v4650
        %v4652 = vpop.f32.mrb[0].mxu0
        %v4653 = vadd.f32 %v4300, %v4652
        %v4654 = vpop.f32.mrb[0].mxu0
        %v4655 = vadd.f32 %v4302, %v4654
        %v4656 = vpop.f32.mrb[0].mxu0
        %v4657 = vadd.f32 %v4304, %v4656
        %4658 = vmatprep.mubr.bf16.mxu0 %v2134
        %4659 = vmatmul.mubr.bf16.gmra.mrb[0].mxu0 %v2133
        %v4660 = vpop.f32.mrb[0].mxu0
        %v4661 = vadd.f32 %v4308, %v4660
        %v4662 = vpop.f32.mrb[0].mxu0
        %v4663 = vadd.f32 %v4310, %v4662
        %v4664 = vpop.f32.mrb[0].mxu0
        %v4665 = vadd.f32 %v4312, %v4664
        %v4666 = vpop.f32.mrb[0].mxu0
        %v4667 = vadd.f32 %v4314, %v4666
        %4668 = vmatprep.mubr.bf16.mxu0 %v2144
        %4669 = vmatmul.mubr.bf16.gmra.mrb[0].mxu0 %v2143
        %v4670 = vpop.f32.mrb[0].mxu0
        %v4671 = vadd.f32 %v4318, %v4670
        %v4672 = vpop.f32.mrb[0].mxu0
        %v4673 = vadd.f32 %v4320, %v4672
        %v4674 = vpop.f32.mrb[0].mxu0
        %v4675 = vadd.f32 %v4322, %v4674
        %v4676 = vpop.f32.mrb[0].mxu0
        %v4677 = vadd.f32 %v4324, %v4676
        %4678 = vmatprep.mubr.bf16.mxu0 %v2154
        %4679 = vmatmul.mubr.bf16.gmra.mrb[0].mxu0 %v2153
        %v4680 = vpop.f32.mrb[0].mxu0
        %v4681 = vadd.f32 %v4328, %v4680
        %v4682 = vpop.f32.mrb[0].mxu0
        %v4683 = vadd.f32 %v4330, %v4682
        %v4684 = vpop.f32.mrb[0].mxu0
        %v4685 = vadd.f32 %v4332, %v4684
        %v4686 = vpop.f32.mrb[0].mxu0
        %v4687 = vadd.f32 %v4334, %v4686
        %4688 = vmatprep.mubr.bf16.mxu0 %v2164
        %4689 = vmatmul.mubr.bf16.gmra.mrb[0].mxu0 %v2163
        %v4690 = vpop.f32.mrb[0].mxu0
        %v4691 = vadd.f32 %v4338, %v4690
        %v4692 = vpop.f32.mrb[0].mxu0
        %v4693 = vadd.f32 %v4340, %v4692
        %v4694 = vpop.f32.mrb[0].mxu0
        %v4695 = vadd.f32 %v4342, %v4694
        %v4696 = vpop.f32.mrb[0].mxu0
        %v4697 = vadd.f32 %v4344, %v4696
        %4698 = vmatprep.mubr.bf16.mxu0 %v2174
        %4699 = vmatmul.mubr.bf16.gmra.mrb[0].mxu0 %v2173
        %v4700 = vpop.f32.mrb[0].mxu0
        %v4701 = vadd.f32 %v4348, %v4700
        %v4702 = vpop.f32.mrb[0].mxu0
        %v4703 = vadd.f32 %v4350, %v4702
        %v4704 = vpop.f32.mrb[0].mxu0
        %v4705 = vadd.f32 %v4352, %v4704
        %v4706 = vpop.f32.mrb[0].mxu0
        %v4707 = vadd.f32 %v4354, %v4706
        %4708 = vmatprep.mubr.bf16.mxu0 %v2184
        %4709 = vmatmul.mubr.bf16.gmra.mrb[0].mxu0 %v2183
        %v4710 = vpop.f32.mrb[0].mxu0
        %v4711 = vadd.f32 %v4358, %v4710
        %v4712 = vpop.f32.mrb[0].mxu0
        %v4713 = vadd.f32 %v4360, %v4712
        %v4714 = vpop.f32.mrb[0].mxu0
        %v4715 = vadd.f32 %v4362, %v4714
        %v4716 = vpop.f32.mrb[0].mxu0
        %v4717 = vadd.f32 %v4364, %v4716
        %4718 = vmatprep.mubr.bf16.mxu0 %v2194
        %4719 = vmatmul.mubr.bf16.gmra.mrb[0].mxu0 %v2193
        %v4720 = vpop.f32.mrb[0].mxu0
        %v4721 = vadd.f32 %v4368, %v4720
        %v4722 = vpop.f32.mrb[0].mxu0
        %v4723 = vadd.f32 %v4370, %v4722
        %v4724 = vpop.f32.mrb[0].mxu0
        %v4725 = vadd.f32 %v4372, %v4724
        %v4726 = vpop.f32.mrb[0].mxu0
        %v4727 = vadd.f32 %v4374, %v4726
        %4728 = vmatprep.mubr.bf16.mxu0 %v2204
        %4729 = vmatmul.mubr.bf16.gmra.mrb[0].mxu0 %v2203
        %v4730 = vpop.f32.mrb[0].mxu0
        %v4731 = vadd.f32 %v4378, %v4730
        %v4732 = vpop.f32.mrb[0].mxu0
        %v4733 = vadd.f32 %v4380, %v4732
        %v4734 = vpop.f32.mrb[0].mxu0
        %v4735 = vadd.f32 %v4382, %v4734
        %v4736 = vpop.f32.mrb[0].mxu0
        %v4737 = vadd.f32 %v4384, %v4736
        %4738 = vmatprep.mubr.bf16.mxu0 %v2214
        %4739 = vmatmul.mubr.bf16.gmra.mrb[0].mxu0 %v2213
        %v4740 = vpop.f32.mrb[0].mxu0
        %v4741 = vadd.f32 %v4388, %v4740
        %v4742 = vpop.f32.mrb[0].mxu0
        %v4743 = vadd.f32 %v4390, %v4742
        %v4744 = vpop.f32.mrb[0].mxu0
        %v4745 = vadd.f32 %v4392, %v4744
        %v4746 = vpop.f32.mrb[0].mxu0
        %v4747 = vadd.f32 %v4394, %v4746
        %4748 = vmatprep.mubr.bf16.mxu0 %v2224
        %4749 = vmatmul.mubr.bf16.gmra.mrb[0].mxu0 %v2223
        %v4750 = vpop.f32.mrb[0].mxu0
        %v4751 = vadd.f32 %v4398, %v4750
        %v4752 = vpop.f32.mrb[0].mxu0
        %v4753 = vadd.f32 %v4400, %v4752
        %v4754 = vpop.f32.mrb[0].mxu0
        %v4755 = vadd.f32 %v4402, %v4754
        %v4756 = vpop.f32.mrb[0].mxu0
        %v4757 = vadd.f32 %v4404, %v4756
        %4758 = vmatprep.mubr.bf16.mxu0 %v2234
        %4759 = vmatmul.mubr.bf16.gmra.mrb[0].mxu0 %v2233
        %v4760 = vpop.f32.mrb[0].mxu0
        %v4761 = vadd.f32 %v4408, %v4760
        %v4762 = vpop.f32.mrb[0].mxu0
        %v4763 = vadd.f32 %v4410, %v4762
        %v4764 = vpop.f32.mrb[0].mxu0
        %v4765 = vadd.f32 %v4412, %v4764
        %v4766 = vpop.f32.mrb[0].mxu0
        %v4767 = vadd.f32 %v4414, %v4766
        %4768 = vmatprep.mubr.bf16.mxu0 %v2244
        %4769 = vmatmul.mubr.bf16.gmra.mrb[0].mxu0 %v2243
        %v4770 = vpop.f32.mrb[0].mxu0
        %v4771 = vadd.f32 %v4418, %v4770
        %v4772 = vpop.f32.mrb[0].mxu0
        %v4773 = vadd.f32 %v4420, %v4772
        %v4774 = vpop.f32.mrb[0].mxu0
        %v4775 = vadd.f32 %v4422, %v4774
        %v4776 = vpop.f32.mrb[0].mxu0
        %v4777 = vadd.f32 %v4424, %v4776
        %4778 = vmatprep.mubr.bf16.mxu0 %v2254
        %4779 = vmatmul.mubr.bf16.gmra.mrb[0].mxu0 %v2253
        %v4780 = vpop.f32.mrb[0].mxu0
        %v4781 = vadd.f32 %v4428, %v4780
        %v4782 = vpop.f32.mrb[0].mxu0
        %v4783 = vadd.f32 %v4430, %v4782
        %v4784 = vpop.f32.mrb[0].mxu0
        %v4785 = vadd.f32 %v4432, %v4784
        %v4786 = vpop.f32.mrb[0].mxu0
        %v4787 = vadd.f32 %v4434, %v4786
        %4788 = vmatprep.mubr.bf16.mxu0 %v2264
        %4789 = vmatmul.mubr.bf16.gmra.mrb[0].mxu0 %v2263
        %v4790 = vpop.f32.mrb[0].mxu0
        %v4791 = vadd.f32 %v4438, %v4790
        %v4792 = vpop.f32.mrb[0].mxu0
        %v4793 = vadd.f32 %v4440, %v4792
        %v4794 = vpop.f32.mrb[0].mxu0
        %v4795 = vadd.f32 %v4442, %v4794
        %v4796 = vpop.f32.mrb[0].mxu0
        %v4797 = vadd.f32 %v4444, %v4796
        %4798 = vmatprep.mubr.bf16.mxu0 %v2274
        %4799 = vmatmul.mubr.bf16.gmra.mrb[0].mxu0 %v2273
        %v4800 = vpop.f32.mrb[0].mxu0
        %v4801 = vadd.f32 %v4448, %v4800
        %v4802 = vpop.f32.mrb[0].mxu0
        %v4803 = vadd.f32 %v4450, %v4802
        %v4804 = vpop.f32.mrb[0].mxu0
        %v4805 = vadd.f32 %v4452, %v4804
        %v4806 = vpop.f32.mrb[0].mxu0
        %v4807 = vadd.f32 %v4454, %v4806
        %4808 = vmatprep.mubr.bf16.mxu0 %v2284
        %4809 = vmatmul.mubr.bf16.gmra.mrb[0].mxu0 %v2283
        %v4810 = vpop.f32.mrb[0].mxu0
        %v4811 = vadd.f32 %v4458, %v4810
        %v4812 = vpop.f32.mrb[0].mxu0
        %v4813 = vadd.f32 %v4460, %v4812
        %v4814 = vpop.f32.mrb[0].mxu0
        %v4815 = vadd.f32 %v4462, %v4814
        %v4816 = vpop.f32.mrb[0].mxu0
        %v4817 = vadd.f32 %v4464, %v4816
        %4818 = vmatprep.mubr.bf16.mxu0 %v2294
        %4819 = vmatmul.mubr.bf16.gmra.mrb[0].mxu0 %v2293
        %v4820 = vpop.f32.mrb[0].mxu0
        %v4821 = vadd.f32 %v4468, %v4820
        %v4822 = vpop.f32.mrb[0].mxu0
        %v4823 = vadd.f32 %v4470, %v4822
        %v4824 = vpop.f32.mrb[0].mxu0
        %v4825 = vadd.f32 %v4472, %v4824
        %v4826 = vpop.f32.mrb[0].mxu0
        %v4827 = vadd.f32 %v4474, %v4826
        %4828 = vmatprep.mubr.bf16.mxu0 %v2304
        %4829 = vmatmul.mubr.bf16.gmra.mrb[0].mxu0 %v2303
        %v4830 = vpop.f32.mrb[0].mxu0
        %v4831 = vadd.f32 %v4478, %v4830
        %v4832 = vpop.f32.mrb[0].mxu0
        %v4833 = vadd.f32 %v4480, %v4832
        %v4834 = vpop.f32.mrb[0].mxu0
        %v4835 = vadd.f32 %v4482, %v4834
        %v4836 = vpop.f32.mrb[0].mxu0
        %v4837 = vadd.f32 %v4484, %v4836
        %4838 = vmatprep.mubr.bf16.mxu0 %v2314
        %4839 = vmatmul.mubr.bf16.gmra.mrb[0].mxu0 %v2313
        %v4840 = vpop.f32.mrb[0].mxu0
        %v4841 = vadd.f32 %v4488, %v4840
        %v4842 = vpop.f32.mrb[0].mxu0
        %v4843 = vadd.f32 %v4490, %v4842
        %v4844 = vpop.f32.mrb[0].mxu0
        %v4845 = vadd.f32 %v4492, %v4844
        %v4846 = vpop.f32.mrb[0].mxu0
        %v4847 = vadd.f32 %v4494, %v4846
        %4848 = vmatprep.mubr.bf16.mxu0 %v2324
        %4849 = vmatmul.mubr.bf16.gmra.mrb[0].mxu0 %v2323
        %v4850 = vpop.f32.mrb[0].mxu0
        %v4851 = vadd.f32 %v4498, %v4850
        %v4852 = vpop.f32.mrb[0].mxu0
        %v4853 = vadd.f32 %v4500, %v4852
        %v4854 = vpop.f32.mrb[0].mxu0
        %v4855 = vadd.f32 %v4502, %v4854
        %v4856 = vpop.f32.mrb[0].mxu0
        %v4857 = vadd.f32 %v4504, %v4856
        %4858 = vmatprep.mubr.bf16.mxu0 %v2334
        %4859 = vmatmul.mubr.bf16.gmra.mrb[0].mxu0 %v2333
        %v4860 = vpop.f32.mrb[0].mxu0
        %v4861 = vadd.f32 %v4508, %v4860
        %v4862 = vpop.f32.mrb[0].mxu0
        %v4863 = vadd.f32 %v4510, %v4862
        %v4864 = vpop.f32.mrb[0].mxu0
        %v4865 = vadd.f32 %v4512, %v4864
        %v4866 = vpop.f32.mrb[0].mxu0
        %v4867 = vadd.f32 %v4514, %v4866
        %4868 = vmatprep.mubr.bf16.mxu0 %v2344
        %4869 = vmatmul.mubr.bf16.gmra.mrb[0].mxu0 %v2343
        %v4870 = vpop.f32.mrb[0].mxu0
        %v4871 = vadd.f32 %v4518, %v4870
        %v4872 = vpop.f32.mrb[0].mxu0
        %v4873 = vadd.f32 %v4520, %v4872
        %v4874 = vpop.f32.mrb[0].mxu0
        %v4875 = vadd.f32 %v4522, %v4874
        %v4876 = vpop.f32.mrb[0].mxu0
        %v4877 = vadd.f32 %v4524, %v4876
        %4878 = vmatprep.mubr.bf16.mxu0 %v2354
        %4879 = vmatmul.mubr.bf16.gmra.mrb[0].mxu0 %v2353
        %v4880 = vpop.f32.mrb[0].mxu0
        %v4881 = vadd.f32 %v4528, %v4880
        %v4882 = vpop.f32.mrb[0].mxu0
        %v4883 = vadd.f32 %v4530, %v4882
        %v4884 = vpop.f32.mrb[0].mxu0
        %v4885 = vadd.f32 %v4532, %v4884
        %v4886 = vpop.f32.mrb[0].mxu0
        %v4887 = vadd.f32 %v4534, %v4886
        %4888 = vmatprep.mubr.bf16.mxu0 %v2364
        %4889 = vmatmul.mubr.bf16.gmra.mrb[0].mxu0 %v2363
        %v4890 = vpop.f32.mrb[0].mxu0
        %v4891 = vadd.f32 %v4538, %v4890
        %v4892 = vpop.f32.mrb[0].mxu0
        %v4893 = vadd.f32 %v4540, %v4892
        %v4894 = vpop.f32.mrb[0].mxu0
        %v4895 = vadd.f32 %v4542, %v4894
        %v4896 = vpop.f32.mrb[0].mxu0
        %v4897 = vadd.f32 %v4544, %v4896
        %4898 = vmatprep.mubr.bf16.mxu0 %v2374
        %4899 = vmatmul.mubr.bf16.gmra.mrb[0].mxu0 %v2373
        %v4900 = vpop.f32.mrb[0].mxu0
        %v4901 = vadd.f32 %v4548, %v4900
        %v4902 = vpop.f32.mrb[0].mxu0
        %v4903 = vadd.f32 %v4550, %v4902
        %v4904 = vpop.f32.mrb[0].mxu0
        %v4905 = vadd.f32 %v4552, %v4904
        %v4906 = vpop.f32.mrb[0].mxu0
        %v4907 = vadd.f32 %v4554, %v4906
        %4908 = vmatprep.mubr.bf16.mxu0 %v2384
        %4909 = vmatmul.mubr.bf16.gmra.mrb[0].mxu0 %v2383
        %v4910 = vpop.f32.mrb[0].mxu0
        %v4911 = vadd.f32 %v4558, %v4910
        %v4912 = vpop.f32.mrb[0].mxu0
        %v4913 = vadd.f32 %v4560, %v4912
        %v4914 = vpop.f32.mrb[0].mxu0
        %v4915 = vadd.f32 %v4562, %v4914
        %v4916 = vpop.f32.mrb[0].mxu0
        %v4917 = vadd.f32 %v4564, %v4916
        %4918 = vmatprep.mubr.bf16.mxu0 %v2394
        %4919 = vmatmul.mubr.bf16.gmra.mrb[0].mxu0 %v2393
        %v4920 = vpop.f32.mrb[0].mxu0
        %v4921 = vadd.f32 %v4568, %v4920
        %v4922 = vpop.f32.mrb[0].mxu0
        %v4923 = vadd.f32 %v4570, %v4922
        %v4924 = vpop.f32.mrb[0].mxu0
        %v4925 = vadd.f32 %v4572, %v4924
        %v4926 = vpop.f32.mrb[0].mxu0
        %v4927 = vadd.f32 %v4574, %v4926
        %4928 = vmatprep.mubr.bf16.mxu0 %v2404
        %4929 = vmatmul.mubr.bf16.gmra.mrb[0].mxu0 %v2403
        %v4930 = vpop.f32.mrb[0].mxu0
        %v4931 = vadd.f32 %v4578, %v4930
        %v4932 = vpop.f32.mrb[0].mxu0
        %v4933 = vadd.f32 %v4580, %v4932
        %v4934 = vpop.f32.mrb[0].mxu0
        %v4935 = vadd.f32 %v4582, %v4934
        %v4936 = vpop.f32.mrb[0].mxu0
        %v4937 = vadd.f32 %v4584, %v4936
        %4938 = vmatprep.mubr.bf16.mxu0 %v2414
        %4939 = vmatmul.mubr.bf16.gmra.mrb[0].mxu0 %v2413
        %v4940 = vpop.f32.mrb[0].mxu0
        %v4941 = vadd.f32 %v4588, %v4940
        %v4942 = vpop.f32.mrb[0].mxu0
        %v4943 = vadd.f32 %v4590, %v4942
        %v4944 = vpop.f32.mrb[0].mxu0
        %v4945 = vadd.f32 %v4592, %v4944
        %v4946 = vpop.f32.mrb[0].mxu0
        %v4947 = vadd.f32 %v4594, %v4946
        %4948 = vmatprep.mubr.bf16.mxu0 %v2424
        %4949 = vmatmul.mubr.bf16.gmra.mrb[0].mxu0 %v2423
        %v4950 = vpop.f32.mrb[0].mxu0
        %v4951 = vadd.f32 %v4598, %v4950
        %v4952 = vpop.f32.mrb[0].mxu0
        %v4953 = vadd.f32 %v4600, %v4952
        %v4954 = vpop.f32.mrb[0].mxu0
        %v4955 = vadd.f32 %v4602, %v4954
        %v4956 = vpop.f32.mrb[0].mxu0
        %v4957 = vadd.f32 %v4604, %v4956
        %4958 = vmatprep.mubr.bf16.mxu0 %v2434
        %4959 = vmatmul.mubr.bf16.gmra.mrb[0].mxu0 %v2433
        %v4960 = vpop.f32.mrb[0].mxu0
        %v4961 = vadd.f32 %v4608, %v4960
        %v4962 = vpop.f32.mrb[0].mxu0
        %v4963 = vadd.f32 %v4610, %v4962
        %v4964 = vpop.f32.mrb[0].mxu0
        %v4965 = vadd.f32 %v4612, %v4964
        %v4966 = vpop.f32.mrb[0].mxu0
        %v4967 = vadd.f32 %v4614, %v4966
        %4968 = vdwg.mxu0
        %4969 = vmatprep.subr.bf16.mxu0 %v3366
        %4970 = vmatpush1.bf16.msra.mxu0 %v3365
        %4971 = vmatprep.subr.bf16.mxu0 %v3368
        %4972 = vmatpush1.bf16.msra.mxu0 %v3367
        %4973 = vmatprep.subr.bf16.mxu0 %v3370
        %4974 = vmatpush1.bf16.msra.mxu0 %v3369
        %4975 = vmatprep.subr.bf16.mxu0 %v3372
        %4976 = vmatpush1.bf16.msra.mxu0 %v3371
        %4977 = vmatprep.subr.bf16.mxu0 %v3374
        %4978 = vmatpush1.bf16.msra.mxu0 %v3373
        %4979 = vmatprep.subr.bf16.mxu0 %v3376
        %4980 = vmatpush1.bf16.msra.mxu0 %v3375
        %4981 = vmatprep.subr.bf16.mxu0 %v3378
        %4982 = vmatpush1.bf16.msra.mxu0 %v3377
        %4983 = vmatprep.subr.bf16.mxu0 %v3380
        %4984 = vmatpush1.bf16.msra.mxu0 %v3379
        %4985 = vmatprep.subr.bf16.mxu0 %v3382
        %4986 = vmatpush1.bf16.msra.mxu0 %v3381
        %4987 = vmatprep.subr.bf16.mxu0 %v3384
        %4988 = vmatpush1.bf16.msra.mxu0 %v3383
        %4989 = vmatprep.subr.bf16.mxu0 %v3386
        %4990 = vmatpush1.bf16.msra.mxu0 %v3385
        %4991 = vmatprep.subr.bf16.mxu0 %v3388
        %4992 = vmatpush1.bf16.msra.mxu0 %v3387
        %4993 = vmatprep.subr.bf16.mxu0 %v3390
        %4994 = vmatpush1.bf16.msra.mxu0 %v3389
        %4995 = vmatprep.subr.bf16.mxu0 %v3392
        %4996 = vmatpush1.bf16.msra.mxu0 %v3391
        %4997 = vmatprep.subr.bf16.mxu0 %v3394
        %4998 = vmatpush1.bf16.msra.mxu0 %v3393
        %4999 = vmatprep.subr.bf16.mxu0 %v3396
        %5000 = vmatpush1.bf16.msra.mxu0 %v3395
        %5001 = vmatprep.mubr.bf16.mxu0 %v2126
        %5002 = vmatmul.mubr.bf16.gmra.mrb[0].mxu0 %v2125
        %v5003 = vpop.f32.mrb[0].mxu0
        %v5004 = vadd.f32 %v4651, %v5003
        %v5005 = vpop.f32.mrb[0].mxu0
        %v5006 = vadd.f32 %v4653, %v5005
        %v5007 = vpop.f32.mrb[0].mxu0
        %v5008 = vadd.f32 %v4655, %v5007
        %v5009 = vpop.f32.mrb[0].mxu0
        %v5010 = vadd.f32 %v4657, %v5009
        %5011 = vmatprep.mubr.bf16.mxu0 %v2136
        %5012 = vmatmul.mubr.bf16.gmra.mrb[0].mxu0 %v2135
        %v5013 = vpop.f32.mrb[0].mxu0
        %v5014 = vadd.f32 %v4661, %v5013
        %v5015 = vpop.f32.mrb[0].mxu0
        %v5016 = vadd.f32 %v4663, %v5015
        %v5017 = vpop.f32.mrb[0].mxu0
        %v5018 = vadd.f32 %v4665, %v5017
        %v5019 = vpop.f32.mrb[0].mxu0
        %v5020 = vadd.f32 %v4667, %v5019
        %5021 = vmatprep.mubr.bf16.mxu0 %v2146
        %5022 = vmatmul.mubr.bf16.gmra.mrb[0].mxu0 %v2145
        %v5023 = vpop.f32.mrb[0].mxu0
        %v5024 = vadd.f32 %v4671, %v5023
        %v5025 = vpop.f32.mrb[0].mxu0
        %v5026 = vadd.f32 %v4673, %v5025
        %v5027 = vpop.f32.mrb[0].mxu0
        %v5028 = vadd.f32 %v4675, %v5027
        %v5029 = vpop.f32.mrb[0].mxu0
        %v5030 = vadd.f32 %v4677, %v5029
        %5031 = vmatprep.mubr.bf16.mxu0 %v2156
        %5032 = vmatmul.mubr.bf16.gmra.mrb[0].mxu0 %v2155
        %v5033 = vpop.f32.mrb[0].mxu0
        %v5034 = vadd.f32 %v4681, %v5033
        %v5035 = vpop.f32.mrb[0].mxu0
        %v5036 = vadd.f32 %v4683, %v5035
        %v5037 = vpop.f32.mrb[0].mxu0
        %v5038 = vadd.f32 %v4685, %v5037
        %v5039 = vpop.f32.mrb[0].mxu0
        %v5040 = vadd.f32 %v4687, %v5039
        %5041 = vmatprep.mubr.bf16.mxu0 %v2166
        %5042 = vmatmul.mubr.bf16.gmra.mrb[0].mxu0 %v2165
        %v5043 = vpop.f32.mrb[0].mxu0
        %v5044 = vadd.f32 %v4691, %v5043
        %v5045 = vpop.f32.mrb[0].mxu0
        %v5046 = vadd.f32 %v4693, %v5045
        %v5047 = vpop.f32.mrb[0].mxu0
        %v5048 = vadd.f32 %v4695, %v5047
        %v5049 = vpop.f32.mrb[0].mxu0
        %v5050 = vadd.f32 %v4697, %v5049
        %5051 = vmatprep.mubr.bf16.mxu0 %v2176
        %5052 = vmatmul.mubr.bf16.gmra.mrb[0].mxu0 %v2175
        %v5053 = vpop.f32.mrb[0].mxu0
        %v5054 = vadd.f32 %v4701, %v5053
        %v5055 = vpop.f32.mrb[0].mxu0
        %v5056 = vadd.f32 %v4703, %v5055
        %v5057 = vpop.f32.mrb[0].mxu0
        %v5058 = vadd.f32 %v4705, %v5057
        %v5059 = vpop.f32.mrb[0].mxu0
        %v5060 = vadd.f32 %v4707, %v5059
        %5061 = vmatprep.mubr.bf16.mxu0 %v2186
        %5062 = vmatmul.mubr.bf16.gmra.mrb[0].mxu0 %v2185
        %v5063 = vpop.f32.mrb[0].mxu0
        %v5064 = vadd.f32 %v4711, %v5063
        %v5065 = vpop.f32.mrb[0].mxu0
        %v5066 = vadd.f32 %v4713, %v5065
        %v5067 = vpop.f32.mrb[0].mxu0
        %v5068 = vadd.f32 %v4715, %v5067
        %v5069 = vpop.f32.mrb[0].mxu0
        %v5070 = vadd.f32 %v4717, %v5069
        %5071 = vmatprep.mubr.bf16.mxu0 %v2196
        %5072 = vmatmul.mubr.bf16.gmra.mrb[0].mxu0 %v2195
        %v5073 = vpop.f32.mrb[0].mxu0
        %v5074 = vadd.f32 %v4721, %v5073
        %v5075 = vpop.f32.mrb[0].mxu0
        %v5076 = vadd.f32 %v4723, %v5075
        %v5077 = vpop.f32.mrb[0].mxu0
        %v5078 = vadd.f32 %v4725, %v5077
        %v5079 = vpop.f32.mrb[0].mxu0
        %v5080 = vadd.f32 %v4727, %v5079
        %5081 = vmatprep.mubr.bf16.mxu0 %v2206
        %5082 = vmatmul.mubr.bf16.gmra.mrb[0].mxu0 %v2205
        %v5083 = vpop.f32.mrb[0].mxu0
        %v5084 = vadd.f32 %v4731, %v5083
        %v5085 = vpop.f32.mrb[0].mxu0
        %v5086 = vadd.f32 %v4733, %v5085
        %v5087 = vpop.f32.mrb[0].mxu0
        %v5088 = vadd.f32 %v4735, %v5087
        %v5089 = vpop.f32.mrb[0].mxu0
        %v5090 = vadd.f32 %v4737, %v5089
        %5091 = vmatprep.mubr.bf16.mxu0 %v2216
        %5092 = vmatmul.mubr.bf16.gmra.mrb[0].mxu0 %v2215
        %v5093 = vpop.f32.mrb[0].mxu0
        %v5094 = vadd.f32 %v4741, %v5093
        %v5095 = vpop.f32.mrb[0].mxu0
        %v5096 = vadd.f32 %v4743, %v5095
        %v5097 = vpop.f32.mrb[0].mxu0
        %v5098 = vadd.f32 %v4745, %v5097
        %v5099 = vpop.f32.mrb[0].mxu0
        %v5100 = vadd.f32 %v4747, %v5099
        %5101 = vmatprep.mubr.bf16.mxu0 %v2226
        %5102 = vmatmul.mubr.bf16.gmra.mrb[0].mxu0 %v2225
        %v5103 = vpop.f32.mrb[0].mxu0
        %v5104 = vadd.f32 %v4751, %v5103
        %v5105 = vpop.f32.mrb[0].mxu0
        %v5106 = vadd.f32 %v4753, %v5105
        %v5107 = vpop.f32.mrb[0].mxu0
        %v5108 = vadd.f32 %v4755, %v5107
        %v5109 = vpop.f32.mrb[0].mxu0
        %v5110 = vadd.f32 %v4757, %v5109
        %5111 = vmatprep.mubr.bf16.mxu0 %v2236
        %5112 = vmatmul.mubr.bf16.gmra.mrb[0].mxu0 %v2235
        %v5113 = vpop.f32.mrb[0].mxu0
        %v5114 = vadd.f32 %v4761, %v5113
        %v5115 = vpop.f32.mrb[0].mxu0
        %v5116 = vadd.f32 %v4763, %v5115
        %v5117 = vpop.f32.mrb[0].mxu0
        %v5118 = vadd.f32 %v4765, %v5117
        %v5119 = vpop.f32.mrb[0].mxu0
        %v5120 = vadd.f32 %v4767, %v5119
        %5121 = vmatprep.mubr.bf16.mxu0 %v2246
        %5122 = vmatmul.mubr.bf16.gmra.mrb[0].mxu0 %v2245
        %v5123 = vpop.f32.mrb[0].mxu0
        %v5124 = vadd.f32 %v4771, %v5123
        %v5125 = vpop.f32.mrb[0].mxu0
        %v5126 = vadd.f32 %v4773, %v5125
        %v5127 = vpop.f32.mrb[0].mxu0
        %v5128 = vadd.f32 %v4775, %v5127
        %v5129 = vpop.f32.mrb[0].mxu0
        %v5130 = vadd.f32 %v4777, %v5129
        %5131 = vmatprep.mubr.bf16.mxu0 %v2256
        %5132 = vmatmul.mubr.bf16.gmra.mrb[0].mxu0 %v2255
        %v5133 = vpop.f32.mrb[0].mxu0
        %v5134 = vadd.f32 %v4781, %v5133
        %v5135 = vpop.f32.mrb[0].mxu0
        %v5136 = vadd.f32 %v4783, %v5135
        %v5137 = vpop.f32.mrb[0].mxu0
        %v5138 = vadd.f32 %v4785, %v5137
        %v5139 = vpop.f32.mrb[0].mxu0
        %v5140 = vadd.f32 %v4787, %v5139
        %5141 = vmatprep.mubr.bf16.mxu0 %v2266
        %5142 = vmatmul.mubr.bf16.gmra.mrb[0].mxu0 %v2265
        %v5143 = vpop.f32.mrb[0].mxu0
        %v5144 = vadd.f32 %v4791, %v5143
        %v5145 = vpop.f32.mrb[0].mxu0
        %v5146 = vadd.f32 %v4793, %v5145
        %v5147 = vpop.f32.mrb[0].mxu0
        %v5148 = vadd.f32 %v4795, %v5147
        %v5149 = vpop.f32.mrb[0].mxu0
        %v5150 = vadd.f32 %v4797, %v5149
        %5151 = vmatprep.mubr.bf16.mxu0 %v2276
        %5152 = vmatmul.mubr.bf16.gmra.mrb[0].mxu0 %v2275
        %v5153 = vpop.f32.mrb[0].mxu0
        %v5154 = vadd.f32 %v4801, %v5153
        %v5155 = vpop.f32.mrb[0].mxu0
        %v5156 = vadd.f32 %v4803, %v5155
        %v5157 = vpop.f32.mrb[0].mxu0
        %v5158 = vadd.f32 %v4805, %v5157
        %v5159 = vpop.f32.mrb[0].mxu0
        %v5160 = vadd.f32 %v4807, %v5159
        %5161 = vmatprep.mubr.bf16.mxu0 %v2286
        %5162 = vmatmul.mubr.bf16.gmra.mrb[0].mxu0 %v2285
        %v5163 = vpop.f32.mrb[0].mxu0
        %v5164 = vadd.f32 %v4811, %v5163
        %v5165 = vpop.f32.mrb[0].mxu0
        %v5166 = vadd.f32 %v4813, %v5165
        %v5167 = vpop.f32.mrb[0].mxu0
        %v5168 = vadd.f32 %v4815, %v5167
        %v5169 = vpop.f32.mrb[0].mxu0
        %v5170 = vadd.f32 %v4817, %v5169
        %5171 = vmatprep.mubr.bf16.mxu0 %v2296
        %5172 = vmatmul.mubr.bf16.gmra.mrb[0].mxu0 %v2295
        %v5173 = vpop.f32.mrb[0].mxu0
        %v5174 = vadd.f32 %v4821, %v5173
        %v5175 = vpop.f32.mrb[0].mxu0
        %v5176 = vadd.f32 %v4823, %v5175
        %v5177 = vpop.f32.mrb[0].mxu0
        %v5178 = vadd.f32 %v4825, %v5177
        %v5179 = vpop.f32.mrb[0].mxu0
        %v5180 = vadd.f32 %v4827, %v5179
        %5181 = vmatprep.mubr.bf16.mxu0 %v2306
        %5182 = vmatmul.mubr.bf16.gmra.mrb[0].mxu0 %v2305
        %v5183 = vpop.f32.mrb[0].mxu0
        %v5184 = vadd.f32 %v4831, %v5183
        %v5185 = vpop.f32.mrb[0].mxu0
        %v5186 = vadd.f32 %v4833, %v5185
        %v5187 = vpop.f32.mrb[0].mxu0
        %v5188 = vadd.f32 %v4835, %v5187
        %v5189 = vpop.f32.mrb[0].mxu0
        %v5190 = vadd.f32 %v4837, %v5189
        %5191 = vmatprep.mubr.bf16.mxu0 %v2316
        %5192 = vmatmul.mubr.bf16.gmra.mrb[0].mxu0 %v2315
        %v5193 = vpop.f32.mrb[0].mxu0
        %v5194 = vadd.f32 %v4841, %v5193
        %v5195 = vpop.f32.mrb[0].mxu0
        %v5196 = vadd.f32 %v4843, %v5195
        %v5197 = vpop.f32.mrb[0].mxu0
        %v5198 = vadd.f32 %v4845, %v5197
        %v5199 = vpop.f32.mrb[0].mxu0
        %v5200 = vadd.f32 %v4847, %v5199
        %5201 = vmatprep.mubr.bf16.mxu0 %v2326
        %5202 = vmatmul.mubr.bf16.gmra.mrb[0].mxu0 %v2325
        %v5203 = vpop.f32.mrb[0].mxu0
        %v5204 = vadd.f32 %v4851, %v5203
        %v5205 = vpop.f32.mrb[0].mxu0
        %v5206 = vadd.f32 %v4853, %v5205
        %v5207 = vpop.f32.mrb[0].mxu0
        %v5208 = vadd.f32 %v4855, %v5207
        %v5209 = vpop.f32.mrb[0].mxu0
        %v5210 = vadd.f32 %v4857, %v5209
        %5211 = vmatprep.mubr.bf16.mxu0 %v2336
        %5212 = vmatmul.mubr.bf16.gmra.mrb[0].mxu0 %v2335
        %v5213 = vpop.f32.mrb[0].mxu0
        %v5214 = vadd.f32 %v4861, %v5213
        %v5215 = vpop.f32.mrb[0].mxu0
        %v5216 = vadd.f32 %v4863, %v5215
        %v5217 = vpop.f32.mrb[0].mxu0
        %v5218 = vadd.f32 %v4865, %v5217
        %v5219 = vpop.f32.mrb[0].mxu0
        %v5220 = vadd.f32 %v4867, %v5219
        %5221 = vmatprep.mubr.bf16.mxu0 %v2346
        %5222 = vmatmul.mubr.bf16.gmra.mrb[0].mxu0 %v2345
        %v5223 = vpop.f32.mrb[0].mxu0
        %v5224 = vadd.f32 %v4871, %v5223
        %v5225 = vpop.f32.mrb[0].mxu0
        %v5226 = vadd.f32 %v4873, %v5225
        %v5227 = vpop.f32.mrb[0].mxu0
        %v5228 = vadd.f32 %v4875, %v5227
        %v5229 = vpop.f32.mrb[0].mxu0
        %v5230 = vadd.f32 %v4877, %v5229
        %5231 = vmatprep.mubr.bf16.mxu0 %v2356
        %5232 = vmatmul.mubr.bf16.gmra.mrb[0].mxu0 %v2355
        %v5233 = vpop.f32.mrb[0].mxu0
        %v5234 = vadd.f32 %v4881, %v5233
        %v5235 = vpop.f32.mrb[0].mxu0
        %v5236 = vadd.f32 %v4883, %v5235
        %v5237 = vpop.f32.mrb[0].mxu0
        %v5238 = vadd.f32 %v4885, %v5237
        %v5239 = vpop.f32.mrb[0].mxu0
        %v5240 = vadd.f32 %v4887, %v5239
        %5241 = vmatprep.mubr.bf16.mxu0 %v2366
        %5242 = vmatmul.mubr.bf16.gmra.mrb[0].mxu0 %v2365
        %v5243 = vpop.f32.mrb[0].mxu0
        %v5244 = vadd.f32 %v4891, %v5243
        %v5245 = vpop.f32.mrb[0].mxu0
        %v5246 = vadd.f32 %v4893, %v5245
        %v5247 = vpop.f32.mrb[0].mxu0
        %v5248 = vadd.f32 %v4895, %v5247
        %v5249 = vpop.f32.mrb[0].mxu0
        %v5250 = vadd.f32 %v4897, %v5249
        %5251 = vmatprep.mubr.bf16.mxu0 %v2376
        %5252 = vmatmul.mubr.bf16.gmra.mrb[0].mxu0 %v2375
        %v5253 = vpop.f32.mrb[0].mxu0
        %v5254 = vadd.f32 %v4901, %v5253
        %v5255 = vpop.f32.mrb[0].mxu0
        %v5256 = vadd.f32 %v4903, %v5255
        %v5257 = vpop.f32.mrb[0].mxu0
        %v5258 = vadd.f32 %v4905, %v5257
        %v5259 = vpop.f32.mrb[0].mxu0
        %v5260 = vadd.f32 %v4907, %v5259
        %5261 = vmatprep.mubr.bf16.mxu0 %v2386
        %5262 = vmatmul.mubr.bf16.gmra.mrb[0].mxu0 %v2385
        %v5263 = vpop.f32.mrb[0].mxu0
        %v5264 = vadd.f32 %v4911, %v5263
        %v5265 = vpop.f32.mrb[0].mxu0
        %v5266 = vadd.f32 %v4913, %v5265
        %v5267 = vpop.f32.mrb[0].mxu0
        %v5268 = vadd.f32 %v4915, %v5267
        %v5269 = vpop.f32.mrb[0].mxu0
        %v5270 = vadd.f32 %v4917, %v5269
        %5271 = vmatprep.mubr.bf16.mxu0 %v2396
        %5272 = vmatmul.mubr.bf16.gmra.mrb[0].mxu0 %v2395
        %v5273 = vpop.f32.mrb[0].mxu0
        %v5274 = vadd.f32 %v4921, %v5273
        %v5275 = vpop.f32.mrb[0].mxu0
        %v5276 = vadd.f32 %v4923, %v5275
        %v5277 = vpop.f32.mrb[0].mxu0
        %v5278 = vadd.f32 %v4925, %v5277
        %v5279 = vpop.f32.mrb[0].mxu0
        %v5280 = vadd.f32 %v4927, %v5279
        %5281 = vmatprep.mubr.bf16.mxu0 %v2406
        %5282 = vmatmul.mubr.bf16.gmra.mrb[0].mxu0 %v2405
        %v5283 = vpop.f32.mrb[0].mxu0
        %v5284 = vadd.f32 %v4931, %v5283
        %v5285 = vpop.f32.mrb[0].mxu0
        %v5286 = vadd.f32 %v4933, %v5285
        %v5287 = vpop.f32.mrb[0].mxu0
        %v5288 = vadd.f32 %v4935, %v5287
        %v5289 = vpop.f32.mrb[0].mxu0
        %v5290 = vadd.f32 %v4937, %v5289
        %5291 = vmatprep.mubr.bf16.mxu0 %v2416
        %5292 = vmatmul.mubr.bf16.gmra.mrb[0].mxu0 %v2415
        %v5293 = vpop.f32.mrb[0].mxu0
        %v5294 = vadd.f32 %v4941, %v5293
        %v5295 = vpop.f32.mrb[0].mxu0
        %v5296 = vadd.f32 %v4943, %v5295
        %v5297 = vpop.f32.mrb[0].mxu0
        %v5298 = vadd.f32 %v4945, %v5297
        %v5299 = vpop.f32.mrb[0].mxu0
        %v5300 = vadd.f32 %v4947, %v5299
        %5301 = vmatprep.mubr.bf16.mxu0 %v2426
        %5302 = vmatmul.mubr.bf16.gmra.mrb[0].mxu0 %v2425
        %v5303 = vpop.f32.mrb[0].mxu0
        %v5304 = vadd.f32 %v4951, %v5303
        %v5305 = vpop.f32.mrb[0].mxu0
        %v5306 = vadd.f32 %v4953, %v5305
        %v5307 = vpop.f32.mrb[0].mxu0
        %v5308 = vadd.f32 %v4955, %v5307
        %v5309 = vpop.f32.mrb[0].mxu0
        %v5310 = vadd.f32 %v4957, %v5309
        %5311 = vmatprep.mubr.bf16.mxu0 %v2436
        %5312 = vmatmul.mubr.bf16.gmra.mrb[0].mxu0 %v2435
        %v5313 = vpop.f32.mrb[0].mxu0
        %v5314 = vadd.f32 %v4961, %v5313
        %v5315 = vpop.f32.mrb[0].mxu0
        %v5316 = vadd.f32 %v4963, %v5315
        %v5317 = vpop.f32.mrb[0].mxu0
        %v5318 = vadd.f32 %v4965, %v5317
        %v5319 = vpop.f32.mrb[0].mxu0
        %v5320 = vadd.f32 %v4967, %v5319
        %5321 = vdwg.mxu0
        %v5322 = vadd.f32 %v549, %v5004
        %v5323 = vadd.f32 %v550, %v5006
        %v5324 = vadd.f32 %v551, %v5008
        %v5325 = vadd.f32 %v552, %v5010
        %v5326 = vadd.f32 %v553, %v5014
        %v5327 = vadd.f32 %v554, %v5016
        %v5328 = vadd.f32 %v555, %v5018
        %v5329 = vadd.f32 %v556, %v5020
        %v5330 = vadd.f32 %v557, %v5024
        %v5331 = vadd.f32 %v558, %v5026
        %v5332 = vadd.f32 %v559, %v5028
        %v5333 = vadd.f32 %v560, %v5030
        %v5334 = vadd.f32 %v561, %v5034
        %v5335 = vadd.f32 %v562, %v5036
        %v5336 = vadd.f32 %v563, %v5038
        %v5337 = vadd.f32 %v564, %v5040
        %v5338 = vadd.f32 %v565, %v5044
        %v5339 = vadd.f32 %v566, %v5046
        %v5340 = vadd.f32 %v567, %v5048
        %v5341 = vadd.f32 %v568, %v5050
        %v5342 = vadd.f32 %v569, %v5054
        %v5343 = vadd.f32 %v570, %v5056
        %v5344 = vadd.f32 %v571, %v5058
        %v5345 = vadd.f32 %v572, %v5060
        %v5346 = vadd.f32 %v573, %v5064
        %v5347 = vadd.f32 %v574, %v5066
        %v5348 = vadd.f32 %v575, %v5068
        %v5349 = vadd.f32 %v576, %v5070
        %v5350 = vadd.f32 %v577, %v5074
        %v5351 = vadd.f32 %v578, %v5076
        %v5352 = vadd.f32 %v579, %v5078
        %v5353 = vadd.f32 %v580, %v5080
        %v5354 = vadd.f32 %v581, %v5084
        %v5355 = vadd.f32 %v582, %v5086
        %v5356 = vadd.f32 %v583, %v5088
        %v5357 = vadd.f32 %v584, %v5090
        %v5358 = vadd.f32 %v585, %v5094
        %v5359 = vadd.f32 %v586, %v5096
        %v5360 = vadd.f32 %v587, %v5098
        %v5361 = vadd.f32 %v588, %v5100
        %v5362 = vadd.f32 %v589, %v5104
        %v5363 = vadd.f32 %v590, %v5106
        %v5364 = vadd.f32 %v591, %v5108
        %v5365 = vadd.f32 %v592, %v5110
        %v5366 = vadd.f32 %v593, %v5114
        %v5367 = vadd.f32 %v594, %v5116
        %v5368 = vadd.f32 %v595, %v5118
        %v5369 = vadd.f32 %v596, %v5120
        %v5370 = vadd.f32 %v597, %v5124
        %v5371 = vadd.f32 %v598, %v5126
        %v5372 = vadd.f32 %v599, %v5128
        %v5373 = vadd.f32 %v600, %v5130
        %v5374 = vadd.f32 %v601, %v5134
        %v5375 = vadd.f32 %v602, %v5136
        %v5376 = vadd.f32 %v603, %v5138
        %v5377 = vadd.f32 %v604, %v5140
        %v5378 = vadd.f32 %v605, %v5144
        %v5379 = vadd.f32 %v606, %v5146
        %v5380 = vadd.f32 %v607, %v5148
        %v5381 = vadd.f32 %v608, %v5150
        %v5382 = vadd.f32 %v609, %v5154
        %v5383 = vadd.f32 %v610, %v5156
        %v5384 = vadd.f32 %v611, %v5158
        %v5385 = vadd.f32 %v612, %v5160
        %v5386 = vadd.f32 %v613, %v5164
        %v5387 = vadd.f32 %v614, %v5166
        %v5388 = vadd.f32 %v615, %v5168
        %v5389 = vadd.f32 %v616, %v5170
        %v5390 = vadd.f32 %v617, %v5174
        %v5391 = vadd.f32 %v618, %v5176
        %v5392 = vadd.f32 %v619, %v5178
        %v5393 = vadd.f32 %v620, %v5180
        %v5394 = vadd.f32 %v621, %v5184
        %v5395 = vadd.f32 %v622, %v5186
        %v5396 = vadd.f32 %v623, %v5188
        %v5397 = vadd.f32 %v624, %v5190
        %v5398 = vadd.f32 %v625, %v5194
        %v5399 = vadd.f32 %v626, %v5196
        %v5400 = vadd.f32 %v627, %v5198
        %v5401 = vadd.f32 %v628, %v5200
        %v5402 = vadd.f32 %v629, %v5204
        %v5403 = vadd.f32 %v630, %v5206
        %v5404 = vadd.f32 %v631, %v5208
        %v5405 = vadd.f32 %v632, %v5210
        %v5406 = vadd.f32 %v633, %v5214
        %v5407 = vadd.f32 %v634, %v5216
        %v5408 = vadd.f32 %v635, %v5218
        %v5409 = vadd.f32 %v636, %v5220
        %v5410 = vadd.f32 %v637, %v5224
        %v5411 = vadd.f32 %v638, %v5226
        %v5412 = vadd.f32 %v639, %v5228
        %v5413 = vadd.f32 %v640, %v5230
        %v5414 = vadd.f32 %v641, %v5234
        %v5415 = vadd.f32 %v642, %v5236
        %v5416 = vadd.f32 %v643, %v5238
        %v5417 = vadd.f32 %v644, %v5240
        %v5418 = vadd.f32 %v645, %v5244
        %v5419 = vadd.f32 %v646, %v5246
        %v5420 = vadd.f32 %v647, %v5248
        %v5421 = vadd.f32 %v648, %v5250
        %v5422 = vadd.f32 %v649, %v5254
        %v5423 = vadd.f32 %v650, %v5256
        %v5424 = vadd.f32 %v651, %v5258
        %v5425 = vadd.f32 %v652, %v5260
        %v5426 = vadd.f32 %v653, %v5264
        %v5427 = vadd.f32 %v654, %v5266
        %v5428 = vadd.f32 %v655, %v5268
        %v5429 = vadd.f32 %v656, %v5270
        %v5430 = vadd.f32 %v657, %v5274
        %v5431 = vadd.f32 %v658, %v5276
        %v5432 = vadd.f32 %v659, %v5278
        %v5433 = vadd.f32 %v660, %v5280
        %v5434 = vadd.f32 %v661, %v5284
        %v5435 = vadd.f32 %v662, %v5286
        %v5436 = vadd.f32 %v663, %v5288
        %v5437 = vadd.f32 %v664, %v5290
        %v5438 = vadd.f32 %v665, %v5294
        %v5439 = vadd.f32 %v666, %v5296
        %v5440 = vadd.f32 %v667, %v5298
        %v5441 = vadd.f32 %v668, %v5300
        %v5442 = vadd.f32 %v669, %v5304
        %v5443 = vadd.f32 %v670, %v5306
        %v5444 = vadd.f32 %v671, %v5308
        %v5445 = vadd.f32 %v672, %v5310
        %v5446 = vadd.f32 %v673, %v5314
        %v5447 = vadd.f32 %v674, %v5316
        %v5448 = vadd.f32 %v675, %v5318
        %v5449 = vadd.f32 %v676, %v5320
        %5450 = vst [vmem:[#allocation2] sm:$0xff] %v5322
        %5451 = vst [vmem:[#allocation2 + $0x8] sm:$0xff] %v5323
        %5452 = vst [vmem:[#allocation2 + $0x10] sm:$0xff] %v5324
        %5453 = vst [vmem:[#allocation2 + $0x18] sm:$0xff] %v5325
        %5454 = vst [vmem:[#allocation2 + $0x20] sm:$0xff] %v5326
        %5455 = vst [vmem:[#allocation2 + $0x28] sm:$0xff] %v5327
        %5456 = vst [vmem:[#allocation2 + $0x30] sm:$0xff] %v5328
        %5457 = vst [vmem:[#allocation2 + $0x38] sm:$0xff] %v5329
        %5458 = vst [vmem:[#allocation2 + $0x40] sm:$0xff] %v5330
        %5459 = vst [vmem:[#allocation2 + $0x48] sm:$0xff] %v5331
        %5460 = vst [vmem:[#allocation2 + $0x50] sm:$0xff] %v5332
        %5461 = vst [vmem:[#allocation2 + $0x58] sm:$0xff] %v5333
        %5462 = vst [vmem:[#allocation2 + $0x60] sm:$0xff] %v5334
        %5463 = vst [vmem:[#allocation2 + $0x68] sm:$0xff] %v5335
        %5464 = vst [vmem:[#allocation2 + $0x70] sm:$0xff] %v5336
        %5465 = vst [vmem:[#allocation2 + $0x78] sm:$0xff] %v5337
        %5466 = vst [vmem:[#allocation2 + $0x80] sm:$0xff] %v5338
        %5467 = vst [vmem:[#allocation2 + $0x88] sm:$0xff] %v5339
        %5468 = vst [vmem:[#allocation2 + $0x90] sm:$0xff] %v5340
        %5469 = vst [vmem:[#allocation2 + $0x98] sm:$0xff] %v5341
        %5470 = vst [vmem:[#allocation2 + $0xa0] sm:$0xff] %v5342
        %5471 = vst [vmem:[#allocation2 + $0xa8] sm:$0xff] %v5343
        %5472 = vst [vmem:[#allocation2 + $0xb0] sm:$0xff] %v5344
        %5473 = vst [vmem:[#allocation2 + $0xb8] sm:$0xff] %v5345
        %5474 = vst [vmem:[#allocation2 + $0xc0] sm:$0xff] %v5346
        %5475 = vst [vmem:[#allocation2 + $0xc8] sm:$0xff] %v5347
        %5476 = vst [vmem:[#allocation2 + $0xd0] sm:$0xff] %v5348
        %5477 = vst [vmem:[#allocation2 + $0xd8] sm:$0xff] %v5349
        %5478 = vst [vmem:[#allocation2 + $0xe0] sm:$0xff] %v5350
        %5479 = vst [vmem:[#allocation2 + $0xe8] sm:$0xff] %v5351
        %5480 = vst [vmem:[#allocation2 + $0xf0] sm:$0xff] %v5352
        %5481 = vst [vmem:[#allocation2 + $0xf8] sm:$0xff] %v5353
        %5482 = vst [vmem:[#allocation2 + $0x100] sm:$0xff] %v5354
        %5483 = vst [vmem:[#allocation2 + $0x108] sm:$0xff] %v5355
        %5484 = vst [vmem:[#allocation2 + $0x110] sm:$0xff] %v5356
        %5485 = vst [vmem:[#allocation2 + $0x118] sm:$0xff] %v5357
        %5486 = vst [vmem:[#allocation2 + $0x120] sm:$0xff] %v5358
        %5487 = vst [vmem:[#allocation2 + $0x128] sm:$0xff] %v5359
        %5488 = vst [vmem:[#allocation2 + $0x130] sm:$0xff] %v5360
        %5489 = vst [vmem:[#allocation2 + $0x138] sm:$0xff] %v5361
        %5490 = vst [vmem:[#allocation2 + $0x140] sm:$0xff] %v5362
        %5491 = vst [vmem:[#allocation2 + $0x148] sm:$0xff] %v5363
        %5492 = vst [vmem:[#allocation2 + $0x150] sm:$0xff] %v5364
        %5493 = vst [vmem:[#allocation2 + $0x158] sm:$0xff] %v5365
        %5494 = vst [vmem:[#allocation2 + $0x160] sm:$0xff] %v5366
        %5495 = vst [vmem:[#allocation2 + $0x168] sm:$0xff] %v5367
        %5496 = vst [vmem:[#allocation2 + $0x170] sm:$0xff] %v5368
        %5497 = vst [vmem:[#allocation2 + $0x178] sm:$0xff] %v5369
        %5498 = vst [vmem:[#allocation2 + $0x180] sm:$0xff] %v5370
        %5499 = vst [vmem:[#allocation2 + $0x188] sm:$0xff] %v5371
        %5500 = vst [vmem:[#allocation2 + $0x190] sm:$0xff] %v5372
        %5501 = vst [vmem:[#allocation2 + $0x198] sm:$0xff] %v5373
        %5502 = vst [vmem:[#allocation2 + $0x1a0] sm:$0xff] %v5374
        %5503 = vst [vmem:[#allocation2 + $0x1a8] sm:$0xff] %v5375
        %5504 = vst [vmem:[#allocation2 + $0x1b0] sm:$0xff] %v5376
        %5505 = vst [vmem:[#allocation2 + $0x1b8] sm:$0xff] %v5377
        %5506 = vst [vmem:[#allocation2 + $0x1c0] sm:$0xff] %v5378
        %5507 = vst [vmem:[#allocation2 + $0x1c8] sm:$0xff] %v5379
        %5508 = vst [vmem:[#allocation2 + $0x1d0] sm:$0xff] %v5380
        %5509 = vst [vmem:[#allocation2 + $0x1d8] sm:$0xff] %v5381
        %5510 = vst [vmem:[#allocation2 + $0x1e0] sm:$0xff] %v5382
        %5511 = vst [vmem:[#allocation2 + $0x1e8] sm:$0xff] %v5383
        %5512 = vst [vmem:[#allocation2 + $0x1f0] sm:$0xff] %v5384
        %5513 = vst [vmem:[#allocation2 + $0x1f8] sm:$0xff] %v5385
        %5514 = vst [vmem:[#allocation2 + $0x200] sm:$0xff] %v5386
        %5515 = vst [vmem:[#allocation2 + $0x208] sm:$0xff] %v5387
        %5516 = vst [vmem:[#allocation2 + $0x210] sm:$0xff] %v5388
        %5517 = vst [vmem:[#allocation2 + $0x218] sm:$0xff] %v5389
        %5518 = vst [vmem:[#allocation2 + $0x220] sm:$0xff] %v5390
        %5519 = vst [vmem:[#allocation2 + $0x228] sm:$0xff] %v5391
        %5520 = vst [vmem:[#allocation2 + $0x230] sm:$0xff] %v5392
        %5521 = vst [vmem:[#allocation2 + $0x238] sm:$0xff] %v5393
        %5522 = vst [vmem:[#allocation2 + $0x240] sm:$0xff] %v5394
        %5523 = vst [vmem:[#allocation2 + $0x248] sm:$0xff] %v5395
        %5524 = vst [vmem:[#allocation2 + $0x250] sm:$0xff] %v5396
        %5525 = vst [vmem:[#allocation2 + $0x258] sm:$0xff] %v5397
        %5526 = vst [vmem:[#allocation2 + $0x260] sm:$0xff] %v5398
        %5527 = vst [vmem:[#allocation2 + $0x268] sm:$0xff] %v5399
        %5528 = vst [vmem:[#allocation2 + $0x270] sm:$0xff] %v5400
        %5529 = vst [vmem:[#allocation2 + $0x278] sm:$0xff] %v5401
        %5530 = vst [vmem:[#allocation2 + $0x280] sm:$0xff] %v5402
        %5531 = vst [vmem:[#allocation2 + $0x288] sm:$0xff] %v5403
        %5532 = vst [vmem:[#allocation2 + $0x290] sm:$0xff] %v5404
        %5533 = vst [vmem:[#allocation2 + $0x298] sm:$0xff] %v5405
        %5534 = vst [vmem:[#allocation2 + $0x2a0] sm:$0xff] %v5406
        %5535 = vst [vmem:[#allocation2 + $0x2a8] sm:$0xff] %v5407
        %5536 = vst [vmem:[#allocation2 + $0x2b0] sm:$0xff] %v5408
        %5537 = vst [vmem:[#allocation2 + $0x2b8] sm:$0xff] %v5409
        %5538 = vst [vmem:[#allocation2 + $0x2c0] sm:$0xff] %v5410
        %5539 = vst [vmem:[#allocation2 + $0x2c8] sm:$0xff] %v5411
        %5540 = vst [vmem:[#allocation2 + $0x2d0] sm:$0xff] %v5412
        %5541 = vst [vmem:[#allocation2 + $0x2d8] sm:$0xff] %v5413
        %5542 = vst [vmem:[#allocation2 + $0x2e0] sm:$0xff] %v5414
        %5543 = vst [vmem:[#allocation2 + $0x2e8] sm:$0xff] %v5415
        %5544 = vst [vmem:[#allocation2 + $0x2f0] sm:$0xff] %v5416
        %5545 = vst [vmem:[#allocation2 + $0x2f8] sm:$0xff] %v5417
        %5546 = vst [vmem:[#allocation2 + $0x300] sm:$0xff] %v5418
        %5547 = vst [vmem:[#allocation2 + $0x308] sm:$0xff] %v5419
        %5548 = vst [vmem:[#allocation2 + $0x310] sm:$0xff] %v5420
        %5549 = vst [vmem:[#allocation2 + $0x318] sm:$0xff] %v5421
        %5550 = vst [vmem:[#allocation2 + $0x320] sm:$0xff] %v5422
        %5551 = vst [vmem:[#allocation2 + $0x328] sm:$0xff] %v5423
        %5552 = vst [vmem:[#allocation2 + $0x330] sm:$0xff] %v5424
        %5553 = vst [vmem:[#allocation2 + $0x338] sm:$0xff] %v5425
        %5554 = vst [vmem:[#allocation2 + $0x340] sm:$0xff] %v5426
        %5555 = vst [vmem:[#allocation2 + $0x348] sm:$0xff] %v5427
        %5556 = vst [vmem:[#allocation2 + $0x350] sm:$0xff] %v5428
        %5557 = vst [vmem:[#allocation2 + $0x358] sm:$0xff] %v5429
        %5558 = vst [vmem:[#allocation2 + $0x360] sm:$0xff] %v5430
        %5559 = vst [vmem:[#allocation2 + $0x368] sm:$0xff] %v5431
        %5560 = vst [vmem:[#allocation2 + $0x370] sm:$0xff] %v5432
        %5561 = vst [vmem:[#allocation2 + $0x378] sm:$0xff] %v5433
        %5562 = vst [vmem:[#allocation2 + $0x380] sm:$0xff] %v5434
        %5563 = vst [vmem:[#allocation2 + $0x388] sm:$0xff] %v5435
        %5564 = vst [vmem:[#allocation2 + $0x390] sm:$0xff] %v5436
        %5565 = vst [vmem:[#allocation2 + $0x398] sm:$0xff] %v5437
        %5566 = vst [vmem:[#allocation2 + $0x3a0] sm:$0xff] %v5438
        %5567 = vst [vmem:[#allocation2 + $0x3a8] sm:$0xff] %v5439
        %5568 = vst [vmem:[#allocation2 + $0x3b0] sm:$0xff] %v5440
        %5569 = vst [vmem:[#allocation2 + $0x3b8] sm:$0xff] %v5441
        %5570 = vst [vmem:[#allocation2 + $0x3c0] sm:$0xff] %v5442
        %5571 = vst [vmem:[#allocation2 + $0x3c8] sm:$0xff] %v5443
        %5572 = vst [vmem:[#allocation2 + $0x3d0] sm:$0xff] %v5444
        %5573 = vst [vmem:[#allocation2 + $0x3d8] sm:$0xff] %v5445
        %5574 = vst [vmem:[#allocation2 + $0x3e0] sm:$0xff] %v5446
        %5575 = vst [vmem:[#allocation2 + $0x3e8] sm:$0xff] %v5447
        %5576 = vst [vmem:[#allocation2 + $0x3f0] sm:$0xff] %v5448
        %5577 = vst [vmem:[#allocation2 + $0x3f8] sm:$0xff] %v5449
        %p5578 = scmp.eq.s32.totalorder %s33, 1
        // Predicated region
        $region65: #{tpu_custom_call.1} parent=39 // pred_check
          %p5579 = pneg %p5578
        $region66: #{tpu_custom_call.1} parent=39 // pred_check_branch
          %5581 = sbr.rel (%p5579) target = $region68
        $region67: #{tpu_custom_call.1} parent=39 // pred_region
          %v5582 = vld [vmem:[#allocation2] sm:$0xff]
          %v5583 = vld [vmem:[#allocation2 + $0x8] sm:$0xff]
          %v5584 = vld [vmem:[#allocation2 + $0x10] sm:$0xff]
          %v5585 = vld [vmem:[#allocation2 + $0x18] sm:$0xff]
          %v5586 = vld [vmem:[#allocation2 + $0x20] sm:$0xff]
          %v5587 = vld [vmem:[#allocation2 + $0x28] sm:$0xff]
          %v5588 = vld [vmem:[#allocation2 + $0x30] sm:$0xff]
          %v5589 = vld [vmem:[#allocation2 + $0x38] sm:$0xff]
          %v5590 = vld [vmem:[#allocation2 + $0x40] sm:$0xff]
          %v5591 = vld [vmem:[#allocation2 + $0x48] sm:$0xff]
          %v5592 = vld [vmem:[#allocation2 + $0x50] sm:$0xff]
          %v5593 = vld [vmem:[#allocation2 + $0x58] sm:$0xff]
          %v5594 = vld [vmem:[#allocation2 + $0x60] sm:$0xff]
          %v5595 = vld [vmem:[#allocation2 + $0x68] sm:$0xff]
          %v5596 = vld [vmem:[#allocation2 + $0x70] sm:$0xff]
          %v5597 = vld [vmem:[#allocation2 + $0x78] sm:$0xff]
          %v5598 = vld [vmem:[#allocation2 + $0x80] sm:$0xff]
          %v5599 = vld [vmem:[#allocation2 + $0x88] sm:$0xff]
          %v5600 = vld [vmem:[#allocation2 + $0x90] sm:$0xff]
          %v5601 = vld [vmem:[#allocation2 + $0x98] sm:$0xff]
          %v5602 = vld [vmem:[#allocation2 + $0xa0] sm:$0xff]
          %v5603 = vld [vmem:[#allocation2 + $0xa8] sm:$0xff]
          %v5604 = vld [vmem:[#allocation2 + $0xb0] sm:$0xff]
          %v5605 = vld [vmem:[#allocation2 + $0xb8] sm:$0xff]
          %v5606 = vld [vmem:[#allocation2 + $0xc0] sm:$0xff]
          %v5607 = vld [vmem:[#allocation2 + $0xc8] sm:$0xff]
          %v5608 = vld [vmem:[#allocation2 + $0xd0] sm:$0xff]
          %v5609 = vld [vmem:[#allocation2 + $0xd8] sm:$0xff]
          %v5610 = vld [vmem:[#allocation2 + $0xe0] sm:$0xff]
          %v5611 = vld [vmem:[#allocation2 + $0xe8] sm:$0xff]
          %v5612 = vld [vmem:[#allocation2 + $0xf0] sm:$0xff]
          %v5613 = vld [vmem:[#allocation2 + $0xf8] sm:$0xff]
          %v5614 = vld [vmem:[#allocation2 + $0x100] sm:$0xff]
          %v5615 = vld [vmem:[#allocation2 + $0x108] sm:$0xff]
          %v5616 = vld [vmem:[#allocation2 + $0x110] sm:$0xff]
          %v5617 = vld [vmem:[#allocation2 + $0x118] sm:$0xff]
          %v5618 = vld [vmem:[#allocation2 + $0x120] sm:$0xff]
          %v5619 = vld [vmem:[#allocation2 + $0x128] sm:$0xff]
          %v5620 = vld [vmem:[#allocation2 + $0x130] sm:$0xff]
          %v5621 = vld [vmem:[#allocation2 + $0x138] sm:$0xff]
          %v5622 = vld [vmem:[#allocation2 + $0x140] sm:$0xff]
          %v5623 = vld [vmem:[#allocation2 + $0x148] sm:$0xff]
          %v5624 = vld [vmem:[#allocation2 + $0x150] sm:$0xff]
          %v5625 = vld [vmem:[#allocation2 + $0x158] sm:$0xff]
          %v5626 = vld [vmem:[#allocation2 + $0x160] sm:$0xff]
          %v5627 = vld [vmem:[#allocation2 + $0x168] sm:$0xff]
          %v5628 = vld [vmem:[#allocation2 + $0x170] sm:$0xff]
          %v5629 = vld [vmem:[#allocation2 + $0x178] sm:$0xff]
          %v5630 = vld [vmem:[#allocation2 + $0x180] sm:$0xff]
          %v5631 = vld [vmem:[#allocation2 + $0x188] sm:$0xff]
          %v5632 = vld [vmem:[#allocation2 + $0x190] sm:$0xff]
          %v5633 = vld [vmem:[#allocation2 + $0x198] sm:$0xff]
          %v5634 = vld [vmem:[#allocation2 + $0x1a0] sm:$0xff]
          %v5635 = vld [vmem:[#allocation2 + $0x1a8] sm:$0xff]
          %v5636 = vld [vmem:[#allocation2 + $0x1b0] sm:$0xff]
          %v5637 = vld [vmem:[#allocation2 + $0x1b8] sm:$0xff]
          %v5638 = vld [vmem:[#allocation2 + $0x1c0] sm:$0xff]
          %v5639 = vld [vmem:[#allocation2 + $0x1c8] sm:$0xff]
          %v5640 = vld [vmem:[#allocation2 + $0x1d0] sm:$0xff]
          %v5641 = vld [vmem:[#allocation2 + $0x1d8] sm:$0xff]
          %v5642 = vld [vmem:[#allocation2 + $0x1e0] sm:$0xff]
          %v5643 = vld [vmem:[#allocation2 + $0x1e8] sm:$0xff]
          %v5644 = vld [vmem:[#allocation2 + $0x1f0] sm:$0xff]
          %v5645 = vld [vmem:[#allocation2 + $0x1f8] sm:$0xff]
          %v5646 = vld [vmem:[#allocation2 + $0x200] sm:$0xff]
          %v5647 = vld [vmem:[#allocation2 + $0x208] sm:$0xff]
          %v5648 = vld [vmem:[#allocation2 + $0x210] sm:$0xff]
          %v5649 = vld [vmem:[#allocation2 + $0x218] sm:$0xff]
          %v5650 = vld [vmem:[#allocation2 + $0x220] sm:$0xff]
          %v5651 = vld [vmem:[#allocation2 + $0x228] sm:$0xff]
          %v5652 = vld [vmem:[#allocation2 + $0x230] sm:$0xff]
          %v5653 = vld [vmem:[#allocation2 + $0x238] sm:$0xff]
          %v5654 = vld [vmem:[#allocation2 + $0x240] sm:$0xff]
          %v5655 = vld [vmem:[#allocation2 + $0x248] sm:$0xff]
          %v5656 = vld [vmem:[#allocation2 + $0x250] sm:$0xff]
          %v5657 = vld [vmem:[#allocation2 + $0x258] sm:$0xff]
          %v5658 = vld [vmem:[#allocation2 + $0x260] sm:$0xff]
          %v5659 = vld [vmem:[#allocation2 + $0x268] sm:$0xff]
          %v5660 = vld [vmem:[#allocation2 + $0x270] sm:$0xff]
          %v5661 = vld [vmem:[#allocation2 + $0x278] sm:$0xff]
          %v5662 = vld [vmem:[#allocation2 + $0x280] sm:$0xff]
          %v5663 = vld [vmem:[#allocation2 + $0x288] sm:$0xff]
          %v5664 = vld [vmem:[#allocation2 + $0x290] sm:$0xff]
          %v5665 = vld [vmem:[#allocation2 + $0x298] sm:$0xff]
          %v5666 = vld [vmem:[#allocation2 + $0x2a0] sm:$0xff]
          %v5667 = vld [vmem:[#allocation2 + $0x2a8] sm:$0xff]
          %v5668 = vld [vmem:[#allocation2 + $0x2b0] sm:$0xff]
          %v5669 = vld [vmem:[#allocation2 + $0x2b8] sm:$0xff]
          %v5670 = vld [vmem:[#allocation2 + $0x2c0] sm:$0xff]
          %v5671 = vld [vmem:[#allocation2 + $0x2c8] sm:$0xff]
          %v5672 = vld [vmem:[#allocation2 + $0x2d0] sm:$0xff]
          %v5673 = vld [vmem:[#allocation2 + $0x2d8] sm:$0xff]
          %v5674 = vld [vmem:[#allocation2 + $0x2e0] sm:$0xff]
          %v5675 = vld [vmem:[#allocation2 + $0x2e8] sm:$0xff]
          %v5676 = vld [vmem:[#allocation2 + $0x2f0] sm:$0xff]
          %v5677 = vld [vmem:[#allocation2 + $0x2f8] sm:$0xff]
          %v5678 = vld [vmem:[#allocation2 + $0x300] sm:$0xff]
          %v5679 = vld [vmem:[#allocation2 + $0x308] sm:$0xff]
          %v5680 = vld [vmem:[#allocation2 + $0x310] sm:$0xff]
          %v5681 = vld [vmem:[#allocation2 + $0x318] sm:$0xff]
          %v5682 = vld [vmem:[#allocation2 + $0x320] sm:$0xff]
          %v5683 = vld [vmem:[#allocation2 + $0x328] sm:$0xff]
          %v5684 = vld [vmem:[#allocation2 + $0x330] sm:$0xff]
          %v5685 = vld [vmem:[#allocation2 + $0x338] sm:$0xff]
          %v5686 = vld [vmem:[#allocation2 + $0x340] sm:$0xff]
          %v5687 = vld [vmem:[#allocation2 + $0x348] sm:$0xff]
          %v5688 = vld [vmem:[#allocation2 + $0x350] sm:$0xff]
          %v5689 = vld [vmem:[#allocation2 + $0x358] sm:$0xff]
          %v5690 = vld [vmem:[#allocation2 + $0x360] sm:$0xff]
          %v5691 = vld [vmem:[#allocation2 + $0x368] sm:$0xff]
          %v5692 = vld [vmem:[#allocation2 + $0x370] sm:$0xff]
          %v5693 = vld [vmem:[#allocation2 + $0x378] sm:$0xff]
          %v5694 = vld [vmem:[#allocation2 + $0x380] sm:$0xff]
          %v5695 = vld [vmem:[#allocation2 + $0x388] sm:$0xff]
          %v5696 = vld [vmem:[#allocation2 + $0x390] sm:$0xff]
          %v5697 = vld [vmem:[#allocation2 + $0x398] sm:$0xff]
          %v5698 = vld [vmem:[#allocation2 + $0x3a0] sm:$0xff]
          %v5699 = vld [vmem:[#allocation2 + $0x3a8] sm:$0xff]
          %v5700 = vld [vmem:[#allocation2 + $0x3b0] sm:$0xff]
          %v5701 = vld [vmem:[#allocation2 + $0x3b8] sm:$0xff]
          %v5702 = vld [vmem:[#allocation2 + $0x3c0] sm:$0xff]
          %v5703 = vld [vmem:[#allocation2 + $0x3c8] sm:$0xff]
          %v5704 = vld [vmem:[#allocation2 + $0x3d0] sm:$0xff]
          %v5705 = vld [vmem:[#allocation2 + $0x3d8] sm:$0xff]
          %v5706 = vld [vmem:[#allocation2 + $0x3e0] sm:$0xff]
          %v5707 = vld [vmem:[#allocation2 + $0x3e8] sm:$0xff]
          %v5708 = vld [vmem:[#allocation2 + $0x3f0] sm:$0xff]
          %v5709 = vld [vmem:[#allocation2 + $0x3f8] sm:$0xff]
          %v5710 = vadd.f32 %v5582, %v5584
          %v5711 = vadd.f32 %v5710, %v5586
          %v5712 = vadd.f32 %v5711, %v5588
          %v5713 = vadd.f32 %v5712, %v5590
          %v5714 = vadd.f32 %v5713, %v5592
          %v5715 = vadd.f32 %v5714, %v5594
          %v5716 = vadd.f32 %v5715, %v5596
          %v5717 = vadd.f32 %v5716, %v5598
          %v5718 = vadd.f32 %v5717, %v5600
          %v5719 = vadd.f32 %v5718, %v5602
          %v5720 = vadd.f32 %v5719, %v5604
          %v5721 = vadd.f32 %v5720, %v5606
          %v5722 = vadd.f32 %v5721, %v5608
          %v5723 = vadd.f32 %v5722, %v5610
          %v5724 = vadd.f32 %v5723, %v5612
          %v5725 = vadd.f32 %v5724, %v5614
          %v5726 = vadd.f32 %v5725, %v5616
          %v5727 = vadd.f32 %v5726, %v5618
          %v5728 = vadd.f32 %v5727, %v5620
          %v5729 = vadd.f32 %v5728, %v5622
          %v5730 = vadd.f32 %v5729, %v5624
          %v5731 = vadd.f32 %v5730, %v5626
          %v5732 = vadd.f32 %v5731, %v5628
          %v5733 = vadd.f32 %v5732, %v5630
          %v5734 = vadd.f32 %v5733, %v5632
          %v5735 = vadd.f32 %v5734, %v5634
          %v5736 = vadd.f32 %v5735, %v5636
          %v5737 = vadd.f32 %v5736, %v5638
          %v5738 = vadd.f32 %v5737, %v5640
          %v5739 = vadd.f32 %v5738, %v5642
          %v5740 = vadd.f32 %v5739, %v5644
          %v5741 = vadd.f32 %v5740, %v5646
          %v5742 = vadd.f32 %v5741, %v5648
          %v5743 = vadd.f32 %v5742, %v5650
          %v5744 = vadd.f32 %v5743, %v5652
          %v5745 = vadd.f32 %v5744, %v5654
          %v5746 = vadd.f32 %v5745, %v5656
          %v5747 = vadd.f32 %v5746, %v5658
          %v5748 = vadd.f32 %v5747, %v5660
          %v5749 = vadd.f32 %v5748, %v5662
          %v5750 = vadd.f32 %v5749, %v5664
          %v5751 = vadd.f32 %v5750, %v5666
          %v5752 = vadd.f32 %v5751, %v5668
          %v5753 = vadd.f32 %v5752, %v5670
          %v5754 = vadd.f32 %v5753, %v5672
          %v5755 = vadd.f32 %v5754, %v5674
          %v5756 = vadd.f32 %v5755, %v5676
          %v5757 = vadd.f32 %v5756, %v5678
          %v5758 = vadd.f32 %v5757, %v5680
          %v5759 = vadd.f32 %v5758, %v5682
          %v5760 = vadd.f32 %v5759, %v5684
          %v5761 = vadd.f32 %v5760, %v5686
          %v5762 = vadd.f32 %v5761, %v5688
          %v5763 = vadd.f32 %v5762, %v5690
          %v5764 = vadd.f32 %v5763, %v5692
          %v5765 = vadd.f32 %v5764, %v5694
          %v5766 = vadd.f32 %v5765, %v5696
          %v5767 = vadd.f32 %v5766, %v5698
          %v5768 = vadd.f32 %v5767, %v5700
          %v5769 = vadd.f32 %v5768, %v5702
          %v5770 = vadd.f32 %v5769, %v5704
          %v5771 = vadd.f32 %v5770, %v5706
          %v5772 = vadd.f32 %v5771, %v5708
          %v5773 = vrot.slane %v5772, 4
          %v5774 = vadd.f32 %v5772, %v5773
          %v5775 = vrot.slane %v5774, 2
          %v5776 = vadd.f32 %v5774, %v5775
          %v5777 = vrot.slane %v5776, 1
          %v5778 = vadd.f32 %v5776, %v5777
          %v5779 = vadd.f32 %v5583, %v5585
          %v5780 = vadd.f32 %v5779, %v5587
          %v5781 = vadd.f32 %v5780, %v5589
          %v5782 = vadd.f32 %v5781, %v5591
          %v5783 = vadd.f32 %v5782, %v5593
          %v5784 = vadd.f32 %v5783, %v5595
          %v5785 = vadd.f32 %v5784, %v5597
          %v5786 = vadd.f32 %v5785, %v5599
          %v5787 = vadd.f32 %v5786, %v5601
          %v5788 = vadd.f32 %v5787, %v5603
          %v5789 = vadd.f32 %v5788, %v5605
          %v5790 = vadd.f32 %v5789, %v5607
          %v5791 = vadd.f32 %v5790, %v5609
          %v5792 = vadd.f32 %v5791, %v5611
          %v5793 = vadd.f32 %v5792, %v5613
          %v5794 = vadd.f32 %v5793, %v5615
          %v5795 = vadd.f32 %v5794, %v5617
          %v5796 = vadd.f32 %v5795, %v5619
          %v5797 = vadd.f32 %v5796, %v5621
          %v5798 = vadd.f32 %v5797, %v5623
          %v5799 = vadd.f32 %v5798, %v5625
          %v5800 = vadd.f32 %v5799, %v5627
          %v5801 = vadd.f32 %v5800, %v5629
          %v5802 = vadd.f32 %v5801, %v5631
          %v5803 = vadd.f32 %v5802, %v5633
          %v5804 = vadd.f32 %v5803, %v5635
          %v5805 = vadd.f32 %v5804, %v5637
          %v5806 = vadd.f32 %v5805, %v5639
          %v5807 = vadd.f32 %v5806, %v5641
          %v5808 = vadd.f32 %v5807, %v5643
          %v5809 = vadd.f32 %v5808, %v5645
          %v5810 = vadd.f32 %v5809, %v5647
          %v5811 = vadd.f32 %v5810, %v5649
          %v5812 = vadd.f32 %v5811, %v5651
          %v5813 = vadd.f32 %v5812, %v5653
          %v5814 = vadd.f32 %v5813, %v5655
          %v5815 = vadd.f32 %v5814, %v5657
          %v5816 = vadd.f32 %v5815, %v5659
          %v5817 = vadd.f32 %v5816, %v5661
          %v5818 = vadd.f32 %v5817, %v5663
          %v5819 = vadd.f32 %v5818, %v5665
          %v5820 = vadd.f32 %v5819, %v5667
          %v5821 = vadd.f32 %v5820, %v5669
          %v5822 = vadd.f32 %v5821, %v5671
          %v5823 = vadd.f32 %v5822, %v5673
          %v5824 = vadd.f32 %v5823, %v5675
          %v5825 = vadd.f32 %v5824, %v5677
          %v5826 = vadd.f32 %v5825, %v5679
          %v5827 = vadd.f32 %v5826, %v5681
          %v5828 = vadd.f32 %v5827, %v5683
          %v5829 = vadd.f32 %v5828, %v5685
          %v5830 = vadd.f32 %v5829, %v5687
          %v5831 = vadd.f32 %v5830, %v5689
          %v5832 = vadd.f32 %v5831, %v5691
          %v5833 = vadd.f32 %v5832, %v5693
          %v5834 = vadd.f32 %v5833, %v5695
          %v5835 = vadd.f32 %v5834, %v5697
          %v5836 = vadd.f32 %v5835, %v5699
          %v5837 = vadd.f32 %v5836, %v5701
          %v5838 = vadd.f32 %v5837, %v5703
          %v5839 = vadd.f32 %v5838, %v5705
          %v5840 = vadd.f32 %v5839, %v5707
          %v5841 = vadd.f32 %v5840, %v5709
          %v5842 = vrot.slane %v5841, 4
          %v5843 = vadd.f32 %v5841, %v5842
          %v5844 = vrot.slane %v5843, 2
          %v5845 = vadd.f32 %v5843, %v5844
          %v5846 = vrot.slane %v5845, 1
          %v5847 = vadd.f32 %v5845, %v5846
          %v5848 = vmul.f32 %v5778, 0.001953125
          %v5849 = vmul.f32 %v5847, 0.001953125
          %v5850 = vsub.f32 %v5582, %v5848
          %v5851 = vsub.f32 %v5583, %v5849
          %v5852 = vsub.f32 %v5584, %v5848
          %v5853 = vsub.f32 %v5585, %v5849
          %v5854 = vsub.f32 %v5586, %v5848
          %v5855 = vsub.f32 %v5587, %v5849
          %v5856 = vsub.f32 %v5588, %v5848
          %v5857 = vsub.f32 %v5589, %v5849
          %v5858 = vsub.f32 %v5590, %v5848
          %v5859 = vsub.f32 %v5591, %v5849
          %v5860 = vsub.f32 %v5592, %v5848
          %v5861 = vsub.f32 %v5593, %v5849
          %v5862 = vsub.f32 %v5594, %v5848
          %v5863 = vsub.f32 %v5595, %v5849
          %v5864 = vsub.f32 %v5596, %v5848
          %v5865 = vsub.f32 %v5597, %v5849
          %v5866 = vsub.f32 %v5598, %v5848
          %v5867 = vsub.f32 %v5599, %v5849
          %v5868 = vsub.f32 %v5600, %v5848
          %v5869 = vsub.f32 %v5601, %v5849
          %v5870 = vsub.f32 %v5602, %v5848
          %v5871 = vsub.f32 %v5603, %v5849
          %v5872 = vsub.f32 %v5604, %v5848
          %v5873 = vsub.f32 %v5605, %v5849
          %v5874 = vsub.f32 %v5606, %v5848
          %v5875 = vsub.f32 %v5607, %v5849
          %v5876 = vsub.f32 %v5608, %v5848
          %v5877 = vsub.f32 %v5609, %v5849
          %v5878 = vsub.f32 %v5610, %v5848
          %v5879 = vsub.f32 %v5611, %v5849
          %v5880 = vsub.f32 %v5612, %v5848
          %v5881 = vsub.f32 %v5613, %v5849
          %v5882 = vsub.f32 %v5614, %v5848
          %v5883 = vsub.f32 %v5615, %v5849
          %v5884 = vsub.f32 %v5616, %v5848
          %v5885 = vsub.f32 %v5617, %v5849
          %v5886 = vsub.f32 %v5618, %v5848
          %v5887 = vsub.f32 %v5619, %v5849
          %v5888 = vsub.f32 %v5620, %v5848
          %v5889 = vsub.f32 %v5621, %v5849
          %v5890 = vsub.f32 %v5622, %v5848
          %v5891 = vsub.f32 %v5623, %v5849
          %v5892 = vsub.f32 %v5624, %v5848
          %v5893 = vsub.f32 %v5625, %v5849
          %v5894 = vsub.f32 %v5626, %v5848
          %v5895 = vsub.f32 %v5627, %v5849
          %v5896 = vsub.f32 %v5628, %v5848
          %v5897 = vsub.f32 %v5629, %v5849
          %v5898 = vsub.f32 %v5630, %v5848
          %v5899 = vsub.f32 %v5631, %v5849
          %v5900 = vsub.f32 %v5632, %v5848
          %v5901 = vsub.f32 %v5633, %v5849
          %v5902 = vsub.f32 %v5634, %v5848
          %v5903 = vsub.f32 %v5635, %v5849
          %v5904 = vsub.f32 %v5636, %v5848
          %v5905 = vsub.f32 %v5637, %v5849
          %v5906 = vsub.f32 %v5638, %v5848
          %v5907 = vsub.f32 %v5639, %v5849
          %v5908 = vsub.f32 %v5640, %v5848
          %v5909 = vsub.f32 %v5641, %v5849
          %v5910 = vsub.f32 %v5642, %v5848
          %v5911 = vsub.f32 %v5643, %v5849
          %v5912 = vsub.f32 %v5644, %v5848
          %v5913 = vsub.f32 %v5645, %v5849
          %v5914 = vsub.f32 %v5646, %v5848
          %v5915 = vsub.f32 %v5647, %v5849
          %v5916 = vsub.f32 %v5648, %v5848
          %v5917 = vsub.f32 %v5649, %v5849
          %v5918 = vsub.f32 %v5650, %v5848
          %v5919 = vsub.f32 %v5651, %v5849
          %v5920 = vsub.f32 %v5652, %v5848
          %v5921 = vsub.f32 %v5653, %v5849
          %v5922 = vsub.f32 %v5654, %v5848
          %v5923 = vsub.f32 %v5655, %v5849
          %v5924 = vsub.f32 %v5656, %v5848
          %v5925 = vsub.f32 %v5657, %v5849
          %v5926 = vsub.f32 %v5658, %v5848
          %v5927 = vsub.f32 %v5659, %v5849
          %v5928 = vsub.f32 %v5660, %v5848
          %v5929 = vsub.f32 %v5661, %v5849
          %v5930 = vsub.f32 %v5662, %v5848
          %v5931 = vsub.f32 %v5663, %v5849
          %v5932 = vsub.f32 %v5664, %v5848
          %v5933 = vsub.f32 %v5665, %v5849
          %v5934 = vsub.f32 %v5666, %v5848
          %v5935 = vsub.f32 %v5667, %v5849
          %v5936 = vsub.f32 %v5668, %v5848
          %v5937 = vsub.f32 %v5669, %v5849
          %v5938 = vsub.f32 %v5670, %v5848
          %v5939 = vsub.f32 %v5671, %v5849
          %v5940 = vsub.f32 %v5672, %v5848
          %v5941 = vsub.f32 %v5673, %v5849
          %v5942 = vsub.f32 %v5674, %v5848
          %v5943 = vsub.f32 %v5675, %v5849
          %v5944 = vsub.f32 %v5676, %v5848
          %v5945 = vsub.f32 %v5677, %v5849
          %v5946 = vsub.f32 %v5678, %v5848
          %v5947 = vsub.f32 %v5679, %v5849
          %v5948 = vsub.f32 %v5680, %v5848
          %v5949 = vsub.f32 %v5681, %v5849
          %v5950 = vsub.f32 %v5682, %v5848
          %v5951 = vsub.f32 %v5683, %v5849
          %v5952 = vsub.f32 %v5684, %v5848
          %v5953 = vsub.f32 %v5685, %v5849
          %v5954 = vsub.f32 %v5686, %v5848
          %v5955 = vsub.f32 %v5687, %v5849
          %v5956 = vsub.f32 %v5688, %v5848
          %v5957 = vsub.f32 %v5689, %v5849
          %v5958 = vsub.f32 %v5690, %v5848
          %v5959 = vsub.f32 %v5691, %v5849
          %v5960 = vsub.f32 %v5692, %v5848
          %v5961 = vsub.f32 %v5693, %v5849
          %v5962 = vsub.f32 %v5694, %v5848
          %v5963 = vsub.f32 %v5695, %v5849
          %v5964 = vsub.f32 %v5696, %v5848
          %v5965 = vsub.f32 %v5697, %v5849
          %v5966 = vsub.f32 %v5698, %v5848
          %v5967 = vsub.f32 %v5699, %v5849
          %v5968 = vsub.f32 %v5700, %v5848
          %v5969 = vsub.f32 %v5701, %v5849
          %v5970 = vsub.f32 %v5702, %v5848
          %v5971 = vsub.f32 %v5703, %v5849
          %v5972 = vsub.f32 %v5704, %v5848
          %v5973 = vsub.f32 %v5705, %v5849
          %v5974 = vsub.f32 %v5706, %v5848
          %v5975 = vsub.f32 %v5707, %v5849
          %v5976 = vsub.f32 %v5708, %v5848
          %v5977 = vsub.f32 %v5709, %v5849
          %v5978 = vmul.f32 %v5850, %v5850
          %v5979 = vmul.f32 %v5851, %v5851
          %v5980 = vmul.f32 %v5852, %v5852
          %v5981 = vmul.f32 %v5853, %v5853
          %v5982 = vmul.f32 %v5854, %v5854
          %v5983 = vmul.f32 %v5855, %v5855
          %v5984 = vmul.f32 %v5856, %v5856
          %v5985 = vmul.f32 %v5857, %v5857
          %v5986 = vmul.f32 %v5858, %v5858
          %v5987 = vmul.f32 %v5859, %v5859
          %v5988 = vmul.f32 %v5860, %v5860
          %v5989 = vmul.f32 %v5861, %v5861
          %v5990 = vmul.f32 %v5862, %v5862
          %v5991 = vmul.f32 %v5863, %v5863
          %v5992 = vmul.f32 %v5864, %v5864
          %v5993 = vmul.f32 %v5865, %v5865
          %v5994 = vmul.f32 %v5866, %v5866
          %v5995 = vmul.f32 %v5867, %v5867
          %v5996 = vmul.f32 %v5868, %v5868
          %v5997 = vmul.f32 %v5869, %v5869
          %v5998 = vmul.f32 %v5870, %v5870
          %v5999 = vmul.f32 %v5871, %v5871
          %v6000 = vmul.f32 %v5872, %v5872
          %v6001 = vmul.f32 %v5873, %v5873
          %v6002 = vmul.f32 %v5874, %v5874
          %v6003 = vmul.f32 %v5875, %v5875
          %v6004 = vmul.f32 %v5876, %v5876
          %v6005 = vmul.f32 %v5877, %v5877
          %v6006 = vmul.f32 %v5878, %v5878
          %v6007 = vmul.f32 %v5879, %v5879
          %v6008 = vmul.f32 %v5880, %v5880
          %v6009 = vmul.f32 %v5881, %v5881
          %v6010 = vmul.f32 %v5882, %v5882
          %v6011 = vmul.f32 %v5883, %v5883
          %v6012 = vmul.f32 %v5884, %v5884
          %v6013 = vmul.f32 %v5885, %v5885
          %v6014 = vmul.f32 %v5886, %v5886
          %v6015 = vmul.f32 %v5887, %v5887
          %v6016 = vmul.f32 %v5888, %v5888
          %v6017 = vmul.f32 %v5889, %v5889
          %v6018 = vmul.f32 %v5890, %v5890
          %v6019 = vmul.f32 %v5891, %v5891
          %v6020 = vmul.f32 %v5892, %v5892
          %v6021 = vmul.f32 %v5893, %v5893
          %v6022 = vmul.f32 %v5894, %v5894
          %v6023 = vmul.f32 %v5895, %v5895
          %v6024 = vmul.f32 %v5896, %v5896
          %v6025 = vmul.f32 %v5897, %v5897
          %v6026 = vmul.f32 %v5898, %v5898
          %v6027 = vmul.f32 %v5899, %v5899
          %v6028 = vmul.f32 %v5900, %v5900
          %v6029 = vmul.f32 %v5901, %v5901
          %v6030 = vmul.f32 %v5902, %v5902
          %v6031 = vmul.f32 %v5903, %v5903
          %v6032 = vmul.f32 %v5904, %v5904
          %v6033 = vmul.f32 %v5905, %v5905
          %v6034 = vmul.f32 %v5906, %v5906
          %v6035 = vmul.f32 %v5907, %v5907
          %v6036 = vmul.f32 %v5908, %v5908
          %v6037 = vmul.f32 %v5909, %v5909
          %v6038 = vmul.f32 %v5910, %v5910
          %v6039 = vmul.f32 %v5911, %v5911
          %v6040 = vmul.f32 %v5912, %v5912
          %v6041 = vmul.f32 %v5913, %v5913
          %v6042 = vmul.f32 %v5914, %v5914
          %v6043 = vmul.f32 %v5915, %v5915
          %v6044 = vmul.f32 %v5916, %v5916
          %v6045 = vmul.f32 %v5917, %v5917
          %v6046 = vmul.f32 %v5918, %v5918
          %v6047 = vmul.f32 %v5919, %v5919
          %v6048 = vmul.f32 %v5920, %v5920
          %v6049 = vmul.f32 %v5921, %v5921
          %v6050 = vmul.f32 %v5922, %v5922
          %v6051 = vmul.f32 %v5923, %v5923
          %v6052 = vmul.f32 %v5924, %v5924
          %v6053 = vmul.f32 %v5925, %v5925
          %v6054 = vmul.f32 %v5926, %v5926
          %v6055 = vmul.f32 %v5927, %v5927
          %v6056 = vmul.f32 %v5928, %v5928
          %v6057 = vmul.f32 %v5929, %v5929
          %v6058 = vmul.f32 %v5930, %v5930
          %v6059 = vmul.f32 %v5931, %v5931
          %v6060 = vmul.f32 %v5932, %v5932
          %v6061 = vmul.f32 %v5933, %v5933
          %v6062 = vmul.f32 %v5934, %v5934
          %v6063 = vmul.f32 %v5935, %v5935
          %v6064 = vmul.f32 %v5936, %v5936
          %v6065 = vmul.f32 %v5937, %v5937
          %v6066 = vmul.f32 %v5938, %v5938
          %v6067 = vmul.f32 %v5939, %v5939
          %v6068 = vmul.f32 %v5940, %v5940
          %v6069 = vmul.f32 %v5941, %v5941
          %v6070 = vmul.f32 %v5942, %v5942
          %v6071 = vmul.f32 %v5943, %v5943
          %v6072 = vmul.f32 %v5944, %v5944
          %v6073 = vmul.f32 %v5945, %v5945
          %v6074 = vmul.f32 %v5946, %v5946
          %v6075 = vmul.f32 %v5947, %v5947
          %v6076 = vmul.f32 %v5948, %v5948
          %v6077 = vmul.f32 %v5949, %v5949
          %v6078 = vmul.f32 %v5950, %v5950
          %v6079 = vmul.f32 %v5951, %v5951
          %v6080 = vmul.f32 %v5952, %v5952
          %v6081 = vmul.f32 %v5953, %v5953
          %v6082 = vmul.f32 %v5954, %v5954
          %v6083 = vmul.f32 %v5955, %v5955
          %v6084 = vmul.f32 %v5956, %v5956
          %v6085 = vmul.f32 %v5957, %v5957
          %v6086 = vmul.f32 %v5958, %v5958
          %v6087 = vmul.f32 %v5959, %v5959
          %v6088 = vmul.f32 %v5960, %v5960
          %v6089 = vmul.f32 %v5961, %v5961
          %v6090 = vmul.f32 %v5962, %v5962
          %v6091 = vmul.f32 %v5963, %v5963
          %v6092 = vmul.f32 %v5964, %v5964
          %v6093 = vmul.f32 %v5965, %v5965
          %v6094 = vmul.f32 %v5966, %v5966
          %v6095 = vmul.f32 %v5967, %v5967
          %v6096 = vmul.f32 %v5968, %v5968
          %v6097 = vmul.f32 %v5969, %v5969
          %v6098 = vmul.f32 %v5970, %v5970
          %v6099 = vmul.f32 %v5971, %v5971
          %v6100 = vmul.f32 %v5972, %v5972
          %v6101 = vmul.f32 %v5973, %v5973
          %v6102 = vmul.f32 %v5974, %v5974
          %v6103 = vmul.f32 %v5975, %v5975
          %v6104 = vmul.f32 %v5976, %v5976
          %v6105 = vmul.f32 %v5977, %v5977
          %v6106 = vadd.f32 %v5978, %v5980
          %v6107 = vadd.f32 %v6106, %v5982
          %v6108 = vadd.f32 %v6107, %v5984
          %v6109 = vadd.f32 %v6108, %v5986
          %v6110 = vadd.f32 %v6109, %v5988
          %v6111 = vadd.f32 %v6110, %v5990
          %v6112 = vadd.f32 %v6111, %v5992
          %v6113 = vadd.f32 %v6112, %v5994
          %v6114 = vadd.f32 %v6113, %v5996
          %v6115 = vadd.f32 %v6114, %v5998
          %v6116 = vadd.f32 %v6115, %v6000
          %v6117 = vadd.f32 %v6116, %v6002
          %v6118 = vadd.f32 %v6117, %v6004
          %v6119 = vadd.f32 %v6118, %v6006
          %v6120 = vadd.f32 %v6119, %v6008
          %v6121 = vadd.f32 %v6120, %v6010
          %v6122 = vadd.f32 %v6121, %v6012
          %v6123 = vadd.f32 %v6122, %v6014
          %v6124 = vadd.f32 %v6123, %v6016
          %v6125 = vadd.f32 %v6124, %v6018
          %v6126 = vadd.f32 %v6125, %v6020
          %v6127 = vadd.f32 %v6126, %v6022
          %v6128 = vadd.f32 %v6127, %v6024
          %v6129 = vadd.f32 %v6128, %v6026
          %v6130 = vadd.f32 %v6129, %v6028
          %v6131 = vadd.f32 %v6130, %v6030
          %v6132 = vadd.f32 %v6131, %v6032
          %v6133 = vadd.f32 %v6132, %v6034
          %v6134 = vadd.f32 %v6133, %v6036
          %v6135 = vadd.f32 %v6134, %v6038
          %v6136 = vadd.f32 %v6135, %v6040
          %v6137 = vadd.f32 %v6136, %v6042
          %v6138 = vadd.f32 %v6137, %v6044
          %v6139 = vadd.f32 %v6138, %v6046
          %v6140 = vadd.f32 %v6139, %v6048
          %v6141 = vadd.f32 %v6140, %v6050
          %v6142 = vadd.f32 %v6141, %v6052
          %v6143 = vadd.f32 %v6142, %v6054
          %v6144 = vadd.f32 %v6143, %v6056
          %v6145 = vadd.f32 %v6144, %v6058
          %v6146 = vadd.f32 %v6145, %v6060
          %v6147 = vadd.f32 %v6146, %v6062
          %v6148 = vadd.f32 %v6147, %v6064
          %v6149 = vadd.f32 %v6148, %v6066
          %v6150 = vadd.f32 %v6149, %v6068
          %v6151 = vadd.f32 %v6150, %v6070
          %v6152 = vadd.f32 %v6151, %v6072
          %v6153 = vadd.f32 %v6152, %v6074
          %v6154 = vadd.f32 %v6153, %v6076
          %v6155 = vadd.f32 %v6154, %v6078
          %v6156 = vadd.f32 %v6155, %v6080
          %v6157 = vadd.f32 %v6156, %v6082
          %v6158 = vadd.f32 %v6157, %v6084
          %v6159 = vadd.f32 %v6158, %v6086
          %v6160 = vadd.f32 %v6159, %v6088
          %v6161 = vadd.f32 %v6160, %v6090
          %v6162 = vadd.f32 %v6161, %v6092
          %v6163 = vadd.f32 %v6162, %v6094
          %v6164 = vadd.f32 %v6163, %v6096
          %v6165 = vadd.f32 %v6164, %v6098
          %v6166 = vadd.f32 %v6165, %v6100
          %v6167 = vadd.f32 %v6166, %v6102
          %v6168 = vadd.f32 %v6167, %v6104
          %v6169 = vrot.slane %v6168, 4
          %v6170 = vadd.f32 %v6168, %v6169
          %v6171 = vrot.slane %v6170, 2
          %v6172 = vadd.f32 %v6170, %v6171
          %v6173 = vrot.slane %v6172, 1
          %v6174 = vadd.f32 %v6172, %v6173
          %v6175 = vadd.f32 %v5979, %v5981
          %v6176 = vadd.f32 %v6175, %v5983
          %v6177 = vadd.f32 %v6176, %v5985
          %v6178 = vadd.f32 %v6177, %v5987
          %v6179 = vadd.f32 %v6178, %v5989
          %v6180 = vadd.f32 %v6179, %v5991
          %v6181 = vadd.f32 %v6180, %v5993
          %v6182 = vadd.f32 %v6181, %v5995
          %v6183 = vadd.f32 %v6182, %v5997
          %v6184 = vadd.f32 %v6183, %v5999
          %v6185 = vadd.f32 %v6184, %v6001
          %v6186 = vadd.f32 %v6185, %v6003
          %v6187 = vadd.f32 %v6186, %v6005
          %v6188 = vadd.f32 %v6187, %v6007
          %v6189 = vadd.f32 %v6188, %v6009
          %v6190 = vadd.f32 %v6189, %v6011
          %v6191 = vadd.f32 %v6190, %v6013
          %v6192 = vadd.f32 %v6191, %v6015
          %v6193 = vadd.f32 %v6192, %v6017
          %v6194 = vadd.f32 %v6193, %v6019
          %v6195 = vadd.f32 %v6194, %v6021
          %v6196 = vadd.f32 %v6195, %v6023
          %v6197 = vadd.f32 %v6196, %v6025
          %v6198 = vadd.f32 %v6197, %v6027
          %v6199 = vadd.f32 %v6198, %v6029
          %v6200 = vadd.f32 %v6199, %v6031
          %v6201 = vadd.f32 %v6200, %v6033
          %v6202 = vadd.f32 %v6201, %v6035
          %v6203 = vadd.f32 %v6202, %v6037
          %v6204 = vadd.f32 %v6203, %v6039
          %v6205 = vadd.f32 %v6204, %v6041
          %v6206 = vadd.f32 %v6205, %v6043
          %v6207 = vadd.f32 %v6206, %v6045
          %v6208 = vadd.f32 %v6207, %v6047
          %v6209 = vadd.f32 %v6208, %v6049
          %v6210 = vadd.f32 %v6209, %v6051
          %v6211 = vadd.f32 %v6210, %v6053
          %v6212 = vadd.f32 %v6211, %v6055
          %v6213 = vadd.f32 %v6212, %v6057
          %v6214 = vadd.f32 %v6213, %v6059
          %v6215 = vadd.f32 %v6214, %v6061
          %v6216 = vadd.f32 %v6215, %v6063
          %v6217 = vadd.f32 %v6216, %v6065
          %v6218 = vadd.f32 %v6217, %v6067
          %v6219 = vadd.f32 %v6218, %v6069
          %v6220 = vadd.f32 %v6219, %v6071
          %v6221 = vadd.f32 %v6220, %v6073
          %v6222 = vadd.f32 %v6221, %v6075
          %v6223 = vadd.f32 %v6222, %v6077
          %v6224 = vadd.f32 %v6223, %v6079
          %v6225 = vadd.f32 %v6224, %v6081
          %v6226 = vadd.f32 %v6225, %v6083
          %v6227 = vadd.f32 %v6226, %v6085
          %v6228 = vadd.f32 %v6227, %v6087
          %v6229 = vadd.f32 %v6228, %v6089
          %v6230 = vadd.f32 %v6229, %v6091
          %v6231 = vadd.f32 %v6230, %v6093
          %v6232 = vadd.f32 %v6231, %v6095
          %v6233 = vadd.f32 %v6232, %v6097
          %v6234 = vadd.f32 %v6233, %v6099
          %v6235 = vadd.f32 %v6234, %v6101
          %v6236 = vadd.f32 %v6235, %v6103
          %v6237 = vadd.f32 %v6236, %v6105
          %v6238 = vrot.slane %v6237, 4
          %v6239 = vadd.f32 %v6237, %v6238
          %v6240 = vrot.slane %v6239, 2
          %v6241 = vadd.f32 %v6239, %v6240
          %v6242 = vrot.slane %v6241, 1
          %v6243 = vadd.f32 %v6241, %v6242
          %v6244 = vmul.f32 %v6174, 0.001953125
          %v6245 = vmul.f32 %v6243, 0.001953125
          %v6246 = vld [vmem:[%s345] sm:$0x3]
          %v6247 = vadd.f32 %v6244, 1e-05
          %v6248 = vadd.f32 %v6245, 1e-05
          %v6249 = vrsqrt.pop %v6247
          %v6250 = vrsqrt.pop %v6248
          %v6253 = vcombine.low %v6249, %v6250
          %v6255 = vunpack.c.l.s4 1966171168
          %v6256 = vunpack.c.0.s8 %v6255
          %v6257 = vlaneseq
          %v6258 = vshrl.u32 %v6257, 7
          %v6259 = vsub.s32 %v6256, %v6258
          %v6260 = vrot.slane %v6253, %v6259
          %v6262 = vunpack.c.l.s4 1966171168
          %v6263 = vunpack.c.0.s8 %v6262
          %v6264 = vlaneseq
          %v6265 = vshrl.u32 %v6264, 7
          %v6266 = vsub.s32 %v6263, %v6265
          %v6267 = vrot.slane %v6260, %v6266
          %v6269 = vmul.f32 %v6246, %v6267
          %v6270 = vld [vmem:[%s354] sm:$0x3]
          %v6272 = vlaneseq
          %v6273 = vshrl.u32 %v6272, 7
          %v6274 = vsub.s32 0, %v6273
          %v6275 = vrot.slane %v6269, %v6274
          %v6276 = vlaneseq
          %v6277 = vshrl.u32 %v6276, 7
          %v6278 = vsub.s32 1, %v6277
          %v6279 = vrot.slane %v6269, %v6278
          %v6282 = vmul.f32 %v5848, %v6275
          %v6283 = vmul.f32 %v5849, %v6279
          %v6286 = vcombine.low %v6282, %v6283
          %v6288 = vunpack.c.l.s4 1966171168
          %v6289 = vunpack.c.0.s8 %v6288
          %v6290 = vlaneseq
          %v6291 = vshrl.u32 %v6290, 7
          %v6292 = vsub.s32 %v6289, %v6291
          %v6293 = vrot.slane %v6286, %v6292
          %v6295 = vunpack.c.l.s4 1966171168
          %v6296 = vunpack.c.0.s8 %v6295
          %v6297 = vlaneseq
          %v6298 = vshrl.u32 %v6297, 7
          %v6299 = vsub.s32 %v6296, %v6298
          %v6300 = vrot.slane %v6293, %v6299
          %v6302 = vsub.f32 %v6270, %v6300
          %v6303 = vmul.f32 %v5582, %v6275
          %v6304 = vmul.f32 %v5583, %v6279
          %v6305 = vmul.f32 %v5584, %v6275
          %v6306 = vmul.f32 %v5585, %v6279
          %v6307 = vmul.f32 %v5586, %v6275
          %v6308 = vmul.f32 %v5587, %v6279
          %v6309 = vmul.f32 %v5588, %v6275
          %v6310 = vmul.f32 %v5589, %v6279
          %v6311 = vmul.f32 %v5590, %v6275
          %v6312 = vmul.f32 %v5591, %v6279
          %v6313 = vmul.f32 %v5592, %v6275
          %v6314 = vmul.f32 %v5593, %v6279
          %v6315 = vmul.f32 %v5594, %v6275
          %v6316 = vmul.f32 %v5595, %v6279
          %v6317 = vmul.f32 %v5596, %v6275
          %v6318 = vmul.f32 %v5597, %v6279
          %v6319 = vmul.f32 %v5598, %v6275
          %v6320 = vmul.f32 %v5599, %v6279
          %v6321 = vmul.f32 %v5600, %v6275
          %v6322 = vmul.f32 %v5601, %v6279
          %v6323 = vmul.f32 %v5602, %v6275
          %v6324 = vmul.f32 %v5603, %v6279
          %v6325 = vmul.f32 %v5604, %v6275
          %v6326 = vmul.f32 %v5605, %v6279
          %v6327 = vmul.f32 %v5606, %v6275
          %v6328 = vmul.f32 %v5607, %v6279
          %v6329 = vmul.f32 %v5608, %v6275
          %v6330 = vmul.f32 %v5609, %v6279
          %v6331 = vmul.f32 %v5610, %v6275
          %v6332 = vmul.f32 %v5611, %v6279
          %v6333 = vmul.f32 %v5612, %v6275
          %v6334 = vmul.f32 %v5613, %v6279
          %v6335 = vmul.f32 %v5614, %v6275
          %v6336 = vmul.f32 %v5615, %v6279
          %v6337 = vmul.f32 %v5616, %v6275
          %v6338 = vmul.f32 %v5617, %v6279
          %v6339 = vmul.f32 %v5618, %v6275
          %v6340 = vmul.f32 %v5619, %v6279
          %v6341 = vmul.f32 %v5620, %v6275
          %v6342 = vmul.f32 %v5621, %v6279
          %v6343 = vmul.f32 %v5622, %v6275
          %v6344 = vmul.f32 %v5623, %v6279
          %v6345 = vmul.f32 %v5624, %v6275
          %v6346 = vmul.f32 %v5625, %v6279
          %v6347 = vmul.f32 %v5626, %v6275
          %v6348 = vmul.f32 %v5627, %v6279
          %v6349 = vmul.f32 %v5628, %v6275
          %v6350 = vmul.f32 %v5629, %v6279
          %v6351 = vmul.f32 %v5630, %v6275
          %v6352 = vmul.f32 %v5631, %v6279
          %v6353 = vmul.f32 %v5632, %v6275
          %v6354 = vmul.f32 %v5633, %v6279
          %v6355 = vmul.f32 %v5634, %v6275
          %v6356 = vmul.f32 %v5635, %v6279
          %v6357 = vmul.f32 %v5636, %v6275
          %v6358 = vmul.f32 %v5637, %v6279
          %v6359 = vmul.f32 %v5638, %v6275
          %v6360 = vmul.f32 %v5639, %v6279
          %v6361 = vmul.f32 %v5640, %v6275
          %v6362 = vmul.f32 %v5641, %v6279
          %v6363 = vmul.f32 %v5642, %v6275
          %v6364 = vmul.f32 %v5643, %v6279
          %v6365 = vmul.f32 %v5644, %v6275
          %v6366 = vmul.f32 %v5645, %v6279
          %v6367 = vmul.f32 %v5646, %v6275
          %v6368 = vmul.f32 %v5647, %v6279
          %v6369 = vmul.f32 %v5648, %v6275
          %v6370 = vmul.f32 %v5649, %v6279
          %v6371 = vmul.f32 %v5650, %v6275
          %v6372 = vmul.f32 %v5651, %v6279
          %v6373 = vmul.f32 %v5652, %v6275
          %v6374 = vmul.f32 %v5653, %v6279
          %v6375 = vmul.f32 %v5654, %v6275
          %v6376 = vmul.f32 %v5655, %v6279
          %v6377 = vmul.f32 %v5656, %v6275
          %v6378 = vmul.f32 %v5657, %v6279
          %v6379 = vmul.f32 %v5658, %v6275
          %v6380 = vmul.f32 %v5659, %v6279
          %v6381 = vmul.f32 %v5660, %v6275
          %v6382 = vmul.f32 %v5661, %v6279
          %v6383 = vmul.f32 %v5662, %v6275
          %v6384 = vmul.f32 %v5663, %v6279
          %v6385 = vmul.f32 %v5664, %v6275
          %v6386 = vmul.f32 %v5665, %v6279
          %v6387 = vmul.f32 %v5666, %v6275
          %v6388 = vmul.f32 %v5667, %v6279
          %v6389 = vmul.f32 %v5668, %v6275
          %v6390 = vmul.f32 %v5669, %v6279
          %v6391 = vmul.f32 %v5670, %v6275
          %v6392 = vmul.f32 %v5671, %v6279
          %v6393 = vmul.f32 %v5672, %v6275
          %v6394 = vmul.f32 %v5673, %v6279
          %v6395 = vmul.f32 %v5674, %v6275
          %v6396 = vmul.f32 %v5675, %v6279
          %v6397 = vmul.f32 %v5676, %v6275
          %v6398 = vmul.f32 %v5677, %v6279
          %v6399 = vmul.f32 %v5678, %v6275
          %v6400 = vmul.f32 %v5679, %v6279
          %v6401 = vmul.f32 %v5680, %v6275
          %v6402 = vmul.f32 %v5681, %v6279
          %v6403 = vmul.f32 %v5682, %v6275
          %v6404 = vmul.f32 %v5683, %v6279
          %v6405 = vmul.f32 %v5684, %v6275
          %v6406 = vmul.f32 %v5685, %v6279
          %v6407 = vmul.f32 %v5686, %v6275
          %v6408 = vmul.f32 %v5687, %v6279
          %v6409 = vmul.f32 %v5688, %v6275
          %v6410 = vmul.f32 %v5689, %v6279
          %v6411 = vmul.f32 %v5690, %v6275
          %v6412 = vmul.f32 %v5691, %v6279
          %v6413 = vmul.f32 %v5692, %v6275
          %v6414 = vmul.f32 %v5693, %v6279
          %v6415 = vmul.f32 %v5694, %v6275
          %v6416 = vmul.f32 %v5695, %v6279
          %v6417 = vmul.f32 %v5696, %v6275
          %v6418 = vmul.f32 %v5697, %v6279
          %v6419 = vmul.f32 %v5698, %v6275
          %v6420 = vmul.f32 %v5699, %v6279
          %v6421 = vmul.f32 %v5700, %v6275
          %v6422 = vmul.f32 %v5701, %v6279
          %v6423 = vmul.f32 %v5702, %v6275
          %v6424 = vmul.f32 %v5703, %v6279
          %v6425 = vmul.f32 %v5704, %v6275
          %v6426 = vmul.f32 %v5705, %v6279
          %v6427 = vmul.f32 %v5706, %v6275
          %v6428 = vmul.f32 %v5707, %v6279
          %v6429 = vmul.f32 %v5708, %v6275
          %v6430 = vmul.f32 %v5709, %v6279
          %v6432 = vlaneseq
          %v6433 = vshrl.u32 %v6432, 7
          %v6434 = vsub.s32 0, %v6433
          %v6435 = vrot.slane %v6302, %v6434
          %v6436 = vlaneseq
          %v6437 = vshrl.u32 %v6436, 7
          %v6438 = vsub.s32 1, %v6437
          %v6439 = vrot.slane %v6302, %v6438
          %v6442 = vadd.f32 %v6303, %v6435
          %v6443 = vadd.f32 %v6304, %v6439
          %v6444 = vadd.f32 %v6305, %v6435
          %v6445 = vadd.f32 %v6306, %v6439
          %v6446 = vadd.f32 %v6307, %v6435
          %v6447 = vadd.f32 %v6308, %v6439
          %v6448 = vadd.f32 %v6309, %v6435
          %v6449 = vadd.f32 %v6310, %v6439
          %v6450 = vadd.f32 %v6311, %v6435
          %v6451 = vadd.f32 %v6312, %v6439
          %v6452 = vadd.f32 %v6313, %v6435
          %v6453 = vadd.f32 %v6314, %v6439
          %v6454 = vadd.f32 %v6315, %v6435
          %v6455 = vadd.f32 %v6316, %v6439
          %v6456 = vadd.f32 %v6317, %v6435
          %v6457 = vadd.f32 %v6318, %v6439
          %v6458 = vadd.f32 %v6319, %v6435
          %v6459 = vadd.f32 %v6320, %v6439
          %v6460 = vadd.f32 %v6321, %v6435
          %v6461 = vadd.f32 %v6322, %v6439
          %v6462 = vadd.f32 %v6323, %v6435
          %v6463 = vadd.f32 %v6324, %v6439
          %v6464 = vadd.f32 %v6325, %v6435
          %v6465 = vadd.f32 %v6326, %v6439
          %v6466 = vadd.f32 %v6327, %v6435
          %v6467 = vadd.f32 %v6328, %v6439
          %v6468 = vadd.f32 %v6329, %v6435
          %v6469 = vadd.f32 %v6330, %v6439
          %v6470 = vadd.f32 %v6331, %v6435
          %v6471 = vadd.f32 %v6332, %v6439
          %v6472 = vadd.f32 %v6333, %v6435
          %v6473 = vadd.f32 %v6334, %v6439
          %v6474 = vadd.f32 %v6335, %v6435
          %v6475 = vadd.f32 %v6336, %v6439
          %v6476 = vadd.f32 %v6337, %v6435
          %v6477 = vadd.f32 %v6338, %v6439
          %v6478 = vadd.f32 %v6339, %v6435
          %v6479 = vadd.f32 %v6340, %v6439
          %v6480 = vadd.f32 %v6341, %v6435
          %v6481 = vadd.f32 %v6342, %v6439
          %v6482 = vadd.f32 %v6343, %v6435
          %v6483 = vadd.f32 %v6344, %v6439
          %v6484 = vadd.f32 %v6345, %v6435
          %v6485 = vadd.f32 %v6346, %v6439
          %v6486 = vadd.f32 %v6347, %v6435
          %v6487 = vadd.f32 %v6348, %v6439
          %v6488 = vadd.f32 %v6349, %v6435
          %v6489 = vadd.f32 %v6350, %v6439
          %v6490 = vadd.f32 %v6351, %v6435
          %v6491 = vadd.f32 %v6352, %v6439
          %v6492 = vadd.f32 %v6353, %v6435
          %v6493 = vadd.f32 %v6354, %v6439
          %v6494 = vadd.f32 %v6355, %v6435
          %v6495 = vadd.f32 %v6356, %v6439
          %v6496 = vadd.f32 %v6357, %v6435
          %v6497 = vadd.f32 %v6358, %v6439
          %v6498 = vadd.f32 %v6359, %v6435
          %v6499 = vadd.f32 %v6360, %v6439
          %v6500 = vadd.f32 %v6361, %v6435
          %v6501 = vadd.f32 %v6362, %v6439
          %v6502 = vadd.f32 %v6363, %v6435
          %v6503 = vadd.f32 %v6364, %v6439
          %v6504 = vadd.f32 %v6365, %v6435
          %v6505 = vadd.f32 %v6366, %v6439
          %v6506 = vadd.f32 %v6367, %v6435
          %v6507 = vadd.f32 %v6368, %v6439
          %v6508 = vadd.f32 %v6369, %v6435
          %v6509 = vadd.f32 %v6370, %v6439
          %v6510 = vadd.f32 %v6371, %v6435
          %v6511 = vadd.f32 %v6372, %v6439
          %v6512 = vadd.f32 %v6373, %v6435
          %v6513 = vadd.f32 %v6374, %v6439
          %v6514 = vadd.f32 %v6375, %v6435
          %v6515 = vadd.f32 %v6376, %v6439
          %v6516 = vadd.f32 %v6377, %v6435
          %v6517 = vadd.f32 %v6378, %v6439
          %v6518 = vadd.f32 %v6379, %v6435
          %v6519 = vadd.f32 %v6380, %v6439
          %v6520 = vadd.f32 %v6381, %v6435
          %v6521 = vadd.f32 %v6382, %v6439
          %v6522 = vadd.f32 %v6383, %v6435
          %v6523 = vadd.f32 %v6384, %v6439
          %v6524 = vadd.f32 %v6385, %v6435
          %v6525 = vadd.f32 %v6386, %v6439
          %v6526 = vadd.f32 %v6387, %v6435
          %v6527 = vadd.f32 %v6388, %v6439
          %v6528 = vadd.f32 %v6389, %v6435
          %v6529 = vadd.f32 %v6390, %v6439
          %v6530 = vadd.f32 %v6391, %v6435
          %v6531 = vadd.f32 %v6392, %v6439
          %v6532 = vadd.f32 %v6393, %v6435
          %v6533 = vadd.f32 %v6394, %v6439
          %v6534 = vadd.f32 %v6395, %v6435
          %v6535 = vadd.f32 %v6396, %v6439
          %v6536 = vadd.f32 %v6397, %v6435
          %v6537 = vadd.f32 %v6398, %v6439
          %v6538 = vadd.f32 %v6399, %v6435
          %v6539 = vadd.f32 %v6400, %v6439
          %v6540 = vadd.f32 %v6401, %v6435
          %v6541 = vadd.f32 %v6402, %v6439
          %v6542 = vadd.f32 %v6403, %v6435
          %v6543 = vadd.f32 %v6404, %v6439
          %v6544 = vadd.f32 %v6405, %v6435
          %v6545 = vadd.f32 %v6406, %v6439
          %v6546 = vadd.f32 %v6407, %v6435
          %v6547 = vadd.f32 %v6408, %v6439
          %v6548 = vadd.f32 %v6409, %v6435
          %v6549 = vadd.f32 %v6410, %v6439
          %v6550 = vadd.f32 %v6411, %v6435
          %v6551 = vadd.f32 %v6412, %v6439
          %v6552 = vadd.f32 %v6413, %v6435
          %v6553 = vadd.f32 %v6414, %v6439
          %v6554 = vadd.f32 %v6415, %v6435
          %v6555 = vadd.f32 %v6416, %v6439
          %v6556 = vadd.f32 %v6417, %v6435
          %v6557 = vadd.f32 %v6418, %v6439
          %v6558 = vadd.f32 %v6419, %v6435
          %v6559 = vadd.f32 %v6420, %v6439
          %v6560 = vadd.f32 %v6421, %v6435
          %v6561 = vadd.f32 %v6422, %v6439
          %v6562 = vadd.f32 %v6423, %v6435
          %v6563 = vadd.f32 %v6424, %v6439
          %v6564 = vadd.f32 %v6425, %v6435
          %v6565 = vadd.f32 %v6426, %v6439
          %v6566 = vadd.f32 %v6427, %v6435
          %v6567 = vadd.f32 %v6428, %v6439
          %v6568 = vadd.f32 %v6429, %v6435
          %v6569 = vadd.f32 %v6430, %v6439
          %v6570 = vld [vmem:[%s363] sm:$0xff]
          %v6571 = vld [vmem:[%s363 + $0x8] sm:$0xff]
          %v6572 = vld [vmem:[%s363 + $0x10] sm:$0xff]
          %v6573 = vld [vmem:[%s363 + $0x18] sm:$0xff]
          %v6574 = vld [vmem:[%s363 + $0x20] sm:$0xff]
          %v6575 = vld [vmem:[%s363 + $0x28] sm:$0xff]
          %v6576 = vld [vmem:[%s363 + $0x30] sm:$0xff]
          %v6577 = vld [vmem:[%s363 + $0x38] sm:$0xff]
          %v6578 = vld [vmem:[%s363 + $0x40] sm:$0xff]
          %v6579 = vld [vmem:[%s363 + $0x48] sm:$0xff]
          %v6580 = vld [vmem:[%s363 + $0x50] sm:$0xff]
          %v6581 = vld [vmem:[%s363 + $0x58] sm:$0xff]
          %v6582 = vld [vmem:[%s363 + $0x60] sm:$0xff]
          %v6583 = vld [vmem:[%s363 + $0x68] sm:$0xff]
          %v6584 = vld [vmem:[%s363 + $0x70] sm:$0xff]
          %v6585 = vld [vmem:[%s363 + $0x78] sm:$0xff]
          %v6586 = vld [vmem:[%s363 + $0x80] sm:$0xff]
          %v6587 = vld [vmem:[%s363 + $0x88] sm:$0xff]
          %v6588 = vld [vmem:[%s363 + $0x90] sm:$0xff]
          %v6589 = vld [vmem:[%s363 + $0x98] sm:$0xff]
          %v6590 = vld [vmem:[%s363 + $0xa0] sm:$0xff]
          %v6591 = vld [vmem:[%s363 + $0xa8] sm:$0xff]
          %v6592 = vld [vmem:[%s363 + $0xb0] sm:$0xff]
          %v6593 = vld [vmem:[%s363 + $0xb8] sm:$0xff]
          %v6594 = vld [vmem:[%s363 + $0xc0] sm:$0xff]
          %v6595 = vld [vmem:[%s363 + $0xc8] sm:$0xff]
          %v6596 = vld [vmem:[%s363 + $0xd0] sm:$0xff]
          %v6597 = vld [vmem:[%s363 + $0xd8] sm:$0xff]
          %v6598 = vld [vmem:[%s363 + $0xe0] sm:$0xff]
          %v6599 = vld [vmem:[%s363 + $0xe8] sm:$0xff]
          %v6600 = vld [vmem:[%s363 + $0xf0] sm:$0xff]
          %v6601 = vld [vmem:[%s363 + $0xf8] sm:$0xff]
          %v6602 = vld [vmem:[%s363 + $0x100] sm:$0xff]
          %v6603 = vld [vmem:[%s363 + $0x108] sm:$0xff]
          %v6604 = vld [vmem:[%s363 + $0x110] sm:$0xff]
          %v6605 = vld [vmem:[%s363 + $0x118] sm:$0xff]
          %v6606 = vld [vmem:[%s363 + $0x120] sm:$0xff]
          %v6607 = vld [vmem:[%s363 + $0x128] sm:$0xff]
          %v6608 = vld [vmem:[%s363 + $0x130] sm:$0xff]
          %v6609 = vld [vmem:[%s363 + $0x138] sm:$0xff]
          %v6610 = vld [vmem:[%s363 + $0x140] sm:$0xff]
          %v6611 = vld [vmem:[%s363 + $0x148] sm:$0xff]
          %v6612 = vld [vmem:[%s363 + $0x150] sm:$0xff]
          %v6613 = vld [vmem:[%s363 + $0x158] sm:$0xff]
          %v6614 = vld [vmem:[%s363 + $0x160] sm:$0xff]
          %v6615 = vld [vmem:[%s363 + $0x168] sm:$0xff]
          %v6616 = vld [vmem:[%s363 + $0x170] sm:$0xff]
          %v6617 = vld [vmem:[%s363 + $0x178] sm:$0xff]
          %v6618 = vld [vmem:[%s363 + $0x180] sm:$0xff]
          %v6619 = vld [vmem:[%s363 + $0x188] sm:$0xff]
          %v6620 = vld [vmem:[%s363 + $0x190] sm:$0xff]
          %v6621 = vld [vmem:[%s363 + $0x198] sm:$0xff]
          %v6622 = vld [vmem:[%s363 + $0x1a0] sm:$0xff]
          %v6623 = vld [vmem:[%s363 + $0x1a8] sm:$0xff]
          %v6624 = vld [vmem:[%s363 + $0x1b0] sm:$0xff]
          %v6625 = vld [vmem:[%s363 + $0x1b8] sm:$0xff]
          %v6626 = vld [vmem:[%s363 + $0x1c0] sm:$0xff]
          %v6627 = vld [vmem:[%s363 + $0x1c8] sm:$0xff]
          %v6628 = vld [vmem:[%s363 + $0x1d0] sm:$0xff]
          %v6629 = vld [vmem:[%s363 + $0x1d8] sm:$0xff]
          %v6630 = vld [vmem:[%s363 + $0x1e0] sm:$0xff]
          %v6631 = vld [vmem:[%s363 + $0x1e8] sm:$0xff]
          %v6632 = vld [vmem:[%s363 + $0x1f0] sm:$0xff]
          %v6633 = vld [vmem:[%s363 + $0x1f8] sm:$0xff]
          %v6634 = vunpack.c.l.bf16 %v6570
          %v6635 = vunpack.c.h.bf16 %v6570
          %v6636 = vunpack.c.l.bf16 %v6571
          %v6637 = vunpack.c.h.bf16 %v6571
          %v6638 = vunpack.c.l.bf16 %v6572
          %v6639 = vunpack.c.h.bf16 %v6572
          %v6640 = vunpack.c.l.bf16 %v6573
          %v6641 = vunpack.c.h.bf16 %v6573
          %v6642 = vunpack.c.l.bf16 %v6574
          %v6643 = vunpack.c.h.bf16 %v6574
          %v6644 = vunpack.c.l.bf16 %v6575
          %v6645 = vunpack.c.h.bf16 %v6575
          %v6646 = vunpack.c.l.bf16 %v6576
          %v6647 = vunpack.c.h.bf16 %v6576
          %v6648 = vunpack.c.l.bf16 %v6577
          %v6649 = vunpack.c.h.bf16 %v6577
          %v6650 = vunpack.c.l.bf16 %v6578
          %v6651 = vunpack.c.h.bf16 %v6578
          %v6652 = vunpack.c.l.bf16 %v6579
          %v6653 = vunpack.c.h.bf16 %v6579
          %v6654 = vunpack.c.l.bf16 %v6580
          %v6655 = vunpack.c.h.bf16 %v6580
          %v6656 = vunpack.c.l.bf16 %v6581
          %v6657 = vunpack.c.h.bf16 %v6581
          %v6658 = vunpack.c.l.bf16 %v6582
          %v6659 = vunpack.c.h.bf16 %v6582
          %v6660 = vunpack.c.l.bf16 %v6583
          %v6661 = vunpack.c.h.bf16 %v6583
          %v6662 = vunpack.c.l.bf16 %v6584
          %v6663 = vunpack.c.h.bf16 %v6584
          %v6664 = vunpack.c.l.bf16 %v6585
          %v6665 = vunpack.c.h.bf16 %v6585
          %v6666 = vunpack.c.l.bf16 %v6586
          %v6667 = vunpack.c.h.bf16 %v6586
          %v6668 = vunpack.c.l.bf16 %v6587
          %v6669 = vunpack.c.h.bf16 %v6587
          %v6670 = vunpack.c.l.bf16 %v6588
          %v6671 = vunpack.c.h.bf16 %v6588
          %v6672 = vunpack.c.l.bf16 %v6589
          %v6673 = vunpack.c.h.bf16 %v6589
          %v6674 = vunpack.c.l.bf16 %v6590
          %v6675 = vunpack.c.h.bf16 %v6590
          %v6676 = vunpack.c.l.bf16 %v6591
          %v6677 = vunpack.c.h.bf16 %v6591
          %v6678 = vunpack.c.l.bf16 %v6592
          %v6679 = vunpack.c.h.bf16 %v6592
          %v6680 = vunpack.c.l.bf16 %v6593
          %v6681 = vunpack.c.h.bf16 %v6593
          %v6682 = vunpack.c.l.bf16 %v6594
          %v6683 = vunpack.c.h.bf16 %v6594
          %v6684 = vunpack.c.l.bf16 %v6595
          %v6685 = vunpack.c.h.bf16 %v6595
          %v6686 = vunpack.c.l.bf16 %v6596
          %v6687 = vunpack.c.h.bf16 %v6596
          %v6688 = vunpack.c.l.bf16 %v6597
          %v6689 = vunpack.c.h.bf16 %v6597
          %v6690 = vunpack.c.l.bf16 %v6598
          %v6691 = vunpack.c.h.bf16 %v6598
          %v6692 = vunpack.c.l.bf16 %v6599
          %v6693 = vunpack.c.h.bf16 %v6599
          %v6694 = vunpack.c.l.bf16 %v6600
          %v6695 = vunpack.c.h.bf16 %v6600
          %v6696 = vunpack.c.l.bf16 %v6601
          %v6697 = vunpack.c.h.bf16 %v6601
          %v6698 = vunpack.c.l.bf16 %v6602
          %v6699 = vunpack.c.h.bf16 %v6602
          %v6700 = vunpack.c.l.bf16 %v6603
          %v6701 = vunpack.c.h.bf16 %v6603
          %v6702 = vunpack.c.l.bf16 %v6604
          %v6703 = vunpack.c.h.bf16 %v6604
          %v6704 = vunpack.c.l.bf16 %v6605
          %v6705 = vunpack.c.h.bf16 %v6605
          %v6706 = vunpack.c.l.bf16 %v6606
          %v6707 = vunpack.c.h.bf16 %v6606
          %v6708 = vunpack.c.l.bf16 %v6607
          %v6709 = vunpack.c.h.bf16 %v6607
          %v6710 = vunpack.c.l.bf16 %v6608
          %v6711 = vunpack.c.h.bf16 %v6608
          %v6712 = vunpack.c.l.bf16 %v6609
          %v6713 = vunpack.c.h.bf16 %v6609
          %v6714 = vunpack.c.l.bf16 %v6610
          %v6715 = vunpack.c.h.bf16 %v6610
          %v6716 = vunpack.c.l.bf16 %v6611
          %v6717 = vunpack.c.h.bf16 %v6611
          %v6718 = vunpack.c.l.bf16 %v6612
          %v6719 = vunpack.c.h.bf16 %v6612
          %v6720 = vunpack.c.l.bf16 %v6613
          %v6721 = vunpack.c.h.bf16 %v6613
          %v6722 = vunpack.c.l.bf16 %v6614
          %v6723 = vunpack.c.h.bf16 %v6614
          %v6724 = vunpack.c.l.bf16 %v6615
          %v6725 = vunpack.c.h.bf16 %v6615
          %v6726 = vunpack.c.l.bf16 %v6616
          %v6727 = vunpack.c.h.bf16 %v6616
          %v6728 = vunpack.c.l.bf16 %v6617
          %v6729 = vunpack.c.h.bf16 %v6617
          %v6730 = vunpack.c.l.bf16 %v6618
          %v6731 = vunpack.c.h.bf16 %v6618
          %v6732 = vunpack.c.l.bf16 %v6619
          %v6733 = vunpack.c.h.bf16 %v6619
          %v6734 = vunpack.c.l.bf16 %v6620
          %v6735 = vunpack.c.h.bf16 %v6620
          %v6736 = vunpack.c.l.bf16 %v6621
          %v6737 = vunpack.c.h.bf16 %v6621
          %v6738 = vunpack.c.l.bf16 %v6622
          %v6739 = vunpack.c.h.bf16 %v6622
          %v6740 = vunpack.c.l.bf16 %v6623
          %v6741 = vunpack.c.h.bf16 %v6623
          %v6742 = vunpack.c.l.bf16 %v6624
          %v6743 = vunpack.c.h.bf16 %v6624
          %v6744 = vunpack.c.l.bf16 %v6625
          %v6745 = vunpack.c.h.bf16 %v6625
          %v6746 = vunpack.c.l.bf16 %v6626
          %v6747 = vunpack.c.h.bf16 %v6626
          %v6748 = vunpack.c.l.bf16 %v6627
          %v6749 = vunpack.c.h.bf16 %v6627
          %v6750 = vunpack.c.l.bf16 %v6628
          %v6751 = vunpack.c.h.bf16 %v6628
          %v6752 = vunpack.c.l.bf16 %v6629
          %v6753 = vunpack.c.h.bf16 %v6629
          %v6754 = vunpack.c.l.bf16 %v6630
          %v6755 = vunpack.c.h.bf16 %v6630
          %v6756 = vunpack.c.l.bf16 %v6631
          %v6757 = vunpack.c.h.bf16 %v6631
          %v6758 = vunpack.c.l.bf16 %v6632
          %v6759 = vunpack.c.h.bf16 %v6632
          %v6760 = vunpack.c.l.bf16 %v6633
          %v6761 = vunpack.c.h.bf16 %v6633
          %v6762 = vadd.f32 %v6442, %v6634
          %v6763 = vadd.f32 %v6443, %v6635
          %v6764 = vadd.f32 %v6444, %v6636
          %v6765 = vadd.f32 %v6445, %v6637
          %v6766 = vadd.f32 %v6446, %v6638
          %v6767 = vadd.f32 %v6447, %v6639
          %v6768 = vadd.f32 %v6448, %v6640
          %v6769 = vadd.f32 %v6449, %v6641
          %v6770 = vadd.f32 %v6450, %v6642
          %v6771 = vadd.f32 %v6451, %v6643
          %v6772 = vadd.f32 %v6452, %v6644
          %v6773 = vadd.f32 %v6453, %v6645
          %v6774 = vadd.f32 %v6454, %v6646
          %v6775 = vadd.f32 %v6455, %v6647
          %v6776 = vadd.f32 %v6456, %v6648
          %v6777 = vadd.f32 %v6457, %v6649
          %v6778 = vadd.f32 %v6458, %v6650
          %v6779 = vadd.f32 %v6459, %v6651
          %v6780 = vadd.f32 %v6460, %v6652
          %v6781 = vadd.f32 %v6461, %v6653
          %v6782 = vadd.f32 %v6462, %v6654
          %v6783 = vadd.f32 %v6463, %v6655
          %v6784 = vadd.f32 %v6464, %v6656
          %v6785 = vadd.f32 %v6465, %v6657
          %v6786 = vadd.f32 %v6466, %v6658
          %v6787 = vadd.f32 %v6467, %v6659
          %v6788 = vadd.f32 %v6468, %v6660
          %v6789 = vadd.f32 %v6469, %v6661
          %v6790 = vadd.f32 %v6470, %v6662
          %v6791 = vadd.f32 %v6471, %v6663
          %v6792 = vadd.f32 %v6472, %v6664
          %v6793 = vadd.f32 %v6473, %v6665
          %v6794 = vadd.f32 %v6474, %v6666
          %v6795 = vadd.f32 %v6475, %v6667
          %v6796 = vadd.f32 %v6476, %v6668
          %v6797 = vadd.f32 %v6477, %v6669
          %v6798 = vadd.f32 %v6478, %v6670
          %v6799 = vadd.f32 %v6479, %v6671
          %v6800 = vadd.f32 %v6480, %v6672
          %v6801 = vadd.f32 %v6481, %v6673
          %v6802 = vadd.f32 %v6482, %v6674
          %v6803 = vadd.f32 %v6483, %v6675
          %v6804 = vadd.f32 %v6484, %v6676
          %v6805 = vadd.f32 %v6485, %v6677
          %v6806 = vadd.f32 %v6486, %v6678
          %v6807 = vadd.f32 %v6487, %v6679
          %v6808 = vadd.f32 %v6488, %v6680
          %v6809 = vadd.f32 %v6489, %v6681
          %v6810 = vadd.f32 %v6490, %v6682
          %v6811 = vadd.f32 %v6491, %v6683
          %v6812 = vadd.f32 %v6492, %v6684
          %v6813 = vadd.f32 %v6493, %v6685
          %v6814 = vadd.f32 %v6494, %v6686
          %v6815 = vadd.f32 %v6495, %v6687
          %v6816 = vadd.f32 %v6496, %v6688
          %v6817 = vadd.f32 %v6497, %v6689
          %v6818 = vadd.f32 %v6498, %v6690
          %v6819 = vadd.f32 %v6499, %v6691
          %v6820 = vadd.f32 %v6500, %v6692
          %v6821 = vadd.f32 %v6501, %v6693
          %v6822 = vadd.f32 %v6502, %v6694
          %v6823 = vadd.f32 %v6503, %v6695
          %v6824 = vadd.f32 %v6504, %v6696
          %v6825 = vadd.f32 %v6505, %v6697
          %v6826 = vadd.f32 %v6506, %v6698
          %v6827 = vadd.f32 %v6507, %v6699
          %v6828 = vadd.f32 %v6508, %v6700
          %v6829 = vadd.f32 %v6509, %v6701
          %v6830 = vadd.f32 %v6510, %v6702
          %v6831 = vadd.f32 %v6511, %v6703
          %v6832 = vadd.f32 %v6512, %v6704
          %v6833 = vadd.f32 %v6513, %v6705
          %v6834 = vadd.f32 %v6514, %v6706
          %v6835 = vadd.f32 %v6515, %v6707
          %v6836 = vadd.f32 %v6516, %v6708
          %v6837 = vadd.f32 %v6517, %v6709
          %v6838 = vadd.f32 %v6518, %v6710
          %v6839 = vadd.f32 %v6519, %v6711
          %v6840 = vadd.f32 %v6520, %v6712
          %v6841 = vadd.f32 %v6521, %v6713
          %v6842 = vadd.f32 %v6522, %v6714
          %v6843 = vadd.f32 %v6523, %v6715
          %v6844 = vadd.f32 %v6524, %v6716
          %v6845 = vadd.f32 %v6525, %v6717
          %v6846 = vadd.f32 %v6526, %v6718
          %v6847 = vadd.f32 %v6527, %v6719
          %v6848 = vadd.f32 %v6528, %v6720
          %v6849 = vadd.f32 %v6529, %v6721
          %v6850 = vadd.f32 %v6530, %v6722
          %v6851 = vadd.f32 %v6531, %v6723
          %v6852 = vadd.f32 %v6532, %v6724
          %v6853 = vadd.f32 %v6533, %v6725
          %v6854 = vadd.f32 %v6534, %v6726
          %v6855 = vadd.f32 %v6535, %v6727
          %v6856 = vadd.f32 %v6536, %v6728
          %v6857 = vadd.f32 %v6537, %v6729
          %v6858 = vadd.f32 %v6538, %v6730
          %v6859 = vadd.f32 %v6539, %v6731
          %v6860 = vadd.f32 %v6540, %v6732
          %v6861 = vadd.f32 %v6541, %v6733
          %v6862 = vadd.f32 %v6542, %v6734
          %v6863 = vadd.f32 %v6543, %v6735
          %v6864 = vadd.f32 %v6544, %v6736
          %v6865 = vadd.f32 %v6545, %v6737
          %v6866 = vadd.f32 %v6546, %v6738
          %v6867 = vadd.f32 %v6547, %v6739
          %v6868 = vadd.f32 %v6548, %v6740
          %v6869 = vadd.f32 %v6549, %v6741
          %v6870 = vadd.f32 %v6550, %v6742
          %v6871 = vadd.f32 %v6551, %v6743
          %v6872 = vadd.f32 %v6552, %v6744
          %v6873 = vadd.f32 %v6553, %v6745
          %v6874 = vadd.f32 %v6554, %v6746
          %v6875 = vadd.f32 %v6555, %v6747
          %v6876 = vadd.f32 %v6556, %v6748
          %v6877 = vadd.f32 %v6557, %v6749
          %v6878 = vadd.f32 %v6558, %v6750
          %v6879 = vadd.f32 %v6559, %v6751
          %v6880 = vadd.f32 %v6560, %v6752
          %v6881 = vadd.f32 %v6561, %v6753
          %v6882 = vadd.f32 %v6562, %v6754
          %v6883 = vadd.f32 %v6563, %v6755
          %v6884 = vadd.f32 %v6564, %v6756
          %v6885 = vadd.f32 %v6565, %v6757
          %v6886 = vadd.f32 %v6566, %v6758
          %v6887 = vadd.f32 %v6567, %v6759
          %v6888 = vadd.f32 %v6568, %v6760
          %v6889 = vadd.f32 %v6569, %v6761
          %v6890 = vmax.f32 %v6762, 0.0
          %v6891 = vmax.f32 %v6763, 0.0
          %v6892 = vmax.f32 %v6764, 0.0
          %v6893 = vmax.f32 %v6765, 0.0
          %v6894 = vmax.f32 %v6766, 0.0
          %v6895 = vmax.f32 %v6767, 0.0
          %v6896 = vmax.f32 %v6768, 0.0
          %v6897 = vmax.f32 %v6769, 0.0
          %v6898 = vmax.f32 %v6770, 0.0
          %v6899 = vmax.f32 %v6771, 0.0
          %v6900 = vmax.f32 %v6772, 0.0
          %v6901 = vmax.f32 %v6773, 0.0
          %v6902 = vmax.f32 %v6774, 0.0
          %v6903 = vmax.f32 %v6775, 0.0
          %v6904 = vmax.f32 %v6776, 0.0
          %v6905 = vmax.f32 %v6777, 0.0
          %v6906 = vmax.f32 %v6778, 0.0
          %v6907 = vmax.f32 %v6779, 0.0
          %v6908 = vmax.f32 %v6780, 0.0
          %v6909 = vmax.f32 %v6781, 0.0
          %v6910 = vmax.f32 %v6782, 0.0
          %v6911 = vmax.f32 %v6783, 0.0
          %v6912 = vmax.f32 %v6784, 0.0
          %v6913 = vmax.f32 %v6785, 0.0
          %v6914 = vmax.f32 %v6786, 0.0
          %v6915 = vmax.f32 %v6787, 0.0
          %v6916 = vmax.f32 %v6788, 0.0
          %v6917 = vmax.f32 %v6789, 0.0
          %v6918 = vmax.f32 %v6790, 0.0
          %v6919 = vmax.f32 %v6791, 0.0
          %v6920 = vmax.f32 %v6792, 0.0
          %v6921 = vmax.f32 %v6793, 0.0
          %v6922 = vmax.f32 %v6794, 0.0
          %v6923 = vmax.f32 %v6795, 0.0
          %v6924 = vmax.f32 %v6796, 0.0
          %v6925 = vmax.f32 %v6797, 0.0
          %v6926 = vmax.f32 %v6798, 0.0
          %v6927 = vmax.f32 %v6799, 0.0
          %v6928 = vmax.f32 %v6800, 0.0
          %v6929 = vmax.f32 %v6801, 0.0
          %v6930 = vmax.f32 %v6802, 0.0
          %v6931 = vmax.f32 %v6803, 0.0
          %v6932 = vmax.f32 %v6804, 0.0
          %v6933 = vmax.f32 %v6805, 0.0
          %v6934 = vmax.f32 %v6806, 0.0
          %v6935 = vmax.f32 %v6807, 0.0
          %v6936 = vmax.f32 %v6808, 0.0
          %v6937 = vmax.f32 %v6809, 0.0
          %v6938 = vmax.f32 %v6810, 0.0
          %v6939 = vmax.f32 %v6811, 0.0
          %v6940 = vmax.f32 %v6812, 0.0
          %v6941 = vmax.f32 %v6813, 0.0
          %v6942 = vmax.f32 %v6814, 0.0
          %v6943 = vmax.f32 %v6815, 0.0
          %v6944 = vmax.f32 %v6816, 0.0
          %v6945 = vmax.f32 %v6817, 0.0
          %v6946 = vmax.f32 %v6818, 0.0
          %v6947 = vmax.f32 %v6819, 0.0
          %v6948 = vmax.f32 %v6820, 0.0
          %v6949 = vmax.f32 %v6821, 0.0
          %v6950 = vmax.f32 %v6822, 0.0
          %v6951 = vmax.f32 %v6823, 0.0
          %v6952 = vmax.f32 %v6824, 0.0
          %v6953 = vmax.f32 %v6825, 0.0
          %v6954 = vmax.f32 %v6826, 0.0
          %v6955 = vmax.f32 %v6827, 0.0
          %v6956 = vmax.f32 %v6828, 0.0
          %v6957 = vmax.f32 %v6829, 0.0
          %v6958 = vmax.f32 %v6830, 0.0
          %v6959 = vmax.f32 %v6831, 0.0
          %v6960 = vmax.f32 %v6832, 0.0
          %v6961 = vmax.f32 %v6833, 0.0
          %v6962 = vmax.f32 %v6834, 0.0
          %v6963 = vmax.f32 %v6835, 0.0
          %v6964 = vmax.f32 %v6836, 0.0
          %v6965 = vmax.f32 %v6837, 0.0
          %v6966 = vmax.f32 %v6838, 0.0
          %v6967 = vmax.f32 %v6839, 0.0
          %v6968 = vmax.f32 %v6840, 0.0
          %v6969 = vmax.f32 %v6841, 0.0
          %v6970 = vmax.f32 %v6842, 0.0
          %v6971 = vmax.f32 %v6843, 0.0
          %v6972 = vmax.f32 %v6844, 0.0
          %v6973 = vmax.f32 %v6845, 0.0
          %v6974 = vmax.f32 %v6846, 0.0
          %v6975 = vmax.f32 %v6847, 0.0
          %v6976 = vmax.f32 %v6848, 0.0
          %v6977 = vmax.f32 %v6849, 0.0
          %v6978 = vmax.f32 %v6850, 0.0
          %v6979 = vmax.f32 %v6851, 0.0
          %v6980 = vmax.f32 %v6852, 0.0
          %v6981 = vmax.f32 %v6853, 0.0
          %v6982 = vmax.f32 %v6854, 0.0
          %v6983 = vmax.f32 %v6855, 0.0
          %v6984 = vmax.f32 %v6856, 0.0
          %v6985 = vmax.f32 %v6857, 0.0
          %v6986 = vmax.f32 %v6858, 0.0
          %v6987 = vmax.f32 %v6859, 0.0
          %v6988 = vmax.f32 %v6860, 0.0
          %v6989 = vmax.f32 %v6861, 0.0
          %v6990 = vmax.f32 %v6862, 0.0
          %v6991 = vmax.f32 %v6863, 0.0
          %v6992 = vmax.f32 %v6864, 0.0
          %v6993 = vmax.f32 %v6865, 0.0
          %v6994 = vmax.f32 %v6866, 0.0
          %v6995 = vmax.f32 %v6867, 0.0
          %v6996 = vmax.f32 %v6868, 0.0
          %v6997 = vmax.f32 %v6869, 0.0
          %v6998 = vmax.f32 %v6870, 0.0
          %v6999 = vmax.f32 %v6871, 0.0
          %v7000 = vmax.f32 %v6872, 0.0
          %v7001 = vmax.f32 %v6873, 0.0
          %v7002 = vmax.f32 %v6874, 0.0
          %v7003 = vmax.f32 %v6875, 0.0
          %v7004 = vmax.f32 %v6876, 0.0
          %v7005 = vmax.f32 %v6877, 0.0
          %v7006 = vmax.f32 %v6878, 0.0
          %v7007 = vmax.f32 %v6879, 0.0
          %v7008 = vmax.f32 %v6880, 0.0
          %v7009 = vmax.f32 %v6881, 0.0
          %v7010 = vmax.f32 %v6882, 0.0
          %v7011 = vmax.f32 %v6883, 0.0
          %v7012 = vmax.f32 %v6884, 0.0
          %v7013 = vmax.f32 %v6885, 0.0
          %v7014 = vmax.f32 %v6886, 0.0
          %v7015 = vmax.f32 %v6887, 0.0
          %v7016 = vmax.f32 %v6888, 0.0
          %v7017 = vmax.f32 %v6889, 0.0
          %v7018 = vpack.c.bf16 %v6892, %v6890
          %v7019 = vpack.c.bf16 %v6893, %v6891
          %v7020 = vpack.c.bf16 %v6896, %v6894
          %v7021 = vpack.c.bf16 %v6897, %v6895
          %v7022 = vpack.c.bf16 %v6900, %v6898
          %v7023 = vpack.c.bf16 %v6901, %v6899
          %v7024 = vpack.c.bf16 %v6904, %v6902
          %v7025 = vpack.c.bf16 %v6905, %v6903
          %v7026 = vpack.c.bf16 %v6908, %v6906
          %v7027 = vpack.c.bf16 %v6909, %v6907
          %v7028 = vpack.c.bf16 %v6912, %v6910
          %v7029 = vpack.c.bf16 %v6913, %v6911
          %v7030 = vpack.c.bf16 %v6916, %v6914
          %v7031 = vpack.c.bf16 %v6917, %v6915
          %v7032 = vpack.c.bf16 %v6920, %v6918
          %v7033 = vpack.c.bf16 %v6921, %v6919
          %v7034 = vpack.c.bf16 %v6924, %v6922
          %v7035 = vpack.c.bf16 %v6925, %v6923
          %v7036 = vpack.c.bf16 %v6928, %v6926
          %v7037 = vpack.c.bf16 %v6929, %v6927
          %v7038 = vpack.c.bf16 %v6932, %v6930
          %v7039 = vpack.c.bf16 %v6933, %v6931
          %v7040 = vpack.c.bf16 %v6936, %v6934
          %v7041 = vpack.c.bf16 %v6937, %v6935
          %v7042 = vpack.c.bf16 %v6940, %v6938
          %v7043 = vpack.c.bf16 %v6941, %v6939
          %v7044 = vpack.c.bf16 %v6944, %v6942
          %v7045 = vpack.c.bf16 %v6945, %v6943
          %v7046 = vpack.c.bf16 %v6948, %v6946
          %v7047 = vpack.c.bf16 %v6949, %v6947
          %v7048 = vpack.c.bf16 %v6952, %v6950
          %v7049 = vpack.c.bf16 %v6953, %v6951
          %v7050 = vpack.c.bf16 %v6956, %v6954
          %v7051 = vpack.c.bf16 %v6957, %v6955
          %v7052 = vpack.c.bf16 %v6960, %v6958
          %v7053 = vpack.c.bf16 %v6961, %v6959
          %v7054 = vpack.c.bf16 %v6964, %v6962
          %v7055 = vpack.c.bf16 %v6965, %v6963
          %v7056 = vpack.c.bf16 %v6968, %v6966
          %v7057 = vpack.c.bf16 %v6969, %v6967
          %v7058 = vpack.c.bf16 %v6972, %v6970
          %v7059 = vpack.c.bf16 %v6973, %v6971
          %v7060 = vpack.c.bf16 %v6976, %v6974
          %v7061 = vpack.c.bf16 %v6977, %v6975
          %v7062 = vpack.c.bf16 %v6980, %v6978
          %v7063 = vpack.c.bf16 %v6981, %v6979
          %v7064 = vpack.c.bf16 %v6984, %v6982
          %v7065 = vpack.c.bf16 %v6985, %v6983
          %v7066 = vpack.c.bf16 %v6988, %v6986
          %v7067 = vpack.c.bf16 %v6989, %v6987
          %v7068 = vpack.c.bf16 %v6992, %v6990
          %v7069 = vpack.c.bf16 %v6993, %v6991
          %v7070 = vpack.c.bf16 %v6996, %v6994
          %v7071 = vpack.c.bf16 %v6997, %v6995
          %v7072 = vpack.c.bf16 %v7000, %v6998
          %v7073 = vpack.c.bf16 %v7001, %v6999
          %v7074 = vpack.c.bf16 %v7004, %v7002
          %v7075 = vpack.c.bf16 %v7005, %v7003
          %v7076 = vpack.c.bf16 %v7008, %v7006
          %v7077 = vpack.c.bf16 %v7009, %v7007
          %v7078 = vpack.c.bf16 %v7012, %v7010
          %v7079 = vpack.c.bf16 %v7013, %v7011
          %v7080 = vpack.c.bf16 %v7016, %v7014
          %v7081 = vpack.c.bf16 %v7017, %v7015
          %v7146 = vunpack.c.l.b16 %v7018
          %v7147 = vunpack.c.l.b16 %v7019
          %v7148 = vunpack.c.h.b16 %v7018
          %v7149 = vunpack.c.h.b16 %v7019
          %v7150 = vunpack.c.l.b16 %v7020
          %v7151 = vunpack.c.l.b16 %v7021
          %v7152 = vunpack.c.h.b16 %v7020
          %v7153 = vunpack.c.h.b16 %v7021
          %v7154 = vunpack.c.l.b16 %v7022
          %v7155 = vunpack.c.l.b16 %v7023
          %v7156 = vunpack.c.h.b16 %v7022
          %v7157 = vunpack.c.h.b16 %v7023
          %v7158 = vunpack.c.l.b16 %v7024
          %v7159 = vunpack.c.l.b16 %v7025
          %v7160 = vunpack.c.h.b16 %v7024
          %v7161 = vunpack.c.h.b16 %v7025
          %v7162 = vunpack.c.l.b16 %v7026
          %v7163 = vunpack.c.l.b16 %v7027
          %v7164 = vunpack.c.h.b16 %v7026
          %v7165 = vunpack.c.h.b16 %v7027
          %v7166 = vunpack.c.l.b16 %v7028
          %v7167 = vunpack.c.l.b16 %v7029
          %v7168 = vunpack.c.h.b16 %v7028
          %v7169 = vunpack.c.h.b16 %v7029
          %v7170 = vunpack.c.l.b16 %v7030
          %v7171 = vunpack.c.l.b16 %v7031
          %v7172 = vunpack.c.h.b16 %v7030
          %v7173 = vunpack.c.h.b16 %v7031
          %v7174 = vunpack.c.l.b16 %v7032
          %v7175 = vunpack.c.l.b16 %v7033
          %v7176 = vunpack.c.h.b16 %v7032
          %v7177 = vunpack.c.h.b16 %v7033
          %v7178 = vunpack.c.l.b16 %v7034
          %v7179 = vunpack.c.l.b16 %v7035
          %v7180 = vunpack.c.h.b16 %v7034
          %v7181 = vunpack.c.h.b16 %v7035
          %v7182 = vunpack.c.l.b16 %v7036
          %v7183 = vunpack.c.l.b16 %v7037
          %v7184 = vunpack.c.h.b16 %v7036
          %v7185 = vunpack.c.h.b16 %v7037
          %v7186 = vunpack.c.l.b16 %v7038
          %v7187 = vunpack.c.l.b16 %v7039
          %v7188 = vunpack.c.h.b16 %v7038
          %v7189 = vunpack.c.h.b16 %v7039
          %v7190 = vunpack.c.l.b16 %v7040
          %v7191 = vunpack.c.l.b16 %v7041
          %v7192 = vunpack.c.h.b16 %v7040
          %v7193 = vunpack.c.h.b16 %v7041
          %v7194 = vunpack.c.l.b16 %v7042
          %v7195 = vunpack.c.l.b16 %v7043
          %v7196 = vunpack.c.h.b16 %v7042
          %v7197 = vunpack.c.h.b16 %v7043
          %v7198 = vunpack.c.l.b16 %v7044
          %v7199 = vunpack.c.l.b16 %v7045
          %v7200 = vunpack.c.h.b16 %v7044
          %v7201 = vunpack.c.h.b16 %v7045
          %v7202 = vunpack.c.l.b16 %v7046
          %v7203 = vunpack.c.l.b16 %v7047
          %v7204 = vunpack.c.h.b16 %v7046
          %v7205 = vunpack.c.h.b16 %v7047
          %v7206 = vunpack.c.l.b16 %v7048
          %v7207 = vunpack.c.l.b16 %v7049
          %v7208 = vunpack.c.h.b16 %v7048
          %v7209 = vunpack.c.h.b16 %v7049
          %v7210 = vunpack.c.l.b16 %v7050
          %v7211 = vunpack.c.l.b16 %v7051
          %v7212 = vunpack.c.h.b16 %v7050
          %v7213 = vunpack.c.h.b16 %v7051
          %v7214 = vunpack.c.l.b16 %v7052
          %v7215 = vunpack.c.l.b16 %v7053
          %v7216 = vunpack.c.h.b16 %v7052
          %v7217 = vunpack.c.h.b16 %v7053
          %v7218 = vunpack.c.l.b16 %v7054
          %v7219 = vunpack.c.l.b16 %v7055
          %v7220 = vunpack.c.h.b16 %v7054
          %v7221 = vunpack.c.h.b16 %v7055
          %v7222 = vunpack.c.l.b16 %v7056
          %v7223 = vunpack.c.l.b16 %v7057
          %v7224 = vunpack.c.h.b16 %v7056
          %v7225 = vunpack.c.h.b16 %v7057
          %v7226 = vunpack.c.l.b16 %v7058
          %v7227 = vunpack.c.l.b16 %v7059
          %v7228 = vunpack.c.h.b16 %v7058
          %v7229 = vunpack.c.h.b16 %v7059
          %v7230 = vunpack.c.l.b16 %v7060
          %v7231 = vunpack.c.l.b16 %v7061
          %v7232 = vunpack.c.h.b16 %v7060
          %v7233 = vunpack.c.h.b16 %v7061
          %v7234 = vunpack.c.l.b16 %v7062
          %v7235 = vunpack.c.l.b16 %v7063
          %v7236 = vunpack.c.h.b16 %v7062
          %v7237 = vunpack.c.h.b16 %v7063
          %v7238 = vunpack.c.l.b16 %v7064
          %v7239 = vunpack.c.l.b16 %v7065
          %v7240 = vunpack.c.h.b16 %v7064
          %v7241 = vunpack.c.h.b16 %v7065
          %v7242 = vunpack.c.l.b16 %v7066
          %v7243 = vunpack.c.l.b16 %v7067
          %v7244 = vunpack.c.h.b16 %v7066
          %v7245 = vunpack.c.h.b16 %v7067
          %v7246 = vunpack.c.l.b16 %v7068
          %v7247 = vunpack.c.l.b16 %v7069
          %v7248 = vunpack.c.h.b16 %v7068
          %v7249 = vunpack.c.h.b16 %v7069
          %v7250 = vunpack.c.l.b16 %v7070
          %v7251 = vunpack.c.l.b16 %v7071
          %v7252 = vunpack.c.h.b16 %v7070
          %v7253 = vunpack.c.h.b16 %v7071
          %v7254 = vunpack.c.l.b16 %v7072
          %v7255 = vunpack.c.l.b16 %v7073
          %v7256 = vunpack.c.h.b16 %v7072
          %v7257 = vunpack.c.h.b16 %v7073
          %v7258 = vunpack.c.l.b16 %v7074
          %v7259 = vunpack.c.l.b16 %v7075
          %v7260 = vunpack.c.h.b16 %v7074
          %v7261 = vunpack.c.h.b16 %v7075
          %v7262 = vunpack.c.l.b16 %v7076
          %v7263 = vunpack.c.l.b16 %v7077
          %v7264 = vunpack.c.h.b16 %v7076
          %v7265 = vunpack.c.h.b16 %v7077
          %v7266 = vunpack.c.l.b16 %v7078
          %v7267 = vunpack.c.l.b16 %v7079
          %v7268 = vunpack.c.h.b16 %v7078
          %v7269 = vunpack.c.h.b16 %v7079
          %v7270 = vunpack.c.l.b16 %v7080
          %v7271 = vunpack.c.l.b16 %v7081
          %v7272 = vunpack.c.h.b16 %v7080
          %v7273 = vunpack.c.h.b16 %v7081
          %v7274 = vpack.c.b16 %v7147, %v7146
          %v7275 = vpack.c.b16 %v7149, %v7148
          %v7276 = vpack.c.b16 %v7151, %v7150
          %v7277 = vpack.c.b16 %v7153, %v7152
          %v7278 = vpack.c.b16 %v7155, %v7154
          %v7279 = vpack.c.b16 %v7157, %v7156
          %v7280 = vpack.c.b16 %v7159, %v7158
          %v7281 = vpack.c.b16 %v7161, %v7160
          %v7282 = vpack.c.b16 %v7163, %v7162
          %v7283 = vpack.c.b16 %v7165, %v7164
          %v7284 = vpack.c.b16 %v7167, %v7166
          %v7285 = vpack.c.b16 %v7169, %v7168
          %v7286 = vpack.c.b16 %v7171, %v7170
          %v7287 = vpack.c.b16 %v7173, %v7172
          %v7288 = vpack.c.b16 %v7175, %v7174
          %v7289 = vpack.c.b16 %v7177, %v7176
          %v7290 = vpack.c.b16 %v7179, %v7178
          %v7291 = vpack.c.b16 %v7181, %v7180
          %v7292 = vpack.c.b16 %v7183, %v7182
          %v7293 = vpack.c.b16 %v7185, %v7184
          %v7294 = vpack.c.b16 %v7187, %v7186
          %v7295 = vpack.c.b16 %v7189, %v7188
          %v7296 = vpack.c.b16 %v7191, %v7190
          %v7297 = vpack.c.b16 %v7193, %v7192
          %v7298 = vpack.c.b16 %v7195, %v7194
          %v7299 = vpack.c.b16 %v7197, %v7196
          %v7300 = vpack.c.b16 %v7199, %v7198
          %v7301 = vpack.c.b16 %v7201, %v7200
          %v7302 = vpack.c.b16 %v7203, %v7202
          %v7303 = vpack.c.b16 %v7205, %v7204
          %v7304 = vpack.c.b16 %v7207, %v7206
          %v7305 = vpack.c.b16 %v7209, %v7208
          %v7306 = vpack.c.b16 %v7211, %v7210
          %v7307 = vpack.c.b16 %v7213, %v7212
          %v7308 = vpack.c.b16 %v7215, %v7214
          %v7309 = vpack.c.b16 %v7217, %v7216
          %v7310 = vpack.c.b16 %v7219, %v7218
          %v7311 = vpack.c.b16 %v7221, %v7220
          %v7312 = vpack.c.b16 %v7223, %v7222
          %v7313 = vpack.c.b16 %v7225, %v7224
          %v7314 = vpack.c.b16 %v7227, %v7226
          %v7315 = vpack.c.b16 %v7229, %v7228
          %v7316 = vpack.c.b16 %v7231, %v7230
          %v7317 = vpack.c.b16 %v7233, %v7232
          %v7318 = vpack.c.b16 %v7235, %v7234
          %v7319 = vpack.c.b16 %v7237, %v7236
          %v7320 = vpack.c.b16 %v7239, %v7238
          %v7321 = vpack.c.b16 %v7241, %v7240
          %v7322 = vpack.c.b16 %v7243, %v7242
          %v7323 = vpack.c.b16 %v7245, %v7244
          %v7324 = vpack.c.b16 %v7247, %v7246
          %v7325 = vpack.c.b16 %v7249, %v7248
          %v7326 = vpack.c.b16 %v7251, %v7250
          %v7327 = vpack.c.b16 %v7253, %v7252
          %v7328 = vpack.c.b16 %v7255, %v7254
          %v7329 = vpack.c.b16 %v7257, %v7256
          %v7330 = vpack.c.b16 %v7259, %v7258
          %v7331 = vpack.c.b16 %v7261, %v7260
          %v7332 = vpack.c.b16 %v7263, %v7262
          %v7333 = vpack.c.b16 %v7265, %v7264
          %v7334 = vpack.c.b16 %v7267, %v7266
          %v7335 = vpack.c.b16 %v7269, %v7268
          %v7336 = vpack.c.b16 %v7271, %v7270
          %v7337 = vpack.c.b16 %v7273, %v7272
          %7402 = vst [vmem:[%s409] sm:$0xff] %v7274
          %7403 = vst [vmem:[%s409 + $0x8] sm:$0xff] %v7275
          %7404 = vst [vmem:[%s409 + $0x10] sm:$0xff] %v7276
          %7405 = vst [vmem:[%s409 + $0x18] sm:$0xff] %v7277
          %7406 = vst [vmem:[%s409 + $0x20] sm:$0xff] %v7278
          %7407 = vst [vmem:[%s409 + $0x28] sm:$0xff] %v7279
          %7408 = vst [vmem:[%s409 + $0x30] sm:$0xff] %v7280
          %7409 = vst [vmem:[%s409 + $0x38] sm:$0xff] %v7281
          %7410 = vst [vmem:[%s409 + $0x40] sm:$0xff] %v7282
          %7411 = vst [vmem:[%s409 + $0x48] sm:$0xff] %v7283
          %7412 = vst [vmem:[%s409 + $0x50] sm:$0xff] %v7284
          %7413 = vst [vmem:[%s409 + $0x58] sm:$0xff] %v7285
          %7414 = vst [vmem:[%s409 + $0x60] sm:$0xff] %v7286
          %7415 = vst [vmem:[%s409 + $0x68] sm:$0xff] %v7287
          %7416 = vst [vmem:[%s409 + $0x70] sm:$0xff] %v7288
          %7417 = vst [vmem:[%s409 + $0x78] sm:$0xff] %v7289
          %7418 = vst [vmem:[%s409 + $0x80] sm:$0xff] %v7290
          %7419 = vst [vmem:[%s409 + $0x88] sm:$0xff] %v7291
          %7420 = vst [vmem:[%s409 + $0x90] sm:$0xff] %v7292
          %7421 = vst [vmem:[%s409 + $0x98] sm:$0xff] %v7293
          %7422 = vst [vmem:[%s409 + $0xa0] sm:$0xff] %v7294
          %7423 = vst [vmem:[%s409 + $0xa8] sm:$0xff] %v7295
          %7424 = vst [vmem:[%s409 + $0xb0] sm:$0xff] %v7296
          %7425 = vst [vmem:[%s409 + $0xb8] sm:$0xff] %v7297
          %7426 = vst [vmem:[%s409 + $0xc0] sm:$0xff] %v7298
          %7427 = vst [vmem:[%s409 + $0xc8] sm:$0xff] %v7299
          %7428 = vst [vmem:[%s409 + $0xd0] sm:$0xff] %v7300
          %7429 = vst [vmem:[%s409 + $0xd8] sm:$0xff] %v7301
          %7430 = vst [vmem:[%s409 + $0xe0] sm:$0xff] %v7302
          %7431 = vst [vmem:[%s409 + $0xe8] sm:$0xff] %v7303
          %7432 = vst [vmem:[%s409 + $0xf0] sm:$0xff] %v7304
          %7433 = vst [vmem:[%s409 + $0xf8] sm:$0xff] %v7305
          %7434 = vst [vmem:[%s409 + $0x100] sm:$0xff] %v7306
          %7435 = vst [vmem:[%s409 + $0x108] sm:$0xff] %v7307
          %7436 = vst [vmem:[%s409 + $0x110] sm:$0xff] %v7308
          %7437 = vst [vmem:[%s409 + $0x118] sm:$0xff] %v7309
          %7438 = vst [vmem:[%s409 + $0x120] sm:$0xff] %v7310
          %7439 = vst [vmem:[%s409 + $0x128] sm:$0xff] %v7311
          %7440 = vst [vmem:[%s409 + $0x130] sm:$0xff] %v7312
          %7441 = vst [vmem:[%s409 + $0x138] sm:$0xff] %v7313
          %7442 = vst [vmem:[%s409 + $0x140] sm:$0xff] %v7314
          %7443 = vst [vmem:[%s409 + $0x148] sm:$0xff] %v7315
          %7444 = vst [vmem:[%s409 + $0x150] sm:$0xff] %v7316
          %7445 = vst [vmem:[%s409 + $0x158] sm:$0xff] %v7317
          %7446 = vst [vmem:[%s409 + $0x160] sm:$0xff] %v7318
          %7447 = vst [vmem:[%s409 + $0x168] sm:$0xff] %v7319
          %7448 = vst [vmem:[%s409 + $0x170] sm:$0xff] %v7320
          %7449 = vst [vmem:[%s409 + $0x178] sm:$0xff] %v7321
          %7450 = vst [vmem:[%s409 + $0x180] sm:$0xff] %v7322
          %7451 = vst [vmem:[%s409 + $0x188] sm:$0xff] %v7323
          %7452 = vst [vmem:[%s409 + $0x190] sm:$0xff] %v7324
          %7453 = vst [vmem:[%s409 + $0x198] sm:$0xff] %v7325
          %7454 = vst [vmem:[%s409 + $0x1a0] sm:$0xff] %v7326
          %7455 = vst [vmem:[%s409 + $0x1a8] sm:$0xff] %v7327
          %7456 = vst [vmem:[%s409 + $0x1b0] sm:$0xff] %v7328
          %7457 = vst [vmem:[%s409 + $0x1b8] sm:$0xff] %v7329
          %7458 = vst [vmem:[%s409 + $0x1c0] sm:$0xff] %v7330
          %7459 = vst [vmem:[%s409 + $0x1c8] sm:$0xff] %v7331
          %7460 = vst [vmem:[%s409 + $0x1d0] sm:$0xff] %v7332
          %7461 = vst [vmem:[%s409 + $0x1d8] sm:$0xff] %v7333
          %7462 = vst [vmem:[%s409 + $0x1e0] sm:$0xff] %v7334
          %7463 = vst [vmem:[%s409 + $0x1e8] sm:$0xff] %v7335
          %7464 = vst [vmem:[%s409 + $0x1f0] sm:$0xff] %v7336
          %7465 = vst [vmem:[%s409 + $0x1f8] sm:$0xff] %v7337
        $region68: #{tpu_custom_call.1} parent=39 // pred_fallthru
          _
        %s7466 = sand.u32 %s180, 1
        %s7467 = scalar_lea.sflag [#allocation5], %s7466
        %s7468 = sand.u32 %s180, 1
        %s7469 = smul.addr %s7468, 512
        %s7470 = scalar_lea.vmem [#allocation12], %s7469
        // Predicated region
        $region69: #{tpu_custom_call.1} parent=39 // pred_check
          %p7471 = pneg %p190
        $region70: #{tpu_custom_call.1} parent=39 // pred_check_branch
          %7473 = sbr.rel (%p7471) target = $region72
        $region71: #{tpu_custom_call.1} parent=39 // pred_region
          %s7474 = smul.u32 2, %s32
          %s7476 = ssub.s32 8192, 8192
          %7477 = vsyncadd %s7467, %s7476
          %s7478 = smul.addr %s7474, 64
          %s7479 = scalar_lea.hbm %s5, %s7478
          %s7480 = sshll.u32 %s7470, 4
          %s7481 = int_to_ptr.vmem [resolvable:$true] %s7480
          %7486 = dma.vmem_to_hbm [thread:$0]  %s7481, 8192, %s7479, %s7467, 128, 256, 8
        $region72: #{tpu_custom_call.1} parent=39 // pred_fallthru
          _
      $region40: #{tpu_custom_call.1} parent=5 // pred_fallthru
        _
      %p7487 = scmp.le.s32.totalorder 2, %s23
      // Predicated region
      $region73: #{tpu_custom_call.1} parent=5 // pred_check
        %p7488 = pneg %p7487
      $region74: #{tpu_custom_call.1} parent=5 // pred_check_branch
        %7490 = sbr.rel (%p7488) target = $region76
      $region75: #{tpu_custom_call.1} parent=5 // pred_region
        %s7491 = ssub.s32 %s23, 2
        // Predicated region
        $region77: #{tpu_custom_call.1} parent=75 // pred_check
          %p7492 = pneg %p196
        $region78: #{tpu_custom_call.1} parent=75 // pred_check_branch
          %7494 = sbr.rel (%p7492) target = $region80
        $region79: #{tpu_custom_call.1} parent=75 // pred_region
          %s7495 = sand.u32 %s181, 1
          %s7496 = scalar_lea.sflag [#allocation5], %s7495
          %s7497 = sand.u32 %s181, 1
          %s7498 = smul.addr %s7497, 512
          %s7499 = scalar_lea.vmem [#allocation12], %s7498
          %7500 = dma.done %s7496, 8192
        $region80: #{tpu_custom_call.1} parent=75 // pred_fallthru
          _
      $region76: #{tpu_custom_call.1} parent=5 // pred_fallthru
        _
    $region6: #{tpu_custom_call.1} parent=1 // loop_footer
      %s27 = sadd.s32 1, %s23
    $region7: #{tpu_custom_call.1} parent=1 // loop_footer_branch
      %22 = sbr.rel target = $region3
    $region8: #{tpu_custom_call.1} parent=1 // loop_exit
      _
    %7501 = vsyncpa [#allocation4], 1
    %s7502 = scalar_lea.sflag [#allocation4], 1
    %7503 = vsyncpa %s7502, 1
    %7504 = vsyncpa [#allocation7], 1
    %s7505 = scalar_lea.sflag [#allocation7], 1
    %7506 = vsyncpa %s7505, 1
    %7507 = vsyncpa [#allocation10], 1
    %s7508 = scalar_lea.sflag [#allocation10], 1
    %7509 = vsyncpa %s7508, 1
    %7510 = vsyncpa [#allocation5], 1
    %s7511 = scalar_lea.sflag [#allocation5], 1
    %7512 = vsyncpa %s7511, 1

</llo_original>
